<compile_context>
chip_gen: v7x
topology: tpu7x:2x2x1
jax: 0.10.0
libtpu: 0.0.40
codegen_flags: <defaults>
</compile_context>

<pallas_src>
import functools

import jax
import jax.numpy as jnp
from jax import lax
from jax.experimental import pallas as pl
from jax.experimental.pallas import tpu as pltpu


# ----------------------------------------------------------------------------------
# Kernel A: fused  LeakyReLU -> Conv2d(4x4, s2, p1) -> ReLU -> ConvTranspose2d(4x4, s2, p1)
#           (per image; also emits per-image BatchNorm partial statistics)
# ----------------------------------------------------------------------------------
def _down_up_kernel(x_ph_ref, wd_ref, wu_ref, y_ph_ref, stats_ref, hpad_ref, *,
                    ho, wo, inner_nc, outer_nc):
    """
    x_ph_ref : (1, ho+1, wo+1, cin*4)   phase-split (space-to-depth) zero-padded input
    wd_ref   : (2, 2, cin*4, inner_nc)  down-conv weight, one 2x2-conv tap (a, b) each
    wu_ref   : (4, 4, inner_nc, outer_nc) transposed-conv weight, [kh, kw] taps
    y_ph_ref : (1, 2, 2, ho*wo, outer_nc) pre-BN output phases (f32)
    stats_ref: (1, 2, outer_nc)          per-image [sum, sum of squares] over pixels
    hpad_ref : (ho+2, wo+2, inner_nc)    VMEM scratch: spatially zero-padded ReLU(h)
    """
    npix = ho * wo
    cin4 = x_ph_ref.shape[-1]

    xph = x_ph_ref[0]
    # LeakyReLU(0.2) prologue (exact: leaky(0) == 0, so the zero padding is preserved).
    xph = jnp.where(xph >= 0, xph, 0.2 * xph)

    # stride-2 4x4 conv == sum over (a, b) of stride-1 2x2 convs on the input phases.
    h = jnp.zeros((npix, inner_nc), jnp.float32)
    for a in (0, 1):
        for b in (0, 1):
            slab = xph[a:a + ho, b:b + wo, :].reshape(npix, cin4)
            h = h + jnp.dot(slab, wd_ref[a, b], preferred_element_type=jnp.float32)

    # ReLU epilogue on the producer (f32), then spatial zero-pad (halo = 1) in VMEM.
    h = jnp.maximum(h, 0.0)
    hpad_ref[...] = jnp.zeros_like(hpad_ref)
    hpad_ref[1:ho + 1, 1:wo + 1, :] = h.reshape(ho, wo, inner_nc).astype(hpad_ref.dtype)

    # ConvTranspose2d(4x4, s2, p1) via sub-pixel decomposition: output phase (r, s) is a
    # stride-1 2x2 conv of padded h with the sub-kernel Wu[:, :, 3-r-2a, 3-s-2b].
    s1 = jnp.zeros((1, outer_nc), jnp.float32)
    s2 = jnp.zeros((1, outer_nc), jnp.float32)
    for r in (0, 1):
        for s in (0, 1):
            acc = jnp.zeros((npix, outer_nc), jnp.float32)
            for a in (0, 1):
                for b in (0, 1):
                    slab = hpad_ref[r + a:r + a + ho, s + b:s + b + wo, :]
                    slab = slab.reshape(npix, inner_nc)
                    acc = acc + jnp.dot(slab, wu_ref[3 - r - 2 * a, 3 - s - 2 * b],
                                        preferred_element_type=jnp.float32)
            y_ph_ref[0, r, s] = acc
            # BatchNorm statistics as a free single-pass epilogue (sum & sum of squares).
            s1 = s1 + jnp.sum(acc, axis=0, keepdims=True)
            s2 = s2 + jnp.sum(acc * acc, axis=0, keepdims=True)
    stats_ref[0, 0:1, :] = s1
    stats_ref[0, 1:2, :] = s2


# ----------------------------------------------------------------------------------
# Kernel B: BatchNorm (training-mode batch statistics) + fused channel-concat writeback
# ----------------------------------------------------------------------------------
def _bn_concat_kernel(x_ref, y_ph_ref, stats_ref, gamma_ref, beta_ref, out_ref, *,
                      ho, wo, skip_nc, outer_nc, count, eps=1e-5):
    npix = ho * wo

    # Skip branch: LeakyReLU(x) (the in-place aliased tensor) -> channels [0 : skip_nc].
    x = x_ref[0]                                               # (skip_nc, H*W) f32
    out_ref[0, 0:skip_nc, :] = jnp.where(x >= 0, x, 0.2 * x).astype(out_ref.dtype)

    # BatchNorm: biased batch variance from single-pass sums (E[y^2] - mean^2).
    st = stats_ref[...]                                        # (N, 2, outer_nc) f32
    s1 = jnp.sum(st[:, 0:1, :], axis=0)                        # (1, outer_nc)
    s2 = jnp.sum(st[:, 1:2, :], axis=0)
    mean = s1 / count
    var = s2 / count - mean * mean
    inv = lax.rsqrt(var + eps)
    scale = gamma_ref[...] * inv                               # (1, outer_nc), lane-dense
    shift = beta_ref[...] - mean * scale

    # Normalize each sub-pixel phase (channels-last), interleave back to (H, W), and store
    # channel-major into channels [skip_nc : skip_nc + outer_nc] of the concat output.
    rows = []
    for r in (0, 1):
        cols = []
        for s in (0, 1):
            t = y_ph_ref[0, r, s] * scale + shift              # (npix, outer_nc)
            cols.append(t.reshape(ho, wo, outer_nc))
        rows.append(jnp.stack(cols, axis=2).reshape(ho, 2 * wo, outer_nc))
    y = jnp.stack(rows, axis=1).reshape(2 * ho, 2 * wo, outer_nc)
    y = y.reshape(4 * npix, outer_nc)                          # (H*W, outer_nc)
    out_ref[0, skip_nc:skip_nc + outer_nc, :] = jnp.transpose(y).astype(out_ref.dtype)


# ----------------------------------------------------------------------------------
# Wrapper
# ----------------------------------------------------------------------------------
def unet_innermost_forward(x, params, *, use_bf16=True):
    n, cin, hh, ww = x.shape
    assert hh % 2 == 0 and ww % 2 == 0
    w_down, w_up = params["w_down"], params["w_up"]
    inner_nc = w_down.shape[0]
    outer_nc = w_up.shape[1]
    ho, wo = hh // 2, ww // 2
    npix = ho * wo
    cdt = jnp.bfloat16 if use_bf16 else jnp.float32
    itm = 2 if use_bf16 else 4

    # ---- cheap layout plumbing (1x input bytes, not patch duplication):
    #      zero-pad + space-to-depth so both convs become stride-1 2x2 matmul taps.
    xpad = jnp.pad(x, ((0, 0), (0, 0), (1, 1), (1, 1)))
    x_ph = xpad.reshape(n, cin, ho + 1, 2, wo + 1, 2).transpose(0, 2, 4, 1, 3, 5)
    x_ph = x_ph.reshape(n, ho + 1, wo + 1, cin * 4).astype(cdt)

    # down-conv weight -> (a, b, ci*4 + i*2 + j, co) with kh = 2a+i, kw = 2b+j
    wd_r = w_down.reshape(inner_nc, cin, 2, 2, 2, 2)
    wd_r = wd_r.transpose(2, 4, 1, 3, 5, 0).reshape(2, 2, cin * 4, inner_nc).astype(cdt)
    # transposed-conv weight -> (kh, kw, ci, co)
    wu_r = w_up.transpose(2, 3, 0, 1).astype(cdt)

    x_flat = x.reshape(n, cin, hh * ww)
    gamma = params["gamma"].reshape(1, outer_nc).astype(jnp.float32)
    beta = params["beta"].reshape(1, outer_nc).astype(jnp.float32)

    cparams = pltpu.CompilerParams(dimension_semantics=("parallel",),
                                   vmem_limit_bytes=32 * 1024 * 1024)

    # ---- kernel A: fused leaky -> down conv -> relu -> up conv (+ BN partial stats)
    flops_a = n * (2 * npix * (cin * 16) * inner_nc + 32 * npix * inner_nc * outer_nc)
    bytes_a = (n * (ho + 1) * (wo + 1) * cin * 4 * itm
               + (4 * cin * 4 * inner_nc + 16 * inner_nc * outer_nc) * itm
               + n * 4 * npix * outer_nc * 4 + n * 2 * outer_nc * 4)
    y_ph, stats = pl.pallas_call(
        functools.partial(_down_up_kernel, ho=ho, wo=wo,
                          inner_nc=inner_nc, outer_nc=outer_nc),
        grid=(n,),
        in_specs=[
            pl.BlockSpec((1, ho + 1, wo + 1, cin * 4), lambda i: (i, 0, 0, 0)),
            pl.BlockSpec((2, 2, cin * 4, inner_nc), lambda i: (0, 0, 0, 0)),
            pl.BlockSpec((4, 4, inner_nc, outer_nc), lambda i: (0, 0, 0, 0)),
        ],
        out_specs=[
            pl.BlockSpec((1, 2, 2, npix, outer_nc), lambda i: (i, 0, 0, 0, 0)),
            pl.BlockSpec((1, 2, outer_nc), lambda i: (i, 0, 0)),
        ],
        out_shape=[
            jax.ShapeDtypeStruct((n, 2, 2, npix, outer_nc), jnp.float32),
            jax.ShapeDtypeStruct((n, 2, outer_nc), jnp.float32),
        ],
        scratch_shapes=[pltpu.VMEM((ho + 2, wo + 2, inner_nc), cdt)],
        compiler_params=cparams,
        cost_estimate=pl.CostEstimate(flops=flops_a, transcendentals=0,
                                      bytes_accessed=bytes_a),
    )(x_ph, wd_r, wu_r)

    # ---- kernel B: BN normalization + fused concat writeback ([skip | BN(y)])
    bytes_b = (n * cin * hh * ww * 4 + n * 4 * npix * outer_nc * 4
               + n * 2 * outer_nc * 4 + 2 * outer_nc * 4
               + n * (cin + outer_nc) * hh * ww * 4)
    out_flat = pl.pallas_call(
        functools.partial(_bn_concat_kernel, ho=ho, wo=wo, skip_nc=cin,
                          outer_nc=outer_nc, count=float(n * hh * ww)),
        grid=(n,),
        in_specs=[
            pl.BlockSpec((1, cin, hh * ww), lambda i: (i, 0, 0)),
            pl.BlockSpec((1, 2, 2, npix, outer_nc), lambda i: (i, 0, 0, 0, 0)),
            pl.BlockSpec((n, 2, outer_nc), lambda i: (0, 0, 0)),
            pl.BlockSpec((1, outer_nc), lambda i: (0, 0)),
            pl.BlockSpec((1, outer_nc), lambda i: (0, 0)),
        ],
        out_specs=pl.BlockSpec((1, cin + outer_nc, hh * ww), lambda i: (i, 0, 0)),
        out_shape=jax.ShapeDtypeStruct((n, cin + outer_nc, hh * ww), x.dtype),
        compiler_params=cparams,
        cost_estimate=pl.CostEstimate(flops=8 * n * (cin + outer_nc) * hh * ww,
                                      transcendentals=0, bytes_accessed=bytes_b),
    )(x_flat, y_ph, stats, gamma, beta)

    return out_flat.reshape(n, cin + outer_nc, hh, ww)


# ----------------------------------------------------------------------------------
# Pure-JAX reference
# ----------------------------------------------------------------------------------
def reference_forward(x, params):
    x_act = jnp.where(x >= 0, x, 0.2 * x)
    h = lax.conv_general_dilated(
        x_act, params["w_down"], window_strides=(2, 2), padding=[(1, 1), (1, 1)],
        dimension_numbers=("NCHW", "OIHW", "NCHW"), precision=lax.Precision.HIGHEST)
    hr = jnp.maximum(h, 0.0)
    w_eq = jnp.flip(params["w_up"], axis=(2, 3)).transpose(1, 0, 2, 3)
    y = lax.conv_general_dilated(
        hr, w_eq, window_strides=(1, 1), padding=[(2, 2), (2, 2)], lhs_dilation=(2, 2),
        dimension_numbers=("NCHW", "OIHW", "NCHW"), precision=lax.Precision.HIGHEST)
    mean = y.mean(axis=(0, 2, 3), keepdims=True)
    var = ((y - mean) ** 2).mean(axis=(0, 2, 3), keepdims=True)
    yn = (y - mean) * lax.rsqrt(var + 1e-5)
    yn = yn * params["gamma"].reshape(1, -1, 1, 1) + params["beta"].reshape(1, -1, 1, 1)
    return jnp.concatenate([x_act, yn], axis=1)


# ----------------------------------------------------------------------------------
# Main
# ----------------------------------------------------------------------------------
if __name__ == "__main__":
    N, outer_nc, inner_nc, H, W = 2, 4, 8, 16, 16
    input_nc = outer_nc  # input_nc=None -> outer_nc

    key = jax.random.PRNGKey(0)
    kx, kd, ku = jax.random.split(key, 3)
    x = jax.random.normal(kx, (N, input_nc, H, W), jnp.float32)
    params = {
        "w_down": 0.02 * jax.random.normal(kd, (inner_nc, input_nc, 4, 4), jnp.float32),
        "w_up": 0.02 * jax.random.normal(ku, (inner_nc, outer_nc, 4, 4), jnp.float32),
        "gamma": jnp.ones((outer_nc,), jnp.float32),
        "beta": jnp.zeros((outer_nc,), jnp.float32),
    }

    ref = reference_forward(x, params)

    # Exact-path check (f32 operands everywhere).
    fwd_f32 = jax.jit(functools.partial(unet_innermost_forward, use_bf16=False))
    out = jax.block_until_ready(fwd_f32(x, params))
    assert out.shape == (N, 2 * outer_nc, H, W), out.shape
    err = float(jnp.abs(out - ref).max())
    assert err < 2e-3, f"f32 path max abs err {err}"

    # Performance path: bf16 matmul operands, f32 accumulators (looser tolerance).
    fwd_bf16 = jax.jit(functools.partial(unet_innermost_forward, use_bf16=True))
    out_bf = jax.block_until_ready(fwd_bf16(x, params))
    err_bf = float(jnp.abs(out_bf - ref).max())
    assert err_bf < 1.5e-1, f"bf16 path max abs err {err_bf}"

    print("KERNEL_OK")
</pallas_src>

<mosaic_0001>
module attributes {stable_mosaic.version = 11 : i64} {
  func.func @_down_up_kernel(%arg0: i32, %arg1: memref<1x9x9x16xf32, #tpu.memory_space<vmem>>, %arg2: memref<2x2x16x8xf32, #tpu.memory_space<vmem>>, %arg3: memref<4x4x8x4xf32, #tpu.memory_space<vmem>>, %arg4: memref<1x2x2x64x4xf32, #tpu.memory_space<vmem>>, %arg5: memref<1x2x4xf32, #tpu.memory_space<vmem>>, %arg6: memref<10x10x8xf32, #tpu.memory_space<vmem>>) attributes {dimension_semantics = [#tpu.dimension_semantics<parallel>], iteration_bounds = array<i64: 2>, scalar_prefetch = 0 : i64, scratch_operands = 1 : i64, tpu.core_type = #tpu.core_type<tc>, window_params = [{transform_indices = @transform_0, window_bounds = array<i64: 1, 9, 9, 16>}, {pipeline_mode = #tpu.pipeline_mode<synchronous>, transform_indices = @transform_1, window_bounds = array<i64: 2, 2, 16, 8>}, {pipeline_mode = #tpu.pipeline_mode<synchronous>, transform_indices = @transform_2, window_bounds = array<i64: 4, 4, 8, 4>}, {transform_indices = @transform_3, window_bounds = array<i64: 1, 2, 2, 64, 4>}, {transform_indices = @transform_4, window_bounds = array<i64: 1, 2, 4>}]} {
    %c0 = arith.constant 0 : index
    %c0_0 = arith.constant 0 : index
    %c0_1 = arith.constant 0 : index
    %c0_2 = arith.constant 0 : index
    %0 = vector.load %arg1[%c0, %c0_0, %c0_1, %c0_2] : memref<1x9x9x16xf32, #tpu.memory_space<vmem>>, vector<1x9x9x16xf32>
    %1 = vector.shape_cast %0 : vector<1x9x9x16xf32> to vector<9x9x16xf32>
    %cst = arith.constant 0.000000e+00 : f32
    %2 = vector.broadcast %cst : f32 to vector<9x9x16xf32>
    %3 = arith.cmpf oge, %1, %2 : vector<9x9x16xf32>
    %cst_3 = arith.constant 2.000000e-01 : f32
    %4 = vector.broadcast %cst_3 : f32 to vector<9x9x16xf32>
    %5 = arith.mulf %4, %1 : vector<9x9x16xf32>
    %6 = arith.select %3, %1, %5 : vector<9x9x16xi1>, vector<9x9x16xf32>
    %cst_4 = arith.constant 0.000000e+00 : f32
    %7 = vector.broadcast %cst_4 : f32 to vector<64x8xf32>
    %8 = vector.extract_strided_slice %6 {offsets = [0, 0, 0], sizes = [8, 8, 16], strides = [1, 1, 1]} : vector<9x9x16xf32> to vector<8x8x16xf32>
    %9 = vector.shape_cast %8 : vector<8x8x16xf32> to vector<64x16xf32>
    %c0_5 = arith.constant 0 : index
    %c0_6 = arith.constant 0 : index
    %c0_7 = arith.constant 0 : index
    %c0_8 = arith.constant 0 : index
    %10 = vector.load %arg2[%c0_5, %c0_6, %c0_7, %c0_8] : memref<2x2x16x8xf32, #tpu.memory_space<vmem>>, vector<1x1x16x8xf32>
    %11 = vector.shape_cast %10 : vector<1x1x16x8xf32> to vector<16x8xf32>
    %cst_9 = arith.constant dense<0.000000e+00> : vector<64x8xf32>
    %12 = tpu.matmul %9, %11, %cst_9 {dimension_numbers = #tpu.dot_dimension_numbers<[1], [0], [0], [1], [0, 0, 1, 1], [], []>} : vector<64x16xf32>, vector<16x8xf32>, vector<64x8xf32> -> vector<64x8xf32>
    %13 = arith.addf %7, %12 : vector<64x8xf32>
    %14 = vector.extract_strided_slice %6 {offsets = [0, 1, 0], sizes = [8, 8, 16], strides = [1, 1, 1]} : vector<9x9x16xf32> to vector<8x8x16xf32>
    %15 = vector.shape_cast %14 : vector<8x8x16xf32> to vector<64x16xf32>
    %c0_10 = arith.constant 0 : index
    %c1 = arith.constant 1 : index
    %c0_11 = arith.constant 0 : index
    %c0_12 = arith.constant 0 : index
    %16 = vector.load %arg2[%c0_10, %c1, %c0_11, %c0_12] : memref<2x2x16x8xf32, #tpu.memory_space<vmem>>, vector<1x1x16x8xf32>
    %17 = vector.shape_cast %16 : vector<1x1x16x8xf32> to vector<16x8xf32>
    %cst_13 = arith.constant dense<0.000000e+00> : vector<64x8xf32>
    %18 = tpu.matmul %15, %17, %cst_13 {dimension_numbers = #tpu.dot_dimension_numbers<[1], [0], [0], [1], [0, 0, 1, 1], [], []>} : vector<64x16xf32>, vector<16x8xf32>, vector<64x8xf32> -> vector<64x8xf32>
    %19 = arith.addf %13, %18 : vector<64x8xf32>
    %20 = vector.extract_strided_slice %6 {offsets = [1, 0, 0], sizes = [8, 8, 16], strides = [1, 1, 1]} : vector<9x9x16xf32> to vector<8x8x16xf32>
    %21 = vector.shape_cast %20 : vector<8x8x16xf32> to vector<64x16xf32>
    %c1_14 = arith.constant 1 : index
    %c0_15 = arith.constant 0 : index
    %c0_16 = arith.constant 0 : index
    %c0_17 = arith.constant 0 : index
    %22 = vector.load %arg2[%c1_14, %c0_15, %c0_16, %c0_17] : memref<2x2x16x8xf32, #tpu.memory_space<vmem>>, vector<1x1x16x8xf32>
    %23 = vector.shape_cast %22 : vector<1x1x16x8xf32> to vector<16x8xf32>
    %cst_18 = arith.constant dense<0.000000e+00> : vector<64x8xf32>
    %24 = tpu.matmul %21, %23, %cst_18 {dimension_numbers = #tpu.dot_dimension_numbers<[1], [0], [0], [1], [0, 0, 1, 1], [], []>} : vector<64x16xf32>, vector<16x8xf32>, vector<64x8xf32> -> vector<64x8xf32>
    %25 = arith.addf %19, %24 : vector<64x8xf32>
    %26 = vector.extract_strided_slice %6 {offsets = [1, 1, 0], sizes = [8, 8, 16], strides = [1, 1, 1]} : vector<9x9x16xf32> to vector<8x8x16xf32>
    %27 = vector.shape_cast %26 : vector<8x8x16xf32> to vector<64x16xf32>
    %c1_19 = arith.constant 1 : index
    %c1_20 = arith.constant 1 : index
    %c0_21 = arith.constant 0 : index
    %c0_22 = arith.constant 0 : index
    %28 = vector.load %arg2[%c1_19, %c1_20, %c0_21, %c0_22] : memref<2x2x16x8xf32, #tpu.memory_space<vmem>>, vector<1x1x16x8xf32>
    %29 = vector.shape_cast %28 : vector<1x1x16x8xf32> to vector<16x8xf32>
    %cst_23 = arith.constant dense<0.000000e+00> : vector<64x8xf32>
    %30 = tpu.matmul %27, %29, %cst_23 {dimension_numbers = #tpu.dot_dimension_numbers<[1], [0], [0], [1], [0, 0, 1, 1], [], []>} : vector<64x16xf32>, vector<16x8xf32>, vector<64x8xf32> -> vector<64x8xf32>
    %31 = arith.addf %25, %30 : vector<64x8xf32>
    %cst_24 = arith.constant 0.000000e+00 : f32
    %32 = vector.broadcast %cst_24 : f32 to vector<64x8xf32>
    %33 = arith.maximumf %31, %32 : vector<64x8xf32>
    %cst_25 = arith.constant 0.000000e+00 : f32
    %34 = vector.broadcast %cst_25 : f32 to vector<10x10x8xf32>
    %c0_26 = arith.constant 0 : index
    %c0_27 = arith.constant 0 : index
    %c0_28 = arith.constant 0 : index
    %35 = vector.load %arg6[%c0_26, %c0_27, %c0_28] : memref<10x10x8xf32, #tpu.memory_space<vmem>>, vector<10x10x8xf32>
    tpu.vector_store %arg6[%c0_26, %c0_27, %c0_28], %34 {strides = array<i32>} : memref<10x10x8xf32, #tpu.memory_space<vmem>>, vector<10x10x8xf32>,
    %36 = vector.shape_cast %33 : vector<64x8xf32> to vector<8x8x8xf32>
    %c1_29 = arith.constant 1 : index
    %c1_30 = arith.constant 1 : index
    %c0_31 = arith.constant 0 : index
    %37 = vector.load %arg6[%c1_29, %c1_30, %c0_31] : memref<10x10x8xf32, #tpu.memory_space<vmem>>, vector<8x8x8xf32>
    tpu.vector_store %arg6[%c1_29, %c1_30, %c0_31], %36 {strides = array<i32>} : memref<10x10x8xf32, #tpu.memory_space<vmem>>, vector<8x8x8xf32>,
    %cst_32 = arith.constant 0.000000e+00 : f32
    %38 = vector.broadcast %cst_32 : f32 to vector<1x4xf32>
    %cst_33 = arith.constant 0.000000e+00 : f32
    %39 = vector.broadcast %cst_33 : f32 to vector<1x4xf32>
    %cst_34 = arith.constant 0.000000e+00 : f32
    %40 = vector.broadcast %cst_34 : f32 to vector<64x4xf32>
    %c0_35 = arith.constant 0 : index
    %c0_36 = arith.constant 0 : index
    %c0_37 = arith.constant 0 : index
    %41 = vector.load %arg6[%c0_35, %c0_36, %c0_37] : memref<10x10x8xf32, #tpu.memory_space<vmem>>, vector<8x8x8xf32>
    %42 = vector.shape_cast %41 : vector<8x8x8xf32> to vector<64x8xf32>
    %c3 = arith.constant 3 : index
    %c3_38 = arith.constant 3 : index
    %c0_39 = arith.constant 0 : index
    %c0_40 = arith.constant 0 : index
    %43 = vector.load %arg3[%c3, %c3_38, %c0_39, %c0_40] : memref<4x4x8x4xf32, #tpu.memory_space<vmem>>, vector<1x1x8x4xf32>
    %44 = vector.shape_cast %43 : vector<1x1x8x4xf32> to vector<8x4xf32>
    %cst_41 = arith.constant dense<0.000000e+00> : vector<64x4xf32>
    %45 = tpu.matmul %42, %44, %cst_41 {dimension_numbers = #tpu.dot_dimension_numbers<[1], [0], [0], [1], [0, 0, 1, 1], [], []>} : vector<64x8xf32>, vector<8x4xf32>, vector<64x4xf32> -> vector<64x4xf32>
    %46 = arith.addf %40, %45 : vector<64x4xf32>
    %c0_42 = arith.constant 0 : index
    %c1_43 = arith.constant 1 : index
    %c0_44 = arith.constant 0 : index
    %47 = vector.load %arg6[%c0_42, %c1_43, %c0_44] : memref<10x10x8xf32, #tpu.memory_space<vmem>>, vector<8x8x8xf32>
    %48 = vector.shape_cast %47 : vector<8x8x8xf32> to vector<64x8xf32>
    %c3_45 = arith.constant 3 : index
    %c1_46 = arith.constant 1 : index
    %c0_47 = arith.constant 0 : index
    %c0_48 = arith.constant 0 : index
    %49 = vector.load %arg3[%c3_45, %c1_46, %c0_47, %c0_48] : memref<4x4x8x4xf32, #tpu.memory_space<vmem>>, vector<1x1x8x4xf32>
    %50 = vector.shape_cast %49 : vector<1x1x8x4xf32> to vector<8x4xf32>
    %cst_49 = arith.constant dense<0.000000e+00> : vector<64x4xf32>
    %51 = tpu.matmul %48, %50, %cst_49 {dimension_numbers = #tpu.dot_dimension_numbers<[1], [0], [0], [1], [0, 0, 1, 1], [], []>} : vector<64x8xf32>, vector<8x4xf32>, vector<64x4xf32> -> vector<64x4xf32>
    %52 = arith.addf %46, %51 : vector<64x4xf32>
    %c1_50 = arith.constant 1 : index
    %c0_51 = arith.constant 0 : index
    %c0_52 = arith.constant 0 : index
    %53 = vector.load %arg6[%c1_50, %c0_51, %c0_52] : memref<10x10x8xf32, #tpu.memory_space<vmem>>, vector<8x8x8xf32>
    %54 = vector.shape_cast %53 : vector<8x8x8xf32> to vector<64x8xf32>
    %c1_53 = arith.constant 1 : index
    %c3_54 = arith.constant 3 : index
    %c0_55 = arith.constant 0 : index
    %c0_56 = arith.constant 0 : index
    %55 = vector.load %arg3[%c1_53, %c3_54, %c0_55, %c0_56] : memref<4x4x8x4xf32, #tpu.memory_space<vmem>>, vector<1x1x8x4xf32>
    %56 = vector.shape_cast %55 : vector<1x1x8x4xf32> to vector<8x4xf32>
    %cst_57 = arith.constant dense<0.000000e+00> : vector<64x4xf32>
    %57 = tpu.matmul %54, %56, %cst_57 {dimension_numbers = #tpu.dot_dimension_numbers<[1], [0], [0], [1], [0, 0, 1, 1], [], []>} : vector<64x8xf32>, vector<8x4xf32>, vector<64x4xf32> -> vector<64x4xf32>
    %58 = arith.addf %52, %57 : vector<64x4xf32>
    %c1_58 = arith.constant 1 : index
    %c1_59 = arith.constant 1 : index
    %c0_60 = arith.constant 0 : index
    %59 = vector.load %arg6[%c1_58, %c1_59, %c0_60] : memref<10x10x8xf32, #tpu.memory_space<vmem>>, vector<8x8x8xf32>
    %60 = vector.shape_cast %59 : vector<8x8x8xf32> to vector<64x8xf32>
    %c1_61 = arith.constant 1 : index
    %c1_62 = arith.constant 1 : index
    %c0_63 = arith.constant 0 : index
    %c0_64 = arith.constant 0 : index
    %61 = vector.load %arg3[%c1_61, %c1_62, %c0_63, %c0_64] : memref<4x4x8x4xf32, #tpu.memory_space<vmem>>, vector<1x1x8x4xf32>
    %62 = vector.shape_cast %61 : vector<1x1x8x4xf32> to vector<8x4xf32>
    %cst_65 = arith.constant dense<0.000000e+00> : vector<64x4xf32>
    %63 = tpu.matmul %60, %62, %cst_65 {dimension_numbers = #tpu.dot_dimension_numbers<[1], [0], [0], [1], [0, 0, 1, 1], [], []>} : vector<64x8xf32>, vector<8x4xf32>, vector<64x4xf32> -> vector<64x4xf32>
    %64 = arith.addf %58, %63 : vector<64x4xf32>
    %c0_66 = arith.constant 0 : index
    %c0_67 = arith.constant 0 : index
    %c0_68 = arith.constant 0 : index
    %c0_69 = arith.constant 0 : index
    %c0_70 = arith.constant 0 : index
    %65 = vector.load %arg4[%c0_66, %c0_67, %c0_68, %c0_69, %c0_70] : memref<1x2x2x64x4xf32, #tpu.memory_space<vmem>>, vector<1x1x1x64x4xf32>
    %66 = vector.shape_cast %65 : vector<1x1x1x64x4xf32> to vector<64x4xf32>
    %67 = vector.shape_cast %64 : vector<64x4xf32> to vector<1x1x1x64x4xf32>
    tpu.vector_store %arg4[%c0_66, %c0_67, %c0_68, %c0_69, %c0_70], %67 {strides = array<i32>} : memref<1x2x2x64x4xf32, #tpu.memory_space<vmem>>, vector<1x1x1x64x4xf32>,
    %cst_71 = arith.constant dense<0.000000e+00> : vector<4xf32>
    %68 = vector.multi_reduction <add>, %64, %cst_71 [0] : vector<64x4xf32> to vector<4xf32>
    %69 = vector.shape_cast %68 : vector<4xf32> to vector<1x4xf32>
    %70 = arith.addf %38, %69 : vector<1x4xf32>
    %71 = arith.mulf %64, %64 : vector<64x4xf32>
    %cst_72 = arith.constant dense<0.000000e+00> : vector<4xf32>
    %72 = vector.multi_reduction <add>, %71, %cst_72 [0] : vector<64x4xf32> to vector<4xf32>
    %73 = vector.shape_cast %72 : vector<4xf32> to vector<1x4xf32>
    %74 = arith.addf %39, %73 : vector<1x4xf32>
    %cst_73 = arith.constant 0.000000e+00 : f32
    %75 = vector.broadcast %cst_73 : f32 to vector<64x4xf32>
    %c0_74 = arith.constant 0 : index
    %c1_75 = arith.constant 1 : index
    %c0_76 = arith.constant 0 : index
    %76 = vector.load %arg6[%c0_74, %c1_75, %c0_76] : memref<10x10x8xf32, #tpu.memory_space<vmem>>, vector<8x8x8xf32>
    %77 = vector.shape_cast %76 : vector<8x8x8xf32> to vector<64x8xf32>
    %c3_77 = arith.constant 3 : index
    %c2 = arith.constant 2 : index
    %c0_78 = arith.constant 0 : index
    %c0_79 = arith.constant 0 : index
    %78 = vector.load %arg3[%c3_77, %c2, %c0_78, %c0_79] : memref<4x4x8x4xf32, #tpu.memory_space<vmem>>, vector<1x1x8x4xf32>
    %79 = vector.shape_cast %78 : vector<1x1x8x4xf32> to vector<8x4xf32>
    %cst_80 = arith.constant dense<0.000000e+00> : vector<64x4xf32>
    %80 = tpu.matmul %77, %79, %cst_80 {dimension_numbers = #tpu.dot_dimension_numbers<[1], [0], [0], [1], [0, 0, 1, 1], [], []>} : vector<64x8xf32>, vector<8x4xf32>, vector<64x4xf32> -> vector<64x4xf32>
    %81 = arith.addf %75, %80 : vector<64x4xf32>
    %c0_81 = arith.constant 0 : index
    %c2_82 = arith.constant 2 : index
    %c0_83 = arith.constant 0 : index
    %82 = vector.load %arg6[%c0_81, %c2_82, %c0_83] : memref<10x10x8xf32, #tpu.memory_space<vmem>>, vector<8x8x8xf32>
    %83 = vector.shape_cast %82 : vector<8x8x8xf32> to vector<64x8xf32>
    %c3_84 = arith.constant 3 : index
    %c0_85 = arith.constant 0 : index
    %c0_86 = arith.constant 0 : index
    %c0_87 = arith.constant 0 : index
    %84 = vector.load %arg3[%c3_84, %c0_85, %c0_86, %c0_87] : memref<4x4x8x4xf32, #tpu.memory_space<vmem>>, vector<1x1x8x4xf32>
    %85 = vector.shape_cast %84 : vector<1x1x8x4xf32> to vector<8x4xf32>
    %cst_88 = arith.constant dense<0.000000e+00> : vector<64x4xf32>
    %86 = tpu.matmul %83, %85, %cst_88 {dimension_numbers = #tpu.dot_dimension_numbers<[1], [0], [0], [1], [0, 0, 1, 1], [], []>} : vector<64x8xf32>, vector<8x4xf32>, vector<64x4xf32> -> vector<64x4xf32>
    %87 = arith.addf %81, %86 : vector<64x4xf32>
    %c1_89 = arith.constant 1 : index
    %c1_90 = arith.constant 1 : index
    %c0_91 = arith.constant 0 : index
    %88 = vector.load %arg6[%c1_89, %c1_90, %c0_91] : memref<10x10x8xf32, #tpu.memory_space<vmem>>, vector<8x8x8xf32>
    %89 = vector.shape_cast %88 : vector<8x8x8xf32> to vector<64x8xf32>
    %c1_92 = arith.constant 1 : index
    %c2_93 = arith.constant 2 : index
    %c0_94 = arith.constant 0 : index
    %c0_95 = arith.constant 0 : index
    %90 = vector.load %arg3[%c1_92, %c2_93, %c0_94, %c0_95] : memref<4x4x8x4xf32, #tpu.memory_space<vmem>>, vector<1x1x8x4xf32>
    %91 = vector.shape_cast %90 : vector<1x1x8x4xf32> to vector<8x4xf32>
    %cst_96 = arith.constant dense<0.000000e+00> : vector<64x4xf32>
    %92 = tpu.matmul %89, %91, %cst_96 {dimension_numbers = #tpu.dot_dimension_numbers<[1], [0], [0], [1], [0, 0, 1, 1], [], []>} : vector<64x8xf32>, vector<8x4xf32>, vector<64x4xf32> -> vector<64x4xf32>
    %93 = arith.addf %87, %92 : vector<64x4xf32>
    %c1_97 = arith.constant 1 : index
    %c2_98 = arith.constant 2 : index
    %c0_99 = arith.constant 0 : index
    %94 = vector.load %arg6[%c1_97, %c2_98, %c0_99] : memref<10x10x8xf32, #tpu.memory_space<vmem>>, vector<8x8x8xf32>
    %95 = vector.shape_cast %94 : vector<8x8x8xf32> to vector<64x8xf32>
    %c1_100 = arith.constant 1 : index
    %c0_101 = arith.constant 0 : index
    %c0_102 = arith.constant 0 : index
    %c0_103 = arith.constant 0 : index
    %96 = vector.load %arg3[%c1_100, %c0_101, %c0_102, %c0_103] : memref<4x4x8x4xf32, #tpu.memory_space<vmem>>, vector<1x1x8x4xf32>
    %97 = vector.shape_cast %96 : vector<1x1x8x4xf32> to vector<8x4xf32>
    %cst_104 = arith.constant dense<0.000000e+00> : vector<64x4xf32>
    %98 = tpu.matmul %95, %97, %cst_104 {dimension_numbers = #tpu.dot_dimension_numbers<[1], [0], [0], [1], [0, 0, 1, 1], [], []>} : vector<64x8xf32>, vector<8x4xf32>, vector<64x4xf32> -> vector<64x4xf32>
    %99 = arith.addf %93, %98 : vector<64x4xf32>
    %c0_105 = arith.constant 0 : index
    %c0_106 = arith.constant 0 : index
    %c1_107 = arith.constant 1 : index
    %c0_108 = arith.constant 0 : index
    %c0_109 = arith.constant 0 : index
    %100 = vector.load %arg4[%c0_105, %c0_106, %c1_107, %c0_108, %c0_109] : memref<1x2x2x64x4xf32, #tpu.memory_space<vmem>>, vector<1x1x1x64x4xf32>
    %101 = vector.shape_cast %100 : vector<1x1x1x64x4xf32> to vector<64x4xf32>
    %102 = vector.shape_cast %99 : vector<64x4xf32> to vector<1x1x1x64x4xf32>
    tpu.vector_store %arg4[%c0_105, %c0_106, %c1_107, %c0_108, %c0_109], %102 {strides = array<i32>} : memref<1x2x2x64x4xf32, #tpu.memory_space<vmem>>, vector<1x1x1x64x4xf32>,
    %cst_110 = arith.constant dense<0.000000e+00> : vector<4xf32>
    %103 = vector.multi_reduction <add>, %99, %cst_110 [0] : vector<64x4xf32> to vector<4xf32>
    %104 = vector.shape_cast %103 : vector<4xf32> to vector<1x4xf32>
    %105 = arith.addf %70, %104 : vector<1x4xf32>
    %106 = arith.mulf %99, %99 : vector<64x4xf32>
    %cst_111 = arith.constant dense<0.000000e+00> : vector<4xf32>
    %107 = vector.multi_reduction <add>, %106, %cst_111 [0] : vector<64x4xf32> to vector<4xf32>
    %108 = vector.shape_cast %107 : vector<4xf32> to vector<1x4xf32>
    %109 = arith.addf %74, %108 : vector<1x4xf32>
    %cst_112 = arith.constant 0.000000e+00 : f32
    %110 = vector.broadcast %cst_112 : f32 to vector<64x4xf32>
    %c1_113 = arith.constant 1 : index
    %c0_114 = arith.constant 0 : index
    %c0_115 = arith.constant 0 : index
    %111 = vector.load %arg6[%c1_113, %c0_114, %c0_115] : memref<10x10x8xf32, #tpu.memory_space<vmem>>, vector<8x8x8xf32>
    %112 = vector.shape_cast %111 : vector<8x8x8xf32> to vector<64x8xf32>
    %c2_116 = arith.constant 2 : index
    %c3_117 = arith.constant 3 : index
    %c0_118 = arith.constant 0 : index
    %c0_119 = arith.constant 0 : index
    %113 = vector.load %arg3[%c2_116, %c3_117, %c0_118, %c0_119] : memref<4x4x8x4xf32, #tpu.memory_space<vmem>>, vector<1x1x8x4xf32>
    %114 = vector.shape_cast %113 : vector<1x1x8x4xf32> to vector<8x4xf32>
    %cst_120 = arith.constant dense<0.000000e+00> : vector<64x4xf32>
    %115 = tpu.matmul %112, %114, %cst_120 {dimension_numbers = #tpu.dot_dimension_numbers<[1], [0], [0], [1], [0, 0, 1, 1], [], []>} : vector<64x8xf32>, vector<8x4xf32>, vector<64x4xf32> -> vector<64x4xf32>
    %116 = arith.addf %110, %115 : vector<64x4xf32>
    %c1_121 = arith.constant 1 : index
    %c1_122 = arith.constant 1 : index
    %c0_123 = arith.constant 0 : index
    %117 = vector.load %arg6[%c1_121, %c1_122, %c0_123] : memref<10x10x8xf32, #tpu.memory_space<vmem>>, vector<8x8x8xf32>
    %118 = vector.shape_cast %117 : vector<8x8x8xf32> to vector<64x8xf32>
    %c2_124 = arith.constant 2 : index
    %c1_125 = arith.constant 1 : index
    %c0_126 = arith.constant 0 : index
    %c0_127 = arith.constant 0 : index
    %119 = vector.load %arg3[%c2_124, %c1_125, %c0_126, %c0_127] : memref<4x4x8x4xf32, #tpu.memory_space<vmem>>, vector<1x1x8x4xf32>
    %120 = vector.shape_cast %119 : vector<1x1x8x4xf32> to vector<8x4xf32>
    %cst_128 = arith.constant dense<0.000000e+00> : vector<64x4xf32>
    %121 = tpu.matmul %118, %120, %cst_128 {dimension_numbers = #tpu.dot_dimension_numbers<[1], [0], [0], [1], [0, 0, 1, 1], [], []>} : vector<64x8xf32>, vector<8x4xf32>, vector<64x4xf32> -> vector<64x4xf32>
    %122 = arith.addf %116, %121 : vector<64x4xf32>
    %c2_129 = arith.constant 2 : index
    %c0_130 = arith.constant 0 : index
    %c0_131 = arith.constant 0 : index
    %123 = vector.load %arg6[%c2_129, %c0_130, %c0_131] : memref<10x10x8xf32, #tpu.memory_space<vmem>>, vector<8x8x8xf32>
    %124 = vector.shape_cast %123 : vector<8x8x8xf32> to vector<64x8xf32>
    %c0_132 = arith.constant 0 : index
    %c3_133 = arith.constant 3 : index
    %c0_134 = arith.constant 0 : index
    %c0_135 = arith.constant 0 : index
    %125 = vector.load %arg3[%c0_132, %c3_133, %c0_134, %c0_135] : memref<4x4x8x4xf32, #tpu.memory_space<vmem>>, vector<1x1x8x4xf32>
    %126 = vector.shape_cast %125 : vector<1x1x8x4xf32> to vector<8x4xf32>
    %cst_136 = arith.constant dense<0.000000e+00> : vector<64x4xf32>
    %127 = tpu.matmul %124, %126, %cst_136 {dimension_numbers = #tpu.dot_dimension_numbers<[1], [0], [0], [1], [0, 0, 1, 1], [], []>} : vector<64x8xf32>, vector<8x4xf32>, vector<64x4xf32> -> vector<64x4xf32>
    %128 = arith.addf %122, %127 : vector<64x4xf32>
    %c2_137 = arith.constant 2 : index
    %c1_138 = arith.constant 1 : index
    %c0_139 = arith.constant 0 : index
    %129 = vector.load %arg6[%c2_137, %c1_138, %c0_139] : memref<10x10x8xf32, #tpu.memory_space<vmem>>, vector<8x8x8xf32>
    %130 = vector.shape_cast %129 : vector<8x8x8xf32> to vector<64x8xf32>
    %c0_140 = arith.constant 0 : index
    %c1_141 = arith.constant 1 : index
    %c0_142 = arith.constant 0 : index
    %c0_143 = arith.constant 0 : index
    %131 = vector.load %arg3[%c0_140, %c1_141, %c0_142, %c0_143] : memref<4x4x8x4xf32, #tpu.memory_space<vmem>>, vector<1x1x8x4xf32>
    %132 = vector.shape_cast %131 : vector<1x1x8x4xf32> to vector<8x4xf32>
    %cst_144 = arith.constant dense<0.000000e+00> : vector<64x4xf32>
    %133 = tpu.matmul %130, %132, %cst_144 {dimension_numbers = #tpu.dot_dimension_numbers<[1], [0], [0], [1], [0, 0, 1, 1], [], []>} : vector<64x8xf32>, vector<8x4xf32>, vector<64x4xf32> -> vector<64x4xf32>
    %134 = arith.addf %128, %133 : vector<64x4xf32>
    %c0_145 = arith.constant 0 : index
    %c1_146 = arith.constant 1 : index
    %c0_147 = arith.constant 0 : index
    %c0_148 = arith.constant 0 : index
    %c0_149 = arith.constant 0 : index
    %135 = vector.load %arg4[%c0_145, %c1_146, %c0_147, %c0_148, %c0_149] : memref<1x2x2x64x4xf32, #tpu.memory_space<vmem>>, vector<1x1x1x64x4xf32>
    %136 = vector.shape_cast %135 : vector<1x1x1x64x4xf32> to vector<64x4xf32>
    %137 = vector.shape_cast %134 : vector<64x4xf32> to vector<1x1x1x64x4xf32>
    tpu.vector_store %arg4[%c0_145, %c1_146, %c0_147, %c0_148, %c0_149], %137 {strides = array<i32>} : memref<1x2x2x64x4xf32, #tpu.memory_space<vmem>>, vector<1x1x1x64x4xf32>,
    %cst_150 = arith.constant dense<0.000000e+00> : vector<4xf32>
    %138 = vector.multi_reduction <add>, %134, %cst_150 [0] : vector<64x4xf32> to vector<4xf32>
    %139 = vector.shape_cast %138 : vector<4xf32> to vector<1x4xf32>
    %140 = arith.addf %105, %139 : vector<1x4xf32>
    %141 = arith.mulf %134, %134 : vector<64x4xf32>
    %cst_151 = arith.constant dense<0.000000e+00> : vector<4xf32>
    %142 = vector.multi_reduction <add>, %141, %cst_151 [0] : vector<64x4xf32> to vector<4xf32>
    %143 = vector.shape_cast %142 : vector<4xf32> to vector<1x4xf32>
    %144 = arith.addf %109, %143 : vector<1x4xf32>
    %cst_152 = arith.constant 0.000000e+00 : f32
    %145 = vector.broadcast %cst_152 : f32 to vector<64x4xf32>
    %c1_153 = arith.constant 1 : index
    %c1_154 = arith.constant 1 : index
    %c0_155 = arith.constant 0 : index
    %146 = vector.load %arg6[%c1_153, %c1_154, %c0_155] : memref<10x10x8xf32, #tpu.memory_space<vmem>>, vector<8x8x8xf32>
    %147 = vector.shape_cast %146 : vector<8x8x8xf32> to vector<64x8xf32>
    %c2_156 = arith.constant 2 : index
    %c2_157 = arith.constant 2 : index
    %c0_158 = arith.constant 0 : index
    %c0_159 = arith.constant 0 : index
    %148 = vector.load %arg3[%c2_156, %c2_157, %c0_158, %c0_159] : memref<4x4x8x4xf32, #tpu.memory_space<vmem>>, vector<1x1x8x4xf32>
    %149 = vector.shape_cast %148 : vector<1x1x8x4xf32> to vector<8x4xf32>
    %cst_160 = arith.constant dense<0.000000e+00> : vector<64x4xf32>
    %150 = tpu.matmul %147, %149, %cst_160 {dimension_numbers = #tpu.dot_dimension_numbers<[1], [0], [0], [1], [0, 0, 1, 1], [], []>} : vector<64x8xf32>, vector<8x4xf32>, vector<64x4xf32> -> vector<64x4xf32>
    %151 = arith.addf %145, %150 : vector<64x4xf32>
    %c1_161 = arith.constant 1 : index
    %c2_162 = arith.constant 2 : index
    %c0_163 = arith.constant 0 : index
    %152 = vector.load %arg6[%c1_161, %c2_162, %c0_163] : memref<10x10x8xf32, #tpu.memory_space<vmem>>, vector<8x8x8xf32>
    %153 = vector.shape_cast %152 : vector<8x8x8xf32> to vector<64x8xf32>
    %c2_164 = arith.constant 2 : index
    %c0_165 = arith.constant 0 : index
    %c0_166 = arith.constant 0 : index
    %c0_167 = arith.constant 0 : index
    %154 = vector.load %arg3[%c2_164, %c0_165, %c0_166, %c0_167] : memref<4x4x8x4xf32, #tpu.memory_space<vmem>>, vector<1x1x8x4xf32>
    %155 = vector.shape_cast %154 : vector<1x1x8x4xf32> to vector<8x4xf32>
    %cst_168 = arith.constant dense<0.000000e+00> : vector<64x4xf32>
    %156 = tpu.matmul %153, %155, %cst_168 {dimension_numbers = #tpu.dot_dimension_numbers<[1], [0], [0], [1], [0, 0, 1, 1], [], []>} : vector<64x8xf32>, vector<8x4xf32>, vector<64x4xf32> -> vector<64x4xf32>
    %157 = arith.addf %151, %156 : vector<64x4xf32>
    %c2_169 = arith.constant 2 : index
    %c1_170 = arith.constant 1 : index
    %c0_171 = arith.constant 0 : index
    %158 = vector.load %arg6[%c2_169, %c1_170, %c0_171] : memref<10x10x8xf32, #tpu.memory_space<vmem>>, vector<8x8x8xf32>
    %159 = vector.shape_cast %158 : vector<8x8x8xf32> to vector<64x8xf32>
    %c0_172 = arith.constant 0 : index
    %c2_173 = arith.constant 2 : index
    %c0_174 = arith.constant 0 : index
    %c0_175 = arith.constant 0 : index
    %160 = vector.load %arg3[%c0_172, %c2_173, %c0_174, %c0_175] : memref<4x4x8x4xf32, #tpu.memory_space<vmem>>, vector<1x1x8x4xf32>
    %161 = vector.shape_cast %160 : vector<1x1x8x4xf32> to vector<8x4xf32>
    %cst_176 = arith.constant dense<0.000000e+00> : vector<64x4xf32>
    %162 = tpu.matmul %159, %161, %cst_176 {dimension_numbers = #tpu.dot_dimension_numbers<[1], [0], [0], [1], [0, 0, 1, 1], [], []>} : vector<64x8xf32>, vector<8x4xf32>, vector<64x4xf32> -> vector<64x4xf32>
    %163 = arith.addf %157, %162 : vector<64x4xf32>
    %c2_177 = arith.constant 2 : index
    %c2_178 = arith.constant 2 : index
    %c0_179 = arith.constant 0 : index
    %164 = vector.load %arg6[%c2_177, %c2_178, %c0_179] : memref<10x10x8xf32, #tpu.memory_space<vmem>>, vector<8x8x8xf32>
    %165 = vector.shape_cast %164 : vector<8x8x8xf32> to vector<64x8xf32>
    %c0_180 = arith.constant 0 : index
    %c0_181 = arith.constant 0 : index
    %c0_182 = arith.constant 0 : index
    %c0_183 = arith.constant 0 : index
    %166 = vector.load %arg3[%c0_180, %c0_181, %c0_182, %c0_183] : memref<4x4x8x4xf32, #tpu.memory_space<vmem>>, vector<1x1x8x4xf32>
    %167 = vector.shape_cast %166 : vector<1x1x8x4xf32> to vector<8x4xf32>
    %cst_184 = arith.constant dense<0.000000e+00> : vector<64x4xf32>
    %168 = tpu.matmul %165, %167, %cst_184 {dimension_numbers = #tpu.dot_dimension_numbers<[1], [0], [0], [1], [0, 0, 1, 1], [], []>} : vector<64x8xf32>, vector<8x4xf32>, vector<64x4xf32> -> vector<64x4xf32>
    %169 = arith.addf %163, %168 : vector<64x4xf32>
    %c0_185 = arith.constant 0 : index
    %c1_186 = arith.constant 1 : index
    %c1_187 = arith.constant 1 : index
    %c0_188 = arith.constant 0 : index
    %c0_189 = arith.constant 0 : index
    %170 = vector.load %arg4[%c0_185, %c1_186, %c1_187, %c0_188, %c0_189] : memref<1x2x2x64x4xf32, #tpu.memory_space<vmem>>, vector<1x1x1x64x4xf32>
    %171 = vector.shape_cast %170 : vector<1x1x1x64x4xf32> to vector<64x4xf32>
    %172 = vector.shape_cast %169 : vector<64x4xf32> to vector<1x1x1x64x4xf32>
    tpu.vector_store %arg4[%c0_185, %c1_186, %c1_187, %c0_188, %c0_189], %172 {strides = array<i32>} : memref<1x2x2x64x4xf32, #tpu.memory_space<vmem>>, vector<1x1x1x64x4xf32>,
    %cst_190 = arith.constant dense<0.000000e+00> : vector<4xf32>
    %173 = vector.multi_reduction <add>, %169, %cst_190 [0] : vector<64x4xf32> to vector<4xf32>
    %174 = vector.shape_cast %173 : vector<4xf32> to vector<1x4xf32>
    %175 = arith.addf %140, %174 : vector<1x4xf32>
    %176 = arith.mulf %169, %169 : vector<64x4xf32>
    %cst_191 = arith.constant dense<0.000000e+00> : vector<4xf32>
    %177 = vector.multi_reduction <add>, %176, %cst_191 [0] : vector<64x4xf32> to vector<4xf32>
    %178 = vector.shape_cast %177 : vector<4xf32> to vector<1x4xf32>
    %179 = arith.addf %144, %178 : vector<1x4xf32>
    %c0_192 = arith.constant 0 : index
    %c0_193 = arith.constant 0 : index
    %c0_194 = arith.constant 0 : index
    %180 = vector.load %arg5[%c0_192, %c0_193, %c0_194] : memref<1x2x4xf32, #tpu.memory_space<vmem>>, vector<1x1x4xf32>
    %181 = vector.shape_cast %180 : vector<1x1x4xf32> to vector<1x4xf32>
    %182 = vector.shape_cast %175 : vector<1x4xf32> to vector<1x1x4xf32>
    tpu.vector_store %arg5[%c0_192, %c0_193, %c0_194], %182 {strides = array<i32>} : memref<1x2x4xf32, #tpu.memory_space<vmem>>, vector<1x1x4xf32>,
    %c0_195 = arith.constant 0 : index
    %c1_196 = arith.constant 1 : index
    %c0_197 = arith.constant 0 : index
    %183 = vector.load %arg5[%c0_195, %c1_196, %c0_197] : memref<1x2x4xf32, #tpu.memory_space<vmem>>, vector<1x1x4xf32>
    %184 = vector.shape_cast %183 : vector<1x1x4xf32> to vector<1x4xf32>
    %185 = vector.shape_cast %179 : vector<1x4xf32> to vector<1x1x4xf32>
    tpu.vector_store %arg5[%c0_195, %c1_196, %c0_197], %185 {strides = array<i32>} : memref<1x2x4xf32, #tpu.memory_space<vmem>>, vector<1x1x4xf32>,
    return
  }
  func.func @transform_0(%arg0: i32) -> (i32, i32, i32, i32) {
    %c0_i32 = arith.constant 0 : i32
    %c0_i32_0 = arith.constant 0 : i32
    %c0_i32_1 = arith.constant 0 : i32
    %c0_i32_2 = arith.constant 0 : i32
    return %arg0, %c0_i32, %c0_i32_0, %c0_i32_1 : i32, i32, i32, i32
  }
  func.func @transform_1(%arg0: i32) -> (i32, i32, i32, i32) {
    %c0_i32 = arith.constant 0 : i32
    %c0_i32_0 = arith.constant 0 : i32
    %c0_i32_1 = arith.constant 0 : i32
    %c0_i32_2 = arith.constant 0 : i32
    %c0_i32_3 = arith.constant 0 : i32
    return %c0_i32, %c0_i32_0, %c0_i32_1, %c0_i32_2 : i32, i32, i32, i32
  }
  func.func @transform_2(%arg0: i32) -> (i32, i32, i32, i32) {
    %c0_i32 = arith.constant 0 : i32
    %c0_i32_0 = arith.constant 0 : i32
    %c0_i32_1 = arith.constant 0 : i32
    %c0_i32_2 = arith.constant 0 : i32
    %c0_i32_3 = arith.constant 0 : i32
    return %c0_i32, %c0_i32_0, %c0_i32_1, %c0_i32_2 : i32, i32, i32, i32
  }
  func.func @transform_3(%arg0: i32) -> (i32, i32, i32, i32, i32) {
    %c0_i32 = arith.constant 0 : i32
    %c0_i32_0 = arith.constant 0 : i32
    %c0_i32_1 = arith.constant 0 : i32
    %c0_i32_2 = arith.constant 0 : i32
    %c0_i32_3 = arith.constant 0 : i32
    return %arg0, %c0_i32, %c0_i32_0, %c0_i32_1, %c0_i32_2 : i32, i32, i32, i32, i32
  }
  func.func @transform_4(%arg0: i32) -> (i32, i32, i32) {
    %c0_i32 = arith.constant 0 : i32
    %c0_i32_0 = arith.constant 0 : i32
    %c0_i32_1 = arith.constant 0 : i32
    return %arg0, %c0_i32, %c0_i32_0 : i32, i32, i32
  }
}

module attributes {stable_mosaic.version = 11 : i64} {
  func.func @_bn_concat_kernel(%arg0: i32, %arg1: memref<1x4x256xf32, #tpu.memory_space<vmem>>, %arg2: memref<1x2x2x64x4xf32, #tpu.memory_space<vmem>>, %arg3: memref<2x2x4xf32, #tpu.memory_space<vmem>>, %arg4: memref<1x4xf32, #tpu.memory_space<vmem>>, %arg5: memref<1x4xf32, #tpu.memory_space<vmem>>, %arg6: memref<1x8x256xf32, #tpu.memory_space<vmem>>) attributes {dimension_semantics = [#tpu.dimension_semantics<parallel>], iteration_bounds = array<i64: 2>, scalar_prefetch = 0 : i64, scratch_operands = 0 : i64, tpu.core_type = #tpu.core_type<tc>, window_params = [{transform_indices = @transform_0, window_bounds = array<i64: 1, 4, 256>}, {transform_indices = @transform_1, window_bounds = array<i64: 1, 2, 2, 64, 4>}, {pipeline_mode = #tpu.pipeline_mode<synchronous>, transform_indices = @transform_2, window_bounds = array<i64: 2, 2, 4>}, {pipeline_mode = #tpu.pipeline_mode<synchronous>, transform_indices = @transform_3, window_bounds = array<i64: 1, 4>}, {pipeline_mode = #tpu.pipeline_mode<synchronous>, transform_indices = @transform_4, window_bounds = array<i64: 1, 4>}, {transform_indices = @transform_5, window_bounds = array<i64: 1, 8, 256>}]} {
    %c0 = arith.constant 0 : index
    %c0_0 = arith.constant 0 : index
    %c0_1 = arith.constant 0 : index
    %0 = vector.load %arg1[%c0, %c0_0, %c0_1] : memref<1x4x256xf32, #tpu.memory_space<vmem>>, vector<1x4x256xf32>
    %1 = vector.shape_cast %0 : vector<1x4x256xf32> to vector<4x256xf32>
    %cst = arith.constant 0.000000e+00 : f32
    %2 = vector.broadcast %cst : f32 to vector<4x256xf32>
    %3 = arith.cmpf oge, %1, %2 : vector<4x256xf32>
    %cst_2 = arith.constant 2.000000e-01 : f32
    %4 = vector.broadcast %cst_2 : f32 to vector<4x256xf32>
    %5 = arith.mulf %4, %1 : vector<4x256xf32>
    %6 = arith.select %3, %1, %5 : vector<4x256xi1>, vector<4x256xf32>
    %c0_3 = arith.constant 0 : index
    %c0_4 = arith.constant 0 : index
    %c0_5 = arith.constant 0 : index
    %7 = vector.load %arg6[%c0_3, %c0_4, %c0_5] : memref<1x8x256xf32, #tpu.memory_space<vmem>>, vector<1x4x256xf32>
    %8 = vector.shape_cast %7 : vector<1x4x256xf32> to vector<4x256xf32>
    %9 = vector.shape_cast %6 : vector<4x256xf32> to vector<1x4x256xf32>
    tpu.vector_store %arg6[%c0_3, %c0_4, %c0_5], %9 {strides = array<i32>} : memref<1x8x256xf32, #tpu.memory_space<vmem>>, vector<1x4x256xf32>,
    %c0_6 = arith.constant 0 : index
    %c0_7 = arith.constant 0 : index
    %c0_8 = arith.constant 0 : index
    %10 = vector.load %arg3[%c0_6, %c0_7, %c0_8] : memref<2x2x4xf32, #tpu.memory_space<vmem>>, vector<2x2x4xf32>
    %11 = vector.extract_strided_slice %10 {offsets = [0, 0, 0], sizes = [2, 1, 4], strides = [1, 1, 1]} : vector<2x2x4xf32> to vector<2x1x4xf32>
    %cst_9 = arith.constant dense<0.000000e+00> : vector<1x4xf32>
    %12 = vector.multi_reduction <add>, %11, %cst_9 [0] : vector<2x1x4xf32> to vector<1x4xf32>
    %13 = vector.extract_strided_slice %10 {offsets = [0, 1, 0], sizes = [2, 1, 4], strides = [1, 1, 1]} : vector<2x2x4xf32> to vector<2x1x4xf32>
    %cst_10 = arith.constant dense<0.000000e+00> : vector<1x4xf32>
    %14 = vector.multi_reduction <add>, %13, %cst_10 [0] : vector<2x1x4xf32> to vector<1x4xf32>
    %cst_11 = arith.constant 5.120000e+02 : f32
    %15 = vector.broadcast %cst_11 : f32 to vector<1x4xf32>
    %16 = arith.divf %12, %15 : vector<1x4xf32>
    %cst_12 = arith.constant 5.120000e+02 : f32
    %17 = vector.broadcast %cst_12 : f32 to vector<1x4xf32>
    %18 = arith.divf %14, %17 : vector<1x4xf32>
    %19 = arith.mulf %16, %16 : vector<1x4xf32>
    %20 = arith.subf %18, %19 : vector<1x4xf32>
    %cst_13 = arith.constant 9.99999974E-6 : f32
    %21 = vector.broadcast %cst_13 : f32 to vector<1x4xf32>
    %22 = arith.addf %20, %21 : vector<1x4xf32>
    %23 = math.rsqrt %22 : vector<1x4xf32>
    %c0_14 = arith.constant 0 : index
    %c0_15 = arith.constant 0 : index
    %24 = vector.load %arg4[%c0_14, %c0_15] : memref<1x4xf32, #tpu.memory_space<vmem>>, vector<1x4xf32>
    %25 = arith.mulf %24, %23 : vector<1x4xf32>
    %c0_16 = arith.constant 0 : index
    %c0_17 = arith.constant 0 : index
    %26 = vector.load %arg5[%c0_16, %c0_17] : memref<1x4xf32, #tpu.memory_space<vmem>>, vector<1x4xf32>
    %27 = arith.mulf %16, %25 : vector<1x4xf32>
    %28 = arith.subf %26, %27 : vector<1x4xf32>
    %c0_18 = arith.constant 0 : index
    %c0_19 = arith.constant 0 : index
    %c0_20 = arith.constant 0 : index
    %c0_21 = arith.constant 0 : index
    %c0_22 = arith.constant 0 : index
    %29 = vector.load %arg2[%c0_18, %c0_19, %c0_20, %c0_21, %c0_22] : memref<1x2x2x64x4xf32, #tpu.memory_space<vmem>>, vector<1x1x1x64x4xf32>
    %30 = vector.shape_cast %29 : vector<1x1x1x64x4xf32> to vector<64x4xf32>
    %31 = vector.broadcast %25 : vector<1x4xf32> to vector<64x4xf32>
    %32 = arith.mulf %30, %31 : vector<64x4xf32>
    %33 = vector.broadcast %28 : vector<1x4xf32> to vector<64x4xf32>
    %34 = arith.addf %32, %33 : vector<64x4xf32>
    %35 = vector.shape_cast %34 : vector<64x4xf32> to vector<8x8x4xf32>
    %c0_23 = arith.constant 0 : index
    %c0_24 = arith.constant 0 : index
    %c1 = arith.constant 1 : index
    %c0_25 = arith.constant 0 : index
    %c0_26 = arith.constant 0 : index
    %36 = vector.load %arg2[%c0_23, %c0_24, %c1, %c0_25, %c0_26] : memref<1x2x2x64x4xf32, #tpu.memory_space<vmem>>, vector<1x1x1x64x4xf32>
    %37 = vector.shape_cast %36 : vector<1x1x1x64x4xf32> to vector<64x4xf32>
    %38 = vector.broadcast %25 : vector<1x4xf32> to vector<64x4xf32>
    %39 = arith.mulf %37, %38 : vector<64x4xf32>
    %40 = vector.broadcast %28 : vector<1x4xf32> to vector<64x4xf32>
    %41 = arith.addf %39, %40 : vector<64x4xf32>
    %42 = vector.shape_cast %41 : vector<64x4xf32> to vector<8x8x4xf32>
    %43 = vector.shape_cast %35 : vector<8x8x4xf32> to vector<8x8x1x4xf32>
    %44 = vector.shape_cast %42 : vector<8x8x4xf32> to vector<8x8x1x4xf32>
    %45 = tpu.concatenate %43, %44 in 2 : vector<8x8x1x4xf32>, vector<8x8x1x4xf32> -> vector<8x8x2x4xf32>
    %46 = vector.shape_cast %45 : vector<8x8x2x4xf32> to vector<8x16x4xf32>
    %c0_27 = arith.constant 0 : index
    %c1_28 = arith.constant 1 : index
    %c0_29 = arith.constant 0 : index
    %c0_30 = arith.constant 0 : index
    %c0_31 = arith.constant 0 : index
    %47 = vector.load %arg2[%c0_27, %c1_28, %c0_29, %c0_30, %c0_31] : memref<1x2x2x64x4xf32, #tpu.memory_space<vmem>>, vector<1x1x1x64x4xf32>
    %48 = vector.shape_cast %47 : vector<1x1x1x64x4xf32> to vector<64x4xf32>
    %49 = vector.broadcast %25 : vector<1x4xf32> to vector<64x4xf32>
    %50 = arith.mulf %48, %49 : vector<64x4xf32>
    %51 = vector.broadcast %28 : vector<1x4xf32> to vector<64x4xf32>
    %52 = arith.addf %50, %51 : vector<64x4xf32>
    %53 = vector.shape_cast %52 : vector<64x4xf32> to vector<8x8x4xf32>
    %c0_32 = arith.constant 0 : index
    %c1_33 = arith.constant 1 : index
    %c1_34 = arith.constant 1 : index
    %c0_35 = arith.constant 0 : index
    %c0_36 = arith.constant 0 : index
    %54 = vector.load %arg2[%c0_32, %c1_33, %c1_34, %c0_35, %c0_36] : memref<1x2x2x64x4xf32, #tpu.memory_space<vmem>>, vector<1x1x1x64x4xf32>
    %55 = vector.shape_cast %54 : vector<1x1x1x64x4xf32> to vector<64x4xf32>
    %56 = vector.broadcast %25 : vector<1x4xf32> to vector<64x4xf32>
    %57 = arith.mulf %55, %56 : vector<64x4xf32>
    %58 = vector.broadcast %28 : vector<1x4xf32> to vector<64x4xf32>
    %59 = arith.addf %57, %58 : vector<64x4xf32>
    %60 = vector.shape_cast %59 : vector<64x4xf32> to vector<8x8x4xf32>
    %61 = vector.shape_cast %53 : vector<8x8x4xf32> to vector<8x8x1x4xf32>
    %62 = vector.shape_cast %60 : vector<8x8x4xf32> to vector<8x8x1x4xf32>
    %63 = tpu.concatenate %61, %62 in 2 : vector<8x8x1x4xf32>, vector<8x8x1x4xf32> -> vector<8x8x2x4xf32>
    %64 = vector.shape_cast %63 : vector<8x8x2x4xf32> to vector<8x16x4xf32>
    %65 = vector.shape_cast %46 : vector<8x16x4xf32> to vector<8x1x16x4xf32>
    %66 = vector.shape_cast %64 : vector<8x16x4xf32> to vector<8x1x16x4xf32>
    %67 = tpu.concatenate %65, %66 in 1 : vector<8x1x16x4xf32>, vector<8x1x16x4xf32> -> vector<8x2x16x4xf32>
    %68 = vector.shape_cast %67 : vector<8x2x16x4xf32> to vector<16x16x4xf32>
    %69 = vector.shape_cast %68 : vector<16x16x4xf32> to vector<256x4xf32>
    %70 = tpu.transpose %69, [1, 0] : vector<256x4xf32> -> vector<4x256xf32>
    %c0_37 = arith.constant 0 : index
    %c4 = arith.constant 4 : index
    %c0_38 = arith.constant 0 : index
    %71 = vector.load %arg6[%c0_37, %c4, %c0_38] : memref<1x8x256xf32, #tpu.memory_space<vmem>>, vector<1x4x256xf32>
    %72 = vector.shape_cast %71 : vector<1x4x256xf32> to vector<4x256xf32>
    %73 = vector.shape_cast %70 : vector<4x256xf32> to vector<1x4x256xf32>
    tpu.vector_store %arg6[%c0_37, %c4, %c0_38], %73 {strides = array<i32>} : memref<1x8x256xf32, #tpu.memory_space<vmem>>, vector<1x4x256xf32>,
    return
  }
  func.func @transform_0(%arg0: i32) -> (i32, i32, i32) {
    %c0_i32 = arith.constant 0 : i32
    %c0_i32_0 = arith.constant 0 : i32
    %c0_i32_1 = arith.constant 0 : i32
    return %arg0, %c0_i32, %c0_i32_0 : i32, i32, i32
  }
  func.func @transform_1(%arg0: i32) -> (i32, i32, i32, i32, i32) {
    %c0_i32 = arith.constant 0 : i32
    %c0_i32_0 = arith.constant 0 : i32
    %c0_i32_1 = arith.constant 0 : i32
    %c0_i32_2 = arith.constant 0 : i32
    %c0_i32_3 = arith.constant 0 : i32
    return %arg0, %c0_i32, %c0_i32_0, %c0_i32_1, %c0_i32_2 : i32, i32, i32, i32, i32
  }
  func.func @transform_2(%arg0: i32) -> (i32, i32, i32) {
    %c0_i32 = arith.constant 0 : i32
    %c0_i32_0 = arith.constant 0 : i32
    %c0_i32_1 = arith.constant 0 : i32
    %c0_i32_2 = arith.constant 0 : i32
    return %c0_i32, %c0_i32_0, %c0_i32_1 : i32, i32, i32
  }
  func.func @transform_3(%arg0: i32) -> (i32, i32) {
    %c0_i32 = arith.constant 0 : i32
    %c0_i32_0 = arith.constant 0 : i32
    %c0_i32_1 = arith.constant 0 : i32
    return %c0_i32, %c0_i32_0 : i32, i32
  }
  func.func @transform_4(%arg0: i32) -> (i32, i32) {
    %c0_i32 = arith.constant 0 : i32
    %c0_i32_0 = arith.constant 0 : i32
    %c0_i32_1 = arith.constant 0 : i32
    return %c0_i32, %c0_i32_0 : i32, i32
  }
  func.func @transform_5(%arg0: i32) -> (i32, i32, i32) {
    %c0_i32 = arith.constant 0 : i32
    %c0_i32_0 = arith.constant 0 : i32
    %c0_i32_1 = arith.constant 0 : i32
    return %arg0, %c0_i32, %c0_i32_0 : i32, i32, i32
  }
}

</mosaic_0001>

<llo_original>
// kernel: unet_innermost_forward.3
$region0: #{unet_innermost_forward.3}
  #allocation0 [shape = 'u32[]', space=smem, size = 0x4, offset = 0x4, fixed_abs, tag = 'smem constant byte address 0x4 - core index']
  #allocation1 [shape = 'u32[144,128]{1,0:T(1,128)}', space=vmem, size = 0x12000, scoped, tag = 'internal scratch']
  %s0 = inlined_call_operand.vmem [shape: f32[2,4,256], index: 0, kind: input, shape index: {}]
  %s1 = inlined_call_operand.vmem [shape: f32[2,2,2,64,4], index: 1, kind: input, shape index: {}]
  %s2 = inlined_call_operand.vmem [shape: f32[2,2,4], index: 2, kind: input, shape index: {}]
  %s3 = inlined_call_operand.vmem [shape: f32[1,4], index: 3, kind: input, shape index: {}]
  %s4 = inlined_call_operand.vmem [shape: f32[1,4], index: 4, kind: input, shape index: {}]
  %s5 = inlined_call_operand.vmem [shape: f32[2,8,256], index: 5, kind: output, shape index: {}]
  %s6 = sld [smem:[#allocation0]]
  $region53: #{unet_innermost_forward.3} parent=0
    _
  %s8 = ssub.s32 1, %s6
  %s9 = scalar_select 0, %s8, %s6
  loop: start=0, step=1, limit=4
  $region2: #{unet_innermost_forward.3} parent=0 // loop_pre_header
    _
  $region3: #{unet_innermost_forward.3} parent=0 // loop_header
    %s11 = sphi 0, %s15
    %p12 = scmp.ge.s32.totalorder %s11, 4
    %s21 = sphi 0, %s23
    %s24 = sphi 0, %s21
    %s25 = sphi 0, %s24
    %s41 = sphi 0, %s25
    %s47 = sphi 0, %s49
    %s50 = sphi 0, %s47
    %s51 = sphi 0, %s50
    %s67 = sphi 0, %s51
    %s71 = sphi 0, %s71
    %s73 = sphi 0, %s71
    %s74 = sphi 0, %s73
    %s88 = sphi 0, %s74
    %s92 = sphi 0, %s92
    %s94 = sphi 0, %s92
    %s95 = sphi 0, %s94
    %s109 = sphi 0, %s95
    %s113 = sphi 0, %s113
    %s115 = sphi 0, %s113
    %s116 = sphi 0, %s115
    %s130 = sphi 0, %s116
    %s136 = sphi 0, %s138
    %s139 = sphi 0, %s136
    %s140 = sphi 0, %s139
    %s156 = sphi 0, %s140
  $region4: #{unet_innermost_forward.3} parent=0 // loop_header_branch
    %14 = sbr.rel (%p12) target = $region8
  $region5: #{unet_innermost_forward.3} parent=0 // loop_body
    %s16 = ssub.s32 %s11, 1
    %s17 = ssub.s32 %s11, 2
    %s18 = sadd.s32 %s11, 1
    %s19 = ssub.s32 %s11, %s18
    %p20 = scmp.eq.s32.totalorder %s19, 0
    %s22 = sadd.s32 %s21, 1
    %s23 = scalar_select %p20, %s21, %s22
    %p26 = pneg %p20
    %p27 = scmp.eq.s32.totalorder %s11, 1
    %p28 = por %p26, %p27
    %p29 = scmp.ne.s32.totalorder %s21, %s24
    %p30 = scmp.eq.s32.totalorder %s11, 0
    %p31 = por %p29, %p30
    %p32 = scmp.ne.s32.totalorder %s21, %s24
    %p33 = scmp.eq.s32.totalorder %s16, 1
    %p34 = por %p32, %p33
    %p35 = scmp.ne.s32.totalorder %s24, %s25
    %p36 = scmp.eq.s32.totalorder %s16, 0
    %p37 = por %p35, %p36
    %p38 = scmp.ne.s32.totalorder %s24, %s25
    %p39 = scmp.eq.s32.totalorder %s17, 1
    %p40 = por %p38, %p39
    %p42 = scmp.ne.s32.totalorder %s25, %s41
    %p43 = scmp.eq.s32.totalorder %s17, 0
    %p44 = por %p42, %p43
    %s45 = ssub.s32 %s11, %s18
    %p46 = scmp.eq.s32.totalorder %s45, 0
    %s48 = sadd.s32 %s47, 1
    %s49 = scalar_select %p46, %s47, %s48
    %p52 = pneg %p46
    %p53 = scmp.eq.s32.totalorder %s11, 1
    %p54 = por %p52, %p53
    %p55 = scmp.ne.s32.totalorder %s47, %s50
    %p56 = scmp.eq.s32.totalorder %s11, 0
    %p57 = por %p55, %p56
    %p58 = scmp.ne.s32.totalorder %s47, %s50
    %p59 = scmp.eq.s32.totalorder %s16, 1
    %p60 = por %p58, %p59
    %p61 = scmp.ne.s32.totalorder %s50, %s51
    %p62 = scmp.eq.s32.totalorder %s16, 0
    %p63 = por %p61, %p62
    %p64 = scmp.ne.s32.totalorder %s50, %s51
    %p65 = scmp.eq.s32.totalorder %s17, 1
    %p66 = por %p64, %p65
    %p68 = scmp.ne.s32.totalorder %s51, %s67
    %p69 = scmp.eq.s32.totalorder %s17, 0
    %p70 = por %p68, %p69
    %s72 = sadd.s32 %s71, 1
    %p75 = scmp.eq.s32.totalorder %s11, 1
    %p76 = scmp.ne.s32.totalorder %s71, %s73
    %p77 = scmp.eq.s32.totalorder %s11, 0
    %p78 = por %p76, %p77
    %p79 = scmp.ne.s32.totalorder %s71, %s73
    %p80 = scmp.eq.s32.totalorder %s16, 1
    %p81 = por %p79, %p80
    %p82 = scmp.ne.s32.totalorder %s73, %s74
    %p83 = scmp.eq.s32.totalorder %s16, 0
    %p84 = por %p82, %p83
    %p85 = scmp.ne.s32.totalorder %s73, %s74
    %p86 = scmp.eq.s32.totalorder %s17, 1
    %p87 = por %p85, %p86
    %p89 = scmp.ne.s32.totalorder %s74, %s88
    %p90 = scmp.eq.s32.totalorder %s17, 0
    %p91 = por %p89, %p90
    %s93 = sadd.s32 %s92, 1
    %p96 = scmp.eq.s32.totalorder %s11, 1
    %p97 = scmp.ne.s32.totalorder %s92, %s94
    %p98 = scmp.eq.s32.totalorder %s11, 0
    %p99 = por %p97, %p98
    %p100 = scmp.ne.s32.totalorder %s92, %s94
    %p101 = scmp.eq.s32.totalorder %s16, 1
    %p102 = por %p100, %p101
    %p103 = scmp.ne.s32.totalorder %s94, %s95
    %p104 = scmp.eq.s32.totalorder %s16, 0
    %p105 = por %p103, %p104
    %p106 = scmp.ne.s32.totalorder %s94, %s95
    %p107 = scmp.eq.s32.totalorder %s17, 1
    %p108 = por %p106, %p107
    %p110 = scmp.ne.s32.totalorder %s95, %s109
    %p111 = scmp.eq.s32.totalorder %s17, 0
    %p112 = por %p110, %p111
    %s114 = sadd.s32 %s113, 1
    %p117 = scmp.eq.s32.totalorder %s11, 1
    %p118 = scmp.ne.s32.totalorder %s113, %s115
    %p119 = scmp.eq.s32.totalorder %s11, 0
    %p120 = por %p118, %p119
    %p121 = scmp.ne.s32.totalorder %s113, %s115
    %p122 = scmp.eq.s32.totalorder %s16, 1
    %p123 = por %p121, %p122
    %p124 = scmp.ne.s32.totalorder %s115, %s116
    %p125 = scmp.eq.s32.totalorder %s16, 0
    %p126 = por %p124, %p125
    %p127 = scmp.ne.s32.totalorder %s115, %s116
    %p128 = scmp.eq.s32.totalorder %s17, 1
    %p129 = por %p127, %p128
    %p131 = scmp.ne.s32.totalorder %s116, %s130
    %p132 = scmp.eq.s32.totalorder %s17, 0
    %p133 = por %p131, %p132
    %s134 = ssub.s32 %s11, %s18
    %p135 = scmp.eq.s32.totalorder %s134, 0
    %s137 = sadd.s32 %s136, 1
    %s138 = scalar_select %p135, %s136, %s137
    %p141 = pneg %p135
    %p142 = scmp.eq.s32.totalorder %s11, 1
    %p143 = por %p141, %p142
    %p144 = scmp.ne.s32.totalorder %s136, %s139
    %p145 = scmp.eq.s32.totalorder %s11, 0
    %p146 = por %p144, %p145
    %p147 = scmp.ne.s32.totalorder %s136, %s139
    %p148 = scmp.eq.s32.totalorder %s16, 1
    %p149 = por %p147, %p148
    %p150 = scmp.ne.s32.totalorder %s139, %s140
    %p151 = scmp.eq.s32.totalorder %s16, 0
    %p152 = por %p150, %p151
    %p153 = scmp.ne.s32.totalorder %s139, %s140
    %p154 = scmp.eq.s32.totalorder %s17, 1
    %p155 = por %p153, %p154
    %p157 = scmp.ne.s32.totalorder %s140, %s156
    %p158 = scmp.eq.s32.totalorder %s17, 0
    %p159 = por %p157, %p158
    %p160 = scmp.le.s32.totalorder 1, %s11
    %p161 = scmp.lt.s32.totalorder %s11, 3
    %p162 = pnand %p160, %p161
    %p163 = pneg %p162
    // Predicated region
    $region9: #{unet_innermost_forward.3} parent=5 // pred_check
      _
    $region10: #{unet_innermost_forward.3} parent=5 // pred_check_branch
      %165 = sbr.rel (%p162) target = $region12
    $region11: #{unet_innermost_forward.3} parent=5 // pred_region
      %s166 = ssub.s32 %s11, 1
      // Predicated region
      $region13: #{unet_innermost_forward.3} parent=11 // pred_check
        %p167 = pneg %p84
      $region14: #{unet_innermost_forward.3} parent=11 // pred_check_branch
        %169 = sbr.rel (%p167) target = $region16
      $region15: #{unet_innermost_forward.3} parent=11 // pred_region
        _
      $region16: #{unet_innermost_forward.3} parent=11 // pred_fallthru
        _
      // Predicated region
      $region17: #{unet_innermost_forward.3} parent=11 // pred_check
        %p170 = pneg %p105
      $region18: #{unet_innermost_forward.3} parent=11 // pred_check_branch
        %172 = sbr.rel (%p170) target = $region20
      $region19: #{unet_innermost_forward.3} parent=11 // pred_region
        _
      $region20: #{unet_innermost_forward.3} parent=11 // pred_fallthru
        _
      // Predicated region
      $region21: #{unet_innermost_forward.3} parent=11 // pred_check
        %p173 = pneg %p126
      $region22: #{unet_innermost_forward.3} parent=11 // pred_check_branch
        %175 = sbr.rel (%p173) target = $region24
      $region23: #{unet_innermost_forward.3} parent=11 // pred_region
        _
      $region24: #{unet_innermost_forward.3} parent=11 // pred_fallthru
        _
    $region12: #{unet_innermost_forward.3} parent=5 // pred_fallthru
      _
    %p176 = scmp.lt.s32.totalorder %s11, 2
    // Predicated region
    $region25: #{unet_innermost_forward.3} parent=5 // pred_check
      %p177 = pneg %p176
    $region26: #{unet_innermost_forward.3} parent=5 // pred_check_branch
      %179 = sbr.rel (%p177) target = $region28
    $region27: #{unet_innermost_forward.3} parent=5 // pred_region
      // Predicated region
      $region29: #{unet_innermost_forward.3} parent=27 // pred_check
        %p180 = pneg %p31
      $region30: #{unet_innermost_forward.3} parent=27 // pred_check_branch
        %182 = sbr.rel (%p180) target = $region32
      $region31: #{unet_innermost_forward.3} parent=27 // pred_region
        %p183 = scmp.lt.s32.totalorder %s11, 1
        %s184 = scalar_select %p183, %s11, 1
        %s185 = smul.addr %s184, 2
        %s186 = smul.addr %s185, 4
        %s187 = scalar_lea.vmem %s0, %s186
      $region32: #{unet_innermost_forward.3} parent=27 // pred_fallthru
        _
      // Predicated region
      $region33: #{unet_innermost_forward.3} parent=27 // pred_check
        %p188 = pneg %p57
      $region34: #{unet_innermost_forward.3} parent=27 // pred_check_branch
        %190 = sbr.rel (%p188) target = $region36
      $region35: #{unet_innermost_forward.3} parent=27 // pred_region
        %p191 = scmp.lt.s32.totalorder %s11, 1
        %s192 = scalar_select %p191, %s11, 1
        %s193 = smul.addr %s192, 32
        %s194 = smul.addr %s193, 8
        %s195 = scalar_lea.vmem %s1, %s194
      $region36: #{unet_innermost_forward.3} parent=27 // pred_fallthru
        _
    $region28: #{unet_innermost_forward.3} parent=5 // pred_fallthru
      _
    %p196 = scmp.le.s32.totalorder 1, %s11
    %p197 = scmp.lt.s32.totalorder %s11, 3
    %p198 = pnand %p196, %p197
    %p199 = pneg %p198
    // Predicated region
    $region37: #{unet_innermost_forward.3} parent=5 // pred_check
      _
    $region38: #{unet_innermost_forward.3} parent=5 // pred_check_branch
      %201 = sbr.rel (%p198) target = $region40
    $region39: #{unet_innermost_forward.3} parent=5 // pred_region
      %s202 = ssub.s32 %s11, 1
      %p203 = scmp.lt.s32.totalorder %s16, 1
      %s204 = scalar_select %p203, %s16, 1
      %s205 = smul.addr %s204, 2
      %s206 = smul.addr %s205, 4
      %s207 = scalar_lea.vmem %s0, %s206
      %p208 = pneg %p37
      %p209 = pneg %p34
      %p210 = scmp.lt.s32.totalorder %s16, 1
      %s211 = scalar_select %p210, %s16, 1
      %s212 = smul.addr %s211, 32
      %s213 = smul.addr %s212, 8
      %s214 = scalar_lea.vmem %s1, %s213
      %p215 = pneg %p63
      %p216 = pneg %p60
      %p217 = pneg %p84
      %p218 = pneg %p81
      %p219 = pneg %p105
      %p220 = pneg %p102
      %p221 = pneg %p126
      %p222 = pneg %p123
      %p223 = pneg %p152
      %p224 = pneg %p149
      %p225 = scmp.lt.s32.totalorder %s16, 1
      %s226 = scalar_select %p225, %s16, 1
      %s227 = smul.addr %s226, 2
      %s228 = smul.addr %s227, 8
      %s229 = scalar_lea.vmem %s5, %s228
      %p230 = scmp.lt.s32.totalorder %s16, 1
      %s231 = scalar_select %p230, %s16, 1
      %s232 = smul.addr %s231, 2
      %s233 = smul.addr %s232, 4
      %s234 = scalar_lea.vmem %s0, %s233
      %p235 = scmp.lt.s32.totalorder %s16, 1
      %s236 = scalar_select %p235, %s16, 1
      %s237 = smul.addr %s236, 32
      %s238 = smul.addr %s237, 8
      %s239 = scalar_lea.vmem %s1, %s238
      %p240 = scmp.lt.s32.totalorder %s16, 1
      %s241 = scalar_select %p240, %s16, 1
      %s242 = smul.addr %s241, 2
      %s243 = smul.addr %s242, 8
      %s244 = scalar_lea.vmem %s5, %s243
      %v245 = vld [vmem:[%s234] sm:$0xff]
      %vm246 = vcmp.ge.f32.partialorder %v245, 0.0
      %v247 = vmul.f32 %v245, 0.2
      %v248 = vsel %vm246, %v245, %v247
      %v250 = vcombine.high %v248, %v248
      %252 = vst [vmem:[%s244] sm:$0xf] %v248
      %253 = vst [vmem:[%s244 + $0x8] sm:$0xf] %v250
      %v254 = vld [vmem:[%s2] sm:$0x3]
      %v255 = vld [vmem:[%s2 + $0x2] sm:$0x3]
      %vm256 = vcmask 24576
      %v257 = vsel %vm256, %v254, 0.0
      %v258 = vsel %vm256, %v255, 0.0
      %v259 = vadd.f32 %v257, %v258
      %vm260 = vcmask 25601
      %v261 = vsel %vm260, %v254, 0.0
      %v262 = vsel %vm260, %v255, 0.0
      %v263 = vadd.f32 %v261, %v262
      %v264 = vrcp.pop 512.0
      %v265 = vmul.f32 %v259, %v264
      %v266 = vmul.f32 %v263, %v264
      %v267 = vmul.f32 %v265, %v265
      %v269 = vrot.slane %v267, 7
      %v271 = vsub.f32 %v266, %v269
      %v272 = vadd.f32 %v271, 1e-05
      %v273 = vrsqrt.pop %v272
      %v274 = vld [vmem:[%s3] sm:$0x1]
      %v277 = vunpack.c.l.s4 1966171168
      %v278 = vunpack.c.0.s8 %v277
      %v279 = vlaneseq
      %v280 = vshrl.u32 %v279, 7
      %v281 = vsub.s32 %v278, %v280
      %v282 = vrot.slane %v273, %v281
      %v283 = vcombine.high %v282, %v282
      %v285 = vunpack.c.l.s4 1966171168
      %v286 = vunpack.c.0.s8 %v285
      %v287 = vlaneseq
      %v288 = vshrl.u32 %v287, 7
      %v289 = vsub.s32 %v286, %v288
      %v290 = vrot.slane %v283, %v289
      %v292 = vmul.f32 %v274, %v290
      %v293 = vld [vmem:[%s4] sm:$0x1]
      %v294 = vmul.f32 %v265, %v292
      %v295 = vsub.f32 %v293, %v294
      %v296 = vld [vmem:[%s239] sm:$0xff]
      %v297 = vld [vmem:[%s239 + $0x8] sm:$0xff]
      %v298 = vld [vmem:[%s239 + $0x10] sm:$0xff]
      %v299 = vld [vmem:[%s239 + $0x18] sm:$0xff]
      %v300 = vld [vmem:[%s239 + $0x20] sm:$0xff]
      %v301 = vld [vmem:[%s239 + $0x28] sm:$0xff]
      %v302 = vld [vmem:[%s239 + $0x30] sm:$0xff]
      %v303 = vld [vmem:[%s239 + $0x38] sm:$0xff]
      %v305 = vlaneseq
      %v306 = vshrl.u32 %v305, 7
      %v307 = vsub.s32 0, %v306
      %v308 = vrot.slane %v292, %v307
      %v310 = vmul.f32 %v296, %v308
      %v311 = vmul.f32 %v297, %v308
      %v312 = vmul.f32 %v298, %v308
      %v313 = vmul.f32 %v299, %v308
      %v314 = vmul.f32 %v300, %v308
      %v315 = vmul.f32 %v301, %v308
      %v316 = vmul.f32 %v302, %v308
      %v317 = vmul.f32 %v303, %v308
      %v319 = vlaneseq
      %v320 = vshrl.u32 %v319, 7
      %v321 = vsub.s32 0, %v320
      %v322 = vrot.slane %v295, %v321
      %v324 = vadd.f32 %v310, %v322
      %v325 = vadd.f32 %v311, %v322
      %v326 = vadd.f32 %v312, %v322
      %v327 = vadd.f32 %v313, %v322
      %v328 = vadd.f32 %v314, %v322
      %v329 = vadd.f32 %v315, %v322
      %v330 = vadd.f32 %v316, %v322
      %v331 = vadd.f32 %v317, %v322
      %s332 = scalar_lea.vmem %s239, 64
      %v333 = vld [vmem:[%s332] sm:$0xff]
      %v334 = vld [vmem:[%s332 + $0x8] sm:$0xff]
      %v335 = vld [vmem:[%s332 + $0x10] sm:$0xff]
      %v336 = vld [vmem:[%s332 + $0x18] sm:$0xff]
      %v337 = vld [vmem:[%s332 + $0x20] sm:$0xff]
      %v338 = vld [vmem:[%s332 + $0x28] sm:$0xff]
      %v339 = vld [vmem:[%s332 + $0x30] sm:$0xff]
      %v340 = vld [vmem:[%s332 + $0x38] sm:$0xff]
      %v341 = vmul.f32 %v333, %v308
      %v342 = vmul.f32 %v334, %v308
      %v343 = vmul.f32 %v335, %v308
      %v344 = vmul.f32 %v336, %v308
      %v345 = vmul.f32 %v337, %v308
      %v346 = vmul.f32 %v338, %v308
      %v347 = vmul.f32 %v339, %v308
      %v348 = vmul.f32 %v340, %v308
      %v349 = vadd.f32 %v341, %v322
      %v350 = vadd.f32 %v342, %v322
      %v351 = vadd.f32 %v343, %v322
      %v352 = vadd.f32 %v344, %v322
      %v353 = vadd.f32 %v345, %v322
      %v354 = vadd.f32 %v346, %v322
      %v355 = vadd.f32 %v347, %v322
      %v356 = vadd.f32 %v348, %v322
      %v365 = vcombine.high %v324, %v324
      %v367 = vunpack.c.l.s4 1966171168
      %v368 = vunpack.c.0.s8 %v367
      %v369 = vlaneseq
      %v370 = vshrl.u32 %v369, 7
      %v371 = vsub.s32 %v368, %v370
      %v372 = vrot.slane %v324, %v371
      %v374 = vunpack.c.l.s4 1966171168
      %v375 = vunpack.c.0.s8 %v374
      %v376 = vlaneseq
      %v377 = vshrl.u32 %v376, 7
      %v378 = vsub.s32 %v375, %v377
      %v379 = vrot.slane %v365, %v378
      %v380 = vcombine.high %v372, %v372
      %v381 = vcombine.high %v379, %v379
      %v383 = vunpack.c.l.s4 1966171168
      %v384 = vunpack.c.0.s8 %v383
      %v385 = vlaneseq
      %v386 = vshrl.u32 %v385, 7
      %v387 = vsub.s32 %v384, %v386
      %v388 = vrot.slane %v372, %v387
      %v390 = vunpack.c.l.s4 1966171168
      %v391 = vunpack.c.0.s8 %v390
      %v392 = vlaneseq
      %v393 = vshrl.u32 %v392, 7
      %v394 = vsub.s32 %v391, %v393
      %v395 = vrot.slane %v379, %v394
      %v397 = vunpack.c.l.s4 1966171168
      %v398 = vunpack.c.0.s8 %v397
      %v399 = vlaneseq
      %v400 = vshrl.u32 %v399, 7
      %v401 = vsub.s32 %v398, %v400
      %v402 = vrot.slane %v380, %v401
      %v404 = vunpack.c.l.s4 1966171168
      %v405 = vunpack.c.0.s8 %v404
      %v406 = vlaneseq
      %v407 = vshrl.u32 %v406, 7
      %v408 = vsub.s32 %v405, %v407
      %v409 = vrot.slane %v381, %v408
      %v410 = vcombine.high %v388, %v388
      %v411 = vcombine.high %v395, %v395
      %v412 = vcombine.high %v402, %v402
      %v413 = vcombine.high %v409, %v409
      %v414 = vcombine.high %v325, %v325
      %v416 = vunpack.c.l.s4 1966171168
      %v417 = vunpack.c.0.s8 %v416
      %v418 = vlaneseq
      %v419 = vshrl.u32 %v418, 7
      %v420 = vsub.s32 %v417, %v419
      %v421 = vrot.slane %v325, %v420
      %v423 = vunpack.c.l.s4 1966171168
      %v424 = vunpack.c.0.s8 %v423
      %v425 = vlaneseq
      %v426 = vshrl.u32 %v425, 7
      %v427 = vsub.s32 %v424, %v426
      %v428 = vrot.slane %v414, %v427
      %v429 = vcombine.high %v421, %v421
      %v430 = vcombine.high %v428, %v428
      %v432 = vunpack.c.l.s4 1966171168
      %v433 = vunpack.c.0.s8 %v432
      %v434 = vlaneseq
      %v435 = vshrl.u32 %v434, 7
      %v436 = vsub.s32 %v433, %v435
      %v437 = vrot.slane %v421, %v436
      %v439 = vunpack.c.l.s4 1966171168
      %v440 = vunpack.c.0.s8 %v439
      %v441 = vlaneseq
      %v442 = vshrl.u32 %v441, 7
      %v443 = vsub.s32 %v440, %v442
      %v444 = vrot.slane %v428, %v443
      %v446 = vunpack.c.l.s4 1966171168
      %v447 = vunpack.c.0.s8 %v446
      %v448 = vlaneseq
      %v449 = vshrl.u32 %v448, 7
      %v450 = vsub.s32 %v447, %v449
      %v451 = vrot.slane %v429, %v450
      %v453 = vunpack.c.l.s4 1966171168
      %v454 = vunpack.c.0.s8 %v453
      %v455 = vlaneseq
      %v456 = vshrl.u32 %v455, 7
      %v457 = vsub.s32 %v454, %v456
      %v458 = vrot.slane %v430, %v457
      %v459 = vcombine.high %v437, %v437
      %v460 = vcombine.high %v444, %v444
      %v461 = vcombine.high %v451, %v451
      %v462 = vcombine.high %v458, %v458
      %v463 = vcombine.high %v326, %v326
      %v465 = vunpack.c.l.s4 1966171168
      %v466 = vunpack.c.0.s8 %v465
      %v467 = vlaneseq
      %v468 = vshrl.u32 %v467, 7
      %v469 = vsub.s32 %v466, %v468
      %v470 = vrot.slane %v326, %v469
      %v472 = vunpack.c.l.s4 1966171168
      %v473 = vunpack.c.0.s8 %v472
      %v474 = vlaneseq
      %v475 = vshrl.u32 %v474, 7
      %v476 = vsub.s32 %v473, %v475
      %v477 = vrot.slane %v463, %v476
      %v478 = vcombine.high %v470, %v470
      %v479 = vcombine.high %v477, %v477
      %v481 = vunpack.c.l.s4 1966171168
      %v482 = vunpack.c.0.s8 %v481
      %v483 = vlaneseq
      %v484 = vshrl.u32 %v483, 7
      %v485 = vsub.s32 %v482, %v484
      %v486 = vrot.slane %v470, %v485
      %v488 = vunpack.c.l.s4 1966171168
      %v489 = vunpack.c.0.s8 %v488
      %v490 = vlaneseq
      %v491 = vshrl.u32 %v490, 7
      %v492 = vsub.s32 %v489, %v491
      %v493 = vrot.slane %v477, %v492
      %v495 = vunpack.c.l.s4 1966171168
      %v496 = vunpack.c.0.s8 %v495
      %v497 = vlaneseq
      %v498 = vshrl.u32 %v497, 7
      %v499 = vsub.s32 %v496, %v498
      %v500 = vrot.slane %v478, %v499
      %v502 = vunpack.c.l.s4 1966171168
      %v503 = vunpack.c.0.s8 %v502
      %v504 = vlaneseq
      %v505 = vshrl.u32 %v504, 7
      %v506 = vsub.s32 %v503, %v505
      %v507 = vrot.slane %v479, %v506
      %v508 = vcombine.high %v486, %v486
      %v509 = vcombine.high %v493, %v493
      %v510 = vcombine.high %v500, %v500
      %v511 = vcombine.high %v507, %v507
      %v512 = vcombine.high %v327, %v327
      %v514 = vunpack.c.l.s4 1966171168
      %v515 = vunpack.c.0.s8 %v514
      %v516 = vlaneseq
      %v517 = vshrl.u32 %v516, 7
      %v518 = vsub.s32 %v515, %v517
      %v519 = vrot.slane %v327, %v518
      %v521 = vunpack.c.l.s4 1966171168
      %v522 = vunpack.c.0.s8 %v521
      %v523 = vlaneseq
      %v524 = vshrl.u32 %v523, 7
      %v525 = vsub.s32 %v522, %v524
      %v526 = vrot.slane %v512, %v525
      %v527 = vcombine.high %v519, %v519
      %v528 = vcombine.high %v526, %v526
      %v530 = vunpack.c.l.s4 1966171168
      %v531 = vunpack.c.0.s8 %v530
      %v532 = vlaneseq
      %v533 = vshrl.u32 %v532, 7
      %v534 = vsub.s32 %v531, %v533
      %v535 = vrot.slane %v519, %v534
      %v537 = vunpack.c.l.s4 1966171168
      %v538 = vunpack.c.0.s8 %v537
      %v539 = vlaneseq
      %v540 = vshrl.u32 %v539, 7
      %v541 = vsub.s32 %v538, %v540
      %v542 = vrot.slane %v526, %v541
      %v544 = vunpack.c.l.s4 1966171168
      %v545 = vunpack.c.0.s8 %v544
      %v546 = vlaneseq
      %v547 = vshrl.u32 %v546, 7
      %v548 = vsub.s32 %v545, %v547
      %v549 = vrot.slane %v527, %v548
      %v551 = vunpack.c.l.s4 1966171168
      %v552 = vunpack.c.0.s8 %v551
      %v553 = vlaneseq
      %v554 = vshrl.u32 %v553, 7
      %v555 = vsub.s32 %v552, %v554
      %v556 = vrot.slane %v528, %v555
      %v557 = vcombine.high %v535, %v535
      %v558 = vcombine.high %v542, %v542
      %v559 = vcombine.high %v549, %v549
      %v560 = vcombine.high %v556, %v556
      %v561 = vcombine.high %v328, %v328
      %v563 = vunpack.c.l.s4 1966171168
      %v564 = vunpack.c.0.s8 %v563
      %v565 = vlaneseq
      %v566 = vshrl.u32 %v565, 7
      %v567 = vsub.s32 %v564, %v566
      %v568 = vrot.slane %v328, %v567
      %v570 = vunpack.c.l.s4 1966171168
      %v571 = vunpack.c.0.s8 %v570
      %v572 = vlaneseq
      %v573 = vshrl.u32 %v572, 7
      %v574 = vsub.s32 %v571, %v573
      %v575 = vrot.slane %v561, %v574
      %v576 = vcombine.high %v568, %v568
      %v577 = vcombine.high %v575, %v575
      %v579 = vunpack.c.l.s4 1966171168
      %v580 = vunpack.c.0.s8 %v579
      %v581 = vlaneseq
      %v582 = vshrl.u32 %v581, 7
      %v583 = vsub.s32 %v580, %v582
      %v584 = vrot.slane %v568, %v583
      %v586 = vunpack.c.l.s4 1966171168
      %v587 = vunpack.c.0.s8 %v586
      %v588 = vlaneseq
      %v589 = vshrl.u32 %v588, 7
      %v590 = vsub.s32 %v587, %v589
      %v591 = vrot.slane %v575, %v590
      %v593 = vunpack.c.l.s4 1966171168
      %v594 = vunpack.c.0.s8 %v593
      %v595 = vlaneseq
      %v596 = vshrl.u32 %v595, 7
      %v597 = vsub.s32 %v594, %v596
      %v598 = vrot.slane %v576, %v597
      %v600 = vunpack.c.l.s4 1966171168
      %v601 = vunpack.c.0.s8 %v600
      %v602 = vlaneseq
      %v603 = vshrl.u32 %v602, 7
      %v604 = vsub.s32 %v601, %v603
      %v605 = vrot.slane %v577, %v604
      %v606 = vcombine.high %v584, %v584
      %v607 = vcombine.high %v591, %v591
      %v608 = vcombine.high %v598, %v598
      %v609 = vcombine.high %v605, %v605
      %v610 = vcombine.high %v329, %v329
      %v612 = vunpack.c.l.s4 1966171168
      %v613 = vunpack.c.0.s8 %v612
      %v614 = vlaneseq
      %v615 = vshrl.u32 %v614, 7
      %v616 = vsub.s32 %v613, %v615
      %v617 = vrot.slane %v329, %v616
      %v619 = vunpack.c.l.s4 1966171168
      %v620 = vunpack.c.0.s8 %v619
      %v621 = vlaneseq
      %v622 = vshrl.u32 %v621, 7
      %v623 = vsub.s32 %v620, %v622
      %v624 = vrot.slane %v610, %v623
      %v625 = vcombine.high %v617, %v617
      %v626 = vcombine.high %v624, %v624
      %v628 = vunpack.c.l.s4 1966171168
      %v629 = vunpack.c.0.s8 %v628
      %v630 = vlaneseq
      %v631 = vshrl.u32 %v630, 7
      %v632 = vsub.s32 %v629, %v631
      %v633 = vrot.slane %v617, %v632
      %v635 = vunpack.c.l.s4 1966171168
      %v636 = vunpack.c.0.s8 %v635
      %v637 = vlaneseq
      %v638 = vshrl.u32 %v637, 7
      %v639 = vsub.s32 %v636, %v638
      %v640 = vrot.slane %v624, %v639
      %v642 = vunpack.c.l.s4 1966171168
      %v643 = vunpack.c.0.s8 %v642
      %v644 = vlaneseq
      %v645 = vshrl.u32 %v644, 7
      %v646 = vsub.s32 %v643, %v645
      %v647 = vrot.slane %v625, %v646
      %v649 = vunpack.c.l.s4 1966171168
      %v650 = vunpack.c.0.s8 %v649
      %v651 = vlaneseq
      %v652 = vshrl.u32 %v651, 7
      %v653 = vsub.s32 %v650, %v652
      %v654 = vrot.slane %v626, %v653
      %v655 = vcombine.high %v633, %v633
      %v656 = vcombine.high %v640, %v640
      %v657 = vcombine.high %v647, %v647
      %v658 = vcombine.high %v654, %v654
      %v659 = vcombine.high %v330, %v330
      %v661 = vunpack.c.l.s4 1966171168
      %v662 = vunpack.c.0.s8 %v661
      %v663 = vlaneseq
      %v664 = vshrl.u32 %v663, 7
      %v665 = vsub.s32 %v662, %v664
      %v666 = vrot.slane %v330, %v665
      %v668 = vunpack.c.l.s4 1966171168
      %v669 = vunpack.c.0.s8 %v668
      %v670 = vlaneseq
      %v671 = vshrl.u32 %v670, 7
      %v672 = vsub.s32 %v669, %v671
      %v673 = vrot.slane %v659, %v672
      %v674 = vcombine.high %v666, %v666
      %v675 = vcombine.high %v673, %v673
      %v677 = vunpack.c.l.s4 1966171168
      %v678 = vunpack.c.0.s8 %v677
      %v679 = vlaneseq
      %v680 = vshrl.u32 %v679, 7
      %v681 = vsub.s32 %v678, %v680
      %v682 = vrot.slane %v666, %v681
      %v684 = vunpack.c.l.s4 1966171168
      %v685 = vunpack.c.0.s8 %v684
      %v686 = vlaneseq
      %v687 = vshrl.u32 %v686, 7
      %v688 = vsub.s32 %v685, %v687
      %v689 = vrot.slane %v673, %v688
      %v691 = vunpack.c.l.s4 1966171168
      %v692 = vunpack.c.0.s8 %v691
      %v693 = vlaneseq
      %v694 = vshrl.u32 %v693, 7
      %v695 = vsub.s32 %v692, %v694
      %v696 = vrot.slane %v674, %v695
      %v698 = vunpack.c.l.s4 1966171168
      %v699 = vunpack.c.0.s8 %v698
      %v700 = vlaneseq
      %v701 = vshrl.u32 %v700, 7
      %v702 = vsub.s32 %v699, %v701
      %v703 = vrot.slane %v675, %v702
      %v704 = vcombine.high %v682, %v682
      %v705 = vcombine.high %v689, %v689
      %v706 = vcombine.high %v696, %v696
      %v707 = vcombine.high %v703, %v703
      %v708 = vcombine.high %v331, %v331
      %v710 = vunpack.c.l.s4 1966171168
      %v711 = vunpack.c.0.s8 %v710
      %v712 = vlaneseq
      %v713 = vshrl.u32 %v712, 7
      %v714 = vsub.s32 %v711, %v713
      %v715 = vrot.slane %v331, %v714
      %v717 = vunpack.c.l.s4 1966171168
      %v718 = vunpack.c.0.s8 %v717
      %v719 = vlaneseq
      %v720 = vshrl.u32 %v719, 7
      %v721 = vsub.s32 %v718, %v720
      %v722 = vrot.slane %v708, %v721
      %v723 = vcombine.high %v715, %v715
      %v724 = vcombine.high %v722, %v722
      %v726 = vunpack.c.l.s4 1966171168
      %v727 = vunpack.c.0.s8 %v726
      %v728 = vlaneseq
      %v729 = vshrl.u32 %v728, 7
      %v730 = vsub.s32 %v727, %v729
      %v731 = vrot.slane %v715, %v730
      %v733 = vunpack.c.l.s4 1966171168
      %v734 = vunpack.c.0.s8 %v733
      %v735 = vlaneseq
      %v736 = vshrl.u32 %v735, 7
      %v737 = vsub.s32 %v734, %v736
      %v738 = vrot.slane %v722, %v737
      %v740 = vunpack.c.l.s4 1966171168
      %v741 = vunpack.c.0.s8 %v740
      %v742 = vlaneseq
      %v743 = vshrl.u32 %v742, 7
      %v744 = vsub.s32 %v741, %v743
      %v745 = vrot.slane %v723, %v744
      %v747 = vunpack.c.l.s4 1966171168
      %v748 = vunpack.c.0.s8 %v747
      %v749 = vlaneseq
      %v750 = vshrl.u32 %v749, 7
      %v751 = vsub.s32 %v748, %v750
      %v752 = vrot.slane %v724, %v751
      %v753 = vcombine.high %v731, %v731
      %v754 = vcombine.high %v738, %v738
      %v755 = vcombine.high %v745, %v745
      %v756 = vcombine.high %v752, %v752
      %v829 = vcombine.high %v349, %v349
      %v831 = vunpack.c.l.s4 1966171168
      %v832 = vunpack.c.0.s8 %v831
      %v833 = vlaneseq
      %v834 = vshrl.u32 %v833, 7
      %v835 = vsub.s32 %v832, %v834
      %v836 = vrot.slane %v349, %v835
      %v838 = vunpack.c.l.s4 1966171168
      %v839 = vunpack.c.0.s8 %v838
      %v840 = vlaneseq
      %v841 = vshrl.u32 %v840, 7
      %v842 = vsub.s32 %v839, %v841
      %v843 = vrot.slane %v829, %v842
      %v844 = vcombine.high %v836, %v836
      %v845 = vcombine.high %v843, %v843
      %v847 = vunpack.c.l.s4 1966171168
      %v848 = vunpack.c.0.s8 %v847
      %v849 = vlaneseq
      %v850 = vshrl.u32 %v849, 7
      %v851 = vsub.s32 %v848, %v850
      %v852 = vrot.slane %v836, %v851
      %v854 = vunpack.c.l.s4 1966171168
      %v855 = vunpack.c.0.s8 %v854
      %v856 = vlaneseq
      %v857 = vshrl.u32 %v856, 7
      %v858 = vsub.s32 %v855, %v857
      %v859 = vrot.slane %v843, %v858
      %v861 = vunpack.c.l.s4 1966171168
      %v862 = vunpack.c.0.s8 %v861
      %v863 = vlaneseq
      %v864 = vshrl.u32 %v863, 7
      %v865 = vsub.s32 %v862, %v864
      %v866 = vrot.slane %v844, %v865
      %v868 = vunpack.c.l.s4 1966171168
      %v869 = vunpack.c.0.s8 %v868
      %v870 = vlaneseq
      %v871 = vshrl.u32 %v870, 7
      %v872 = vsub.s32 %v869, %v871
      %v873 = vrot.slane %v845, %v872
      %v874 = vcombine.high %v852, %v852
      %v875 = vcombine.high %v859, %v859
      %v876 = vcombine.high %v866, %v866
      %v877 = vcombine.high %v873, %v873
      %v878 = vcombine.high %v350, %v350
      %v880 = vunpack.c.l.s4 1966171168
      %v881 = vunpack.c.0.s8 %v880
      %v882 = vlaneseq
      %v883 = vshrl.u32 %v882, 7
      %v884 = vsub.s32 %v881, %v883
      %v885 = vrot.slane %v350, %v884
      %v887 = vunpack.c.l.s4 1966171168
      %v888 = vunpack.c.0.s8 %v887
      %v889 = vlaneseq
      %v890 = vshrl.u32 %v889, 7
      %v891 = vsub.s32 %v888, %v890
      %v892 = vrot.slane %v878, %v891
      %v893 = vcombine.high %v885, %v885
      %v894 = vcombine.high %v892, %v892
      %v896 = vunpack.c.l.s4 1966171168
      %v897 = vunpack.c.0.s8 %v896
      %v898 = vlaneseq
      %v899 = vshrl.u32 %v898, 7
      %v900 = vsub.s32 %v897, %v899
      %v901 = vrot.slane %v885, %v900
      %v903 = vunpack.c.l.s4 1966171168
      %v904 = vunpack.c.0.s8 %v903
      %v905 = vlaneseq
      %v906 = vshrl.u32 %v905, 7
      %v907 = vsub.s32 %v904, %v906
      %v908 = vrot.slane %v892, %v907
      %v910 = vunpack.c.l.s4 1966171168
      %v911 = vunpack.c.0.s8 %v910
      %v912 = vlaneseq
      %v913 = vshrl.u32 %v912, 7
      %v914 = vsub.s32 %v911, %v913
      %v915 = vrot.slane %v893, %v914
      %v917 = vunpack.c.l.s4 1966171168
      %v918 = vunpack.c.0.s8 %v917
      %v919 = vlaneseq
      %v920 = vshrl.u32 %v919, 7
      %v921 = vsub.s32 %v918, %v920
      %v922 = vrot.slane %v894, %v921
      %v923 = vcombine.high %v901, %v901
      %v924 = vcombine.high %v908, %v908
      %v925 = vcombine.high %v915, %v915
      %v926 = vcombine.high %v922, %v922
      %v927 = vcombine.high %v351, %v351
      %v929 = vunpack.c.l.s4 1966171168
      %v930 = vunpack.c.0.s8 %v929
      %v931 = vlaneseq
      %v932 = vshrl.u32 %v931, 7
      %v933 = vsub.s32 %v930, %v932
      %v934 = vrot.slane %v351, %v933
      %v936 = vunpack.c.l.s4 1966171168
      %v937 = vunpack.c.0.s8 %v936
      %v938 = vlaneseq
      %v939 = vshrl.u32 %v938, 7
      %v940 = vsub.s32 %v937, %v939
      %v941 = vrot.slane %v927, %v940
      %v942 = vcombine.high %v934, %v934
      %v943 = vcombine.high %v941, %v941
      %v945 = vunpack.c.l.s4 1966171168
      %v946 = vunpack.c.0.s8 %v945
      %v947 = vlaneseq
      %v948 = vshrl.u32 %v947, 7
      %v949 = vsub.s32 %v946, %v948
      %v950 = vrot.slane %v934, %v949
      %v952 = vunpack.c.l.s4 1966171168
      %v953 = vunpack.c.0.s8 %v952
      %v954 = vlaneseq
      %v955 = vshrl.u32 %v954, 7
      %v956 = vsub.s32 %v953, %v955
      %v957 = vrot.slane %v941, %v956
      %v959 = vunpack.c.l.s4 1966171168
      %v960 = vunpack.c.0.s8 %v959
      %v961 = vlaneseq
      %v962 = vshrl.u32 %v961, 7
      %v963 = vsub.s32 %v960, %v962
      %v964 = vrot.slane %v942, %v963
      %v966 = vunpack.c.l.s4 1966171168
      %v967 = vunpack.c.0.s8 %v966
      %v968 = vlaneseq
      %v969 = vshrl.u32 %v968, 7
      %v970 = vsub.s32 %v967, %v969
      %v971 = vrot.slane %v943, %v970
      %v972 = vcombine.high %v950, %v950
      %v973 = vcombine.high %v957, %v957
      %v974 = vcombine.high %v964, %v964
      %v975 = vcombine.high %v971, %v971
      %v976 = vcombine.high %v352, %v352
      %v978 = vunpack.c.l.s4 1966171168
      %v979 = vunpack.c.0.s8 %v978
      %v980 = vlaneseq
      %v981 = vshrl.u32 %v980, 7
      %v982 = vsub.s32 %v979, %v981
      %v983 = vrot.slane %v352, %v982
      %v985 = vunpack.c.l.s4 1966171168
      %v986 = vunpack.c.0.s8 %v985
      %v987 = vlaneseq
      %v988 = vshrl.u32 %v987, 7
      %v989 = vsub.s32 %v986, %v988
      %v990 = vrot.slane %v976, %v989
      %v991 = vcombine.high %v983, %v983
      %v992 = vcombine.high %v990, %v990
      %v994 = vunpack.c.l.s4 1966171168
      %v995 = vunpack.c.0.s8 %v994
      %v996 = vlaneseq
      %v997 = vshrl.u32 %v996, 7
      %v998 = vsub.s32 %v995, %v997
      %v999 = vrot.slane %v983, %v998
      %v1001 = vunpack.c.l.s4 1966171168
      %v1002 = vunpack.c.0.s8 %v1001
      %v1003 = vlaneseq
      %v1004 = vshrl.u32 %v1003, 7
      %v1005 = vsub.s32 %v1002, %v1004
      %v1006 = vrot.slane %v990, %v1005
      %v1008 = vunpack.c.l.s4 1966171168
      %v1009 = vunpack.c.0.s8 %v1008
      %v1010 = vlaneseq
      %v1011 = vshrl.u32 %v1010, 7
      %v1012 = vsub.s32 %v1009, %v1011
      %v1013 = vrot.slane %v991, %v1012
      %v1015 = vunpack.c.l.s4 1966171168
      %v1016 = vunpack.c.0.s8 %v1015
      %v1017 = vlaneseq
      %v1018 = vshrl.u32 %v1017, 7
      %v1019 = vsub.s32 %v1016, %v1018
      %v1020 = vrot.slane %v992, %v1019
      %v1021 = vcombine.high %v999, %v999
      %v1022 = vcombine.high %v1006, %v1006
      %v1023 = vcombine.high %v1013, %v1013
      %v1024 = vcombine.high %v1020, %v1020
      %v1025 = vcombine.high %v353, %v353
      %v1027 = vunpack.c.l.s4 1966171168
      %v1028 = vunpack.c.0.s8 %v1027
      %v1029 = vlaneseq
      %v1030 = vshrl.u32 %v1029, 7
      %v1031 = vsub.s32 %v1028, %v1030
      %v1032 = vrot.slane %v353, %v1031
      %v1034 = vunpack.c.l.s4 1966171168
      %v1035 = vunpack.c.0.s8 %v1034
      %v1036 = vlaneseq
      %v1037 = vshrl.u32 %v1036, 7
      %v1038 = vsub.s32 %v1035, %v1037
      %v1039 = vrot.slane %v1025, %v1038
      %v1040 = vcombine.high %v1032, %v1032
      %v1041 = vcombine.high %v1039, %v1039
      %v1043 = vunpack.c.l.s4 1966171168
      %v1044 = vunpack.c.0.s8 %v1043
      %v1045 = vlaneseq
      %v1046 = vshrl.u32 %v1045, 7
      %v1047 = vsub.s32 %v1044, %v1046
      %v1048 = vrot.slane %v1032, %v1047
      %v1050 = vunpack.c.l.s4 1966171168
      %v1051 = vunpack.c.0.s8 %v1050
      %v1052 = vlaneseq
      %v1053 = vshrl.u32 %v1052, 7
      %v1054 = vsub.s32 %v1051, %v1053
      %v1055 = vrot.slane %v1039, %v1054
      %v1057 = vunpack.c.l.s4 1966171168
      %v1058 = vunpack.c.0.s8 %v1057
      %v1059 = vlaneseq
      %v1060 = vshrl.u32 %v1059, 7
      %v1061 = vsub.s32 %v1058, %v1060
      %v1062 = vrot.slane %v1040, %v1061
      %v1064 = vunpack.c.l.s4 1966171168
      %v1065 = vunpack.c.0.s8 %v1064
      %v1066 = vlaneseq
      %v1067 = vshrl.u32 %v1066, 7
      %v1068 = vsub.s32 %v1065, %v1067
      %v1069 = vrot.slane %v1041, %v1068
      %v1070 = vcombine.high %v1048, %v1048
      %v1071 = vcombine.high %v1055, %v1055
      %v1072 = vcombine.high %v1062, %v1062
      %v1073 = vcombine.high %v1069, %v1069
      %v1074 = vcombine.high %v354, %v354
      %v1076 = vunpack.c.l.s4 1966171168
      %v1077 = vunpack.c.0.s8 %v1076
      %v1078 = vlaneseq
      %v1079 = vshrl.u32 %v1078, 7
      %v1080 = vsub.s32 %v1077, %v1079
      %v1081 = vrot.slane %v354, %v1080
      %v1083 = vunpack.c.l.s4 1966171168
      %v1084 = vunpack.c.0.s8 %v1083
      %v1085 = vlaneseq
      %v1086 = vshrl.u32 %v1085, 7
      %v1087 = vsub.s32 %v1084, %v1086
      %v1088 = vrot.slane %v1074, %v1087
      %v1089 = vcombine.high %v1081, %v1081
      %v1090 = vcombine.high %v1088, %v1088
      %v1092 = vunpack.c.l.s4 1966171168
      %v1093 = vunpack.c.0.s8 %v1092
      %v1094 = vlaneseq
      %v1095 = vshrl.u32 %v1094, 7
      %v1096 = vsub.s32 %v1093, %v1095
      %v1097 = vrot.slane %v1081, %v1096
      %v1099 = vunpack.c.l.s4 1966171168
      %v1100 = vunpack.c.0.s8 %v1099
      %v1101 = vlaneseq
      %v1102 = vshrl.u32 %v1101, 7
      %v1103 = vsub.s32 %v1100, %v1102
      %v1104 = vrot.slane %v1088, %v1103
      %v1106 = vunpack.c.l.s4 1966171168
      %v1107 = vunpack.c.0.s8 %v1106
      %v1108 = vlaneseq
      %v1109 = vshrl.u32 %v1108, 7
      %v1110 = vsub.s32 %v1107, %v1109
      %v1111 = vrot.slane %v1089, %v1110
      %v1113 = vunpack.c.l.s4 1966171168
      %v1114 = vunpack.c.0.s8 %v1113
      %v1115 = vlaneseq
      %v1116 = vshrl.u32 %v1115, 7
      %v1117 = vsub.s32 %v1114, %v1116
      %v1118 = vrot.slane %v1090, %v1117
      %v1119 = vcombine.high %v1097, %v1097
      %v1120 = vcombine.high %v1104, %v1104
      %v1121 = vcombine.high %v1111, %v1111
      %v1122 = vcombine.high %v1118, %v1118
      %v1123 = vcombine.high %v355, %v355
      %v1125 = vunpack.c.l.s4 1966171168
      %v1126 = vunpack.c.0.s8 %v1125
      %v1127 = vlaneseq
      %v1128 = vshrl.u32 %v1127, 7
      %v1129 = vsub.s32 %v1126, %v1128
      %v1130 = vrot.slane %v355, %v1129
      %v1132 = vunpack.c.l.s4 1966171168
      %v1133 = vunpack.c.0.s8 %v1132
      %v1134 = vlaneseq
      %v1135 = vshrl.u32 %v1134, 7
      %v1136 = vsub.s32 %v1133, %v1135
      %v1137 = vrot.slane %v1123, %v1136
      %v1138 = vcombine.high %v1130, %v1130
      %v1139 = vcombine.high %v1137, %v1137
      %v1141 = vunpack.c.l.s4 1966171168
      %v1142 = vunpack.c.0.s8 %v1141
      %v1143 = vlaneseq
      %v1144 = vshrl.u32 %v1143, 7
      %v1145 = vsub.s32 %v1142, %v1144
      %v1146 = vrot.slane %v1130, %v1145
      %v1148 = vunpack.c.l.s4 1966171168
      %v1149 = vunpack.c.0.s8 %v1148
      %v1150 = vlaneseq
      %v1151 = vshrl.u32 %v1150, 7
      %v1152 = vsub.s32 %v1149, %v1151
      %v1153 = vrot.slane %v1137, %v1152
      %v1155 = vunpack.c.l.s4 1966171168
      %v1156 = vunpack.c.0.s8 %v1155
      %v1157 = vlaneseq
      %v1158 = vshrl.u32 %v1157, 7
      %v1159 = vsub.s32 %v1156, %v1158
      %v1160 = vrot.slane %v1138, %v1159
      %v1162 = vunpack.c.l.s4 1966171168
      %v1163 = vunpack.c.0.s8 %v1162
      %v1164 = vlaneseq
      %v1165 = vshrl.u32 %v1164, 7
      %v1166 = vsub.s32 %v1163, %v1165
      %v1167 = vrot.slane %v1139, %v1166
      %v1168 = vcombine.high %v1146, %v1146
      %v1169 = vcombine.high %v1153, %v1153
      %v1170 = vcombine.high %v1160, %v1160
      %v1171 = vcombine.high %v1167, %v1167
      %v1172 = vcombine.high %v356, %v356
      %v1174 = vunpack.c.l.s4 1966171168
      %v1175 = vunpack.c.0.s8 %v1174
      %v1176 = vlaneseq
      %v1177 = vshrl.u32 %v1176, 7
      %v1178 = vsub.s32 %v1175, %v1177
      %v1179 = vrot.slane %v356, %v1178
      %v1181 = vunpack.c.l.s4 1966171168
      %v1182 = vunpack.c.0.s8 %v1181
      %v1183 = vlaneseq
      %v1184 = vshrl.u32 %v1183, 7
      %v1185 = vsub.s32 %v1182, %v1184
      %v1186 = vrot.slane %v1172, %v1185
      %v1187 = vcombine.high %v1179, %v1179
      %v1188 = vcombine.high %v1186, %v1186
      %v1190 = vunpack.c.l.s4 1966171168
      %v1191 = vunpack.c.0.s8 %v1190
      %v1192 = vlaneseq
      %v1193 = vshrl.u32 %v1192, 7
      %v1194 = vsub.s32 %v1191, %v1193
      %v1195 = vrot.slane %v1179, %v1194
      %v1197 = vunpack.c.l.s4 1966171168
      %v1198 = vunpack.c.0.s8 %v1197
      %v1199 = vlaneseq
      %v1200 = vshrl.u32 %v1199, 7
      %v1201 = vsub.s32 %v1198, %v1200
      %v1202 = vrot.slane %v1186, %v1201
      %v1204 = vunpack.c.l.s4 1966171168
      %v1205 = vunpack.c.0.s8 %v1204
      %v1206 = vlaneseq
      %v1207 = vshrl.u32 %v1206, 7
      %v1208 = vsub.s32 %v1205, %v1207
      %v1209 = vrot.slane %v1187, %v1208
      %v1211 = vunpack.c.l.s4 1966171168
      %v1212 = vunpack.c.0.s8 %v1211
      %v1213 = vlaneseq
      %v1214 = vshrl.u32 %v1213, 7
      %v1215 = vsub.s32 %v1212, %v1214
      %v1216 = vrot.slane %v1188, %v1215
      %v1217 = vcombine.high %v1195, %v1195
      %v1218 = vcombine.high %v1202, %v1202
      %v1219 = vcombine.high %v1209, %v1209
      %v1220 = vcombine.high %v1216, %v1216
      %v1221 = vlaneseq
      %v1222 = vshrl.u32 %v1221, 7
      %v1223 = vsub.s32 0, %v1222
      %v1224 = vrot.slane %v852, %v1223
      %v1225 = vlaneseq
      %v1226 = vshrl.u32 %v1225, 7
      %v1227 = vsub.s32 0, %v1226
      %v1228 = vrot.slane %v866, %v1227
      %v1229 = vlaneseq
      %v1230 = vshrl.u32 %v1229, 7
      %v1231 = vsub.s32 0, %v1230
      %v1232 = vrot.slane %v874, %v1231
      %v1233 = vlaneseq
      %v1234 = vshrl.u32 %v1233, 7
      %v1235 = vsub.s32 0, %v1234
      %v1236 = vrot.slane %v876, %v1235
      %v1237 = vlaneseq
      %v1238 = vshrl.u32 %v1237, 7
      %v1239 = vsub.s32 0, %v1238
      %v1240 = vrot.slane %v859, %v1239
      %v1241 = vlaneseq
      %v1242 = vshrl.u32 %v1241, 7
      %v1243 = vsub.s32 0, %v1242
      %v1244 = vrot.slane %v873, %v1243
      %v1245 = vlaneseq
      %v1246 = vshrl.u32 %v1245, 7
      %v1247 = vsub.s32 0, %v1246
      %v1248 = vrot.slane %v875, %v1247
      %v1249 = vlaneseq
      %v1250 = vshrl.u32 %v1249, 7
      %v1251 = vsub.s32 0, %v1250
      %v1252 = vrot.slane %v877, %v1251
      %v1253 = vlaneseq
      %v1254 = vshrl.u32 %v1253, 7
      %v1255 = vsub.s32 0, %v1254
      %v1256 = vrot.slane %v901, %v1255
      %v1257 = vlaneseq
      %v1258 = vshrl.u32 %v1257, 7
      %v1259 = vsub.s32 0, %v1258
      %v1260 = vrot.slane %v915, %v1259
      %v1261 = vlaneseq
      %v1262 = vshrl.u32 %v1261, 7
      %v1263 = vsub.s32 0, %v1262
      %v1264 = vrot.slane %v923, %v1263
      %v1265 = vlaneseq
      %v1266 = vshrl.u32 %v1265, 7
      %v1267 = vsub.s32 0, %v1266
      %v1268 = vrot.slane %v925, %v1267
      %v1269 = vlaneseq
      %v1270 = vshrl.u32 %v1269, 7
      %v1271 = vsub.s32 0, %v1270
      %v1272 = vrot.slane %v908, %v1271
      %v1273 = vlaneseq
      %v1274 = vshrl.u32 %v1273, 7
      %v1275 = vsub.s32 0, %v1274
      %v1276 = vrot.slane %v922, %v1275
      %v1277 = vlaneseq
      %v1278 = vshrl.u32 %v1277, 7
      %v1279 = vsub.s32 0, %v1278
      %v1280 = vrot.slane %v924, %v1279
      %v1281 = vlaneseq
      %v1282 = vshrl.u32 %v1281, 7
      %v1283 = vsub.s32 0, %v1282
      %v1284 = vrot.slane %v926, %v1283
      %v1285 = vlaneseq
      %v1286 = vshrl.u32 %v1285, 7
      %v1287 = vsub.s32 0, %v1286
      %v1288 = vrot.slane %v950, %v1287
      %v1289 = vlaneseq
      %v1290 = vshrl.u32 %v1289, 7
      %v1291 = vsub.s32 0, %v1290
      %v1292 = vrot.slane %v964, %v1291
      %v1293 = vlaneseq
      %v1294 = vshrl.u32 %v1293, 7
      %v1295 = vsub.s32 0, %v1294
      %v1296 = vrot.slane %v972, %v1295
      %v1297 = vlaneseq
      %v1298 = vshrl.u32 %v1297, 7
      %v1299 = vsub.s32 0, %v1298
      %v1300 = vrot.slane %v974, %v1299
      %v1301 = vlaneseq
      %v1302 = vshrl.u32 %v1301, 7
      %v1303 = vsub.s32 0, %v1302
      %v1304 = vrot.slane %v957, %v1303
      %v1305 = vlaneseq
      %v1306 = vshrl.u32 %v1305, 7
      %v1307 = vsub.s32 0, %v1306
      %v1308 = vrot.slane %v971, %v1307
      %v1309 = vlaneseq
      %v1310 = vshrl.u32 %v1309, 7
      %v1311 = vsub.s32 0, %v1310
      %v1312 = vrot.slane %v973, %v1311
      %v1313 = vlaneseq
      %v1314 = vshrl.u32 %v1313, 7
      %v1315 = vsub.s32 0, %v1314
      %v1316 = vrot.slane %v975, %v1315
      %v1317 = vlaneseq
      %v1318 = vshrl.u32 %v1317, 7
      %v1319 = vsub.s32 0, %v1318
      %v1320 = vrot.slane %v999, %v1319
      %v1321 = vlaneseq
      %v1322 = vshrl.u32 %v1321, 7
      %v1323 = vsub.s32 0, %v1322
      %v1324 = vrot.slane %v1013, %v1323
      %v1325 = vlaneseq
      %v1326 = vshrl.u32 %v1325, 7
      %v1327 = vsub.s32 0, %v1326
      %v1328 = vrot.slane %v1021, %v1327
      %v1329 = vlaneseq
      %v1330 = vshrl.u32 %v1329, 7
      %v1331 = vsub.s32 0, %v1330
      %v1332 = vrot.slane %v1023, %v1331
      %v1333 = vlaneseq
      %v1334 = vshrl.u32 %v1333, 7
      %v1335 = vsub.s32 0, %v1334
      %v1336 = vrot.slane %v1006, %v1335
      %v1337 = vlaneseq
      %v1338 = vshrl.u32 %v1337, 7
      %v1339 = vsub.s32 0, %v1338
      %v1340 = vrot.slane %v1020, %v1339
      %v1341 = vlaneseq
      %v1342 = vshrl.u32 %v1341, 7
      %v1343 = vsub.s32 0, %v1342
      %v1344 = vrot.slane %v1022, %v1343
      %v1345 = vlaneseq
      %v1346 = vshrl.u32 %v1345, 7
      %v1347 = vsub.s32 0, %v1346
      %v1348 = vrot.slane %v1024, %v1347
      %v1349 = vlaneseq
      %v1350 = vshrl.u32 %v1349, 7
      %v1351 = vsub.s32 0, %v1350
      %v1352 = vrot.slane %v1048, %v1351
      %v1353 = vlaneseq
      %v1354 = vshrl.u32 %v1353, 7
      %v1355 = vsub.s32 0, %v1354
      %v1356 = vrot.slane %v1062, %v1355
      %v1357 = vlaneseq
      %v1358 = vshrl.u32 %v1357, 7
      %v1359 = vsub.s32 0, %v1358
      %v1360 = vrot.slane %v1070, %v1359
      %v1361 = vlaneseq
      %v1362 = vshrl.u32 %v1361, 7
      %v1363 = vsub.s32 0, %v1362
      %v1364 = vrot.slane %v1072, %v1363
      %v1365 = vlaneseq
      %v1366 = vshrl.u32 %v1365, 7
      %v1367 = vsub.s32 0, %v1366
      %v1368 = vrot.slane %v1055, %v1367
      %v1369 = vlaneseq
      %v1370 = vshrl.u32 %v1369, 7
      %v1371 = vsub.s32 0, %v1370
      %v1372 = vrot.slane %v1069, %v1371
      %v1373 = vlaneseq
      %v1374 = vshrl.u32 %v1373, 7
      %v1375 = vsub.s32 0, %v1374
      %v1376 = vrot.slane %v1071, %v1375
      %v1377 = vlaneseq
      %v1378 = vshrl.u32 %v1377, 7
      %v1379 = vsub.s32 0, %v1378
      %v1380 = vrot.slane %v1073, %v1379
      %v1381 = vlaneseq
      %v1382 = vshrl.u32 %v1381, 7
      %v1383 = vsub.s32 0, %v1382
      %v1384 = vrot.slane %v1097, %v1383
      %v1385 = vlaneseq
      %v1386 = vshrl.u32 %v1385, 7
      %v1387 = vsub.s32 0, %v1386
      %v1388 = vrot.slane %v1111, %v1387
      %v1389 = vlaneseq
      %v1390 = vshrl.u32 %v1389, 7
      %v1391 = vsub.s32 0, %v1390
      %v1392 = vrot.slane %v1119, %v1391
      %v1393 = vlaneseq
      %v1394 = vshrl.u32 %v1393, 7
      %v1395 = vsub.s32 0, %v1394
      %v1396 = vrot.slane %v1121, %v1395
      %v1397 = vlaneseq
      %v1398 = vshrl.u32 %v1397, 7
      %v1399 = vsub.s32 0, %v1398
      %v1400 = vrot.slane %v1104, %v1399
      %v1401 = vlaneseq
      %v1402 = vshrl.u32 %v1401, 7
      %v1403 = vsub.s32 0, %v1402
      %v1404 = vrot.slane %v1118, %v1403
      %v1405 = vlaneseq
      %v1406 = vshrl.u32 %v1405, 7
      %v1407 = vsub.s32 0, %v1406
      %v1408 = vrot.slane %v1120, %v1407
      %v1409 = vlaneseq
      %v1410 = vshrl.u32 %v1409, 7
      %v1411 = vsub.s32 0, %v1410
      %v1412 = vrot.slane %v1122, %v1411
      %v1413 = vlaneseq
      %v1414 = vshrl.u32 %v1413, 7
      %v1415 = vsub.s32 0, %v1414
      %v1416 = vrot.slane %v1146, %v1415
      %v1417 = vlaneseq
      %v1418 = vshrl.u32 %v1417, 7
      %v1419 = vsub.s32 0, %v1418
      %v1420 = vrot.slane %v1160, %v1419
      %v1421 = vlaneseq
      %v1422 = vshrl.u32 %v1421, 7
      %v1423 = vsub.s32 0, %v1422
      %v1424 = vrot.slane %v1168, %v1423
      %v1425 = vlaneseq
      %v1426 = vshrl.u32 %v1425, 7
      %v1427 = vsub.s32 0, %v1426
      %v1428 = vrot.slane %v1170, %v1427
      %v1429 = vlaneseq
      %v1430 = vshrl.u32 %v1429, 7
      %v1431 = vsub.s32 0, %v1430
      %v1432 = vrot.slane %v1153, %v1431
      %v1433 = vlaneseq
      %v1434 = vshrl.u32 %v1433, 7
      %v1435 = vsub.s32 0, %v1434
      %v1436 = vrot.slane %v1167, %v1435
      %v1437 = vlaneseq
      %v1438 = vshrl.u32 %v1437, 7
      %v1439 = vsub.s32 0, %v1438
      %v1440 = vrot.slane %v1169, %v1439
      %v1441 = vlaneseq
      %v1442 = vshrl.u32 %v1441, 7
      %v1443 = vsub.s32 0, %v1442
      %v1444 = vrot.slane %v1171, %v1443
      %v1445 = vlaneseq
      %v1446 = vshrl.u32 %v1445, 7
      %v1447 = vsub.s32 0, %v1446
      %v1448 = vrot.slane %v1195, %v1447
      %v1449 = vlaneseq
      %v1450 = vshrl.u32 %v1449, 7
      %v1451 = vsub.s32 0, %v1450
      %v1452 = vrot.slane %v1209, %v1451
      %v1453 = vlaneseq
      %v1454 = vshrl.u32 %v1453, 7
      %v1455 = vsub.s32 0, %v1454
      %v1456 = vrot.slane %v1217, %v1455
      %v1457 = vlaneseq
      %v1458 = vshrl.u32 %v1457, 7
      %v1459 = vsub.s32 0, %v1458
      %v1460 = vrot.slane %v1219, %v1459
      %v1461 = vlaneseq
      %v1462 = vshrl.u32 %v1461, 7
      %v1463 = vsub.s32 0, %v1462
      %v1464 = vrot.slane %v1202, %v1463
      %v1465 = vlaneseq
      %v1466 = vshrl.u32 %v1465, 7
      %v1467 = vsub.s32 0, %v1466
      %v1468 = vrot.slane %v1216, %v1467
      %v1469 = vlaneseq
      %v1470 = vshrl.u32 %v1469, 7
      %v1471 = vsub.s32 0, %v1470
      %v1472 = vrot.slane %v1218, %v1471
      %v1473 = vlaneseq
      %v1474 = vshrl.u32 %v1473, 7
      %v1475 = vsub.s32 0, %v1474
      %v1476 = vrot.slane %v1220, %v1475
      %vm1541 = vcmask 1040384
      %v1542 = vsel %vm1541, %v388, %v1224
      %v1543 = vsel %vm1541, %v402, %v1228
      %v1544 = vsel %vm1541, %v410, %v1232
      %v1545 = vsel %vm1541, %v412, %v1236
      %v1546 = vsel %vm1541, %v395, %v1240
      %v1547 = vsel %vm1541, %v409, %v1244
      %v1548 = vsel %vm1541, %v411, %v1248
      %v1549 = vsel %vm1541, %v413, %v1252
      %v1550 = vsel %vm1541, %v437, %v1256
      %v1551 = vsel %vm1541, %v451, %v1260
      %v1552 = vsel %vm1541, %v459, %v1264
      %v1553 = vsel %vm1541, %v461, %v1268
      %v1554 = vsel %vm1541, %v444, %v1272
      %v1555 = vsel %vm1541, %v458, %v1276
      %v1556 = vsel %vm1541, %v460, %v1280
      %v1557 = vsel %vm1541, %v462, %v1284
      %v1558 = vsel %vm1541, %v486, %v1288
      %v1559 = vsel %vm1541, %v500, %v1292
      %v1560 = vsel %vm1541, %v508, %v1296
      %v1561 = vsel %vm1541, %v510, %v1300
      %v1562 = vsel %vm1541, %v493, %v1304
      %v1563 = vsel %vm1541, %v507, %v1308
      %v1564 = vsel %vm1541, %v509, %v1312
      %v1565 = vsel %vm1541, %v511, %v1316
      %v1566 = vsel %vm1541, %v535, %v1320
      %v1567 = vsel %vm1541, %v549, %v1324
      %v1568 = vsel %vm1541, %v557, %v1328
      %v1569 = vsel %vm1541, %v559, %v1332
      %v1570 = vsel %vm1541, %v542, %v1336
      %v1571 = vsel %vm1541, %v556, %v1340
      %v1572 = vsel %vm1541, %v558, %v1344
      %v1573 = vsel %vm1541, %v560, %v1348
      %v1574 = vsel %vm1541, %v584, %v1352
      %v1575 = vsel %vm1541, %v598, %v1356
      %v1576 = vsel %vm1541, %v606, %v1360
      %v1577 = vsel %vm1541, %v608, %v1364
      %v1578 = vsel %vm1541, %v591, %v1368
      %v1579 = vsel %vm1541, %v605, %v1372
      %v1580 = vsel %vm1541, %v607, %v1376
      %v1581 = vsel %vm1541, %v609, %v1380
      %v1582 = vsel %vm1541, %v633, %v1384
      %v1583 = vsel %vm1541, %v647, %v1388
      %v1584 = vsel %vm1541, %v655, %v1392
      %v1585 = vsel %vm1541, %v657, %v1396
      %v1586 = vsel %vm1541, %v640, %v1400
      %v1587 = vsel %vm1541, %v654, %v1404
      %v1588 = vsel %vm1541, %v656, %v1408
      %v1589 = vsel %vm1541, %v658, %v1412
      %v1590 = vsel %vm1541, %v682, %v1416
      %v1591 = vsel %vm1541, %v696, %v1420
      %v1592 = vsel %vm1541, %v704, %v1424
      %v1593 = vsel %vm1541, %v706, %v1428
      %v1594 = vsel %vm1541, %v689, %v1432
      %v1595 = vsel %vm1541, %v703, %v1436
      %v1596 = vsel %vm1541, %v705, %v1440
      %v1597 = vsel %vm1541, %v707, %v1444
      %v1598 = vsel %vm1541, %v731, %v1448
      %v1599 = vsel %vm1541, %v745, %v1452
      %v1600 = vsel %vm1541, %v753, %v1456
      %v1601 = vsel %vm1541, %v755, %v1460
      %v1602 = vsel %vm1541, %v738, %v1464
      %v1603 = vsel %vm1541, %v752, %v1468
      %v1604 = vsel %vm1541, %v754, %v1472
      %v1605 = vsel %vm1541, %v756, %v1476
      %s1606 = scalar_lea.vmem %s239, 128
      %v1607 = vld [vmem:[%s1606] sm:$0xff]
      %v1608 = vld [vmem:[%s1606 + $0x8] sm:$0xff]
      %v1609 = vld [vmem:[%s1606 + $0x10] sm:$0xff]
      %v1610 = vld [vmem:[%s1606 + $0x18] sm:$0xff]
      %v1611 = vld [vmem:[%s1606 + $0x20] sm:$0xff]
      %v1612 = vld [vmem:[%s1606 + $0x28] sm:$0xff]
      %v1613 = vld [vmem:[%s1606 + $0x30] sm:$0xff]
      %v1614 = vld [vmem:[%s1606 + $0x38] sm:$0xff]
      %v1615 = vmul.f32 %v1607, %v308
      %v1616 = vmul.f32 %v1608, %v308
      %v1617 = vmul.f32 %v1609, %v308
      %v1618 = vmul.f32 %v1610, %v308
      %v1619 = vmul.f32 %v1611, %v308
      %v1620 = vmul.f32 %v1612, %v308
      %v1621 = vmul.f32 %v1613, %v308
      %v1622 = vmul.f32 %v1614, %v308
      %v1623 = vadd.f32 %v1615, %v322
      %v1624 = vadd.f32 %v1616, %v322
      %v1625 = vadd.f32 %v1617, %v322
      %v1626 = vadd.f32 %v1618, %v322
      %v1627 = vadd.f32 %v1619, %v322
      %v1628 = vadd.f32 %v1620, %v322
      %v1629 = vadd.f32 %v1621, %v322
      %v1630 = vadd.f32 %v1622, %v322
      %s1631 = scalar_lea.vmem %s239, 192
      %v1632 = vld [vmem:[%s1631] sm:$0xff]
      %v1633 = vld [vmem:[%s1631 + $0x8] sm:$0xff]
      %v1634 = vld [vmem:[%s1631 + $0x10] sm:$0xff]
      %v1635 = vld [vmem:[%s1631 + $0x18] sm:$0xff]
      %v1636 = vld [vmem:[%s1631 + $0x20] sm:$0xff]
      %v1637 = vld [vmem:[%s1631 + $0x28] sm:$0xff]
      %v1638 = vld [vmem:[%s1631 + $0x30] sm:$0xff]
      %v1639 = vld [vmem:[%s1631 + $0x38] sm:$0xff]
      %v1640 = vmul.f32 %v1632, %v308
      %v1641 = vmul.f32 %v1633, %v308
      %v1642 = vmul.f32 %v1634, %v308
      %v1643 = vmul.f32 %v1635, %v308
      %v1644 = vmul.f32 %v1636, %v308
      %v1645 = vmul.f32 %v1637, %v308
      %v1646 = vmul.f32 %v1638, %v308
      %v1647 = vmul.f32 %v1639, %v308
      %v1648 = vadd.f32 %v1640, %v322
      %v1649 = vadd.f32 %v1641, %v322
      %v1650 = vadd.f32 %v1642, %v322
      %v1651 = vadd.f32 %v1643, %v322
      %v1652 = vadd.f32 %v1644, %v322
      %v1653 = vadd.f32 %v1645, %v322
      %v1654 = vadd.f32 %v1646, %v322
      %v1655 = vadd.f32 %v1647, %v322
      %v1664 = vcombine.high %v1623, %v1623
      %v1666 = vunpack.c.l.s4 1966171168
      %v1667 = vunpack.c.0.s8 %v1666
      %v1668 = vlaneseq
      %v1669 = vshrl.u32 %v1668, 7
      %v1670 = vsub.s32 %v1667, %v1669
      %v1671 = vrot.slane %v1623, %v1670
      %v1673 = vunpack.c.l.s4 1966171168
      %v1674 = vunpack.c.0.s8 %v1673
      %v1675 = vlaneseq
      %v1676 = vshrl.u32 %v1675, 7
      %v1677 = vsub.s32 %v1674, %v1676
      %v1678 = vrot.slane %v1664, %v1677
      %v1679 = vcombine.high %v1671, %v1671
      %v1680 = vcombine.high %v1678, %v1678
      %v1682 = vunpack.c.l.s4 1966171168
      %v1683 = vunpack.c.0.s8 %v1682
      %v1684 = vlaneseq
      %v1685 = vshrl.u32 %v1684, 7
      %v1686 = vsub.s32 %v1683, %v1685
      %v1687 = vrot.slane %v1671, %v1686
      %v1689 = vunpack.c.l.s4 1966171168
      %v1690 = vunpack.c.0.s8 %v1689
      %v1691 = vlaneseq
      %v1692 = vshrl.u32 %v1691, 7
      %v1693 = vsub.s32 %v1690, %v1692
      %v1694 = vrot.slane %v1678, %v1693
      %v1696 = vunpack.c.l.s4 1966171168
      %v1697 = vunpack.c.0.s8 %v1696
      %v1698 = vlaneseq
      %v1699 = vshrl.u32 %v1698, 7
      %v1700 = vsub.s32 %v1697, %v1699
      %v1701 = vrot.slane %v1679, %v1700
      %v1703 = vunpack.c.l.s4 1966171168
      %v1704 = vunpack.c.0.s8 %v1703
      %v1705 = vlaneseq
      %v1706 = vshrl.u32 %v1705, 7
      %v1707 = vsub.s32 %v1704, %v1706
      %v1708 = vrot.slane %v1680, %v1707
      %v1709 = vcombine.high %v1687, %v1687
      %v1710 = vcombine.high %v1694, %v1694
      %v1711 = vcombine.high %v1701, %v1701
      %v1712 = vcombine.high %v1708, %v1708
      %v1713 = vcombine.high %v1624, %v1624
      %v1715 = vunpack.c.l.s4 1966171168
      %v1716 = vunpack.c.0.s8 %v1715
      %v1717 = vlaneseq
      %v1718 = vshrl.u32 %v1717, 7
      %v1719 = vsub.s32 %v1716, %v1718
      %v1720 = vrot.slane %v1624, %v1719
      %v1722 = vunpack.c.l.s4 1966171168
      %v1723 = vunpack.c.0.s8 %v1722
      %v1724 = vlaneseq
      %v1725 = vshrl.u32 %v1724, 7
      %v1726 = vsub.s32 %v1723, %v1725
      %v1727 = vrot.slane %v1713, %v1726
      %v1728 = vcombine.high %v1720, %v1720
      %v1729 = vcombine.high %v1727, %v1727
      %v1731 = vunpack.c.l.s4 1966171168
      %v1732 = vunpack.c.0.s8 %v1731
      %v1733 = vlaneseq
      %v1734 = vshrl.u32 %v1733, 7
      %v1735 = vsub.s32 %v1732, %v1734
      %v1736 = vrot.slane %v1720, %v1735
      %v1738 = vunpack.c.l.s4 1966171168
      %v1739 = vunpack.c.0.s8 %v1738
      %v1740 = vlaneseq
      %v1741 = vshrl.u32 %v1740, 7
      %v1742 = vsub.s32 %v1739, %v1741
      %v1743 = vrot.slane %v1727, %v1742
      %v1745 = vunpack.c.l.s4 1966171168
      %v1746 = vunpack.c.0.s8 %v1745
      %v1747 = vlaneseq
      %v1748 = vshrl.u32 %v1747, 7
      %v1749 = vsub.s32 %v1746, %v1748
      %v1750 = vrot.slane %v1728, %v1749
      %v1752 = vunpack.c.l.s4 1966171168
      %v1753 = vunpack.c.0.s8 %v1752
      %v1754 = vlaneseq
      %v1755 = vshrl.u32 %v1754, 7
      %v1756 = vsub.s32 %v1753, %v1755
      %v1757 = vrot.slane %v1729, %v1756
      %v1758 = vcombine.high %v1736, %v1736
      %v1759 = vcombine.high %v1743, %v1743
      %v1760 = vcombine.high %v1750, %v1750
      %v1761 = vcombine.high %v1757, %v1757
      %v1762 = vcombine.high %v1625, %v1625
      %v1764 = vunpack.c.l.s4 1966171168
      %v1765 = vunpack.c.0.s8 %v1764
      %v1766 = vlaneseq
      %v1767 = vshrl.u32 %v1766, 7
      %v1768 = vsub.s32 %v1765, %v1767
      %v1769 = vrot.slane %v1625, %v1768
      %v1771 = vunpack.c.l.s4 1966171168
      %v1772 = vunpack.c.0.s8 %v1771
      %v1773 = vlaneseq
      %v1774 = vshrl.u32 %v1773, 7
      %v1775 = vsub.s32 %v1772, %v1774
      %v1776 = vrot.slane %v1762, %v1775
      %v1777 = vcombine.high %v1769, %v1769
      %v1778 = vcombine.high %v1776, %v1776
      %v1780 = vunpack.c.l.s4 1966171168
      %v1781 = vunpack.c.0.s8 %v1780
      %v1782 = vlaneseq
      %v1783 = vshrl.u32 %v1782, 7
      %v1784 = vsub.s32 %v1781, %v1783
      %v1785 = vrot.slane %v1769, %v1784
      %v1787 = vunpack.c.l.s4 1966171168
      %v1788 = vunpack.c.0.s8 %v1787
      %v1789 = vlaneseq
      %v1790 = vshrl.u32 %v1789, 7
      %v1791 = vsub.s32 %v1788, %v1790
      %v1792 = vrot.slane %v1776, %v1791
      %v1794 = vunpack.c.l.s4 1966171168
      %v1795 = vunpack.c.0.s8 %v1794
      %v1796 = vlaneseq
      %v1797 = vshrl.u32 %v1796, 7
      %v1798 = vsub.s32 %v1795, %v1797
      %v1799 = vrot.slane %v1777, %v1798
      %v1801 = vunpack.c.l.s4 1966171168
      %v1802 = vunpack.c.0.s8 %v1801
      %v1803 = vlaneseq
      %v1804 = vshrl.u32 %v1803, 7
      %v1805 = vsub.s32 %v1802, %v1804
      %v1806 = vrot.slane %v1778, %v1805
      %v1807 = vcombine.high %v1785, %v1785
      %v1808 = vcombine.high %v1792, %v1792
      %v1809 = vcombine.high %v1799, %v1799
      %v1810 = vcombine.high %v1806, %v1806
      %v1811 = vcombine.high %v1626, %v1626
      %v1813 = vunpack.c.l.s4 1966171168
      %v1814 = vunpack.c.0.s8 %v1813
      %v1815 = vlaneseq
      %v1816 = vshrl.u32 %v1815, 7
      %v1817 = vsub.s32 %v1814, %v1816
      %v1818 = vrot.slane %v1626, %v1817
      %v1820 = vunpack.c.l.s4 1966171168
      %v1821 = vunpack.c.0.s8 %v1820
      %v1822 = vlaneseq
      %v1823 = vshrl.u32 %v1822, 7
      %v1824 = vsub.s32 %v1821, %v1823
      %v1825 = vrot.slane %v1811, %v1824
      %v1826 = vcombine.high %v1818, %v1818
      %v1827 = vcombine.high %v1825, %v1825
      %v1829 = vunpack.c.l.s4 1966171168
      %v1830 = vunpack.c.0.s8 %v1829
      %v1831 = vlaneseq
      %v1832 = vshrl.u32 %v1831, 7
      %v1833 = vsub.s32 %v1830, %v1832
      %v1834 = vrot.slane %v1818, %v1833
      %v1836 = vunpack.c.l.s4 1966171168
      %v1837 = vunpack.c.0.s8 %v1836
      %v1838 = vlaneseq
      %v1839 = vshrl.u32 %v1838, 7
      %v1840 = vsub.s32 %v1837, %v1839
      %v1841 = vrot.slane %v1825, %v1840
      %v1843 = vunpack.c.l.s4 1966171168
      %v1844 = vunpack.c.0.s8 %v1843
      %v1845 = vlaneseq
      %v1846 = vshrl.u32 %v1845, 7
      %v1847 = vsub.s32 %v1844, %v1846
      %v1848 = vrot.slane %v1826, %v1847
      %v1850 = vunpack.c.l.s4 1966171168
      %v1851 = vunpack.c.0.s8 %v1850
      %v1852 = vlaneseq
      %v1853 = vshrl.u32 %v1852, 7
      %v1854 = vsub.s32 %v1851, %v1853
      %v1855 = vrot.slane %v1827, %v1854
      %v1856 = vcombine.high %v1834, %v1834
      %v1857 = vcombine.high %v1841, %v1841
      %v1858 = vcombine.high %v1848, %v1848
      %v1859 = vcombine.high %v1855, %v1855
      %v1860 = vcombine.high %v1627, %v1627
      %v1862 = vunpack.c.l.s4 1966171168
      %v1863 = vunpack.c.0.s8 %v1862
      %v1864 = vlaneseq
      %v1865 = vshrl.u32 %v1864, 7
      %v1866 = vsub.s32 %v1863, %v1865
      %v1867 = vrot.slane %v1627, %v1866
      %v1869 = vunpack.c.l.s4 1966171168
      %v1870 = vunpack.c.0.s8 %v1869
      %v1871 = vlaneseq
      %v1872 = vshrl.u32 %v1871, 7
      %v1873 = vsub.s32 %v1870, %v1872
      %v1874 = vrot.slane %v1860, %v1873
      %v1875 = vcombine.high %v1867, %v1867
      %v1876 = vcombine.high %v1874, %v1874
      %v1878 = vunpack.c.l.s4 1966171168
      %v1879 = vunpack.c.0.s8 %v1878
      %v1880 = vlaneseq
      %v1881 = vshrl.u32 %v1880, 7
      %v1882 = vsub.s32 %v1879, %v1881
      %v1883 = vrot.slane %v1867, %v1882
      %v1885 = vunpack.c.l.s4 1966171168
      %v1886 = vunpack.c.0.s8 %v1885
      %v1887 = vlaneseq
      %v1888 = vshrl.u32 %v1887, 7
      %v1889 = vsub.s32 %v1886, %v1888
      %v1890 = vrot.slane %v1874, %v1889
      %v1892 = vunpack.c.l.s4 1966171168
      %v1893 = vunpack.c.0.s8 %v1892
      %v1894 = vlaneseq
      %v1895 = vshrl.u32 %v1894, 7
      %v1896 = vsub.s32 %v1893, %v1895
      %v1897 = vrot.slane %v1875, %v1896
      %v1899 = vunpack.c.l.s4 1966171168
      %v1900 = vunpack.c.0.s8 %v1899
      %v1901 = vlaneseq
      %v1902 = vshrl.u32 %v1901, 7
      %v1903 = vsub.s32 %v1900, %v1902
      %v1904 = vrot.slane %v1876, %v1903
      %v1905 = vcombine.high %v1883, %v1883
      %v1906 = vcombine.high %v1890, %v1890
      %v1907 = vcombine.high %v1897, %v1897
      %v1908 = vcombine.high %v1904, %v1904
      %v1909 = vcombine.high %v1628, %v1628
      %v1911 = vunpack.c.l.s4 1966171168
      %v1912 = vunpack.c.0.s8 %v1911
      %v1913 = vlaneseq
      %v1914 = vshrl.u32 %v1913, 7
      %v1915 = vsub.s32 %v1912, %v1914
      %v1916 = vrot.slane %v1628, %v1915
      %v1918 = vunpack.c.l.s4 1966171168
      %v1919 = vunpack.c.0.s8 %v1918
      %v1920 = vlaneseq
      %v1921 = vshrl.u32 %v1920, 7
      %v1922 = vsub.s32 %v1919, %v1921
      %v1923 = vrot.slane %v1909, %v1922
      %v1924 = vcombine.high %v1916, %v1916
      %v1925 = vcombine.high %v1923, %v1923
      %v1927 = vunpack.c.l.s4 1966171168
      %v1928 = vunpack.c.0.s8 %v1927
      %v1929 = vlaneseq
      %v1930 = vshrl.u32 %v1929, 7
      %v1931 = vsub.s32 %v1928, %v1930
      %v1932 = vrot.slane %v1916, %v1931
      %v1934 = vunpack.c.l.s4 1966171168
      %v1935 = vunpack.c.0.s8 %v1934
      %v1936 = vlaneseq
      %v1937 = vshrl.u32 %v1936, 7
      %v1938 = vsub.s32 %v1935, %v1937
      %v1939 = vrot.slane %v1923, %v1938
      %v1941 = vunpack.c.l.s4 1966171168
      %v1942 = vunpack.c.0.s8 %v1941
      %v1943 = vlaneseq
      %v1944 = vshrl.u32 %v1943, 7
      %v1945 = vsub.s32 %v1942, %v1944
      %v1946 = vrot.slane %v1924, %v1945
      %v1948 = vunpack.c.l.s4 1966171168
      %v1949 = vunpack.c.0.s8 %v1948
      %v1950 = vlaneseq
      %v1951 = vshrl.u32 %v1950, 7
      %v1952 = vsub.s32 %v1949, %v1951
      %v1953 = vrot.slane %v1925, %v1952
      %v1954 = vcombine.high %v1932, %v1932
      %v1955 = vcombine.high %v1939, %v1939
      %v1956 = vcombine.high %v1946, %v1946
      %v1957 = vcombine.high %v1953, %v1953
      %v1958 = vcombine.high %v1629, %v1629
      %v1960 = vunpack.c.l.s4 1966171168
      %v1961 = vunpack.c.0.s8 %v1960
      %v1962 = vlaneseq
      %v1963 = vshrl.u32 %v1962, 7
      %v1964 = vsub.s32 %v1961, %v1963
      %v1965 = vrot.slane %v1629, %v1964
      %v1967 = vunpack.c.l.s4 1966171168
      %v1968 = vunpack.c.0.s8 %v1967
      %v1969 = vlaneseq
      %v1970 = vshrl.u32 %v1969, 7
      %v1971 = vsub.s32 %v1968, %v1970
      %v1972 = vrot.slane %v1958, %v1971
      %v1973 = vcombine.high %v1965, %v1965
      %v1974 = vcombine.high %v1972, %v1972
      %v1976 = vunpack.c.l.s4 1966171168
      %v1977 = vunpack.c.0.s8 %v1976
      %v1978 = vlaneseq
      %v1979 = vshrl.u32 %v1978, 7
      %v1980 = vsub.s32 %v1977, %v1979
      %v1981 = vrot.slane %v1965, %v1980
      %v1983 = vunpack.c.l.s4 1966171168
      %v1984 = vunpack.c.0.s8 %v1983
      %v1985 = vlaneseq
      %v1986 = vshrl.u32 %v1985, 7
      %v1987 = vsub.s32 %v1984, %v1986
      %v1988 = vrot.slane %v1972, %v1987
      %v1990 = vunpack.c.l.s4 1966171168
      %v1991 = vunpack.c.0.s8 %v1990
      %v1992 = vlaneseq
      %v1993 = vshrl.u32 %v1992, 7
      %v1994 = vsub.s32 %v1991, %v1993
      %v1995 = vrot.slane %v1973, %v1994
      %v1997 = vunpack.c.l.s4 1966171168
      %v1998 = vunpack.c.0.s8 %v1997
      %v1999 = vlaneseq
      %v2000 = vshrl.u32 %v1999, 7
      %v2001 = vsub.s32 %v1998, %v2000
      %v2002 = vrot.slane %v1974, %v2001
      %v2003 = vcombine.high %v1981, %v1981
      %v2004 = vcombine.high %v1988, %v1988
      %v2005 = vcombine.high %v1995, %v1995
      %v2006 = vcombine.high %v2002, %v2002
      %v2007 = vcombine.high %v1630, %v1630
      %v2009 = vunpack.c.l.s4 1966171168
      %v2010 = vunpack.c.0.s8 %v2009
      %v2011 = vlaneseq
      %v2012 = vshrl.u32 %v2011, 7
      %v2013 = vsub.s32 %v2010, %v2012
      %v2014 = vrot.slane %v1630, %v2013
      %v2016 = vunpack.c.l.s4 1966171168
      %v2017 = vunpack.c.0.s8 %v2016
      %v2018 = vlaneseq
      %v2019 = vshrl.u32 %v2018, 7
      %v2020 = vsub.s32 %v2017, %v2019
      %v2021 = vrot.slane %v2007, %v2020
      %v2022 = vcombine.high %v2014, %v2014
      %v2023 = vcombine.high %v2021, %v2021
      %v2025 = vunpack.c.l.s4 1966171168
      %v2026 = vunpack.c.0.s8 %v2025
      %v2027 = vlaneseq
      %v2028 = vshrl.u32 %v2027, 7
      %v2029 = vsub.s32 %v2026, %v2028
      %v2030 = vrot.slane %v2014, %v2029
      %v2032 = vunpack.c.l.s4 1966171168
      %v2033 = vunpack.c.0.s8 %v2032
      %v2034 = vlaneseq
      %v2035 = vshrl.u32 %v2034, 7
      %v2036 = vsub.s32 %v2033, %v2035
      %v2037 = vrot.slane %v2021, %v2036
      %v2039 = vunpack.c.l.s4 1966171168
      %v2040 = vunpack.c.0.s8 %v2039
      %v2041 = vlaneseq
      %v2042 = vshrl.u32 %v2041, 7
      %v2043 = vsub.s32 %v2040, %v2042
      %v2044 = vrot.slane %v2022, %v2043
      %v2046 = vunpack.c.l.s4 1966171168
      %v2047 = vunpack.c.0.s8 %v2046
      %v2048 = vlaneseq
      %v2049 = vshrl.u32 %v2048, 7
      %v2050 = vsub.s32 %v2047, %v2049
      %v2051 = vrot.slane %v2023, %v2050
      %v2052 = vcombine.high %v2030, %v2030
      %v2053 = vcombine.high %v2037, %v2037
      %v2054 = vcombine.high %v2044, %v2044
      %v2055 = vcombine.high %v2051, %v2051
      %v2128 = vcombine.high %v1648, %v1648
      %v2130 = vunpack.c.l.s4 1966171168
      %v2131 = vunpack.c.0.s8 %v2130
      %v2132 = vlaneseq
      %v2133 = vshrl.u32 %v2132, 7
      %v2134 = vsub.s32 %v2131, %v2133
      %v2135 = vrot.slane %v1648, %v2134
      %v2137 = vunpack.c.l.s4 1966171168
      %v2138 = vunpack.c.0.s8 %v2137
      %v2139 = vlaneseq
      %v2140 = vshrl.u32 %v2139, 7
      %v2141 = vsub.s32 %v2138, %v2140
      %v2142 = vrot.slane %v2128, %v2141
      %v2143 = vcombine.high %v2135, %v2135
      %v2144 = vcombine.high %v2142, %v2142
      %v2146 = vunpack.c.l.s4 1966171168
      %v2147 = vunpack.c.0.s8 %v2146
      %v2148 = vlaneseq
      %v2149 = vshrl.u32 %v2148, 7
      %v2150 = vsub.s32 %v2147, %v2149
      %v2151 = vrot.slane %v2135, %v2150
      %v2153 = vunpack.c.l.s4 1966171168
      %v2154 = vunpack.c.0.s8 %v2153
      %v2155 = vlaneseq
      %v2156 = vshrl.u32 %v2155, 7
      %v2157 = vsub.s32 %v2154, %v2156
      %v2158 = vrot.slane %v2142, %v2157
      %v2160 = vunpack.c.l.s4 1966171168
      %v2161 = vunpack.c.0.s8 %v2160
      %v2162 = vlaneseq
      %v2163 = vshrl.u32 %v2162, 7
      %v2164 = vsub.s32 %v2161, %v2163
      %v2165 = vrot.slane %v2143, %v2164
      %v2167 = vunpack.c.l.s4 1966171168
      %v2168 = vunpack.c.0.s8 %v2167
      %v2169 = vlaneseq
      %v2170 = vshrl.u32 %v2169, 7
      %v2171 = vsub.s32 %v2168, %v2170
      %v2172 = vrot.slane %v2144, %v2171
      %v2173 = vcombine.high %v2151, %v2151
      %v2174 = vcombine.high %v2158, %v2158
      %v2175 = vcombine.high %v2165, %v2165
      %v2176 = vcombine.high %v2172, %v2172
      %v2177 = vcombine.high %v1649, %v1649
      %v2179 = vunpack.c.l.s4 1966171168
      %v2180 = vunpack.c.0.s8 %v2179
      %v2181 = vlaneseq
      %v2182 = vshrl.u32 %v2181, 7
      %v2183 = vsub.s32 %v2180, %v2182
      %v2184 = vrot.slane %v1649, %v2183
      %v2186 = vunpack.c.l.s4 1966171168
      %v2187 = vunpack.c.0.s8 %v2186
      %v2188 = vlaneseq
      %v2189 = vshrl.u32 %v2188, 7
      %v2190 = vsub.s32 %v2187, %v2189
      %v2191 = vrot.slane %v2177, %v2190
      %v2192 = vcombine.high %v2184, %v2184
      %v2193 = vcombine.high %v2191, %v2191
      %v2195 = vunpack.c.l.s4 1966171168
      %v2196 = vunpack.c.0.s8 %v2195
      %v2197 = vlaneseq
      %v2198 = vshrl.u32 %v2197, 7
      %v2199 = vsub.s32 %v2196, %v2198
      %v2200 = vrot.slane %v2184, %v2199
      %v2202 = vunpack.c.l.s4 1966171168
      %v2203 = vunpack.c.0.s8 %v2202
      %v2204 = vlaneseq
      %v2205 = vshrl.u32 %v2204, 7
      %v2206 = vsub.s32 %v2203, %v2205
      %v2207 = vrot.slane %v2191, %v2206
      %v2209 = vunpack.c.l.s4 1966171168
      %v2210 = vunpack.c.0.s8 %v2209
      %v2211 = vlaneseq
      %v2212 = vshrl.u32 %v2211, 7
      %v2213 = vsub.s32 %v2210, %v2212
      %v2214 = vrot.slane %v2192, %v2213
      %v2216 = vunpack.c.l.s4 1966171168
      %v2217 = vunpack.c.0.s8 %v2216
      %v2218 = vlaneseq
      %v2219 = vshrl.u32 %v2218, 7
      %v2220 = vsub.s32 %v2217, %v2219
      %v2221 = vrot.slane %v2193, %v2220
      %v2222 = vcombine.high %v2200, %v2200
      %v2223 = vcombine.high %v2207, %v2207
      %v2224 = vcombine.high %v2214, %v2214
      %v2225 = vcombine.high %v2221, %v2221
      %v2226 = vcombine.high %v1650, %v1650
      %v2228 = vunpack.c.l.s4 1966171168
      %v2229 = vunpack.c.0.s8 %v2228
      %v2230 = vlaneseq
      %v2231 = vshrl.u32 %v2230, 7
      %v2232 = vsub.s32 %v2229, %v2231
      %v2233 = vrot.slane %v1650, %v2232
      %v2235 = vunpack.c.l.s4 1966171168
      %v2236 = vunpack.c.0.s8 %v2235
      %v2237 = vlaneseq
      %v2238 = vshrl.u32 %v2237, 7
      %v2239 = vsub.s32 %v2236, %v2238
      %v2240 = vrot.slane %v2226, %v2239
      %v2241 = vcombine.high %v2233, %v2233
      %v2242 = vcombine.high %v2240, %v2240
      %v2244 = vunpack.c.l.s4 1966171168
      %v2245 = vunpack.c.0.s8 %v2244
      %v2246 = vlaneseq
      %v2247 = vshrl.u32 %v2246, 7
      %v2248 = vsub.s32 %v2245, %v2247
      %v2249 = vrot.slane %v2233, %v2248
      %v2251 = vunpack.c.l.s4 1966171168
      %v2252 = vunpack.c.0.s8 %v2251
      %v2253 = vlaneseq
      %v2254 = vshrl.u32 %v2253, 7
      %v2255 = vsub.s32 %v2252, %v2254
      %v2256 = vrot.slane %v2240, %v2255
      %v2258 = vunpack.c.l.s4 1966171168
      %v2259 = vunpack.c.0.s8 %v2258
      %v2260 = vlaneseq
      %v2261 = vshrl.u32 %v2260, 7
      %v2262 = vsub.s32 %v2259, %v2261
      %v2263 = vrot.slane %v2241, %v2262
      %v2265 = vunpack.c.l.s4 1966171168
      %v2266 = vunpack.c.0.s8 %v2265
      %v2267 = vlaneseq
      %v2268 = vshrl.u32 %v2267, 7
      %v2269 = vsub.s32 %v2266, %v2268
      %v2270 = vrot.slane %v2242, %v2269
      %v2271 = vcombine.high %v2249, %v2249
      %v2272 = vcombine.high %v2256, %v2256
      %v2273 = vcombine.high %v2263, %v2263
      %v2274 = vcombine.high %v2270, %v2270
      %v2275 = vcombine.high %v1651, %v1651
      %v2277 = vunpack.c.l.s4 1966171168
      %v2278 = vunpack.c.0.s8 %v2277
      %v2279 = vlaneseq
      %v2280 = vshrl.u32 %v2279, 7
      %v2281 = vsub.s32 %v2278, %v2280
      %v2282 = vrot.slane %v1651, %v2281
      %v2284 = vunpack.c.l.s4 1966171168
      %v2285 = vunpack.c.0.s8 %v2284
      %v2286 = vlaneseq
      %v2287 = vshrl.u32 %v2286, 7
      %v2288 = vsub.s32 %v2285, %v2287
      %v2289 = vrot.slane %v2275, %v2288
      %v2290 = vcombine.high %v2282, %v2282
      %v2291 = vcombine.high %v2289, %v2289
      %v2293 = vunpack.c.l.s4 1966171168
      %v2294 = vunpack.c.0.s8 %v2293
      %v2295 = vlaneseq
      %v2296 = vshrl.u32 %v2295, 7
      %v2297 = vsub.s32 %v2294, %v2296
      %v2298 = vrot.slane %v2282, %v2297
      %v2300 = vunpack.c.l.s4 1966171168
      %v2301 = vunpack.c.0.s8 %v2300
      %v2302 = vlaneseq
      %v2303 = vshrl.u32 %v2302, 7
      %v2304 = vsub.s32 %v2301, %v2303
      %v2305 = vrot.slane %v2289, %v2304
      %v2307 = vunpack.c.l.s4 1966171168
      %v2308 = vunpack.c.0.s8 %v2307
      %v2309 = vlaneseq
      %v2310 = vshrl.u32 %v2309, 7
      %v2311 = vsub.s32 %v2308, %v2310
      %v2312 = vrot.slane %v2290, %v2311
      %v2314 = vunpack.c.l.s4 1966171168
      %v2315 = vunpack.c.0.s8 %v2314
      %v2316 = vlaneseq
      %v2317 = vshrl.u32 %v2316, 7
      %v2318 = vsub.s32 %v2315, %v2317
      %v2319 = vrot.slane %v2291, %v2318
      %v2320 = vcombine.high %v2298, %v2298
      %v2321 = vcombine.high %v2305, %v2305
      %v2322 = vcombine.high %v2312, %v2312
      %v2323 = vcombine.high %v2319, %v2319
      %v2324 = vcombine.high %v1652, %v1652
      %v2326 = vunpack.c.l.s4 1966171168
      %v2327 = vunpack.c.0.s8 %v2326
      %v2328 = vlaneseq
      %v2329 = vshrl.u32 %v2328, 7
      %v2330 = vsub.s32 %v2327, %v2329
      %v2331 = vrot.slane %v1652, %v2330
      %v2333 = vunpack.c.l.s4 1966171168
      %v2334 = vunpack.c.0.s8 %v2333
      %v2335 = vlaneseq
      %v2336 = vshrl.u32 %v2335, 7
      %v2337 = vsub.s32 %v2334, %v2336
      %v2338 = vrot.slane %v2324, %v2337
      %v2339 = vcombine.high %v2331, %v2331
      %v2340 = vcombine.high %v2338, %v2338
      %v2342 = vunpack.c.l.s4 1966171168
      %v2343 = vunpack.c.0.s8 %v2342
      %v2344 = vlaneseq
      %v2345 = vshrl.u32 %v2344, 7
      %v2346 = vsub.s32 %v2343, %v2345
      %v2347 = vrot.slane %v2331, %v2346
      %v2349 = vunpack.c.l.s4 1966171168
      %v2350 = vunpack.c.0.s8 %v2349
      %v2351 = vlaneseq
      %v2352 = vshrl.u32 %v2351, 7
      %v2353 = vsub.s32 %v2350, %v2352
      %v2354 = vrot.slane %v2338, %v2353
      %v2356 = vunpack.c.l.s4 1966171168
      %v2357 = vunpack.c.0.s8 %v2356
      %v2358 = vlaneseq
      %v2359 = vshrl.u32 %v2358, 7
      %v2360 = vsub.s32 %v2357, %v2359
      %v2361 = vrot.slane %v2339, %v2360
      %v2363 = vunpack.c.l.s4 1966171168
      %v2364 = vunpack.c.0.s8 %v2363
      %v2365 = vlaneseq
      %v2366 = vshrl.u32 %v2365, 7
      %v2367 = vsub.s32 %v2364, %v2366
      %v2368 = vrot.slane %v2340, %v2367
      %v2369 = vcombine.high %v2347, %v2347
      %v2370 = vcombine.high %v2354, %v2354
      %v2371 = vcombine.high %v2361, %v2361
      %v2372 = vcombine.high %v2368, %v2368
      %v2373 = vcombine.high %v1653, %v1653
      %v2375 = vunpack.c.l.s4 1966171168
      %v2376 = vunpack.c.0.s8 %v2375
      %v2377 = vlaneseq
      %v2378 = vshrl.u32 %v2377, 7
      %v2379 = vsub.s32 %v2376, %v2378
      %v2380 = vrot.slane %v1653, %v2379
      %v2382 = vunpack.c.l.s4 1966171168
      %v2383 = vunpack.c.0.s8 %v2382
      %v2384 = vlaneseq
      %v2385 = vshrl.u32 %v2384, 7
      %v2386 = vsub.s32 %v2383, %v2385
      %v2387 = vrot.slane %v2373, %v2386
      %v2388 = vcombine.high %v2380, %v2380
      %v2389 = vcombine.high %v2387, %v2387
      %v2391 = vunpack.c.l.s4 1966171168
      %v2392 = vunpack.c.0.s8 %v2391
      %v2393 = vlaneseq
      %v2394 = vshrl.u32 %v2393, 7
      %v2395 = vsub.s32 %v2392, %v2394
      %v2396 = vrot.slane %v2380, %v2395
      %v2398 = vunpack.c.l.s4 1966171168
      %v2399 = vunpack.c.0.s8 %v2398
      %v2400 = vlaneseq
      %v2401 = vshrl.u32 %v2400, 7
      %v2402 = vsub.s32 %v2399, %v2401
      %v2403 = vrot.slane %v2387, %v2402
      %v2405 = vunpack.c.l.s4 1966171168
      %v2406 = vunpack.c.0.s8 %v2405
      %v2407 = vlaneseq
      %v2408 = vshrl.u32 %v2407, 7
      %v2409 = vsub.s32 %v2406, %v2408
      %v2410 = vrot.slane %v2388, %v2409
      %v2412 = vunpack.c.l.s4 1966171168
      %v2413 = vunpack.c.0.s8 %v2412
      %v2414 = vlaneseq
      %v2415 = vshrl.u32 %v2414, 7
      %v2416 = vsub.s32 %v2413, %v2415
      %v2417 = vrot.slane %v2389, %v2416
      %v2418 = vcombine.high %v2396, %v2396
      %v2419 = vcombine.high %v2403, %v2403
      %v2420 = vcombine.high %v2410, %v2410
      %v2421 = vcombine.high %v2417, %v2417
      %v2422 = vcombine.high %v1654, %v1654
      %v2424 = vunpack.c.l.s4 1966171168
      %v2425 = vunpack.c.0.s8 %v2424
      %v2426 = vlaneseq
      %v2427 = vshrl.u32 %v2426, 7
      %v2428 = vsub.s32 %v2425, %v2427
      %v2429 = vrot.slane %v1654, %v2428
      %v2431 = vunpack.c.l.s4 1966171168
      %v2432 = vunpack.c.0.s8 %v2431
      %v2433 = vlaneseq
      %v2434 = vshrl.u32 %v2433, 7
      %v2435 = vsub.s32 %v2432, %v2434
      %v2436 = vrot.slane %v2422, %v2435
      %v2437 = vcombine.high %v2429, %v2429
      %v2438 = vcombine.high %v2436, %v2436
      %v2440 = vunpack.c.l.s4 1966171168
      %v2441 = vunpack.c.0.s8 %v2440
      %v2442 = vlaneseq
      %v2443 = vshrl.u32 %v2442, 7
      %v2444 = vsub.s32 %v2441, %v2443
      %v2445 = vrot.slane %v2429, %v2444
      %v2447 = vunpack.c.l.s4 1966171168
      %v2448 = vunpack.c.0.s8 %v2447
      %v2449 = vlaneseq
      %v2450 = vshrl.u32 %v2449, 7
      %v2451 = vsub.s32 %v2448, %v2450
      %v2452 = vrot.slane %v2436, %v2451
      %v2454 = vunpack.c.l.s4 1966171168
      %v2455 = vunpack.c.0.s8 %v2454
      %v2456 = vlaneseq
      %v2457 = vshrl.u32 %v2456, 7
      %v2458 = vsub.s32 %v2455, %v2457
      %v2459 = vrot.slane %v2437, %v2458
      %v2461 = vunpack.c.l.s4 1966171168
      %v2462 = vunpack.c.0.s8 %v2461
      %v2463 = vlaneseq
      %v2464 = vshrl.u32 %v2463, 7
      %v2465 = vsub.s32 %v2462, %v2464
      %v2466 = vrot.slane %v2438, %v2465
      %v2467 = vcombine.high %v2445, %v2445
      %v2468 = vcombine.high %v2452, %v2452
      %v2469 = vcombine.high %v2459, %v2459
      %v2470 = vcombine.high %v2466, %v2466
      %v2471 = vcombine.high %v1655, %v1655
      %v2473 = vunpack.c.l.s4 1966171168
      %v2474 = vunpack.c.0.s8 %v2473
      %v2475 = vlaneseq
      %v2476 = vshrl.u32 %v2475, 7
      %v2477 = vsub.s32 %v2474, %v2476
      %v2478 = vrot.slane %v1655, %v2477
      %v2480 = vunpack.c.l.s4 1966171168
      %v2481 = vunpack.c.0.s8 %v2480
      %v2482 = vlaneseq
      %v2483 = vshrl.u32 %v2482, 7
      %v2484 = vsub.s32 %v2481, %v2483
      %v2485 = vrot.slane %v2471, %v2484
      %v2486 = vcombine.high %v2478, %v2478
      %v2487 = vcombine.high %v2485, %v2485
      %v2489 = vunpack.c.l.s4 1966171168
      %v2490 = vunpack.c.0.s8 %v2489
      %v2491 = vlaneseq
      %v2492 = vshrl.u32 %v2491, 7
      %v2493 = vsub.s32 %v2490, %v2492
      %v2494 = vrot.slane %v2478, %v2493
      %v2496 = vunpack.c.l.s4 1966171168
      %v2497 = vunpack.c.0.s8 %v2496
      %v2498 = vlaneseq
      %v2499 = vshrl.u32 %v2498, 7
      %v2500 = vsub.s32 %v2497, %v2499
      %v2501 = vrot.slane %v2485, %v2500
      %v2503 = vunpack.c.l.s4 1966171168
      %v2504 = vunpack.c.0.s8 %v2503
      %v2505 = vlaneseq
      %v2506 = vshrl.u32 %v2505, 7
      %v2507 = vsub.s32 %v2504, %v2506
      %v2508 = vrot.slane %v2486, %v2507
      %v2510 = vunpack.c.l.s4 1966171168
      %v2511 = vunpack.c.0.s8 %v2510
      %v2512 = vlaneseq
      %v2513 = vshrl.u32 %v2512, 7
      %v2514 = vsub.s32 %v2511, %v2513
      %v2515 = vrot.slane %v2487, %v2514
      %v2516 = vcombine.high %v2494, %v2494
      %v2517 = vcombine.high %v2501, %v2501
      %v2518 = vcombine.high %v2508, %v2508
      %v2519 = vcombine.high %v2515, %v2515
      %v2520 = vlaneseq
      %v2521 = vshrl.u32 %v2520, 7
      %v2522 = vsub.s32 0, %v2521
      %v2523 = vrot.slane %v2151, %v2522
      %v2524 = vlaneseq
      %v2525 = vshrl.u32 %v2524, 7
      %v2526 = vsub.s32 0, %v2525
      %v2527 = vrot.slane %v2165, %v2526
      %v2528 = vlaneseq
      %v2529 = vshrl.u32 %v2528, 7
      %v2530 = vsub.s32 0, %v2529
      %v2531 = vrot.slane %v2173, %v2530
      %v2532 = vlaneseq
      %v2533 = vshrl.u32 %v2532, 7
      %v2534 = vsub.s32 0, %v2533
      %v2535 = vrot.slane %v2175, %v2534
      %v2536 = vlaneseq
      %v2537 = vshrl.u32 %v2536, 7
      %v2538 = vsub.s32 0, %v2537
      %v2539 = vrot.slane %v2158, %v2538
      %v2540 = vlaneseq
      %v2541 = vshrl.u32 %v2540, 7
      %v2542 = vsub.s32 0, %v2541
      %v2543 = vrot.slane %v2172, %v2542
      %v2544 = vlaneseq
      %v2545 = vshrl.u32 %v2544, 7
      %v2546 = vsub.s32 0, %v2545
      %v2547 = vrot.slane %v2174, %v2546
      %v2548 = vlaneseq
      %v2549 = vshrl.u32 %v2548, 7
      %v2550 = vsub.s32 0, %v2549
      %v2551 = vrot.slane %v2176, %v2550
      %v2552 = vlaneseq
      %v2553 = vshrl.u32 %v2552, 7
      %v2554 = vsub.s32 0, %v2553
      %v2555 = vrot.slane %v2200, %v2554
      %v2556 = vlaneseq
      %v2557 = vshrl.u32 %v2556, 7
      %v2558 = vsub.s32 0, %v2557
      %v2559 = vrot.slane %v2214, %v2558
      %v2560 = vlaneseq
      %v2561 = vshrl.u32 %v2560, 7
      %v2562 = vsub.s32 0, %v2561
      %v2563 = vrot.slane %v2222, %v2562
      %v2564 = vlaneseq
      %v2565 = vshrl.u32 %v2564, 7
      %v2566 = vsub.s32 0, %v2565
      %v2567 = vrot.slane %v2224, %v2566
      %v2568 = vlaneseq
      %v2569 = vshrl.u32 %v2568, 7
      %v2570 = vsub.s32 0, %v2569
      %v2571 = vrot.slane %v2207, %v2570
      %v2572 = vlaneseq
      %v2573 = vshrl.u32 %v2572, 7
      %v2574 = vsub.s32 0, %v2573
      %v2575 = vrot.slane %v2221, %v2574
      %v2576 = vlaneseq
      %v2577 = vshrl.u32 %v2576, 7
      %v2578 = vsub.s32 0, %v2577
      %v2579 = vrot.slane %v2223, %v2578
      %v2580 = vlaneseq
      %v2581 = vshrl.u32 %v2580, 7
      %v2582 = vsub.s32 0, %v2581
      %v2583 = vrot.slane %v2225, %v2582
      %v2584 = vlaneseq
      %v2585 = vshrl.u32 %v2584, 7
      %v2586 = vsub.s32 0, %v2585
      %v2587 = vrot.slane %v2249, %v2586
      %v2588 = vlaneseq
      %v2589 = vshrl.u32 %v2588, 7
      %v2590 = vsub.s32 0, %v2589
      %v2591 = vrot.slane %v2263, %v2590
      %v2592 = vlaneseq
      %v2593 = vshrl.u32 %v2592, 7
      %v2594 = vsub.s32 0, %v2593
      %v2595 = vrot.slane %v2271, %v2594
      %v2596 = vlaneseq
      %v2597 = vshrl.u32 %v2596, 7
      %v2598 = vsub.s32 0, %v2597
      %v2599 = vrot.slane %v2273, %v2598
      %v2600 = vlaneseq
      %v2601 = vshrl.u32 %v2600, 7
      %v2602 = vsub.s32 0, %v2601
      %v2603 = vrot.slane %v2256, %v2602
      %v2604 = vlaneseq
      %v2605 = vshrl.u32 %v2604, 7
      %v2606 = vsub.s32 0, %v2605
      %v2607 = vrot.slane %v2270, %v2606
      %v2608 = vlaneseq
      %v2609 = vshrl.u32 %v2608, 7
      %v2610 = vsub.s32 0, %v2609
      %v2611 = vrot.slane %v2272, %v2610
      %v2612 = vlaneseq
      %v2613 = vshrl.u32 %v2612, 7
      %v2614 = vsub.s32 0, %v2613
      %v2615 = vrot.slane %v2274, %v2614
      %v2616 = vlaneseq
      %v2617 = vshrl.u32 %v2616, 7
      %v2618 = vsub.s32 0, %v2617
      %v2619 = vrot.slane %v2298, %v2618
      %v2620 = vlaneseq
      %v2621 = vshrl.u32 %v2620, 7
      %v2622 = vsub.s32 0, %v2621
      %v2623 = vrot.slane %v2312, %v2622
      %v2624 = vlaneseq
      %v2625 = vshrl.u32 %v2624, 7
      %v2626 = vsub.s32 0, %v2625
      %v2627 = vrot.slane %v2320, %v2626
      %v2628 = vlaneseq
      %v2629 = vshrl.u32 %v2628, 7
      %v2630 = vsub.s32 0, %v2629
      %v2631 = vrot.slane %v2322, %v2630
      %v2632 = vlaneseq
      %v2633 = vshrl.u32 %v2632, 7
      %v2634 = vsub.s32 0, %v2633
      %v2635 = vrot.slane %v2305, %v2634
      %v2636 = vlaneseq
      %v2637 = vshrl.u32 %v2636, 7
      %v2638 = vsub.s32 0, %v2637
      %v2639 = vrot.slane %v2319, %v2638
      %v2640 = vlaneseq
      %v2641 = vshrl.u32 %v2640, 7
      %v2642 = vsub.s32 0, %v2641
      %v2643 = vrot.slane %v2321, %v2642
      %v2644 = vlaneseq
      %v2645 = vshrl.u32 %v2644, 7
      %v2646 = vsub.s32 0, %v2645
      %v2647 = vrot.slane %v2323, %v2646
      %v2648 = vlaneseq
      %v2649 = vshrl.u32 %v2648, 7
      %v2650 = vsub.s32 0, %v2649
      %v2651 = vrot.slane %v2347, %v2650
      %v2652 = vlaneseq
      %v2653 = vshrl.u32 %v2652, 7
      %v2654 = vsub.s32 0, %v2653
      %v2655 = vrot.slane %v2361, %v2654
      %v2656 = vlaneseq
      %v2657 = vshrl.u32 %v2656, 7
      %v2658 = vsub.s32 0, %v2657
      %v2659 = vrot.slane %v2369, %v2658
      %v2660 = vlaneseq
      %v2661 = vshrl.u32 %v2660, 7
      %v2662 = vsub.s32 0, %v2661
      %v2663 = vrot.slane %v2371, %v2662
      %v2664 = vlaneseq
      %v2665 = vshrl.u32 %v2664, 7
      %v2666 = vsub.s32 0, %v2665
      %v2667 = vrot.slane %v2354, %v2666
      %v2668 = vlaneseq
      %v2669 = vshrl.u32 %v2668, 7
      %v2670 = vsub.s32 0, %v2669
      %v2671 = vrot.slane %v2368, %v2670
      %v2672 = vlaneseq
      %v2673 = vshrl.u32 %v2672, 7
      %v2674 = vsub.s32 0, %v2673
      %v2675 = vrot.slane %v2370, %v2674
      %v2676 = vlaneseq
      %v2677 = vshrl.u32 %v2676, 7
      %v2678 = vsub.s32 0, %v2677
      %v2679 = vrot.slane %v2372, %v2678
      %v2680 = vlaneseq
      %v2681 = vshrl.u32 %v2680, 7
      %v2682 = vsub.s32 0, %v2681
      %v2683 = vrot.slane %v2396, %v2682
      %v2684 = vlaneseq
      %v2685 = vshrl.u32 %v2684, 7
      %v2686 = vsub.s32 0, %v2685
      %v2687 = vrot.slane %v2410, %v2686
      %v2688 = vlaneseq
      %v2689 = vshrl.u32 %v2688, 7
      %v2690 = vsub.s32 0, %v2689
      %v2691 = vrot.slane %v2418, %v2690
      %v2692 = vlaneseq
      %v2693 = vshrl.u32 %v2692, 7
      %v2694 = vsub.s32 0, %v2693
      %v2695 = vrot.slane %v2420, %v2694
      %v2696 = vlaneseq
      %v2697 = vshrl.u32 %v2696, 7
      %v2698 = vsub.s32 0, %v2697
      %v2699 = vrot.slane %v2403, %v2698
      %v2700 = vlaneseq
      %v2701 = vshrl.u32 %v2700, 7
      %v2702 = vsub.s32 0, %v2701
      %v2703 = vrot.slane %v2417, %v2702
      %v2704 = vlaneseq
      %v2705 = vshrl.u32 %v2704, 7
      %v2706 = vsub.s32 0, %v2705
      %v2707 = vrot.slane %v2419, %v2706
      %v2708 = vlaneseq
      %v2709 = vshrl.u32 %v2708, 7
      %v2710 = vsub.s32 0, %v2709
      %v2711 = vrot.slane %v2421, %v2710
      %v2712 = vlaneseq
      %v2713 = vshrl.u32 %v2712, 7
      %v2714 = vsub.s32 0, %v2713
      %v2715 = vrot.slane %v2445, %v2714
      %v2716 = vlaneseq
      %v2717 = vshrl.u32 %v2716, 7
      %v2718 = vsub.s32 0, %v2717
      %v2719 = vrot.slane %v2459, %v2718
      %v2720 = vlaneseq
      %v2721 = vshrl.u32 %v2720, 7
      %v2722 = vsub.s32 0, %v2721
      %v2723 = vrot.slane %v2467, %v2722
      %v2724 = vlaneseq
      %v2725 = vshrl.u32 %v2724, 7
      %v2726 = vsub.s32 0, %v2725
      %v2727 = vrot.slane %v2469, %v2726
      %v2728 = vlaneseq
      %v2729 = vshrl.u32 %v2728, 7
      %v2730 = vsub.s32 0, %v2729
      %v2731 = vrot.slane %v2452, %v2730
      %v2732 = vlaneseq
      %v2733 = vshrl.u32 %v2732, 7
      %v2734 = vsub.s32 0, %v2733
      %v2735 = vrot.slane %v2466, %v2734
      %v2736 = vlaneseq
      %v2737 = vshrl.u32 %v2736, 7
      %v2738 = vsub.s32 0, %v2737
      %v2739 = vrot.slane %v2468, %v2738
      %v2740 = vlaneseq
      %v2741 = vshrl.u32 %v2740, 7
      %v2742 = vsub.s32 0, %v2741
      %v2743 = vrot.slane %v2470, %v2742
      %v2744 = vlaneseq
      %v2745 = vshrl.u32 %v2744, 7
      %v2746 = vsub.s32 0, %v2745
      %v2747 = vrot.slane %v2494, %v2746
      %v2748 = vlaneseq
      %v2749 = vshrl.u32 %v2748, 7
      %v2750 = vsub.s32 0, %v2749
      %v2751 = vrot.slane %v2508, %v2750
      %v2752 = vlaneseq
      %v2753 = vshrl.u32 %v2752, 7
      %v2754 = vsub.s32 0, %v2753
      %v2755 = vrot.slane %v2516, %v2754
      %v2756 = vlaneseq
      %v2757 = vshrl.u32 %v2756, 7
      %v2758 = vsub.s32 0, %v2757
      %v2759 = vrot.slane %v2518, %v2758
      %v2760 = vlaneseq
      %v2761 = vshrl.u32 %v2760, 7
      %v2762 = vsub.s32 0, %v2761
      %v2763 = vrot.slane %v2501, %v2762
      %v2764 = vlaneseq
      %v2765 = vshrl.u32 %v2764, 7
      %v2766 = vsub.s32 0, %v2765
      %v2767 = vrot.slane %v2515, %v2766
      %v2768 = vlaneseq
      %v2769 = vshrl.u32 %v2768, 7
      %v2770 = vsub.s32 0, %v2769
      %v2771 = vrot.slane %v2517, %v2770
      %v2772 = vlaneseq
      %v2773 = vshrl.u32 %v2772, 7
      %v2774 = vsub.s32 0, %v2773
      %v2775 = vrot.slane %v2519, %v2774
      %v2840 = vsel %vm1541, %v1687, %v2523
      %v2841 = vsel %vm1541, %v1701, %v2527
      %v2842 = vsel %vm1541, %v1709, %v2531
      %v2843 = vsel %vm1541, %v1711, %v2535
      %v2844 = vsel %vm1541, %v1694, %v2539
      %v2845 = vsel %vm1541, %v1708, %v2543
      %v2846 = vsel %vm1541, %v1710, %v2547
      %v2847 = vsel %vm1541, %v1712, %v2551
      %v2848 = vsel %vm1541, %v1736, %v2555
      %v2849 = vsel %vm1541, %v1750, %v2559
      %v2850 = vsel %vm1541, %v1758, %v2563
      %v2851 = vsel %vm1541, %v1760, %v2567
      %v2852 = vsel %vm1541, %v1743, %v2571
      %v2853 = vsel %vm1541, %v1757, %v2575
      %v2854 = vsel %vm1541, %v1759, %v2579
      %v2855 = vsel %vm1541, %v1761, %v2583
      %v2856 = vsel %vm1541, %v1785, %v2587
      %v2857 = vsel %vm1541, %v1799, %v2591
      %v2858 = vsel %vm1541, %v1807, %v2595
      %v2859 = vsel %vm1541, %v1809, %v2599
      %v2860 = vsel %vm1541, %v1792, %v2603
      %v2861 = vsel %vm1541, %v1806, %v2607
      %v2862 = vsel %vm1541, %v1808, %v2611
      %v2863 = vsel %vm1541, %v1810, %v2615
      %v2864 = vsel %vm1541, %v1834, %v2619
      %v2865 = vsel %vm1541, %v1848, %v2623
      %v2866 = vsel %vm1541, %v1856, %v2627
      %v2867 = vsel %vm1541, %v1858, %v2631
      %v2868 = vsel %vm1541, %v1841, %v2635
      %v2869 = vsel %vm1541, %v1855, %v2639
      %v2870 = vsel %vm1541, %v1857, %v2643
      %v2871 = vsel %vm1541, %v1859, %v2647
      %v2872 = vsel %vm1541, %v1883, %v2651
      %v2873 = vsel %vm1541, %v1897, %v2655
      %v2874 = vsel %vm1541, %v1905, %v2659
      %v2875 = vsel %vm1541, %v1907, %v2663
      %v2876 = vsel %vm1541, %v1890, %v2667
      %v2877 = vsel %vm1541, %v1904, %v2671
      %v2878 = vsel %vm1541, %v1906, %v2675
      %v2879 = vsel %vm1541, %v1908, %v2679
      %v2880 = vsel %vm1541, %v1932, %v2683
      %v2881 = vsel %vm1541, %v1946, %v2687
      %v2882 = vsel %vm1541, %v1954, %v2691
      %v2883 = vsel %vm1541, %v1956, %v2695
      %v2884 = vsel %vm1541, %v1939, %v2699
      %v2885 = vsel %vm1541, %v1953, %v2703
      %v2886 = vsel %vm1541, %v1955, %v2707
      %v2887 = vsel %vm1541, %v1957, %v2711
      %v2888 = vsel %vm1541, %v1981, %v2715
      %v2889 = vsel %vm1541, %v1995, %v2719
      %v2890 = vsel %vm1541, %v2003, %v2723
      %v2891 = vsel %vm1541, %v2005, %v2727
      %v2892 = vsel %vm1541, %v1988, %v2731
      %v2893 = vsel %vm1541, %v2002, %v2735
      %v2894 = vsel %vm1541, %v2004, %v2739
      %v2895 = vsel %vm1541, %v2006, %v2743
      %v2896 = vsel %vm1541, %v2030, %v2747
      %v2897 = vsel %vm1541, %v2044, %v2751
      %v2898 = vsel %vm1541, %v2052, %v2755
      %v2899 = vsel %vm1541, %v2054, %v2759
      %v2900 = vsel %vm1541, %v2037, %v2763
      %v2901 = vsel %vm1541, %v2051, %v2767
      %v2902 = vsel %vm1541, %v2053, %v2771
      %v2903 = vsel %vm1541, %v2055, %v2775
      %v3032 = vcombine.low %v1542, %v1543
      %v3033 = vcombine.low %v1544, %v1545
      %v3035 = vunpack.c.l.s4 1983009808
      %v3036 = vunpack.c.0.s8 %v3035
      %v3037 = vlaneseq
      %v3038 = vshrl.u32 %v3037, 7
      %v3039 = vsub.s32 %v3036, %v3038
      %v3040 = vrot.slane %v3032, %v3039
      %v3042 = vunpack.c.l.s4 1983009808
      %v3043 = vunpack.c.0.s8 %v3042
      %v3044 = vlaneseq
      %v3045 = vshrl.u32 %v3044, 7
      %v3046 = vsub.s32 %v3043, %v3045
      %v3047 = vrot.slane %v3033, %v3046
      %v3048 = vcombine.low %v3040, %v3047
      %v3049 = vcombine.low %v1546, %v1547
      %v3050 = vcombine.low %v1548, %v1549
      %v3052 = vunpack.c.l.s4 1983009808
      %v3053 = vunpack.c.0.s8 %v3052
      %v3054 = vlaneseq
      %v3055 = vshrl.u32 %v3054, 7
      %v3056 = vsub.s32 %v3053, %v3055
      %v3057 = vrot.slane %v3049, %v3056
      %v3059 = vunpack.c.l.s4 1983009808
      %v3060 = vunpack.c.0.s8 %v3059
      %v3061 = vlaneseq
      %v3062 = vshrl.u32 %v3061, 7
      %v3063 = vsub.s32 %v3060, %v3062
      %v3064 = vrot.slane %v3050, %v3063
      %v3065 = vcombine.low %v3057, %v3064
      %v3066 = vcombine.low %v2840, %v2841
      %v3067 = vcombine.low %v2842, %v2843
      %v3069 = vunpack.c.l.s4 1983009808
      %v3070 = vunpack.c.0.s8 %v3069
      %v3071 = vlaneseq
      %v3072 = vshrl.u32 %v3071, 7
      %v3073 = vsub.s32 %v3070, %v3072
      %v3074 = vrot.slane %v3066, %v3073
      %v3076 = vunpack.c.l.s4 1983009808
      %v3077 = vunpack.c.0.s8 %v3076
      %v3078 = vlaneseq
      %v3079 = vshrl.u32 %v3078, 7
      %v3080 = vsub.s32 %v3077, %v3079
      %v3081 = vrot.slane %v3067, %v3080
      %v3082 = vcombine.low %v3074, %v3081
      %v3083 = vcombine.low %v2844, %v2845
      %v3084 = vcombine.low %v2846, %v2847
      %v3086 = vunpack.c.l.s4 1983009808
      %v3087 = vunpack.c.0.s8 %v3086
      %v3088 = vlaneseq
      %v3089 = vshrl.u32 %v3088, 7
      %v3090 = vsub.s32 %v3087, %v3089
      %v3091 = vrot.slane %v3083, %v3090
      %v3093 = vunpack.c.l.s4 1983009808
      %v3094 = vunpack.c.0.s8 %v3093
      %v3095 = vlaneseq
      %v3096 = vshrl.u32 %v3095, 7
      %v3097 = vsub.s32 %v3094, %v3096
      %v3098 = vrot.slane %v3084, %v3097
      %v3099 = vcombine.low %v3091, %v3098
      %v3100 = vcombine.low %v1550, %v1551
      %v3101 = vcombine.low %v1552, %v1553
      %v3103 = vunpack.c.l.s4 1983009808
      %v3104 = vunpack.c.0.s8 %v3103
      %v3105 = vlaneseq
      %v3106 = vshrl.u32 %v3105, 7
      %v3107 = vsub.s32 %v3104, %v3106
      %v3108 = vrot.slane %v3100, %v3107
      %v3110 = vunpack.c.l.s4 1983009808
      %v3111 = vunpack.c.0.s8 %v3110
      %v3112 = vlaneseq
      %v3113 = vshrl.u32 %v3112, 7
      %v3114 = vsub.s32 %v3111, %v3113
      %v3115 = vrot.slane %v3101, %v3114
      %v3116 = vcombine.low %v3108, %v3115
      %v3117 = vcombine.low %v1554, %v1555
      %v3118 = vcombine.low %v1556, %v1557
      %v3120 = vunpack.c.l.s4 1983009808
      %v3121 = vunpack.c.0.s8 %v3120
      %v3122 = vlaneseq
      %v3123 = vshrl.u32 %v3122, 7
      %v3124 = vsub.s32 %v3121, %v3123
      %v3125 = vrot.slane %v3117, %v3124
      %v3127 = vunpack.c.l.s4 1983009808
      %v3128 = vunpack.c.0.s8 %v3127
      %v3129 = vlaneseq
      %v3130 = vshrl.u32 %v3129, 7
      %v3131 = vsub.s32 %v3128, %v3130
      %v3132 = vrot.slane %v3118, %v3131
      %v3133 = vcombine.low %v3125, %v3132
      %v3134 = vcombine.low %v2848, %v2849
      %v3135 = vcombine.low %v2850, %v2851
      %v3137 = vunpack.c.l.s4 1983009808
      %v3138 = vunpack.c.0.s8 %v3137
      %v3139 = vlaneseq
      %v3140 = vshrl.u32 %v3139, 7
      %v3141 = vsub.s32 %v3138, %v3140
      %v3142 = vrot.slane %v3134, %v3141
      %v3144 = vunpack.c.l.s4 1983009808
      %v3145 = vunpack.c.0.s8 %v3144
      %v3146 = vlaneseq
      %v3147 = vshrl.u32 %v3146, 7
      %v3148 = vsub.s32 %v3145, %v3147
      %v3149 = vrot.slane %v3135, %v3148
      %v3150 = vcombine.low %v3142, %v3149
      %v3151 = vcombine.low %v2852, %v2853
      %v3152 = vcombine.low %v2854, %v2855
      %v3154 = vunpack.c.l.s4 1983009808
      %v3155 = vunpack.c.0.s8 %v3154
      %v3156 = vlaneseq
      %v3157 = vshrl.u32 %v3156, 7
      %v3158 = vsub.s32 %v3155, %v3157
      %v3159 = vrot.slane %v3151, %v3158
      %v3161 = vunpack.c.l.s4 1983009808
      %v3162 = vunpack.c.0.s8 %v3161
      %v3163 = vlaneseq
      %v3164 = vshrl.u32 %v3163, 7
      %v3165 = vsub.s32 %v3162, %v3164
      %v3166 = vrot.slane %v3152, %v3165
      %v3167 = vcombine.low %v3159, %v3166
      %v3168 = vcombine.low %v1558, %v1559
      %v3169 = vcombine.low %v1560, %v1561
      %v3171 = vunpack.c.l.s4 1983009808
      %v3172 = vunpack.c.0.s8 %v3171
      %v3173 = vlaneseq
      %v3174 = vshrl.u32 %v3173, 7
      %v3175 = vsub.s32 %v3172, %v3174
      %v3176 = vrot.slane %v3168, %v3175
      %v3178 = vunpack.c.l.s4 1983009808
      %v3179 = vunpack.c.0.s8 %v3178
      %v3180 = vlaneseq
      %v3181 = vshrl.u32 %v3180, 7
      %v3182 = vsub.s32 %v3179, %v3181
      %v3183 = vrot.slane %v3169, %v3182
      %v3184 = vcombine.low %v3176, %v3183
      %v3185 = vcombine.low %v1562, %v1563
      %v3186 = vcombine.low %v1564, %v1565
      %v3188 = vunpack.c.l.s4 1983009808
      %v3189 = vunpack.c.0.s8 %v3188
      %v3190 = vlaneseq
      %v3191 = vshrl.u32 %v3190, 7
      %v3192 = vsub.s32 %v3189, %v3191
      %v3193 = vrot.slane %v3185, %v3192
      %v3195 = vunpack.c.l.s4 1983009808
      %v3196 = vunpack.c.0.s8 %v3195
      %v3197 = vlaneseq
      %v3198 = vshrl.u32 %v3197, 7
      %v3199 = vsub.s32 %v3196, %v3198
      %v3200 = vrot.slane %v3186, %v3199
      %v3201 = vcombine.low %v3193, %v3200
      %v3202 = vcombine.low %v2856, %v2857
      %v3203 = vcombine.low %v2858, %v2859
      %v3205 = vunpack.c.l.s4 1983009808
      %v3206 = vunpack.c.0.s8 %v3205
      %v3207 = vlaneseq
      %v3208 = vshrl.u32 %v3207, 7
      %v3209 = vsub.s32 %v3206, %v3208
      %v3210 = vrot.slane %v3202, %v3209
      %v3212 = vunpack.c.l.s4 1983009808
      %v3213 = vunpack.c.0.s8 %v3212
      %v3214 = vlaneseq
      %v3215 = vshrl.u32 %v3214, 7
      %v3216 = vsub.s32 %v3213, %v3215
      %v3217 = vrot.slane %v3203, %v3216
      %v3218 = vcombine.low %v3210, %v3217
      %v3219 = vcombine.low %v2860, %v2861
      %v3220 = vcombine.low %v2862, %v2863
      %v3222 = vunpack.c.l.s4 1983009808
      %v3223 = vunpack.c.0.s8 %v3222
      %v3224 = vlaneseq
      %v3225 = vshrl.u32 %v3224, 7
      %v3226 = vsub.s32 %v3223, %v3225
      %v3227 = vrot.slane %v3219, %v3226
      %v3229 = vunpack.c.l.s4 1983009808
      %v3230 = vunpack.c.0.s8 %v3229
      %v3231 = vlaneseq
      %v3232 = vshrl.u32 %v3231, 7
      %v3233 = vsub.s32 %v3230, %v3232
      %v3234 = vrot.slane %v3220, %v3233
      %v3235 = vcombine.low %v3227, %v3234
      %v3236 = vcombine.low %v1566, %v1567
      %v3237 = vcombine.low %v1568, %v1569
      %v3239 = vunpack.c.l.s4 1983009808
      %v3240 = vunpack.c.0.s8 %v3239
      %v3241 = vlaneseq
      %v3242 = vshrl.u32 %v3241, 7
      %v3243 = vsub.s32 %v3240, %v3242
      %v3244 = vrot.slane %v3236, %v3243
      %v3246 = vunpack.c.l.s4 1983009808
      %v3247 = vunpack.c.0.s8 %v3246
      %v3248 = vlaneseq
      %v3249 = vshrl.u32 %v3248, 7
      %v3250 = vsub.s32 %v3247, %v3249
      %v3251 = vrot.slane %v3237, %v3250
      %v3252 = vcombine.low %v3244, %v3251
      %v3253 = vcombine.low %v1570, %v1571
      %v3254 = vcombine.low %v1572, %v1573
      %v3256 = vunpack.c.l.s4 1983009808
      %v3257 = vunpack.c.0.s8 %v3256
      %v3258 = vlaneseq
      %v3259 = vshrl.u32 %v3258, 7
      %v3260 = vsub.s32 %v3257, %v3259
      %v3261 = vrot.slane %v3253, %v3260
      %v3263 = vunpack.c.l.s4 1983009808
      %v3264 = vunpack.c.0.s8 %v3263
      %v3265 = vlaneseq
      %v3266 = vshrl.u32 %v3265, 7
      %v3267 = vsub.s32 %v3264, %v3266
      %v3268 = vrot.slane %v3254, %v3267
      %v3269 = vcombine.low %v3261, %v3268
      %v3270 = vcombine.low %v2864, %v2865
      %v3271 = vcombine.low %v2866, %v2867
      %v3273 = vunpack.c.l.s4 1983009808
      %v3274 = vunpack.c.0.s8 %v3273
      %v3275 = vlaneseq
      %v3276 = vshrl.u32 %v3275, 7
      %v3277 = vsub.s32 %v3274, %v3276
      %v3278 = vrot.slane %v3270, %v3277
      %v3280 = vunpack.c.l.s4 1983009808
      %v3281 = vunpack.c.0.s8 %v3280
      %v3282 = vlaneseq
      %v3283 = vshrl.u32 %v3282, 7
      %v3284 = vsub.s32 %v3281, %v3283
      %v3285 = vrot.slane %v3271, %v3284
      %v3286 = vcombine.low %v3278, %v3285
      %v3287 = vcombine.low %v2868, %v2869
      %v3288 = vcombine.low %v2870, %v2871
      %v3290 = vunpack.c.l.s4 1983009808
      %v3291 = vunpack.c.0.s8 %v3290
      %v3292 = vlaneseq
      %v3293 = vshrl.u32 %v3292, 7
      %v3294 = vsub.s32 %v3291, %v3293
      %v3295 = vrot.slane %v3287, %v3294
      %v3297 = vunpack.c.l.s4 1983009808
      %v3298 = vunpack.c.0.s8 %v3297
      %v3299 = vlaneseq
      %v3300 = vshrl.u32 %v3299, 7
      %v3301 = vsub.s32 %v3298, %v3300
      %v3302 = vrot.slane %v3288, %v3301
      %v3303 = vcombine.low %v3295, %v3302
      %v3304 = vcombine.low %v1574, %v1575
      %v3305 = vcombine.low %v1576, %v1577
      %v3307 = vunpack.c.l.s4 1983009808
      %v3308 = vunpack.c.0.s8 %v3307
      %v3309 = vlaneseq
      %v3310 = vshrl.u32 %v3309, 7
      %v3311 = vsub.s32 %v3308, %v3310
      %v3312 = vrot.slane %v3304, %v3311
      %v3314 = vunpack.c.l.s4 1983009808
      %v3315 = vunpack.c.0.s8 %v3314
      %v3316 = vlaneseq
      %v3317 = vshrl.u32 %v3316, 7
      %v3318 = vsub.s32 %v3315, %v3317
      %v3319 = vrot.slane %v3305, %v3318
      %v3320 = vcombine.low %v3312, %v3319
      %v3321 = vcombine.low %v1578, %v1579
      %v3322 = vcombine.low %v1580, %v1581
      %v3324 = vunpack.c.l.s4 1983009808
      %v3325 = vunpack.c.0.s8 %v3324
      %v3326 = vlaneseq
      %v3327 = vshrl.u32 %v3326, 7
      %v3328 = vsub.s32 %v3325, %v3327
      %v3329 = vrot.slane %v3321, %v3328
      %v3331 = vunpack.c.l.s4 1983009808
      %v3332 = vunpack.c.0.s8 %v3331
      %v3333 = vlaneseq
      %v3334 = vshrl.u32 %v3333, 7
      %v3335 = vsub.s32 %v3332, %v3334
      %v3336 = vrot.slane %v3322, %v3335
      %v3337 = vcombine.low %v3329, %v3336
      %v3338 = vcombine.low %v2872, %v2873
      %v3339 = vcombine.low %v2874, %v2875
      %v3341 = vunpack.c.l.s4 1983009808
      %v3342 = vunpack.c.0.s8 %v3341
      %v3343 = vlaneseq
      %v3344 = vshrl.u32 %v3343, 7
      %v3345 = vsub.s32 %v3342, %v3344
      %v3346 = vrot.slane %v3338, %v3345
      %v3348 = vunpack.c.l.s4 1983009808
      %v3349 = vunpack.c.0.s8 %v3348
      %v3350 = vlaneseq
      %v3351 = vshrl.u32 %v3350, 7
      %v3352 = vsub.s32 %v3349, %v3351
      %v3353 = vrot.slane %v3339, %v3352
      %v3354 = vcombine.low %v3346, %v3353
      %v3355 = vcombine.low %v2876, %v2877
      %v3356 = vcombine.low %v2878, %v2879
      %v3358 = vunpack.c.l.s4 1983009808
      %v3359 = vunpack.c.0.s8 %v3358
      %v3360 = vlaneseq
      %v3361 = vshrl.u32 %v3360, 7
      %v3362 = vsub.s32 %v3359, %v3361
      %v3363 = vrot.slane %v3355, %v3362
      %v3365 = vunpack.c.l.s4 1983009808
      %v3366 = vunpack.c.0.s8 %v3365
      %v3367 = vlaneseq
      %v3368 = vshrl.u32 %v3367, 7
      %v3369 = vsub.s32 %v3366, %v3368
      %v3370 = vrot.slane %v3356, %v3369
      %v3371 = vcombine.low %v3363, %v3370
      %v3372 = vcombine.low %v1582, %v1583
      %v3373 = vcombine.low %v1584, %v1585
      %v3375 = vunpack.c.l.s4 1983009808
      %v3376 = vunpack.c.0.s8 %v3375
      %v3377 = vlaneseq
      %v3378 = vshrl.u32 %v3377, 7
      %v3379 = vsub.s32 %v3376, %v3378
      %v3380 = vrot.slane %v3372, %v3379
      %v3382 = vunpack.c.l.s4 1983009808
      %v3383 = vunpack.c.0.s8 %v3382
      %v3384 = vlaneseq
      %v3385 = vshrl.u32 %v3384, 7
      %v3386 = vsub.s32 %v3383, %v3385
      %v3387 = vrot.slane %v3373, %v3386
      %v3388 = vcombine.low %v3380, %v3387
      %v3389 = vcombine.low %v1586, %v1587
      %v3390 = vcombine.low %v1588, %v1589
      %v3392 = vunpack.c.l.s4 1983009808
      %v3393 = vunpack.c.0.s8 %v3392
      %v3394 = vlaneseq
      %v3395 = vshrl.u32 %v3394, 7
      %v3396 = vsub.s32 %v3393, %v3395
      %v3397 = vrot.slane %v3389, %v3396
      %v3399 = vunpack.c.l.s4 1983009808
      %v3400 = vunpack.c.0.s8 %v3399
      %v3401 = vlaneseq
      %v3402 = vshrl.u32 %v3401, 7
      %v3403 = vsub.s32 %v3400, %v3402
      %v3404 = vrot.slane %v3390, %v3403
      %v3405 = vcombine.low %v3397, %v3404
      %v3406 = vcombine.low %v2880, %v2881
      %v3407 = vcombine.low %v2882, %v2883
      %v3409 = vunpack.c.l.s4 1983009808
      %v3410 = vunpack.c.0.s8 %v3409
      %v3411 = vlaneseq
      %v3412 = vshrl.u32 %v3411, 7
      %v3413 = vsub.s32 %v3410, %v3412
      %v3414 = vrot.slane %v3406, %v3413
      %v3416 = vunpack.c.l.s4 1983009808
      %v3417 = vunpack.c.0.s8 %v3416
      %v3418 = vlaneseq
      %v3419 = vshrl.u32 %v3418, 7
      %v3420 = vsub.s32 %v3417, %v3419
      %v3421 = vrot.slane %v3407, %v3420
      %v3422 = vcombine.low %v3414, %v3421
      %v3423 = vcombine.low %v2884, %v2885
      %v3424 = vcombine.low %v2886, %v2887
      %v3426 = vunpack.c.l.s4 1983009808
      %v3427 = vunpack.c.0.s8 %v3426
      %v3428 = vlaneseq
      %v3429 = vshrl.u32 %v3428, 7
      %v3430 = vsub.s32 %v3427, %v3429
      %v3431 = vrot.slane %v3423, %v3430
      %v3433 = vunpack.c.l.s4 1983009808
      %v3434 = vunpack.c.0.s8 %v3433
      %v3435 = vlaneseq
      %v3436 = vshrl.u32 %v3435, 7
      %v3437 = vsub.s32 %v3434, %v3436
      %v3438 = vrot.slane %v3424, %v3437
      %v3439 = vcombine.low %v3431, %v3438
      %v3440 = vcombine.low %v1590, %v1591
      %v3441 = vcombine.low %v1592, %v1593
      %v3443 = vunpack.c.l.s4 1983009808
      %v3444 = vunpack.c.0.s8 %v3443
      %v3445 = vlaneseq
      %v3446 = vshrl.u32 %v3445, 7
      %v3447 = vsub.s32 %v3444, %v3446
      %v3448 = vrot.slane %v3440, %v3447
      %v3450 = vunpack.c.l.s4 1983009808
      %v3451 = vunpack.c.0.s8 %v3450
      %v3452 = vlaneseq
      %v3453 = vshrl.u32 %v3452, 7
      %v3454 = vsub.s32 %v3451, %v3453
      %v3455 = vrot.slane %v3441, %v3454
      %v3456 = vcombine.low %v3448, %v3455
      %v3457 = vcombine.low %v1594, %v1595
      %v3458 = vcombine.low %v1596, %v1597
      %v3460 = vunpack.c.l.s4 1983009808
      %v3461 = vunpack.c.0.s8 %v3460
      %v3462 = vlaneseq
      %v3463 = vshrl.u32 %v3462, 7
      %v3464 = vsub.s32 %v3461, %v3463
      %v3465 = vrot.slane %v3457, %v3464
      %v3467 = vunpack.c.l.s4 1983009808
      %v3468 = vunpack.c.0.s8 %v3467
      %v3469 = vlaneseq
      %v3470 = vshrl.u32 %v3469, 7
      %v3471 = vsub.s32 %v3468, %v3470
      %v3472 = vrot.slane %v3458, %v3471
      %v3473 = vcombine.low %v3465, %v3472
      %v3474 = vcombine.low %v2888, %v2889
      %v3475 = vcombine.low %v2890, %v2891
      %v3477 = vunpack.c.l.s4 1983009808
      %v3478 = vunpack.c.0.s8 %v3477
      %v3479 = vlaneseq
      %v3480 = vshrl.u32 %v3479, 7
      %v3481 = vsub.s32 %v3478, %v3480
      %v3482 = vrot.slane %v3474, %v3481
      %v3484 = vunpack.c.l.s4 1983009808
      %v3485 = vunpack.c.0.s8 %v3484
      %v3486 = vlaneseq
      %v3487 = vshrl.u32 %v3486, 7
      %v3488 = vsub.s32 %v3485, %v3487
      %v3489 = vrot.slane %v3475, %v3488
      %v3490 = vcombine.low %v3482, %v3489
      %v3491 = vcombine.low %v2892, %v2893
      %v3492 = vcombine.low %v2894, %v2895
      %v3494 = vunpack.c.l.s4 1983009808
      %v3495 = vunpack.c.0.s8 %v3494
      %v3496 = vlaneseq
      %v3497 = vshrl.u32 %v3496, 7
      %v3498 = vsub.s32 %v3495, %v3497
      %v3499 = vrot.slane %v3491, %v3498
      %v3501 = vunpack.c.l.s4 1983009808
      %v3502 = vunpack.c.0.s8 %v3501
      %v3503 = vlaneseq
      %v3504 = vshrl.u32 %v3503, 7
      %v3505 = vsub.s32 %v3502, %v3504
      %v3506 = vrot.slane %v3492, %v3505
      %v3507 = vcombine.low %v3499, %v3506
      %v3508 = vcombine.low %v1598, %v1599
      %v3509 = vcombine.low %v1600, %v1601
      %v3511 = vunpack.c.l.s4 1983009808
      %v3512 = vunpack.c.0.s8 %v3511
      %v3513 = vlaneseq
      %v3514 = vshrl.u32 %v3513, 7
      %v3515 = vsub.s32 %v3512, %v3514
      %v3516 = vrot.slane %v3508, %v3515
      %v3518 = vunpack.c.l.s4 1983009808
      %v3519 = vunpack.c.0.s8 %v3518
      %v3520 = vlaneseq
      %v3521 = vshrl.u32 %v3520, 7
      %v3522 = vsub.s32 %v3519, %v3521
      %v3523 = vrot.slane %v3509, %v3522
      %v3524 = vcombine.low %v3516, %v3523
      %v3525 = vcombine.low %v1602, %v1603
      %v3526 = vcombine.low %v1604, %v1605
      %v3528 = vunpack.c.l.s4 1983009808
      %v3529 = vunpack.c.0.s8 %v3528
      %v3530 = vlaneseq
      %v3531 = vshrl.u32 %v3530, 7
      %v3532 = vsub.s32 %v3529, %v3531
      %v3533 = vrot.slane %v3525, %v3532
      %v3535 = vunpack.c.l.s4 1983009808
      %v3536 = vunpack.c.0.s8 %v3535
      %v3537 = vlaneseq
      %v3538 = vshrl.u32 %v3537, 7
      %v3539 = vsub.s32 %v3536, %v3538
      %v3540 = vrot.slane %v3526, %v3539
      %v3541 = vcombine.low %v3533, %v3540
      %v3542 = vcombine.low %v2896, %v2897
      %v3543 = vcombine.low %v2898, %v2899
      %v3545 = vunpack.c.l.s4 1983009808
      %v3546 = vunpack.c.0.s8 %v3545
      %v3547 = vlaneseq
      %v3548 = vshrl.u32 %v3547, 7
      %v3549 = vsub.s32 %v3546, %v3548
      %v3550 = vrot.slane %v3542, %v3549
      %v3552 = vunpack.c.l.s4 1983009808
      %v3553 = vunpack.c.0.s8 %v3552
      %v3554 = vlaneseq
      %v3555 = vshrl.u32 %v3554, 7
      %v3556 = vsub.s32 %v3553, %v3555
      %v3557 = vrot.slane %v3543, %v3556
      %v3558 = vcombine.low %v3550, %v3557
      %v3559 = vcombine.low %v2900, %v2901
      %v3560 = vcombine.low %v2902, %v2903
      %v3562 = vunpack.c.l.s4 1983009808
      %v3563 = vunpack.c.0.s8 %v3562
      %v3564 = vlaneseq
      %v3565 = vshrl.u32 %v3564, 7
      %v3566 = vsub.s32 %v3563, %v3565
      %v3567 = vrot.slane %v3559, %v3566
      %v3569 = vunpack.c.l.s4 1983009808
      %v3570 = vunpack.c.0.s8 %v3569
      %v3571 = vlaneseq
      %v3572 = vshrl.u32 %v3571, 7
      %v3573 = vsub.s32 %v3570, %v3572
      %v3574 = vrot.slane %v3560, %v3573
      %v3575 = vcombine.low %v3567, %v3574
      %3608 = vxpose.xlu0.b32.start [1/16] %v3048, 128
      %3609 = vxpose.xlu0.b32.cont [2/16] %v3065, 128
      %3610 = vxpose.xlu0.b32.cont [3/16] %v3082, 128
      %3611 = vxpose.xlu0.b32.cont [4/16] %v3099, 128
      %3612 = vxpose.xlu0.b32.cont [5/16] %v3116, 128
      %3613 = vxpose.xlu0.b32.cont [6/16] %v3133, 128
      %3614 = vxpose.xlu0.b32.cont [7/16] %v3150, 128
      %3615 = vxpose.xlu0.b32.cont [8/16] %v3167, 128
      %3616 = vxpose.xlu0.b32.cont [9/16] %v3184, 128
      %3617 = vxpose.xlu0.b32.cont [10/16] %v3201, 128
      %3618 = vxpose.xlu0.b32.cont [11/16] %v3218, 128
      %3619 = vxpose.xlu0.b32.cont [12/16] %v3235, 128
      %3620 = vxpose.xlu0.b32.cont [13/16] %v3252, 128
      %3621 = vxpose.xlu0.b32.cont [14/16] %v3269, 128
      %3622 = vxpose.xlu0.b32.cont [15/16] %v3286, 128
      %3623 = vxpose.xlu0.b32.end [16/16] %v3303, 128
      %v3624 = vpop.trf.xlu0
      %v3625 = vpop.trf.xlu0
      %v3626 = vpop.trf.xlu0
      %v3627 = vpop.trf.xlu0
      %v3628 = vpop.trf.xlu0
      %v3629 = vpop.trf.xlu0
      %v3630 = vpop.trf.xlu0
      %v3631 = vpop.trf.xlu0
      %v3632 = vpop.trf.xlu0
      %v3633 = vpop.trf.xlu0
      %v3634 = vpop.trf.xlu0
      %v3635 = vpop.trf.xlu0
      %v3636 = vpop.trf.xlu0
      %v3637 = vpop.trf.xlu0
      %v3638 = vpop.trf.xlu0
      %v3639 = vpop.trf.xlu0
      %3640 = vxpose.xlu0.b32.start [1/16] %v3320, 128
      %3641 = vxpose.xlu0.b32.cont [2/16] %v3337, 128
      %3642 = vxpose.xlu0.b32.cont [3/16] %v3354, 128
      %3643 = vxpose.xlu0.b32.cont [4/16] %v3371, 128
      %3644 = vxpose.xlu0.b32.cont [5/16] %v3388, 128
      %3645 = vxpose.xlu0.b32.cont [6/16] %v3405, 128
      %3646 = vxpose.xlu0.b32.cont [7/16] %v3422, 128
      %3647 = vxpose.xlu0.b32.cont [8/16] %v3439, 128
      %3648 = vxpose.xlu0.b32.cont [9/16] %v3456, 128
      %3649 = vxpose.xlu0.b32.cont [10/16] %v3473, 128
      %3650 = vxpose.xlu0.b32.cont [11/16] %v3490, 128
      %3651 = vxpose.xlu0.b32.cont [12/16] %v3507, 128
      %3652 = vxpose.xlu0.b32.cont [13/16] %v3524, 128
      %3653 = vxpose.xlu0.b32.cont [14/16] %v3541, 128
      %3654 = vxpose.xlu0.b32.cont [15/16] %v3558, 128
      %3655 = vxpose.xlu0.b32.end [16/16] %v3575, 128
      %v3656 = vpop.trf.xlu0
      %v3657 = vpop.trf.xlu0
      %v3658 = vpop.trf.xlu0
      %v3659 = vpop.trf.xlu0
      %v3660 = vpop.trf.xlu0
      %v3661 = vpop.trf.xlu0
      %v3662 = vpop.trf.xlu0
      %v3663 = vpop.trf.xlu0
      %v3664 = vpop.trf.xlu0
      %v3665 = vpop.trf.xlu0
      %v3666 = vpop.trf.xlu0
      %v3667 = vpop.trf.xlu0
      %v3668 = vpop.trf.xlu0
      %v3669 = vpop.trf.xlu0
      %v3670 = vpop.trf.xlu0
      %v3671 = vpop.trf.xlu0
      %v3674 = vrot.slane %v3624, 4
      %v3675 = vrot.slane %v3656, 4
      %3678 = vst [vmem:[%s244] sm:$0xf0] %v3674
      %3679 = vst [vmem:[%s244 + $0x8] sm:$0xf0] %v3675
      %p3680 = scmp.lt.s32.totalorder %s16, 1
      %s3681 = scalar_select %p3680, %s16, 1
      %s3682 = smul.addr %s3681, 2
      %s3683 = smul.addr %s3682, 8
      %s3684 = scalar_lea.vmem %s5, %s3683
      // Predicated region
      $region41: #{unet_innermost_forward.3} parent=39 // pred_check
        %p3685 = pneg %p149
      $region42: #{unet_innermost_forward.3} parent=39 // pred_check_branch
        %3687 = sbr.rel (%p3685) target = $region44
      $region43: #{unet_innermost_forward.3} parent=39 // pred_region
        _
      $region44: #{unet_innermost_forward.3} parent=39 // pred_fallthru
        _
    $region40: #{unet_innermost_forward.3} parent=5 // pred_fallthru
      _
    %p3688 = scmp.le.s32.totalorder 2, %s11
    // Predicated region
    $region45: #{unet_innermost_forward.3} parent=5 // pred_check
      %p3689 = pneg %p3688
    $region46: #{unet_innermost_forward.3} parent=5 // pred_check_branch
      %3691 = sbr.rel (%p3689) target = $region48
    $region47: #{unet_innermost_forward.3} parent=5 // pred_region
      %s3692 = ssub.s32 %s11, 2
      // Predicated region
      $region49: #{unet_innermost_forward.3} parent=47 // pred_check
        %p3693 = pneg %p155
      $region50: #{unet_innermost_forward.3} parent=47 // pred_check_branch
        %3695 = sbr.rel (%p3693) target = $region52
      $region51: #{unet_innermost_forward.3} parent=47 // pred_region
        %p3696 = scmp.lt.s32.totalorder %s17, 1
        %s3697 = scalar_select %p3696, %s17, 1
        %s3698 = smul.addr %s3697, 2
        %s3699 = smul.addr %s3698, 8
        %s3700 = scalar_lea.vmem %s5, %s3699
      $region52: #{unet_innermost_forward.3} parent=47 // pred_fallthru
        _
    $region48: #{unet_innermost_forward.3} parent=5 // pred_fallthru
      _
  $region6: #{unet_innermost_forward.3} parent=0 // loop_footer
    %s15 = sadd.s32 1, %s11
  $region7: #{unet_innermost_forward.3} parent=0 // loop_footer_branch
    %10 = sbr.rel target = $region3
  $region8: #{unet_innermost_forward.3} parent=0 // loop_exit
    _

// kernel: unet_innermost_forward.2
$region0: #{unet_innermost_forward.2}
  #allocation0 [shape = 'u32[]', space=smem, size = 0x4, offset = 0x4, fixed_abs, tag = 'smem constant byte address 0x4 - core index']
  #allocation1 [shape = 'u32[144,128]{1,0:T(1,128)}', space=vmem, size = 0x12000, scoped, tag = 'internal scratch']
  #allocation2 [shape = 'f32[10,10,8]{2,1,0:T(8,128)}', space=vmem, size = 0x14000, scoped, tag = 'scratch operand']
  %s0 = inlined_call_operand.vmem [shape: f32[2,9,9,16], index: 0, kind: input, shape index: {}]
  %s1 = inlined_call_operand.vmem [shape: f32[2,2,16,8], index: 1, kind: input, shape index: {}]
  %s2 = inlined_call_operand.vmem [shape: f32[4,4,8,4], index: 2, kind: input, shape index: {}]
  %s3 = inlined_call_operand.vmem [shape: f32[2,2,2,64,4], index: 3, kind: output, shape index: {0}]
  %s4 = inlined_call_operand.vmem [shape: f32[2,2,4], index: 4, kind: output, shape index: {1}]
  %5 = xla_tuple %s3, %s4
  %s6 = sld [smem:[#allocation0]]
  $region53: #{unet_innermost_forward.2} parent=0
    _
  %s8 = ssub.s32 1, %s6
  %s9 = scalar_select 0, %s8, %s6
  loop: start=0, step=1, limit=4
  $region2: #{unet_innermost_forward.2} parent=0 // loop_pre_header
    _
  $region3: #{unet_innermost_forward.2} parent=0 // loop_header
    %s11 = sphi 0, %s15
    %p12 = scmp.ge.s32.totalorder %s11, 4
    %s21 = sphi 0, %s23
    %s24 = sphi 0, %s21
    %s25 = sphi 0, %s24
    %s41 = sphi 0, %s25
    %s45 = sphi 0, %s45
    %s47 = sphi 0, %s45
    %s48 = sphi 0, %s47
    %s62 = sphi 0, %s48
    %s66 = sphi 0, %s66
    %s68 = sphi 0, %s66
    %s69 = sphi 0, %s68
    %s83 = sphi 0, %s69
    %s89 = sphi 0, %s91
    %s92 = sphi 0, %s89
    %s93 = sphi 0, %s92
    %s109 = sphi 0, %s93
    %s115 = sphi 0, %s117
    %s118 = sphi 0, %s115
    %s119 = sphi 0, %s118
    %s135 = sphi 0, %s119
  $region4: #{unet_innermost_forward.2} parent=0 // loop_header_branch
    %14 = sbr.rel (%p12) target = $region8
  $region5: #{unet_innermost_forward.2} parent=0 // loop_body
    %s16 = ssub.s32 %s11, 1
    %s17 = ssub.s32 %s11, 2
    %s18 = sadd.s32 %s11, 1
    %s19 = ssub.s32 %s11, %s18
    %p20 = scmp.eq.s32.totalorder %s19, 0
    %s22 = sadd.s32 %s21, 1
    %s23 = scalar_select %p20, %s21, %s22
    %p26 = pneg %p20
    %p27 = scmp.eq.s32.totalorder %s11, 1
    %p28 = por %p26, %p27
    %p29 = scmp.ne.s32.totalorder %s21, %s24
    %p30 = scmp.eq.s32.totalorder %s11, 0
    %p31 = por %p29, %p30
    %p32 = scmp.ne.s32.totalorder %s21, %s24
    %p33 = scmp.eq.s32.totalorder %s16, 1
    %p34 = por %p32, %p33
    %p35 = scmp.ne.s32.totalorder %s24, %s25
    %p36 = scmp.eq.s32.totalorder %s16, 0
    %p37 = por %p35, %p36
    %p38 = scmp.ne.s32.totalorder %s24, %s25
    %p39 = scmp.eq.s32.totalorder %s17, 1
    %p40 = por %p38, %p39
    %p42 = scmp.ne.s32.totalorder %s25, %s41
    %p43 = scmp.eq.s32.totalorder %s17, 0
    %p44 = por %p42, %p43
    %s46 = sadd.s32 %s45, 1
    %p49 = scmp.eq.s32.totalorder %s11, 1
    %p50 = scmp.ne.s32.totalorder %s45, %s47
    %p51 = scmp.eq.s32.totalorder %s11, 0
    %p52 = por %p50, %p51
    %p53 = scmp.ne.s32.totalorder %s45, %s47
    %p54 = scmp.eq.s32.totalorder %s16, 1
    %p55 = por %p53, %p54
    %p56 = scmp.ne.s32.totalorder %s47, %s48
    %p57 = scmp.eq.s32.totalorder %s16, 0
    %p58 = por %p56, %p57
    %p59 = scmp.ne.s32.totalorder %s47, %s48
    %p60 = scmp.eq.s32.totalorder %s17, 1
    %p61 = por %p59, %p60
    %p63 = scmp.ne.s32.totalorder %s48, %s62
    %p64 = scmp.eq.s32.totalorder %s17, 0
    %p65 = por %p63, %p64
    %s67 = sadd.s32 %s66, 1
    %p70 = scmp.eq.s32.totalorder %s11, 1
    %p71 = scmp.ne.s32.totalorder %s66, %s68
    %p72 = scmp.eq.s32.totalorder %s11, 0
    %p73 = por %p71, %p72
    %p74 = scmp.ne.s32.totalorder %s66, %s68
    %p75 = scmp.eq.s32.totalorder %s16, 1
    %p76 = por %p74, %p75
    %p77 = scmp.ne.s32.totalorder %s68, %s69
    %p78 = scmp.eq.s32.totalorder %s16, 0
    %p79 = por %p77, %p78
    %p80 = scmp.ne.s32.totalorder %s68, %s69
    %p81 = scmp.eq.s32.totalorder %s17, 1
    %p82 = por %p80, %p81
    %p84 = scmp.ne.s32.totalorder %s69, %s83
    %p85 = scmp.eq.s32.totalorder %s17, 0
    %p86 = por %p84, %p85
    %s87 = ssub.s32 %s11, %s18
    %p88 = scmp.eq.s32.totalorder %s87, 0
    %s90 = sadd.s32 %s89, 1
    %s91 = scalar_select %p88, %s89, %s90
    %p94 = pneg %p88
    %p95 = scmp.eq.s32.totalorder %s11, 1
    %p96 = por %p94, %p95
    %p97 = scmp.ne.s32.totalorder %s89, %s92
    %p98 = scmp.eq.s32.totalorder %s11, 0
    %p99 = por %p97, %p98
    %p100 = scmp.ne.s32.totalorder %s89, %s92
    %p101 = scmp.eq.s32.totalorder %s16, 1
    %p102 = por %p100, %p101
    %p103 = scmp.ne.s32.totalorder %s92, %s93
    %p104 = scmp.eq.s32.totalorder %s16, 0
    %p105 = por %p103, %p104
    %p106 = scmp.ne.s32.totalorder %s92, %s93
    %p107 = scmp.eq.s32.totalorder %s17, 1
    %p108 = por %p106, %p107
    %p110 = scmp.ne.s32.totalorder %s93, %s109
    %p111 = scmp.eq.s32.totalorder %s17, 0
    %p112 = por %p110, %p111
    %s113 = ssub.s32 %s11, %s18
    %p114 = scmp.eq.s32.totalorder %s113, 0
    %s116 = sadd.s32 %s115, 1
    %s117 = scalar_select %p114, %s115, %s116
    %p120 = pneg %p114
    %p121 = scmp.eq.s32.totalorder %s11, 1
    %p122 = por %p120, %p121
    %p123 = scmp.ne.s32.totalorder %s115, %s118
    %p124 = scmp.eq.s32.totalorder %s11, 0
    %p125 = por %p123, %p124
    %p126 = scmp.ne.s32.totalorder %s115, %s118
    %p127 = scmp.eq.s32.totalorder %s16, 1
    %p128 = por %p126, %p127
    %p129 = scmp.ne.s32.totalorder %s118, %s119
    %p130 = scmp.eq.s32.totalorder %s16, 0
    %p131 = por %p129, %p130
    %p132 = scmp.ne.s32.totalorder %s118, %s119
    %p133 = scmp.eq.s32.totalorder %s17, 1
    %p134 = por %p132, %p133
    %p136 = scmp.ne.s32.totalorder %s119, %s135
    %p137 = scmp.eq.s32.totalorder %s17, 0
    %p138 = por %p136, %p137
    %p139 = scmp.le.s32.totalorder 1, %s11
    %p140 = scmp.lt.s32.totalorder %s11, 3
    %p141 = pnand %p139, %p140
    %p142 = pneg %p141
    // Predicated region
    $region9: #{unet_innermost_forward.2} parent=5 // pred_check
      _
    $region10: #{unet_innermost_forward.2} parent=5 // pred_check_branch
      %144 = sbr.rel (%p141) target = $region12
    $region11: #{unet_innermost_forward.2} parent=5 // pred_region
      %s145 = ssub.s32 %s11, 1
      // Predicated region
      $region13: #{unet_innermost_forward.2} parent=11 // pred_check
        %p146 = pneg %p58
      $region14: #{unet_innermost_forward.2} parent=11 // pred_check_branch
        %148 = sbr.rel (%p146) target = $region16
      $region15: #{unet_innermost_forward.2} parent=11 // pred_region
        _
      $region16: #{unet_innermost_forward.2} parent=11 // pred_fallthru
        _
      // Predicated region
      $region17: #{unet_innermost_forward.2} parent=11 // pred_check
        %p149 = pneg %p79
      $region18: #{unet_innermost_forward.2} parent=11 // pred_check_branch
        %151 = sbr.rel (%p149) target = $region20
      $region19: #{unet_innermost_forward.2} parent=11 // pred_region
        _
      $region20: #{unet_innermost_forward.2} parent=11 // pred_fallthru
        _
    $region12: #{unet_innermost_forward.2} parent=5 // pred_fallthru
      _
    %p152 = scmp.lt.s32.totalorder %s11, 2
    // Predicated region
    $region21: #{unet_innermost_forward.2} parent=5 // pred_check
      %p153 = pneg %p152
    $region22: #{unet_innermost_forward.2} parent=5 // pred_check_branch
      %155 = sbr.rel (%p153) target = $region24
    $region23: #{unet_innermost_forward.2} parent=5 // pred_region
      // Predicated region
      $region25: #{unet_innermost_forward.2} parent=23 // pred_check
        %p156 = pneg %p31
      $region26: #{unet_innermost_forward.2} parent=23 // pred_check_branch
        %158 = sbr.rel (%p156) target = $region28
      $region27: #{unet_innermost_forward.2} parent=23 // pred_region
        %p159 = scmp.lt.s32.totalorder %s11, 1
        %s160 = scalar_select %p159, %s11, 1
        %s161 = smul.addr %s160, 18
        %s162 = smul.addr %s161, 8
        %s163 = scalar_lea.vmem %s0, %s162
      $region28: #{unet_innermost_forward.2} parent=23 // pred_fallthru
        _
    $region24: #{unet_innermost_forward.2} parent=5 // pred_fallthru
      _
    %p164 = scmp.le.s32.totalorder 1, %s11
    %p165 = scmp.lt.s32.totalorder %s11, 3
    %p166 = pnand %p164, %p165
    %p167 = pneg %p166
    // Predicated region
    $region29: #{unet_innermost_forward.2} parent=5 // pred_check
      _
    $region30: #{unet_innermost_forward.2} parent=5 // pred_check_branch
      %169 = sbr.rel (%p166) target = $region32
    $region31: #{unet_innermost_forward.2} parent=5 // pred_region
      %s170 = ssub.s32 %s11, 1
      %p171 = scmp.lt.s32.totalorder %s16, 1
      %s172 = scalar_select %p171, %s16, 1
      %s173 = smul.addr %s172, 18
      %s174 = smul.addr %s173, 8
      %s175 = scalar_lea.vmem %s0, %s174
      %p176 = pneg %p37
      %p177 = pneg %p34
      %p178 = pneg %p58
      %p179 = pneg %p55
      %p180 = pneg %p79
      %p181 = pneg %p76
      %p182 = pneg %p105
      %p183 = pneg %p102
      %p184 = scmp.lt.s32.totalorder %s16, 1
      %s185 = scalar_select %p184, %s16, 1
      %s186 = smul.addr %s185, 32
      %s187 = smul.addr %s186, 8
      %s188 = scalar_lea.vmem %s3, %s187
      %p189 = pneg %p131
      %p190 = pneg %p128
      %p191 = scmp.lt.s32.totalorder %s16, 1
      %s192 = scalar_select %p191, %s16, 1
      %s193 = smul.addr %s192, 2
      %s194 = scalar_lea.vmem %s4, %s193
      %p195 = scmp.lt.s32.totalorder %s16, 1
      %s196 = scalar_select %p195, %s16, 1
      %s197 = smul.addr %s196, 18
      %s198 = smul.addr %s197, 8
      %s199 = scalar_lea.vmem %s0, %s198
      %p200 = scmp.lt.s32.totalorder %s16, 1
      %s201 = scalar_select %p200, %s16, 1
      %s202 = smul.addr %s201, 32
      %s203 = smul.addr %s202, 8
      %s204 = scalar_lea.vmem %s3, %s203
      %p205 = scmp.lt.s32.totalorder %s16, 1
      %s206 = scalar_select %p205, %s16, 1
      %s207 = smul.addr %s206, 2
      %s208 = scalar_lea.vmem %s4, %s207
      %v209 = vld [vmem:[%s199] sm:$0xff]
      %v210 = vld [vmem:[%s199 + $0x8] sm:$0x1]
      %v211 = vld [vmem:[%s199 + $0x10] sm:$0xff]
      %v212 = vld [vmem:[%s199 + $0x18] sm:$0x1]
      %v213 = vld [vmem:[%s199 + $0x20] sm:$0xff]
      %v214 = vld [vmem:[%s199 + $0x28] sm:$0x1]
      %v215 = vld [vmem:[%s199 + $0x30] sm:$0xff]
      %v216 = vld [vmem:[%s199 + $0x38] sm:$0x1]
      %v217 = vld [vmem:[%s199 + $0x40] sm:$0xff]
      %v218 = vld [vmem:[%s199 + $0x48] sm:$0x1]
      %v219 = vld [vmem:[%s199 + $0x50] sm:$0xff]
      %v220 = vld [vmem:[%s199 + $0x58] sm:$0x1]
      %v221 = vld [vmem:[%s199 + $0x60] sm:$0xff]
      %v222 = vld [vmem:[%s199 + $0x68] sm:$0x1]
      %v223 = vld [vmem:[%s199 + $0x70] sm:$0xff]
      %v224 = vld [vmem:[%s199 + $0x78] sm:$0x1]
      %v225 = vld [vmem:[%s199 + $0x80] sm:$0xff]
      %v226 = vld [vmem:[%s199 + $0x88] sm:$0x1]
      %vm227 = vcmp.ge.f32.partialorder %v209, 0.0
      %vm228 = vcmp.ge.f32.partialorder %v210, 0.0
      %vm229 = vcmp.ge.f32.partialorder %v211, 0.0
      %vm230 = vcmp.ge.f32.partialorder %v212, 0.0
      %vm231 = vcmp.ge.f32.partialorder %v213, 0.0
      %vm232 = vcmp.ge.f32.partialorder %v214, 0.0
      %vm233 = vcmp.ge.f32.partialorder %v215, 0.0
      %vm234 = vcmp.ge.f32.partialorder %v216, 0.0
      %vm235 = vcmp.ge.f32.partialorder %v217, 0.0
      %vm236 = vcmp.ge.f32.partialorder %v218, 0.0
      %vm237 = vcmp.ge.f32.partialorder %v219, 0.0
      %vm238 = vcmp.ge.f32.partialorder %v220, 0.0
      %vm239 = vcmp.ge.f32.partialorder %v221, 0.0
      %vm240 = vcmp.ge.f32.partialorder %v222, 0.0
      %vm241 = vcmp.ge.f32.partialorder %v223, 0.0
      %vm242 = vcmp.ge.f32.partialorder %v224, 0.0
      %vm243 = vcmp.ge.f32.partialorder %v225, 0.0
      %vm244 = vcmp.ge.f32.partialorder %v226, 0.0
      %v245 = vmul.f32 %v209, 0.2
      %v246 = vmul.f32 %v210, 0.2
      %v247 = vmul.f32 %v211, 0.2
      %v248 = vmul.f32 %v212, 0.2
      %v249 = vmul.f32 %v213, 0.2
      %v250 = vmul.f32 %v214, 0.2
      %v251 = vmul.f32 %v215, 0.2
      %v252 = vmul.f32 %v216, 0.2
      %v253 = vmul.f32 %v217, 0.2
      %v254 = vmul.f32 %v218, 0.2
      %v255 = vmul.f32 %v219, 0.2
      %v256 = vmul.f32 %v220, 0.2
      %v257 = vmul.f32 %v221, 0.2
      %v258 = vmul.f32 %v222, 0.2
      %v259 = vmul.f32 %v223, 0.2
      %v260 = vmul.f32 %v224, 0.2
      %v261 = vmul.f32 %v225, 0.2
      %v262 = vmul.f32 %v226, 0.2
      %v263 = vsel %vm227, %v209, %v245
      %v264 = vsel %vm228, %v210, %v246
      %v265 = vsel %vm229, %v211, %v247
      %v266 = vsel %vm230, %v212, %v248
      %v267 = vsel %vm231, %v213, %v249
      %v268 = vsel %vm232, %v214, %v250
      %v269 = vsel %vm233, %v215, %v251
      %v270 = vsel %vm234, %v216, %v252
      %v271 = vsel %vm235, %v217, %v253
      %v272 = vsel %vm236, %v218, %v254
      %v273 = vsel %vm237, %v219, %v255
      %v274 = vsel %vm238, %v220, %v256
      %v275 = vsel %vm239, %v221, %v257
      %v276 = vsel %vm240, %v222, %v258
      %v277 = vsel %vm241, %v223, %v259
      %v278 = vsel %vm242, %v224, %v260
      %v279 = vsel %vm243, %v225, %v261
      %v280 = vsel %vm244, %v226, %v262
      %v281 = vld [vmem:[%s1] sm:$0xff]
      %v282 = vld [vmem:[%s1 + $0x8] sm:$0xff]
      %vm299 = vcmask 1046528
      %v300 = vrot.slane %v263, 1
      %v301 = vrot.slane %v264, 1
      %v302 = vsel %vm299, %v300, %v301
      %v303 = vrot.slane %v265, 1
      %v304 = vrot.slane %v266, 1
      %v305 = vsel %vm299, %v303, %v304
      %v306 = vrot.slane %v267, 1
      %v307 = vrot.slane %v268, 1
      %v308 = vsel %vm299, %v306, %v307
      %v309 = vrot.slane %v269, 1
      %v310 = vrot.slane %v270, 1
      %v311 = vsel %vm299, %v309, %v310
      %v312 = vrot.slane %v271, 1
      %v313 = vrot.slane %v272, 1
      %v314 = vsel %vm299, %v312, %v313
      %v315 = vrot.slane %v273, 1
      %v316 = vrot.slane %v274, 1
      %v317 = vsel %vm299, %v315, %v316
      %v318 = vrot.slane %v275, 1
      %v319 = vrot.slane %v276, 1
      %v320 = vsel %vm299, %v318, %v319
      %v321 = vrot.slane %v277, 1
      %v322 = vrot.slane %v278, 1
      %v323 = vsel %vm299, %v321, %v322
      %s324 = scalar_lea.vmem %s1, 16
      %v325 = vld [vmem:[%s324] sm:$0xff]
      %v326 = vld [vmem:[%s324 + $0x8] sm:$0xff]
      %vm327 = vcmask 130048
      %v328 = vsel %vm327, %v302, 0
      %v330 = vsel %vm327, %v305, 0
      %v332 = vsel %vm327, %v308, 0
      %v334 = vsel %vm327, %v311, 0
      %v336 = vsel %vm327, %v314, 0
      %v338 = vsel %vm327, %v317, 0
      %v340 = vsel %vm327, %v320, 0
      %v342 = vsel %vm327, %v323, 0
      %344 = vmatprep.subr.mxu0 0.0
      %345 = vmatpush1.msra.mxu0 %v325
      %346 = vmatprep.subr.mxu0 0.0
      %347 = vmatpush1.msra.mxu0 %v326
      %348 = vmatprep.subr.mxu0 0.0
      %349 = vmatpush1.msra.mxu0 0.0
      %350 = vmatprep.subr.mxu0 0.0
      %351 = vmatpush1.msra.mxu0 0.0
      %352 = vmatprep.subr.mxu0 0.0
      %353 = vmatpush1.msra.mxu0 0.0
      %354 = vmatprep.subr.mxu0 0.0
      %355 = vmatpush1.msra.mxu0 0.0
      %356 = vmatprep.subr.mxu0 0.0
      %357 = vmatpush1.msra.mxu0 0.0
      %358 = vmatprep.subr.mxu0 0.0
      %359 = vmatpush1.msra.mxu0 0.0
      %360 = vmatprep.subr.mxu0 0.0
      %361 = vmatpush1.msra.mxu0 0.0
      %362 = vmatprep.subr.mxu0 0.0
      %363 = vmatpush1.msra.mxu0 0.0
      %364 = vmatprep.subr.mxu0 0.0
      %365 = vmatpush1.msra.mxu0 0.0
      %366 = vmatprep.subr.mxu0 0.0
      %367 = vmatpush1.msra.mxu0 0.0
      %368 = vmatprep.subr.mxu0 0.0
      %369 = vmatpush1.msra.mxu0 0.0
      %370 = vmatprep.subr.mxu0 0.0
      %371 = vmatpush1.msra.mxu0 0.0
      %372 = vmatprep.subr.mxu0 0.0
      %373 = vmatpush1.msra.mxu0 0.0
      %374 = vmatprep.subr.mxu0 0.0
      %375 = vmatpush1.msra.mxu0 0.0
      %376 = vmatprep.subr.mxu0 0.0
      %377 = vmatpush1.msra.mxu0 0.0
      %378 = vmatprep.subr.mxu0 0.0
      %379 = vmatpush1.msra.mxu0 0.0
      %380 = vmatprep.subr.mxu0 0.0
      %381 = vmatpush1.msra.mxu0 0.0
      %382 = vmatprep.subr.mxu0 0.0
      %383 = vmatpush1.msra.mxu0 0.0
      %384 = vmatprep.subr.mxu0 0.0
      %385 = vmatpush1.msra.mxu0 0.0
      %386 = vmatprep.subr.mxu0 0.0
      %387 = vmatpush1.msra.mxu0 0.0
      %388 = vmatprep.subr.mxu0 0.0
      %389 = vmatpush1.msra.mxu0 0.0
      %390 = vmatprep.subr.mxu0 0.0
      %391 = vmatpush1.msra.mxu0 0.0
      %392 = vmatprep.subr.mxu0 0.0
      %393 = vmatpush1.msra.mxu0 0.0
      %394 = vmatprep.subr.mxu0 0.0
      %395 = vmatpush1.msra.mxu0 0.0
      %396 = vmatprep.subr.mxu0 0.0
      %397 = vmatpush1.msra.mxu0 0.0
      %398 = vmatprep.subr.mxu0 0.0
      %399 = vmatpush1.msra.mxu0 0.0
      %400 = vmatprep.subr.mxu0 0.0
      %401 = vmatpush1.msra.mxu0 0.0
      %402 = vmatprep.subr.mxu0 0.0
      %403 = vmatpush1.msra.mxu0 0.0
      %404 = vmatprep.subr.mxu0 0.0
      %405 = vmatpush1.msra.mxu0 0.0
      %406 = vmatprep.subr.mxu0 0.0
      %407 = vmatpush1.msra.mxu0 0.0
      %408 = vmatprep.mubr.f32.mxu0 0.0
      %409 = vmatmul.mubr.f32.gmra.mrb[0].mxu0 %v328
      %v410 = vpop.f32.mrb[0].mxu0
      %v411 = vadd.f32 0.0, %v410
      %v412 = vpop.f32.mrb[0].mxu0
      %413 = vmatprep.mubr.f32.mxu0 0.0
      %414 = vmatmul.mubr.f32.gmra.mrb[0].mxu0 %v330
      %v415 = vpop.f32.mrb[0].mxu0
      %v416 = vadd.f32 0.0, %v415
      %v417 = vpop.f32.mrb[0].mxu0
      %418 = vmatprep.mubr.f32.mxu0 0.0
      %419 = vmatmul.mubr.f32.gmra.mrb[0].mxu0 %v332
      %v420 = vpop.f32.mrb[0].mxu0
      %v421 = vadd.f32 0.0, %v420
      %v422 = vpop.f32.mrb[0].mxu0
      %423 = vmatprep.mubr.f32.mxu0 0.0
      %424 = vmatmul.mubr.f32.gmra.mrb[0].mxu0 %v334
      %v425 = vpop.f32.mrb[0].mxu0
      %v426 = vadd.f32 0.0, %v425
      %v427 = vpop.f32.mrb[0].mxu0
      %428 = vmatprep.mubr.f32.mxu0 0.0
      %429 = vmatmul.mubr.f32.gmra.mrb[0].mxu0 %v336
      %v430 = vpop.f32.mrb[0].mxu0
      %v431 = vadd.f32 0.0, %v430
      %v432 = vpop.f32.mrb[0].mxu0
      %433 = vmatprep.mubr.f32.mxu0 0.0
      %434 = vmatmul.mubr.f32.gmra.mrb[0].mxu0 %v338
      %v435 = vpop.f32.mrb[0].mxu0
      %v436 = vadd.f32 0.0, %v435
      %v437 = vpop.f32.mrb[0].mxu0
      %438 = vmatprep.mubr.f32.mxu0 0.0
      %439 = vmatmul.mubr.f32.gmra.mrb[0].mxu0 %v340
      %v440 = vpop.f32.mrb[0].mxu0
      %v441 = vadd.f32 0.0, %v440
      %v442 = vpop.f32.mrb[0].mxu0
      %443 = vmatprep.mubr.f32.mxu0 0.0
      %444 = vmatmul.mubr.f32.gmra.mrb[0].mxu0 %v342
      %v445 = vpop.f32.mrb[0].mxu0
      %v446 = vadd.f32 0.0, %v445
      %v447 = vpop.f32.mrb[0].mxu0
      %448 = vdwg.mxu0
      %v449 = vsel %vm327, %v263, 0
      %v451 = vsel %vm327, %v265, 0
      %v453 = vsel %vm327, %v267, 0
      %v455 = vsel %vm327, %v269, 0
      %v457 = vsel %vm327, %v271, 0
      %v459 = vsel %vm327, %v273, 0
      %v461 = vsel %vm327, %v275, 0
      %v463 = vsel %vm327, %v277, 0
      %465 = vmatprep.subr.mxu0 0.0
      %466 = vmatpush1.msra.mxu0 %v281
      %467 = vmatprep.subr.mxu0 0.0
      %468 = vmatpush1.msra.mxu0 %v282
      %469 = vmatprep.subr.mxu0 0.0
      %470 = vmatpush1.msra.mxu0 0.0
      %471 = vmatprep.subr.mxu0 0.0
      %472 = vmatpush1.msra.mxu0 0.0
      %473 = vmatprep.subr.mxu0 0.0
      %474 = vmatpush1.msra.mxu0 0.0
      %475 = vmatprep.subr.mxu0 0.0
      %476 = vmatpush1.msra.mxu0 0.0
      %477 = vmatprep.subr.mxu0 0.0
      %478 = vmatpush1.msra.mxu0 0.0
      %479 = vmatprep.subr.mxu0 0.0
      %480 = vmatpush1.msra.mxu0 0.0
      %481 = vmatprep.subr.mxu0 0.0
      %482 = vmatpush1.msra.mxu0 0.0
      %483 = vmatprep.subr.mxu0 0.0
      %484 = vmatpush1.msra.mxu0 0.0
      %485 = vmatprep.subr.mxu0 0.0
      %486 = vmatpush1.msra.mxu0 0.0
      %487 = vmatprep.subr.mxu0 0.0
      %488 = vmatpush1.msra.mxu0 0.0
      %489 = vmatprep.subr.mxu0 0.0
      %490 = vmatpush1.msra.mxu0 0.0
      %491 = vmatprep.subr.mxu0 0.0
      %492 = vmatpush1.msra.mxu0 0.0
      %493 = vmatprep.subr.mxu0 0.0
      %494 = vmatpush1.msra.mxu0 0.0
      %495 = vmatprep.subr.mxu0 0.0
      %496 = vmatpush1.msra.mxu0 0.0
      %497 = vmatprep.subr.mxu0 0.0
      %498 = vmatpush1.msra.mxu0 0.0
      %499 = vmatprep.subr.mxu0 0.0
      %500 = vmatpush1.msra.mxu0 0.0
      %501 = vmatprep.subr.mxu0 0.0
      %502 = vmatpush1.msra.mxu0 0.0
      %503 = vmatprep.subr.mxu0 0.0
      %504 = vmatpush1.msra.mxu0 0.0
      %505 = vmatprep.subr.mxu0 0.0
      %506 = vmatpush1.msra.mxu0 0.0
      %507 = vmatprep.subr.mxu0 0.0
      %508 = vmatpush1.msra.mxu0 0.0
      %509 = vmatprep.subr.mxu0 0.0
      %510 = vmatpush1.msra.mxu0 0.0
      %511 = vmatprep.subr.mxu0 0.0
      %512 = vmatpush1.msra.mxu0 0.0
      %513 = vmatprep.subr.mxu0 0.0
      %514 = vmatpush1.msra.mxu0 0.0
      %515 = vmatprep.subr.mxu0 0.0
      %516 = vmatpush1.msra.mxu0 0.0
      %517 = vmatprep.subr.mxu0 0.0
      %518 = vmatpush1.msra.mxu0 0.0
      %519 = vmatprep.subr.mxu0 0.0
      %520 = vmatpush1.msra.mxu0 0.0
      %521 = vmatprep.subr.mxu0 0.0
      %522 = vmatpush1.msra.mxu0 0.0
      %523 = vmatprep.subr.mxu0 0.0
      %524 = vmatpush1.msra.mxu0 0.0
      %525 = vmatprep.subr.mxu0 0.0
      %526 = vmatpush1.msra.mxu0 0.0
      %527 = vmatprep.subr.mxu0 0.0
      %528 = vmatpush1.msra.mxu0 0.0
      %529 = vmatprep.mubr.f32.mxu0 0.0
      %530 = vmatmul.mubr.f32.gmra.mrb[0].mxu0 %v449
      %v531 = vpop.f32.mrb[0].mxu0
      %v532 = vadd.f32 %v411, %v531
      %v533 = vpop.f32.mrb[0].mxu0
      %534 = vmatprep.mubr.f32.mxu0 0.0
      %535 = vmatmul.mubr.f32.gmra.mrb[0].mxu0 %v451
      %v536 = vpop.f32.mrb[0].mxu0
      %v537 = vadd.f32 %v416, %v536
      %v538 = vpop.f32.mrb[0].mxu0
      %539 = vmatprep.mubr.f32.mxu0 0.0
      %540 = vmatmul.mubr.f32.gmra.mrb[0].mxu0 %v453
      %v541 = vpop.f32.mrb[0].mxu0
      %v542 = vadd.f32 %v421, %v541
      %v543 = vpop.f32.mrb[0].mxu0
      %544 = vmatprep.mubr.f32.mxu0 0.0
      %545 = vmatmul.mubr.f32.gmra.mrb[0].mxu0 %v455
      %v546 = vpop.f32.mrb[0].mxu0
      %v547 = vadd.f32 %v426, %v546
      %v548 = vpop.f32.mrb[0].mxu0
      %549 = vmatprep.mubr.f32.mxu0 0.0
      %550 = vmatmul.mubr.f32.gmra.mrb[0].mxu0 %v457
      %v551 = vpop.f32.mrb[0].mxu0
      %v552 = vadd.f32 %v431, %v551
      %v553 = vpop.f32.mrb[0].mxu0
      %554 = vmatprep.mubr.f32.mxu0 0.0
      %555 = vmatmul.mubr.f32.gmra.mrb[0].mxu0 %v459
      %v556 = vpop.f32.mrb[0].mxu0
      %v557 = vadd.f32 %v436, %v556
      %v558 = vpop.f32.mrb[0].mxu0
      %559 = vmatprep.mubr.f32.mxu0 0.0
      %560 = vmatmul.mubr.f32.gmra.mrb[0].mxu0 %v461
      %v561 = vpop.f32.mrb[0].mxu0
      %v562 = vadd.f32 %v441, %v561
      %v563 = vpop.f32.mrb[0].mxu0
      %564 = vmatprep.mubr.f32.mxu0 0.0
      %565 = vmatmul.mubr.f32.gmra.mrb[0].mxu0 %v463
      %v566 = vpop.f32.mrb[0].mxu0
      %v567 = vadd.f32 %v446, %v566
      %v568 = vpop.f32.mrb[0].mxu0
      %569 = vdwg.mxu0
      %s570 = scalar_lea.vmem %s1, 32
      %v571 = vld [vmem:[%s570] sm:$0xff]
      %v572 = vld [vmem:[%s570 + $0x8] sm:$0xff]
      %v574 = vsel %vm327, %v279, 0
      %576 = vmatprep.subr.mxu0 0.0
      %577 = vmatpush1.msra.mxu0 %v571
      %578 = vmatprep.subr.mxu0 0.0
      %579 = vmatpush1.msra.mxu0 %v572
      %580 = vmatprep.subr.mxu0 0.0
      %581 = vmatpush1.msra.mxu0 0.0
      %582 = vmatprep.subr.mxu0 0.0
      %583 = vmatpush1.msra.mxu0 0.0
      %584 = vmatprep.subr.mxu0 0.0
      %585 = vmatpush1.msra.mxu0 0.0
      %586 = vmatprep.subr.mxu0 0.0
      %587 = vmatpush1.msra.mxu0 0.0
      %588 = vmatprep.subr.mxu0 0.0
      %589 = vmatpush1.msra.mxu0 0.0
      %590 = vmatprep.subr.mxu0 0.0
      %591 = vmatpush1.msra.mxu0 0.0
      %592 = vmatprep.subr.mxu0 0.0
      %593 = vmatpush1.msra.mxu0 0.0
      %594 = vmatprep.subr.mxu0 0.0
      %595 = vmatpush1.msra.mxu0 0.0
      %596 = vmatprep.subr.mxu0 0.0
      %597 = vmatpush1.msra.mxu0 0.0
      %598 = vmatprep.subr.mxu0 0.0
      %599 = vmatpush1.msra.mxu0 0.0
      %600 = vmatprep.subr.mxu0 0.0
      %601 = vmatpush1.msra.mxu0 0.0
      %602 = vmatprep.subr.mxu0 0.0
      %603 = vmatpush1.msra.mxu0 0.0
      %604 = vmatprep.subr.mxu0 0.0
      %605 = vmatpush1.msra.mxu0 0.0
      %606 = vmatprep.subr.mxu0 0.0
      %607 = vmatpush1.msra.mxu0 0.0
      %608 = vmatprep.subr.mxu0 0.0
      %609 = vmatpush1.msra.mxu0 0.0
      %610 = vmatprep.subr.mxu0 0.0
      %611 = vmatpush1.msra.mxu0 0.0
      %612 = vmatprep.subr.mxu0 0.0
      %613 = vmatpush1.msra.mxu0 0.0
      %614 = vmatprep.subr.mxu0 0.0
      %615 = vmatpush1.msra.mxu0 0.0
      %616 = vmatprep.subr.mxu0 0.0
      %617 = vmatpush1.msra.mxu0 0.0
      %618 = vmatprep.subr.mxu0 0.0
      %619 = vmatpush1.msra.mxu0 0.0
      %620 = vmatprep.subr.mxu0 0.0
      %621 = vmatpush1.msra.mxu0 0.0
      %622 = vmatprep.subr.mxu0 0.0
      %623 = vmatpush1.msra.mxu0 0.0
      %624 = vmatprep.subr.mxu0 0.0
      %625 = vmatpush1.msra.mxu0 0.0
      %626 = vmatprep.subr.mxu0 0.0
      %627 = vmatpush1.msra.mxu0 0.0
      %628 = vmatprep.subr.mxu0 0.0
      %629 = vmatpush1.msra.mxu0 0.0
      %630 = vmatprep.subr.mxu0 0.0
      %631 = vmatpush1.msra.mxu0 0.0
      %632 = vmatprep.subr.mxu0 0.0
      %633 = vmatpush1.msra.mxu0 0.0
      %634 = vmatprep.subr.mxu0 0.0
      %635 = vmatpush1.msra.mxu0 0.0
      %636 = vmatprep.subr.mxu0 0.0
      %637 = vmatpush1.msra.mxu0 0.0
      %638 = vmatprep.subr.mxu0 0.0
      %639 = vmatpush1.msra.mxu0 0.0
      %640 = vmatprep.mubr.f32.mxu0 0.0
      %641 = vmatmul.mubr.f32.gmra.mrb[0].mxu0 %v451
      %v642 = vpop.f32.mrb[0].mxu0
      %v643 = vadd.f32 0.0, %v642
      %v644 = vpop.f32.mrb[0].mxu0
      %645 = vmatprep.mubr.f32.mxu0 0.0
      %646 = vmatmul.mubr.f32.gmra.mrb[0].mxu0 %v453
      %v647 = vpop.f32.mrb[0].mxu0
      %v648 = vadd.f32 0.0, %v647
      %v649 = vpop.f32.mrb[0].mxu0
      %650 = vmatprep.mubr.f32.mxu0 0.0
      %651 = vmatmul.mubr.f32.gmra.mrb[0].mxu0 %v455
      %v652 = vpop.f32.mrb[0].mxu0
      %v653 = vadd.f32 0.0, %v652
      %v654 = vpop.f32.mrb[0].mxu0
      %655 = vmatprep.mubr.f32.mxu0 0.0
      %656 = vmatmul.mubr.f32.gmra.mrb[0].mxu0 %v457
      %v657 = vpop.f32.mrb[0].mxu0
      %v658 = vadd.f32 0.0, %v657
      %v659 = vpop.f32.mrb[0].mxu0
      %660 = vmatprep.mubr.f32.mxu0 0.0
      %661 = vmatmul.mubr.f32.gmra.mrb[0].mxu0 %v459
      %v662 = vpop.f32.mrb[0].mxu0
      %v663 = vadd.f32 0.0, %v662
      %v664 = vpop.f32.mrb[0].mxu0
      %665 = vmatprep.mubr.f32.mxu0 0.0
      %666 = vmatmul.mubr.f32.gmra.mrb[0].mxu0 %v461
      %v667 = vpop.f32.mrb[0].mxu0
      %v668 = vadd.f32 0.0, %v667
      %v669 = vpop.f32.mrb[0].mxu0
      %670 = vmatprep.mubr.f32.mxu0 0.0
      %671 = vmatmul.mubr.f32.gmra.mrb[0].mxu0 %v463
      %v672 = vpop.f32.mrb[0].mxu0
      %v673 = vadd.f32 0.0, %v672
      %v674 = vpop.f32.mrb[0].mxu0
      %675 = vmatprep.mubr.f32.mxu0 0.0
      %676 = vmatmul.mubr.f32.gmra.mrb[0].mxu0 %v574
      %v677 = vpop.f32.mrb[0].mxu0
      %v678 = vadd.f32 0.0, %v677
      %v679 = vpop.f32.mrb[0].mxu0
      %680 = vdwg.mxu0
      %v681 = vadd.f32 %v532, %v643
      %v682 = vadd.f32 %v537, %v648
      %v683 = vadd.f32 %v542, %v653
      %v684 = vadd.f32 %v547, %v658
      %v685 = vadd.f32 %v552, %v663
      %v686 = vadd.f32 %v557, %v668
      %v687 = vadd.f32 %v562, %v673
      %v688 = vadd.f32 %v567, %v678
      %v690 = vrot.slane %v279, 1
      %v691 = vrot.slane %v280, 1
      %v692 = vsel %vm299, %v690, %v691
      %s693 = scalar_lea.vmem %s1, 48
      %v694 = vld [vmem:[%s693] sm:$0xff]
      %v695 = vld [vmem:[%s693 + $0x8] sm:$0xff]
      %v696 = vsel %vm327, %v692, 0
      %698 = vmatprep.subr.mxu0 0.0
      %699 = vmatpush1.msra.mxu0 %v694
      %700 = vmatprep.subr.mxu0 0.0
      %701 = vmatpush1.msra.mxu0 %v695
      %702 = vmatprep.subr.mxu0 0.0
      %703 = vmatpush1.msra.mxu0 0.0
      %704 = vmatprep.subr.mxu0 0.0
      %705 = vmatpush1.msra.mxu0 0.0
      %706 = vmatprep.subr.mxu0 0.0
      %707 = vmatpush1.msra.mxu0 0.0
      %708 = vmatprep.subr.mxu0 0.0
      %709 = vmatpush1.msra.mxu0 0.0
      %710 = vmatprep.subr.mxu0 0.0
      %711 = vmatpush1.msra.mxu0 0.0
      %712 = vmatprep.subr.mxu0 0.0
      %713 = vmatpush1.msra.mxu0 0.0
      %714 = vmatprep.subr.mxu0 0.0
      %715 = vmatpush1.msra.mxu0 0.0
      %716 = vmatprep.subr.mxu0 0.0
      %717 = vmatpush1.msra.mxu0 0.0
      %718 = vmatprep.subr.mxu0 0.0
      %719 = vmatpush1.msra.mxu0 0.0
      %720 = vmatprep.subr.mxu0 0.0
      %721 = vmatpush1.msra.mxu0 0.0
      %722 = vmatprep.subr.mxu0 0.0
      %723 = vmatpush1.msra.mxu0 0.0
      %724 = vmatprep.subr.mxu0 0.0
      %725 = vmatpush1.msra.mxu0 0.0
      %726 = vmatprep.subr.mxu0 0.0
      %727 = vmatpush1.msra.mxu0 0.0
      %728 = vmatprep.subr.mxu0 0.0
      %729 = vmatpush1.msra.mxu0 0.0
      %730 = vmatprep.subr.mxu0 0.0
      %731 = vmatpush1.msra.mxu0 0.0
      %732 = vmatprep.subr.mxu0 0.0
      %733 = vmatpush1.msra.mxu0 0.0
      %734 = vmatprep.subr.mxu0 0.0
      %735 = vmatpush1.msra.mxu0 0.0
      %736 = vmatprep.subr.mxu0 0.0
      %737 = vmatpush1.msra.mxu0 0.0
      %738 = vmatprep.subr.mxu0 0.0
      %739 = vmatpush1.msra.mxu0 0.0
      %740 = vmatprep.subr.mxu0 0.0
      %741 = vmatpush1.msra.mxu0 0.0
      %742 = vmatprep.subr.mxu0 0.0
      %743 = vmatpush1.msra.mxu0 0.0
      %744 = vmatprep.subr.mxu0 0.0
      %745 = vmatpush1.msra.mxu0 0.0
      %746 = vmatprep.subr.mxu0 0.0
      %747 = vmatpush1.msra.mxu0 0.0
      %748 = vmatprep.subr.mxu0 0.0
      %749 = vmatpush1.msra.mxu0 0.0
      %750 = vmatprep.subr.mxu0 0.0
      %751 = vmatpush1.msra.mxu0 0.0
      %752 = vmatprep.subr.mxu0 0.0
      %753 = vmatpush1.msra.mxu0 0.0
      %754 = vmatprep.subr.mxu0 0.0
      %755 = vmatpush1.msra.mxu0 0.0
      %756 = vmatprep.subr.mxu0 0.0
      %757 = vmatpush1.msra.mxu0 0.0
      %758 = vmatprep.subr.mxu0 0.0
      %759 = vmatpush1.msra.mxu0 0.0
      %760 = vmatprep.subr.mxu0 0.0
      %761 = vmatpush1.msra.mxu0 0.0
      %762 = vmatprep.mubr.f32.mxu0 0.0
      %763 = vmatmul.mubr.f32.gmra.mrb[0].mxu0 %v330
      %v764 = vpop.f32.mrb[0].mxu0
      %v765 = vadd.f32 0.0, %v764
      %v766 = vpop.f32.mrb[0].mxu0
      %767 = vmatprep.mubr.f32.mxu0 0.0
      %768 = vmatmul.mubr.f32.gmra.mrb[0].mxu0 %v332
      %v769 = vpop.f32.mrb[0].mxu0
      %v770 = vadd.f32 0.0, %v769
      %v771 = vpop.f32.mrb[0].mxu0
      %772 = vmatprep.mubr.f32.mxu0 0.0
      %773 = vmatmul.mubr.f32.gmra.mrb[0].mxu0 %v334
      %v774 = vpop.f32.mrb[0].mxu0
      %v775 = vadd.f32 0.0, %v774
      %v776 = vpop.f32.mrb[0].mxu0
      %777 = vmatprep.mubr.f32.mxu0 0.0
      %778 = vmatmul.mubr.f32.gmra.mrb[0].mxu0 %v336
      %v779 = vpop.f32.mrb[0].mxu0
      %v780 = vadd.f32 0.0, %v779
      %v781 = vpop.f32.mrb[0].mxu0
      %782 = vmatprep.mubr.f32.mxu0 0.0
      %783 = vmatmul.mubr.f32.gmra.mrb[0].mxu0 %v338
      %v784 = vpop.f32.mrb[0].mxu0
      %v785 = vadd.f32 0.0, %v784
      %v786 = vpop.f32.mrb[0].mxu0
      %787 = vmatprep.mubr.f32.mxu0 0.0
      %788 = vmatmul.mubr.f32.gmra.mrb[0].mxu0 %v340
      %v789 = vpop.f32.mrb[0].mxu0
      %v790 = vadd.f32 0.0, %v789
      %v791 = vpop.f32.mrb[0].mxu0
      %792 = vmatprep.mubr.f32.mxu0 0.0
      %793 = vmatmul.mubr.f32.gmra.mrb[0].mxu0 %v342
      %v794 = vpop.f32.mrb[0].mxu0
      %v795 = vadd.f32 0.0, %v794
      %v796 = vpop.f32.mrb[0].mxu0
      %797 = vmatprep.mubr.f32.mxu0 0.0
      %798 = vmatmul.mubr.f32.gmra.mrb[0].mxu0 %v696
      %v799 = vpop.f32.mrb[0].mxu0
      %v800 = vadd.f32 0.0, %v799
      %v801 = vpop.f32.mrb[0].mxu0
      %802 = vdwg.mxu0
      %v803 = vadd.f32 %v681, %v765
      %v804 = vadd.f32 %v682, %v770
      %v805 = vadd.f32 %v683, %v775
      %v806 = vadd.f32 %v684, %v780
      %v807 = vadd.f32 %v685, %v785
      %v808 = vadd.f32 %v686, %v790
      %v809 = vadd.f32 %v687, %v795
      %v810 = vadd.f32 %v688, %v800
      %v811 = vmax.f32 %v803, 0.0
      %v812 = vmax.f32 %v804, 0.0
      %v813 = vmax.f32 %v805, 0.0
      %v814 = vmax.f32 %v806, 0.0
      %v815 = vmax.f32 %v807, 0.0
      %v816 = vmax.f32 %v808, 0.0
      %v817 = vmax.f32 %v809, 0.0
      %v818 = vmax.f32 %v810, 0.0
      %vm819 = vcmask 64512
      %820 = vst.msk [vmem:[#allocation2] sm:$0xff] %vm819, 0.0
      %vm821 = vcmask 58368
      %822 = vst.msk [vmem:[#allocation2 + $0x8] sm:$0x3] %vm821, 0.0
      %823 = vst.msk [vmem:[#allocation2 + $0x10] sm:$0xff] %vm819, 0.0
      %824 = vst.msk [vmem:[#allocation2 + $0x18] sm:$0x3] %vm821, 0.0
      %825 = vst.msk [vmem:[#allocation2 + $0x20] sm:$0xff] %vm819, 0.0
      %826 = vst.msk [vmem:[#allocation2 + $0x28] sm:$0x3] %vm821, 0.0
      %827 = vst.msk [vmem:[#allocation2 + $0x30] sm:$0xff] %vm819, 0.0
      %828 = vst.msk [vmem:[#allocation2 + $0x38] sm:$0x3] %vm821, 0.0
      %829 = vst.msk [vmem:[#allocation2 + $0x40] sm:$0xff] %vm819, 0.0
      %830 = vst.msk [vmem:[#allocation2 + $0x48] sm:$0x3] %vm821, 0.0
      %831 = vst.msk [vmem:[#allocation2 + $0x50] sm:$0xff] %vm819, 0.0
      %832 = vst.msk [vmem:[#allocation2 + $0x58] sm:$0x3] %vm821, 0.0
      %833 = vst.msk [vmem:[#allocation2 + $0x60] sm:$0xff] %vm819, 0.0
      %834 = vst.msk [vmem:[#allocation2 + $0x68] sm:$0x3] %vm821, 0.0
      %835 = vst.msk [vmem:[#allocation2 + $0x70] sm:$0xff] %vm819, 0.0
      %836 = vst.msk [vmem:[#allocation2 + $0x78] sm:$0x3] %vm821, 0.0
      %837 = vst.msk [vmem:[#allocation2 + $0x80] sm:$0xff] %vm819, 0.0
      %838 = vst.msk [vmem:[#allocation2 + $0x88] sm:$0x3] %vm821, 0.0
      %839 = vst.msk [vmem:[#allocation2 + $0x90] sm:$0xff] %vm819, 0.0
      %840 = vst.msk [vmem:[#allocation2 + $0x98] sm:$0x3] %vm821, 0.0
      %s841 = scalar_lea.vmem [#allocation2], 16
      %842 = vst.msk [vmem:[%s841 + $0x1] sm:$0xff] %vm819, %v811
      %843 = vst.msk [vmem:[%s841 + $0x11] sm:$0xff] %vm819, %v812
      %844 = vst.msk [vmem:[%s841 + $0x21] sm:$0xff] %vm819, %v813
      %845 = vst.msk [vmem:[%s841 + $0x31] sm:$0xff] %vm819, %v814
      %846 = vst.msk [vmem:[%s841 + $0x41] sm:$0xff] %vm819, %v815
      %847 = vst.msk [vmem:[%s841 + $0x51] sm:$0xff] %vm819, %v816
      %848 = vst.msk [vmem:[%s841 + $0x61] sm:$0xff] %vm819, %v817
      %849 = vst.msk [vmem:[%s841 + $0x71] sm:$0xff] %vm819, %v818
      %v850 = vld [vmem:[#allocation2] sm:$0xff]
      %v851 = vld [vmem:[#allocation2 + $0x10] sm:$0xff]
      %v852 = vld [vmem:[#allocation2 + $0x20] sm:$0xff]
      %v853 = vld [vmem:[#allocation2 + $0x30] sm:$0xff]
      %v854 = vld [vmem:[#allocation2 + $0x40] sm:$0xff]
      %v855 = vld [vmem:[#allocation2 + $0x50] sm:$0xff]
      %v856 = vld [vmem:[#allocation2 + $0x60] sm:$0xff]
      %v857 = vld [vmem:[#allocation2 + $0x70] sm:$0xff]
      %s858 = scalar_lea.vmem %s2, 120
      %v859 = vld [vmem:[%s858] sm:$0xff]
      %v860 = vld [vmem:[#allocation2 + $0x1] sm:$0xff]
      %v861 = vld [vmem:[#allocation2 + $0x11] sm:$0xff]
      %v862 = vld [vmem:[#allocation2 + $0x21] sm:$0xff]
      %v863 = vld [vmem:[#allocation2 + $0x31] sm:$0xff]
      %v864 = vld [vmem:[#allocation2 + $0x41] sm:$0xff]
      %v865 = vld [vmem:[#allocation2 + $0x51] sm:$0xff]
      %v866 = vld [vmem:[#allocation2 + $0x61] sm:$0xff]
      %v867 = vld [vmem:[#allocation2 + $0x71] sm:$0xff]
      %s868 = scalar_lea.vmem %s2, 104
      %v869 = vld [vmem:[%s868] sm:$0xff]
      %v871 = vsel %vm819, %v860, 0
      %v874 = vsel %vm819, %v861, 0
      %v877 = vsel %vm819, %v862, 0
      %v880 = vsel %vm819, %v863, 0
      %v883 = vsel %vm819, %v864, 0
      %v886 = vsel %vm819, %v865, 0
      %v889 = vsel %vm819, %v866, 0
      %v892 = vsel %vm819, %v867, 0
      %894 = vmatprep.subr.mxu0 0.0
      %895 = vmatpush1.msra.mxu0 %v869
      %896 = vmatprep.subr.mxu0 0.0
      %897 = vmatpush1.msra.mxu0 0.0
      %898 = vmatprep.subr.mxu0 0.0
      %899 = vmatpush1.msra.mxu0 0.0
      %900 = vmatprep.subr.mxu0 0.0
      %901 = vmatpush1.msra.mxu0 0.0
      %902 = vmatprep.subr.mxu0 0.0
      %903 = vmatpush1.msra.mxu0 0.0
      %904 = vmatprep.subr.mxu0 0.0
      %905 = vmatpush1.msra.mxu0 0.0
      %906 = vmatprep.subr.mxu0 0.0
      %907 = vmatpush1.msra.mxu0 0.0
      %908 = vmatprep.subr.mxu0 0.0
      %909 = vmatpush1.msra.mxu0 0.0
      %910 = vmatprep.subr.mxu0 0.0
      %911 = vmatpush1.msra.mxu0 0.0
      %912 = vmatprep.subr.mxu0 0.0
      %913 = vmatpush1.msra.mxu0 0.0
      %914 = vmatprep.subr.mxu0 0.0
      %915 = vmatpush1.msra.mxu0 0.0
      %916 = vmatprep.subr.mxu0 0.0
      %917 = vmatpush1.msra.mxu0 0.0
      %918 = vmatprep.subr.mxu0 0.0
      %919 = vmatpush1.msra.mxu0 0.0
      %920 = vmatprep.subr.mxu0 0.0
      %921 = vmatpush1.msra.mxu0 0.0
      %922 = vmatprep.subr.mxu0 0.0
      %923 = vmatpush1.msra.mxu0 0.0
      %924 = vmatprep.subr.mxu0 0.0
      %925 = vmatpush1.msra.mxu0 0.0
      %926 = vmatprep.subr.mxu0 0.0
      %927 = vmatpush1.msra.mxu0 0.0
      %928 = vmatprep.subr.mxu0 0.0
      %929 = vmatpush1.msra.mxu0 0.0
      %930 = vmatprep.subr.mxu0 0.0
      %931 = vmatpush1.msra.mxu0 0.0
      %932 = vmatprep.subr.mxu0 0.0
      %933 = vmatpush1.msra.mxu0 0.0
      %934 = vmatprep.subr.mxu0 0.0
      %935 = vmatpush1.msra.mxu0 0.0
      %936 = vmatprep.subr.mxu0 0.0
      %937 = vmatpush1.msra.mxu0 0.0
      %938 = vmatprep.subr.mxu0 0.0
      %939 = vmatpush1.msra.mxu0 0.0
      %940 = vmatprep.subr.mxu0 0.0
      %941 = vmatpush1.msra.mxu0 0.0
      %942 = vmatprep.subr.mxu0 0.0
      %943 = vmatpush1.msra.mxu0 0.0
      %944 = vmatprep.subr.mxu0 0.0
      %945 = vmatpush1.msra.mxu0 0.0
      %946 = vmatprep.subr.mxu0 0.0
      %947 = vmatpush1.msra.mxu0 0.0
      %948 = vmatprep.subr.mxu0 0.0
      %949 = vmatpush1.msra.mxu0 0.0
      %950 = vmatprep.subr.mxu0 0.0
      %951 = vmatpush1.msra.mxu0 0.0
      %952 = vmatprep.subr.mxu0 0.0
      %953 = vmatpush1.msra.mxu0 0.0
      %954 = vmatprep.subr.mxu0 0.0
      %955 = vmatpush1.msra.mxu0 0.0
      %956 = vmatprep.subr.mxu0 0.0
      %957 = vmatpush1.msra.mxu0 0.0
      %958 = vmatprep.mubr.f32.mxu0 0.0
      %959 = vmatmul.mubr.f32.gmra.mrb[0].mxu0 %v871
      %v960 = vpop.f32.mrb[0].mxu0
      %v961 = vadd.f32 0.0, %v960
      %v962 = vpop.f32.mrb[0].mxu0
      %963 = vmatprep.mubr.f32.mxu0 0.0
      %964 = vmatmul.mubr.f32.gmra.mrb[0].mxu0 %v874
      %v965 = vpop.f32.mrb[0].mxu0
      %v966 = vadd.f32 0.0, %v965
      %v967 = vpop.f32.mrb[0].mxu0
      %968 = vmatprep.mubr.f32.mxu0 0.0
      %969 = vmatmul.mubr.f32.gmra.mrb[0].mxu0 %v877
      %v970 = vpop.f32.mrb[0].mxu0
      %v971 = vadd.f32 0.0, %v970
      %v972 = vpop.f32.mrb[0].mxu0
      %973 = vmatprep.mubr.f32.mxu0 0.0
      %974 = vmatmul.mubr.f32.gmra.mrb[0].mxu0 %v880
      %v975 = vpop.f32.mrb[0].mxu0
      %v976 = vadd.f32 0.0, %v975
      %v977 = vpop.f32.mrb[0].mxu0
      %978 = vmatprep.mubr.f32.mxu0 0.0
      %979 = vmatmul.mubr.f32.gmra.mrb[0].mxu0 %v883
      %v980 = vpop.f32.mrb[0].mxu0
      %v981 = vadd.f32 0.0, %v980
      %v982 = vpop.f32.mrb[0].mxu0
      %983 = vmatprep.mubr.f32.mxu0 0.0
      %984 = vmatmul.mubr.f32.gmra.mrb[0].mxu0 %v886
      %v985 = vpop.f32.mrb[0].mxu0
      %v986 = vadd.f32 0.0, %v985
      %v987 = vpop.f32.mrb[0].mxu0
      %988 = vmatprep.mubr.f32.mxu0 0.0
      %989 = vmatmul.mubr.f32.gmra.mrb[0].mxu0 %v889
      %v990 = vpop.f32.mrb[0].mxu0
      %v991 = vadd.f32 0.0, %v990
      %v992 = vpop.f32.mrb[0].mxu0
      %993 = vmatprep.mubr.f32.mxu0 0.0
      %994 = vmatmul.mubr.f32.gmra.mrb[0].mxu0 %v892
      %v995 = vpop.f32.mrb[0].mxu0
      %v996 = vadd.f32 0.0, %v995
      %v997 = vpop.f32.mrb[0].mxu0
      %998 = vdwg.mxu0
      %v1000 = vsel %vm819, %v850, 0
      %v1003 = vsel %vm819, %v851, 0
      %v1006 = vsel %vm819, %v852, 0
      %v1009 = vsel %vm819, %v853, 0
      %v1012 = vsel %vm819, %v854, 0
      %v1015 = vsel %vm819, %v855, 0
      %v1018 = vsel %vm819, %v856, 0
      %v1021 = vsel %vm819, %v857, 0
      %1023 = vmatprep.subr.mxu0 0.0
      %1024 = vmatpush1.msra.mxu0 %v859
      %1025 = vmatprep.subr.mxu0 0.0
      %1026 = vmatpush1.msra.mxu0 0.0
      %1027 = vmatprep.subr.mxu0 0.0
      %1028 = vmatpush1.msra.mxu0 0.0
      %1029 = vmatprep.subr.mxu0 0.0
      %1030 = vmatpush1.msra.mxu0 0.0
      %1031 = vmatprep.subr.mxu0 0.0
      %1032 = vmatpush1.msra.mxu0 0.0
      %1033 = vmatprep.subr.mxu0 0.0
      %1034 = vmatpush1.msra.mxu0 0.0
      %1035 = vmatprep.subr.mxu0 0.0
      %1036 = vmatpush1.msra.mxu0 0.0
      %1037 = vmatprep.subr.mxu0 0.0
      %1038 = vmatpush1.msra.mxu0 0.0
      %1039 = vmatprep.subr.mxu0 0.0
      %1040 = vmatpush1.msra.mxu0 0.0
      %1041 = vmatprep.subr.mxu0 0.0
      %1042 = vmatpush1.msra.mxu0 0.0
      %1043 = vmatprep.subr.mxu0 0.0
      %1044 = vmatpush1.msra.mxu0 0.0
      %1045 = vmatprep.subr.mxu0 0.0
      %1046 = vmatpush1.msra.mxu0 0.0
      %1047 = vmatprep.subr.mxu0 0.0
      %1048 = vmatpush1.msra.mxu0 0.0
      %1049 = vmatprep.subr.mxu0 0.0
      %1050 = vmatpush1.msra.mxu0 0.0
      %1051 = vmatprep.subr.mxu0 0.0
      %1052 = vmatpush1.msra.mxu0 0.0
      %1053 = vmatprep.subr.mxu0 0.0
      %1054 = vmatpush1.msra.mxu0 0.0
      %1055 = vmatprep.subr.mxu0 0.0
      %1056 = vmatpush1.msra.mxu0 0.0
      %1057 = vmatprep.subr.mxu0 0.0
      %1058 = vmatpush1.msra.mxu0 0.0
      %1059 = vmatprep.subr.mxu0 0.0
      %1060 = vmatpush1.msra.mxu0 0.0
      %1061 = vmatprep.subr.mxu0 0.0
      %1062 = vmatpush1.msra.mxu0 0.0
      %1063 = vmatprep.subr.mxu0 0.0
      %1064 = vmatpush1.msra.mxu0 0.0
      %1065 = vmatprep.subr.mxu0 0.0
      %1066 = vmatpush1.msra.mxu0 0.0
      %1067 = vmatprep.subr.mxu0 0.0
      %1068 = vmatpush1.msra.mxu0 0.0
      %1069 = vmatprep.subr.mxu0 0.0
      %1070 = vmatpush1.msra.mxu0 0.0
      %1071 = vmatprep.subr.mxu0 0.0
      %1072 = vmatpush1.msra.mxu0 0.0
      %1073 = vmatprep.subr.mxu0 0.0
      %1074 = vmatpush1.msra.mxu0 0.0
      %1075 = vmatprep.subr.mxu0 0.0
      %1076 = vmatpush1.msra.mxu0 0.0
      %1077 = vmatprep.subr.mxu0 0.0
      %1078 = vmatpush1.msra.mxu0 0.0
      %1079 = vmatprep.subr.mxu0 0.0
      %1080 = vmatpush1.msra.mxu0 0.0
      %1081 = vmatprep.subr.mxu0 0.0
      %1082 = vmatpush1.msra.mxu0 0.0
      %1083 = vmatprep.subr.mxu0 0.0
      %1084 = vmatpush1.msra.mxu0 0.0
      %1085 = vmatprep.subr.mxu0 0.0
      %1086 = vmatpush1.msra.mxu0 0.0
      %1087 = vmatprep.mubr.f32.mxu0 0.0
      %1088 = vmatmul.mubr.f32.gmra.mrb[0].mxu0 %v1000
      %v1089 = vpop.f32.mrb[0].mxu0
      %v1090 = vadd.f32 %v961, %v1089
      %v1091 = vpop.f32.mrb[0].mxu0
      %1092 = vmatprep.mubr.f32.mxu0 0.0
      %1093 = vmatmul.mubr.f32.gmra.mrb[0].mxu0 %v1003
      %v1094 = vpop.f32.mrb[0].mxu0
      %v1095 = vadd.f32 %v966, %v1094
      %v1096 = vpop.f32.mrb[0].mxu0
      %1097 = vmatprep.mubr.f32.mxu0 0.0
      %1098 = vmatmul.mubr.f32.gmra.mrb[0].mxu0 %v1006
      %v1099 = vpop.f32.mrb[0].mxu0
      %v1100 = vadd.f32 %v971, %v1099
      %v1101 = vpop.f32.mrb[0].mxu0
      %1102 = vmatprep.mubr.f32.mxu0 0.0
      %1103 = vmatmul.mubr.f32.gmra.mrb[0].mxu0 %v1009
      %v1104 = vpop.f32.mrb[0].mxu0
      %v1105 = vadd.f32 %v976, %v1104
      %v1106 = vpop.f32.mrb[0].mxu0
      %1107 = vmatprep.mubr.f32.mxu0 0.0
      %1108 = vmatmul.mubr.f32.gmra.mrb[0].mxu0 %v1012
      %v1109 = vpop.f32.mrb[0].mxu0
      %v1110 = vadd.f32 %v981, %v1109
      %v1111 = vpop.f32.mrb[0].mxu0
      %1112 = vmatprep.mubr.f32.mxu0 0.0
      %1113 = vmatmul.mubr.f32.gmra.mrb[0].mxu0 %v1015
      %v1114 = vpop.f32.mrb[0].mxu0
      %v1115 = vadd.f32 %v986, %v1114
      %v1116 = vpop.f32.mrb[0].mxu0
      %1117 = vmatprep.mubr.f32.mxu0 0.0
      %1118 = vmatmul.mubr.f32.gmra.mrb[0].mxu0 %v1018
      %v1119 = vpop.f32.mrb[0].mxu0
      %v1120 = vadd.f32 %v991, %v1119
      %v1121 = vpop.f32.mrb[0].mxu0
      %1122 = vmatprep.mubr.f32.mxu0 0.0
      %1123 = vmatmul.mubr.f32.gmra.mrb[0].mxu0 %v1021
      %v1124 = vpop.f32.mrb[0].mxu0
      %v1125 = vadd.f32 %v996, %v1124
      %v1126 = vpop.f32.mrb[0].mxu0
      %1127 = vdwg.mxu0
      %v1128 = vld [vmem:[%s841] sm:$0xff]
      %v1129 = vld [vmem:[%s841 + $0x10] sm:$0xff]
      %v1130 = vld [vmem:[%s841 + $0x20] sm:$0xff]
      %v1131 = vld [vmem:[%s841 + $0x30] sm:$0xff]
      %v1132 = vld [vmem:[%s841 + $0x40] sm:$0xff]
      %v1133 = vld [vmem:[%s841 + $0x50] sm:$0xff]
      %v1134 = vld [vmem:[%s841 + $0x60] sm:$0xff]
      %v1135 = vld [vmem:[%s841 + $0x70] sm:$0xff]
      %s1136 = scalar_lea.vmem %s2, 56
      %v1137 = vld [vmem:[%s1136] sm:$0xff]
      %v1139 = vsel %vm819, %v1128, 0
      %v1142 = vsel %vm819, %v1129, 0
      %v1145 = vsel %vm819, %v1130, 0
      %v1148 = vsel %vm819, %v1131, 0
      %v1151 = vsel %vm819, %v1132, 0
      %v1154 = vsel %vm819, %v1133, 0
      %v1157 = vsel %vm819, %v1134, 0
      %v1160 = vsel %vm819, %v1135, 0
      %1162 = vmatprep.subr.mxu0 0.0
      %1163 = vmatpush1.msra.mxu0 %v1137
      %1164 = vmatprep.subr.mxu0 0.0
      %1165 = vmatpush1.msra.mxu0 0.0
      %1166 = vmatprep.subr.mxu0 0.0
      %1167 = vmatpush1.msra.mxu0 0.0
      %1168 = vmatprep.subr.mxu0 0.0
      %1169 = vmatpush1.msra.mxu0 0.0
      %1170 = vmatprep.subr.mxu0 0.0
      %1171 = vmatpush1.msra.mxu0 0.0
      %1172 = vmatprep.subr.mxu0 0.0
      %1173 = vmatpush1.msra.mxu0 0.0
      %1174 = vmatprep.subr.mxu0 0.0
      %1175 = vmatpush1.msra.mxu0 0.0
      %1176 = vmatprep.subr.mxu0 0.0
      %1177 = vmatpush1.msra.mxu0 0.0
      %1178 = vmatprep.subr.mxu0 0.0
      %1179 = vmatpush1.msra.mxu0 0.0
      %1180 = vmatprep.subr.mxu0 0.0
      %1181 = vmatpush1.msra.mxu0 0.0
      %1182 = vmatprep.subr.mxu0 0.0
      %1183 = vmatpush1.msra.mxu0 0.0
      %1184 = vmatprep.subr.mxu0 0.0
      %1185 = vmatpush1.msra.mxu0 0.0
      %1186 = vmatprep.subr.mxu0 0.0
      %1187 = vmatpush1.msra.mxu0 0.0
      %1188 = vmatprep.subr.mxu0 0.0
      %1189 = vmatpush1.msra.mxu0 0.0
      %1190 = vmatprep.subr.mxu0 0.0
      %1191 = vmatpush1.msra.mxu0 0.0
      %1192 = vmatprep.subr.mxu0 0.0
      %1193 = vmatpush1.msra.mxu0 0.0
      %1194 = vmatprep.subr.mxu0 0.0
      %1195 = vmatpush1.msra.mxu0 0.0
      %1196 = vmatprep.subr.mxu0 0.0
      %1197 = vmatpush1.msra.mxu0 0.0
      %1198 = vmatprep.subr.mxu0 0.0
      %1199 = vmatpush1.msra.mxu0 0.0
      %1200 = vmatprep.subr.mxu0 0.0
      %1201 = vmatpush1.msra.mxu0 0.0
      %1202 = vmatprep.subr.mxu0 0.0
      %1203 = vmatpush1.msra.mxu0 0.0
      %1204 = vmatprep.subr.mxu0 0.0
      %1205 = vmatpush1.msra.mxu0 0.0
      %1206 = vmatprep.subr.mxu0 0.0
      %1207 = vmatpush1.msra.mxu0 0.0
      %1208 = vmatprep.subr.mxu0 0.0
      %1209 = vmatpush1.msra.mxu0 0.0
      %1210 = vmatprep.subr.mxu0 0.0
      %1211 = vmatpush1.msra.mxu0 0.0
      %1212 = vmatprep.subr.mxu0 0.0
      %1213 = vmatpush1.msra.mxu0 0.0
      %1214 = vmatprep.subr.mxu0 0.0
      %1215 = vmatpush1.msra.mxu0 0.0
      %1216 = vmatprep.subr.mxu0 0.0
      %1217 = vmatpush1.msra.mxu0 0.0
      %1218 = vmatprep.subr.mxu0 0.0
      %1219 = vmatpush1.msra.mxu0 0.0
      %1220 = vmatprep.subr.mxu0 0.0
      %1221 = vmatpush1.msra.mxu0 0.0
      %1222 = vmatprep.subr.mxu0 0.0
      %1223 = vmatpush1.msra.mxu0 0.0
      %1224 = vmatprep.subr.mxu0 0.0
      %1225 = vmatpush1.msra.mxu0 0.0
      %1226 = vmatprep.mubr.f32.mxu0 0.0
      %1227 = vmatmul.mubr.f32.gmra.mrb[0].mxu0 %v1139
      %v1228 = vpop.f32.mrb[0].mxu0
      %v1229 = vadd.f32 0.0, %v1228
      %v1230 = vpop.f32.mrb[0].mxu0
      %1231 = vmatprep.mubr.f32.mxu0 0.0
      %1232 = vmatmul.mubr.f32.gmra.mrb[0].mxu0 %v1142
      %v1233 = vpop.f32.mrb[0].mxu0
      %v1234 = vadd.f32 0.0, %v1233
      %v1235 = vpop.f32.mrb[0].mxu0
      %1236 = vmatprep.mubr.f32.mxu0 0.0
      %1237 = vmatmul.mubr.f32.gmra.mrb[0].mxu0 %v1145
      %v1238 = vpop.f32.mrb[0].mxu0
      %v1239 = vadd.f32 0.0, %v1238
      %v1240 = vpop.f32.mrb[0].mxu0
      %1241 = vmatprep.mubr.f32.mxu0 0.0
      %1242 = vmatmul.mubr.f32.gmra.mrb[0].mxu0 %v1148
      %v1243 = vpop.f32.mrb[0].mxu0
      %v1244 = vadd.f32 0.0, %v1243
      %v1245 = vpop.f32.mrb[0].mxu0
      %1246 = vmatprep.mubr.f32.mxu0 0.0
      %1247 = vmatmul.mubr.f32.gmra.mrb[0].mxu0 %v1151
      %v1248 = vpop.f32.mrb[0].mxu0
      %v1249 = vadd.f32 0.0, %v1248
      %v1250 = vpop.f32.mrb[0].mxu0
      %1251 = vmatprep.mubr.f32.mxu0 0.0
      %1252 = vmatmul.mubr.f32.gmra.mrb[0].mxu0 %v1154
      %v1253 = vpop.f32.mrb[0].mxu0
      %v1254 = vadd.f32 0.0, %v1253
      %v1255 = vpop.f32.mrb[0].mxu0
      %1256 = vmatprep.mubr.f32.mxu0 0.0
      %1257 = vmatmul.mubr.f32.gmra.mrb[0].mxu0 %v1157
      %v1258 = vpop.f32.mrb[0].mxu0
      %v1259 = vadd.f32 0.0, %v1258
      %v1260 = vpop.f32.mrb[0].mxu0
      %1261 = vmatprep.mubr.f32.mxu0 0.0
      %1262 = vmatmul.mubr.f32.gmra.mrb[0].mxu0 %v1160
      %v1263 = vpop.f32.mrb[0].mxu0
      %v1264 = vadd.f32 0.0, %v1263
      %v1265 = vpop.f32.mrb[0].mxu0
      %1266 = vdwg.mxu0
      %v1267 = vadd.f32 %v1090, %v1229
      %v1268 = vadd.f32 %v1095, %v1234
      %v1269 = vadd.f32 %v1100, %v1239
      %v1270 = vadd.f32 %v1105, %v1244
      %v1271 = vadd.f32 %v1110, %v1249
      %v1272 = vadd.f32 %v1115, %v1254
      %v1273 = vadd.f32 %v1120, %v1259
      %v1274 = vadd.f32 %v1125, %v1264
      %v1275 = vld [vmem:[%s841 + $0x1] sm:$0xff]
      %v1276 = vld [vmem:[%s841 + $0x11] sm:$0xff]
      %v1277 = vld [vmem:[%s841 + $0x21] sm:$0xff]
      %v1278 = vld [vmem:[%s841 + $0x31] sm:$0xff]
      %v1279 = vld [vmem:[%s841 + $0x41] sm:$0xff]
      %v1280 = vld [vmem:[%s841 + $0x51] sm:$0xff]
      %v1281 = vld [vmem:[%s841 + $0x61] sm:$0xff]
      %v1282 = vld [vmem:[%s841 + $0x71] sm:$0xff]
      %s1283 = scalar_lea.vmem %s2, 40
      %v1284 = vld [vmem:[%s1283] sm:$0xff]
      %v1286 = vsel %vm819, %v1275, 0
      %v1289 = vsel %vm819, %v1276, 0
      %v1292 = vsel %vm819, %v1277, 0
      %v1295 = vsel %vm819, %v1278, 0
      %v1298 = vsel %vm819, %v1279, 0
      %v1301 = vsel %vm819, %v1280, 0
      %v1304 = vsel %vm819, %v1281, 0
      %v1307 = vsel %vm819, %v1282, 0
      %1309 = vmatprep.subr.mxu0 0.0
      %1310 = vmatpush1.msra.mxu0 %v1284
      %1311 = vmatprep.subr.mxu0 0.0
      %1312 = vmatpush1.msra.mxu0 0.0
      %1313 = vmatprep.subr.mxu0 0.0
      %1314 = vmatpush1.msra.mxu0 0.0
      %1315 = vmatprep.subr.mxu0 0.0
      %1316 = vmatpush1.msra.mxu0 0.0
      %1317 = vmatprep.subr.mxu0 0.0
      %1318 = vmatpush1.msra.mxu0 0.0
      %1319 = vmatprep.subr.mxu0 0.0
      %1320 = vmatpush1.msra.mxu0 0.0
      %1321 = vmatprep.subr.mxu0 0.0
      %1322 = vmatpush1.msra.mxu0 0.0
      %1323 = vmatprep.subr.mxu0 0.0
      %1324 = vmatpush1.msra.mxu0 0.0
      %1325 = vmatprep.subr.mxu0 0.0
      %1326 = vmatpush1.msra.mxu0 0.0
      %1327 = vmatprep.subr.mxu0 0.0
      %1328 = vmatpush1.msra.mxu0 0.0
      %1329 = vmatprep.subr.mxu0 0.0
      %1330 = vmatpush1.msra.mxu0 0.0
      %1331 = vmatprep.subr.mxu0 0.0
      %1332 = vmatpush1.msra.mxu0 0.0
      %1333 = vmatprep.subr.mxu0 0.0
      %1334 = vmatpush1.msra.mxu0 0.0
      %1335 = vmatprep.subr.mxu0 0.0
      %1336 = vmatpush1.msra.mxu0 0.0
      %1337 = vmatprep.subr.mxu0 0.0
      %1338 = vmatpush1.msra.mxu0 0.0
      %1339 = vmatprep.subr.mxu0 0.0
      %1340 = vmatpush1.msra.mxu0 0.0
      %1341 = vmatprep.subr.mxu0 0.0
      %1342 = vmatpush1.msra.mxu0 0.0
      %1343 = vmatprep.subr.mxu0 0.0
      %1344 = vmatpush1.msra.mxu0 0.0
      %1345 = vmatprep.subr.mxu0 0.0
      %1346 = vmatpush1.msra.mxu0 0.0
      %1347 = vmatprep.subr.mxu0 0.0
      %1348 = vmatpush1.msra.mxu0 0.0
      %1349 = vmatprep.subr.mxu0 0.0
      %1350 = vmatpush1.msra.mxu0 0.0
      %1351 = vmatprep.subr.mxu0 0.0
      %1352 = vmatpush1.msra.mxu0 0.0
      %1353 = vmatprep.subr.mxu0 0.0
      %1354 = vmatpush1.msra.mxu0 0.0
      %1355 = vmatprep.subr.mxu0 0.0
      %1356 = vmatpush1.msra.mxu0 0.0
      %1357 = vmatprep.subr.mxu0 0.0
      %1358 = vmatpush1.msra.mxu0 0.0
      %1359 = vmatprep.subr.mxu0 0.0
      %1360 = vmatpush1.msra.mxu0 0.0
      %1361 = vmatprep.subr.mxu0 0.0
      %1362 = vmatpush1.msra.mxu0 0.0
      %1363 = vmatprep.subr.mxu0 0.0
      %1364 = vmatpush1.msra.mxu0 0.0
      %1365 = vmatprep.subr.mxu0 0.0
      %1366 = vmatpush1.msra.mxu0 0.0
      %1367 = vmatprep.subr.mxu0 0.0
      %1368 = vmatpush1.msra.mxu0 0.0
      %1369 = vmatprep.subr.mxu0 0.0
      %1370 = vmatpush1.msra.mxu0 0.0
      %1371 = vmatprep.subr.mxu0 0.0
      %1372 = vmatpush1.msra.mxu0 0.0
      %1373 = vmatprep.mubr.f32.mxu0 0.0
      %1374 = vmatmul.mubr.f32.gmra.mrb[0].mxu0 %v1286
      %v1375 = vpop.f32.mrb[0].mxu0
      %v1376 = vadd.f32 0.0, %v1375
      %v1377 = vpop.f32.mrb[0].mxu0
      %1378 = vmatprep.mubr.f32.mxu0 0.0
      %1379 = vmatmul.mubr.f32.gmra.mrb[0].mxu0 %v1289
      %v1380 = vpop.f32.mrb[0].mxu0
      %v1381 = vadd.f32 0.0, %v1380
      %v1382 = vpop.f32.mrb[0].mxu0
      %1383 = vmatprep.mubr.f32.mxu0 0.0
      %1384 = vmatmul.mubr.f32.gmra.mrb[0].mxu0 %v1292
      %v1385 = vpop.f32.mrb[0].mxu0
      %v1386 = vadd.f32 0.0, %v1385
      %v1387 = vpop.f32.mrb[0].mxu0
      %1388 = vmatprep.mubr.f32.mxu0 0.0
      %1389 = vmatmul.mubr.f32.gmra.mrb[0].mxu0 %v1295
      %v1390 = vpop.f32.mrb[0].mxu0
      %v1391 = vadd.f32 0.0, %v1390
      %v1392 = vpop.f32.mrb[0].mxu0
      %1393 = vmatprep.mubr.f32.mxu0 0.0
      %1394 = vmatmul.mubr.f32.gmra.mrb[0].mxu0 %v1298
      %v1395 = vpop.f32.mrb[0].mxu0
      %v1396 = vadd.f32 0.0, %v1395
      %v1397 = vpop.f32.mrb[0].mxu0
      %1398 = vmatprep.mubr.f32.mxu0 0.0
      %1399 = vmatmul.mubr.f32.gmra.mrb[0].mxu0 %v1301
      %v1400 = vpop.f32.mrb[0].mxu0
      %v1401 = vadd.f32 0.0, %v1400
      %v1402 = vpop.f32.mrb[0].mxu0
      %1403 = vmatprep.mubr.f32.mxu0 0.0
      %1404 = vmatmul.mubr.f32.gmra.mrb[0].mxu0 %v1304
      %v1405 = vpop.f32.mrb[0].mxu0
      %v1406 = vadd.f32 0.0, %v1405
      %v1407 = vpop.f32.mrb[0].mxu0
      %1408 = vmatprep.mubr.f32.mxu0 0.0
      %1409 = vmatmul.mubr.f32.gmra.mrb[0].mxu0 %v1307
      %v1410 = vpop.f32.mrb[0].mxu0
      %v1411 = vadd.f32 0.0, %v1410
      %v1412 = vpop.f32.mrb[0].mxu0
      %1413 = vdwg.mxu0
      %v1414 = vadd.f32 %v1267, %v1376
      %v1415 = vadd.f32 %v1268, %v1381
      %v1416 = vadd.f32 %v1269, %v1386
      %v1417 = vadd.f32 %v1270, %v1391
      %v1418 = vadd.f32 %v1271, %v1396
      %v1419 = vadd.f32 %v1272, %v1401
      %v1420 = vadd.f32 %v1273, %v1406
      %v1421 = vadd.f32 %v1274, %v1411
      %vm1422 = vcmask 31744
      %1423 = vst.msk [vmem:[%s204] sm:$0xff] %vm1422, %v1414
      %1424 = vst.msk [vmem:[%s204 + $0x8] sm:$0xff] %vm1422, %v1415
      %1425 = vst.msk [vmem:[%s204 + $0x10] sm:$0xff] %vm1422, %v1416
      %1426 = vst.msk [vmem:[%s204 + $0x18] sm:$0xff] %vm1422, %v1417
      %1427 = vst.msk [vmem:[%s204 + $0x20] sm:$0xff] %vm1422, %v1418
      %1428 = vst.msk [vmem:[%s204 + $0x28] sm:$0xff] %vm1422, %v1419
      %1429 = vst.msk [vmem:[%s204 + $0x30] sm:$0xff] %vm1422, %v1420
      %1430 = vst.msk [vmem:[%s204 + $0x38] sm:$0xff] %vm1422, %v1421
      %v1431 = vsel %vm1422, %v1414, 0.0
      %v1432 = vsel %vm1422, %v1415, 0.0
      %v1433 = vadd.f32 %v1431, %v1432
      %v1434 = vsel %vm1422, %v1416, 0.0
      %v1435 = vadd.f32 %v1433, %v1434
      %v1436 = vsel %vm1422, %v1417, 0.0
      %v1437 = vadd.f32 %v1435, %v1436
      %v1438 = vsel %vm1422, %v1418, 0.0
      %v1439 = vadd.f32 %v1437, %v1438
      %v1440 = vsel %vm1422, %v1419, 0.0
      %v1441 = vadd.f32 %v1439, %v1440
      %v1442 = vsel %vm1422, %v1420, 0.0
      %v1443 = vadd.f32 %v1441, %v1442
      %v1444 = vsel %vm1422, %v1421, 0.0
      %v1445 = vadd.f32 %v1443, %v1444
      %v1446 = vrot.slane %v1445, 4
      %v1447 = vadd.f32 %v1445, %v1446
      %v1448 = vrot.slane %v1447, 2
      %v1449 = vadd.f32 %v1447, %v1448
      %v1450 = vrot.slane %v1449, 1
      %v1451 = vadd.f32 %v1449, %v1450
      %v1452 = vadd.f32 %v1451, 0.0
      %v1453 = vmul.f32 %v1414, %v1414
      %v1454 = vmul.f32 %v1415, %v1415
      %v1455 = vmul.f32 %v1416, %v1416
      %v1456 = vmul.f32 %v1417, %v1417
      %v1457 = vmul.f32 %v1418, %v1418
      %v1458 = vmul.f32 %v1419, %v1419
      %v1459 = vmul.f32 %v1420, %v1420
      %v1460 = vmul.f32 %v1421, %v1421
      %v1461 = vsel %vm1422, %v1453, 0.0
      %v1462 = vsel %vm1422, %v1454, 0.0
      %v1463 = vadd.f32 %v1461, %v1462
      %v1464 = vsel %vm1422, %v1455, 0.0
      %v1465 = vadd.f32 %v1463, %v1464
      %v1466 = vsel %vm1422, %v1456, 0.0
      %v1467 = vadd.f32 %v1465, %v1466
      %v1468 = vsel %vm1422, %v1457, 0.0
      %v1469 = vadd.f32 %v1467, %v1468
      %v1470 = vsel %vm1422, %v1458, 0.0
      %v1471 = vadd.f32 %v1469, %v1470
      %v1472 = vsel %vm1422, %v1459, 0.0
      %v1473 = vadd.f32 %v1471, %v1472
      %v1474 = vsel %vm1422, %v1460, 0.0
      %v1475 = vadd.f32 %v1473, %v1474
      %v1476 = vrot.slane %v1475, 4
      %v1477 = vadd.f32 %v1475, %v1476
      %v1478 = vrot.slane %v1477, 2
      %v1479 = vadd.f32 %v1477, %v1478
      %v1480 = vrot.slane %v1479, 1
      %v1481 = vadd.f32 %v1479, %v1480
      %v1482 = vadd.f32 %v1481, 0.0
      %v1483 = vld [vmem:[#allocation2 + $0x1] sm:$0xff]
      %v1484 = vld [vmem:[#allocation2 + $0x11] sm:$0xff]
      %v1485 = vld [vmem:[#allocation2 + $0x21] sm:$0xff]
      %v1486 = vld [vmem:[#allocation2 + $0x31] sm:$0xff]
      %v1487 = vld [vmem:[#allocation2 + $0x41] sm:$0xff]
      %v1488 = vld [vmem:[#allocation2 + $0x51] sm:$0xff]
      %v1489 = vld [vmem:[#allocation2 + $0x61] sm:$0xff]
      %v1490 = vld [vmem:[#allocation2 + $0x71] sm:$0xff]
      %s1491 = scalar_lea.vmem %s2, 112
      %v1492 = vld [vmem:[%s1491] sm:$0xff]
      %v1493 = vld [vmem:[#allocation2 + $0x2] sm:$0xff]
      %v1494 = vld [vmem:[#allocation2 + $0x12] sm:$0xff]
      %v1495 = vld [vmem:[#allocation2 + $0x22] sm:$0xff]
      %v1496 = vld [vmem:[#allocation2 + $0x32] sm:$0xff]
      %v1497 = vld [vmem:[#allocation2 + $0x42] sm:$0xff]
      %v1498 = vld [vmem:[#allocation2 + $0x52] sm:$0xff]
      %v1499 = vld [vmem:[#allocation2 + $0x62] sm:$0xff]
      %v1500 = vld [vmem:[#allocation2 + $0x72] sm:$0xff]
      %s1501 = scalar_lea.vmem %s2, 96
      %v1502 = vld [vmem:[%s1501] sm:$0xff]
      %v1504 = vsel %vm819, %v1493, 0
      %v1507 = vsel %vm819, %v1494, 0
      %v1510 = vsel %vm819, %v1495, 0
      %v1513 = vsel %vm819, %v1496, 0
      %v1516 = vsel %vm819, %v1497, 0
      %v1519 = vsel %vm819, %v1498, 0
      %v1522 = vsel %vm819, %v1499, 0
      %v1525 = vsel %vm819, %v1500, 0
      %1527 = vmatprep.subr.mxu0 0.0
      %1528 = vmatpush1.msra.mxu0 %v1502
      %1529 = vmatprep.subr.mxu0 0.0
      %1530 = vmatpush1.msra.mxu0 0.0
      %1531 = vmatprep.subr.mxu0 0.0
      %1532 = vmatpush1.msra.mxu0 0.0
      %1533 = vmatprep.subr.mxu0 0.0
      %1534 = vmatpush1.msra.mxu0 0.0
      %1535 = vmatprep.subr.mxu0 0.0
      %1536 = vmatpush1.msra.mxu0 0.0
      %1537 = vmatprep.subr.mxu0 0.0
      %1538 = vmatpush1.msra.mxu0 0.0
      %1539 = vmatprep.subr.mxu0 0.0
      %1540 = vmatpush1.msra.mxu0 0.0
      %1541 = vmatprep.subr.mxu0 0.0
      %1542 = vmatpush1.msra.mxu0 0.0
      %1543 = vmatprep.subr.mxu0 0.0
      %1544 = vmatpush1.msra.mxu0 0.0
      %1545 = vmatprep.subr.mxu0 0.0
      %1546 = vmatpush1.msra.mxu0 0.0
      %1547 = vmatprep.subr.mxu0 0.0
      %1548 = vmatpush1.msra.mxu0 0.0
      %1549 = vmatprep.subr.mxu0 0.0
      %1550 = vmatpush1.msra.mxu0 0.0
      %1551 = vmatprep.subr.mxu0 0.0
      %1552 = vmatpush1.msra.mxu0 0.0
      %1553 = vmatprep.subr.mxu0 0.0
      %1554 = vmatpush1.msra.mxu0 0.0
      %1555 = vmatprep.subr.mxu0 0.0
      %1556 = vmatpush1.msra.mxu0 0.0
      %1557 = vmatprep.subr.mxu0 0.0
      %1558 = vmatpush1.msra.mxu0 0.0
      %1559 = vmatprep.subr.mxu0 0.0
      %1560 = vmatpush1.msra.mxu0 0.0
      %1561 = vmatprep.subr.mxu0 0.0
      %1562 = vmatpush1.msra.mxu0 0.0
      %1563 = vmatprep.subr.mxu0 0.0
      %1564 = vmatpush1.msra.mxu0 0.0
      %1565 = vmatprep.subr.mxu0 0.0
      %1566 = vmatpush1.msra.mxu0 0.0
      %1567 = vmatprep.subr.mxu0 0.0
      %1568 = vmatpush1.msra.mxu0 0.0
      %1569 = vmatprep.subr.mxu0 0.0
      %1570 = vmatpush1.msra.mxu0 0.0
      %1571 = vmatprep.subr.mxu0 0.0
      %1572 = vmatpush1.msra.mxu0 0.0
      %1573 = vmatprep.subr.mxu0 0.0
      %1574 = vmatpush1.msra.mxu0 0.0
      %1575 = vmatprep.subr.mxu0 0.0
      %1576 = vmatpush1.msra.mxu0 0.0
      %1577 = vmatprep.subr.mxu0 0.0
      %1578 = vmatpush1.msra.mxu0 0.0
      %1579 = vmatprep.subr.mxu0 0.0
      %1580 = vmatpush1.msra.mxu0 0.0
      %1581 = vmatprep.subr.mxu0 0.0
      %1582 = vmatpush1.msra.mxu0 0.0
      %1583 = vmatprep.subr.mxu0 0.0
      %1584 = vmatpush1.msra.mxu0 0.0
      %1585 = vmatprep.subr.mxu0 0.0
      %1586 = vmatpush1.msra.mxu0 0.0
      %1587 = vmatprep.subr.mxu0 0.0
      %1588 = vmatpush1.msra.mxu0 0.0
      %1589 = vmatprep.subr.mxu0 0.0
      %1590 = vmatpush1.msra.mxu0 0.0
      %1591 = vmatprep.mubr.f32.mxu0 0.0
      %1592 = vmatmul.mubr.f32.gmra.mrb[0].mxu0 %v1504
      %v1593 = vpop.f32.mrb[0].mxu0
      %v1594 = vadd.f32 0.0, %v1593
      %v1595 = vpop.f32.mrb[0].mxu0
      %1596 = vmatprep.mubr.f32.mxu0 0.0
      %1597 = vmatmul.mubr.f32.gmra.mrb[0].mxu0 %v1507
      %v1598 = vpop.f32.mrb[0].mxu0
      %v1599 = vadd.f32 0.0, %v1598
      %v1600 = vpop.f32.mrb[0].mxu0
      %1601 = vmatprep.mubr.f32.mxu0 0.0
      %1602 = vmatmul.mubr.f32.gmra.mrb[0].mxu0 %v1510
      %v1603 = vpop.f32.mrb[0].mxu0
      %v1604 = vadd.f32 0.0, %v1603
      %v1605 = vpop.f32.mrb[0].mxu0
      %1606 = vmatprep.mubr.f32.mxu0 0.0
      %1607 = vmatmul.mubr.f32.gmra.mrb[0].mxu0 %v1513
      %v1608 = vpop.f32.mrb[0].mxu0
      %v1609 = vadd.f32 0.0, %v1608
      %v1610 = vpop.f32.mrb[0].mxu0
      %1611 = vmatprep.mubr.f32.mxu0 0.0
      %1612 = vmatmul.mubr.f32.gmra.mrb[0].mxu0 %v1516
      %v1613 = vpop.f32.mrb[0].mxu0
      %v1614 = vadd.f32 0.0, %v1613
      %v1615 = vpop.f32.mrb[0].mxu0
      %1616 = vmatprep.mubr.f32.mxu0 0.0
      %1617 = vmatmul.mubr.f32.gmra.mrb[0].mxu0 %v1519
      %v1618 = vpop.f32.mrb[0].mxu0
      %v1619 = vadd.f32 0.0, %v1618
      %v1620 = vpop.f32.mrb[0].mxu0
      %1621 = vmatprep.mubr.f32.mxu0 0.0
      %1622 = vmatmul.mubr.f32.gmra.mrb[0].mxu0 %v1522
      %v1623 = vpop.f32.mrb[0].mxu0
      %v1624 = vadd.f32 0.0, %v1623
      %v1625 = vpop.f32.mrb[0].mxu0
      %1626 = vmatprep.mubr.f32.mxu0 0.0
      %1627 = vmatmul.mubr.f32.gmra.mrb[0].mxu0 %v1525
      %v1628 = vpop.f32.mrb[0].mxu0
      %v1629 = vadd.f32 0.0, %v1628
      %v1630 = vpop.f32.mrb[0].mxu0
      %1631 = vdwg.mxu0
      %v1633 = vsel %vm819, %v1483, 0
      %v1636 = vsel %vm819, %v1484, 0
      %v1639 = vsel %vm819, %v1485, 0
      %v1642 = vsel %vm819, %v1486, 0
      %v1645 = vsel %vm819, %v1487, 0
      %v1648 = vsel %vm819, %v1488, 0
      %v1651 = vsel %vm819, %v1489, 0
      %v1654 = vsel %vm819, %v1490, 0
      %1656 = vmatprep.subr.mxu0 0.0
      %1657 = vmatpush1.msra.mxu0 %v1492
      %1658 = vmatprep.subr.mxu0 0.0
      %1659 = vmatpush1.msra.mxu0 0.0
      %1660 = vmatprep.subr.mxu0 0.0
      %1661 = vmatpush1.msra.mxu0 0.0
      %1662 = vmatprep.subr.mxu0 0.0
      %1663 = vmatpush1.msra.mxu0 0.0
      %1664 = vmatprep.subr.mxu0 0.0
      %1665 = vmatpush1.msra.mxu0 0.0
      %1666 = vmatprep.subr.mxu0 0.0
      %1667 = vmatpush1.msra.mxu0 0.0
      %1668 = vmatprep.subr.mxu0 0.0
      %1669 = vmatpush1.msra.mxu0 0.0
      %1670 = vmatprep.subr.mxu0 0.0
      %1671 = vmatpush1.msra.mxu0 0.0
      %1672 = vmatprep.subr.mxu0 0.0
      %1673 = vmatpush1.msra.mxu0 0.0
      %1674 = vmatprep.subr.mxu0 0.0
      %1675 = vmatpush1.msra.mxu0 0.0
      %1676 = vmatprep.subr.mxu0 0.0
      %1677 = vmatpush1.msra.mxu0 0.0
      %1678 = vmatprep.subr.mxu0 0.0
      %1679 = vmatpush1.msra.mxu0 0.0
      %1680 = vmatprep.subr.mxu0 0.0
      %1681 = vmatpush1.msra.mxu0 0.0
      %1682 = vmatprep.subr.mxu0 0.0
      %1683 = vmatpush1.msra.mxu0 0.0
      %1684 = vmatprep.subr.mxu0 0.0
      %1685 = vmatpush1.msra.mxu0 0.0
      %1686 = vmatprep.subr.mxu0 0.0
      %1687 = vmatpush1.msra.mxu0 0.0
      %1688 = vmatprep.subr.mxu0 0.0
      %1689 = vmatpush1.msra.mxu0 0.0
      %1690 = vmatprep.subr.mxu0 0.0
      %1691 = vmatpush1.msra.mxu0 0.0
      %1692 = vmatprep.subr.mxu0 0.0
      %1693 = vmatpush1.msra.mxu0 0.0
      %1694 = vmatprep.subr.mxu0 0.0
      %1695 = vmatpush1.msra.mxu0 0.0
      %1696 = vmatprep.subr.mxu0 0.0
      %1697 = vmatpush1.msra.mxu0 0.0
      %1698 = vmatprep.subr.mxu0 0.0
      %1699 = vmatpush1.msra.mxu0 0.0
      %1700 = vmatprep.subr.mxu0 0.0
      %1701 = vmatpush1.msra.mxu0 0.0
      %1702 = vmatprep.subr.mxu0 0.0
      %1703 = vmatpush1.msra.mxu0 0.0
      %1704 = vmatprep.subr.mxu0 0.0
      %1705 = vmatpush1.msra.mxu0 0.0
      %1706 = vmatprep.subr.mxu0 0.0
      %1707 = vmatpush1.msra.mxu0 0.0
      %1708 = vmatprep.subr.mxu0 0.0
      %1709 = vmatpush1.msra.mxu0 0.0
      %1710 = vmatprep.subr.mxu0 0.0
      %1711 = vmatpush1.msra.mxu0 0.0
      %1712 = vmatprep.subr.mxu0 0.0
      %1713 = vmatpush1.msra.mxu0 0.0
      %1714 = vmatprep.subr.mxu0 0.0
      %1715 = vmatpush1.msra.mxu0 0.0
      %1716 = vmatprep.subr.mxu0 0.0
      %1717 = vmatpush1.msra.mxu0 0.0
      %1718 = vmatprep.subr.mxu0 0.0
      %1719 = vmatpush1.msra.mxu0 0.0
      %1720 = vmatprep.mubr.f32.mxu0 0.0
      %1721 = vmatmul.mubr.f32.gmra.mrb[0].mxu0 %v1633
      %v1722 = vpop.f32.mrb[0].mxu0
      %v1723 = vadd.f32 %v1594, %v1722
      %v1724 = vpop.f32.mrb[0].mxu0
      %1725 = vmatprep.mubr.f32.mxu0 0.0
      %1726 = vmatmul.mubr.f32.gmra.mrb[0].mxu0 %v1636
      %v1727 = vpop.f32.mrb[0].mxu0
      %v1728 = vadd.f32 %v1599, %v1727
      %v1729 = vpop.f32.mrb[0].mxu0
      %1730 = vmatprep.mubr.f32.mxu0 0.0
      %1731 = vmatmul.mubr.f32.gmra.mrb[0].mxu0 %v1639
      %v1732 = vpop.f32.mrb[0].mxu0
      %v1733 = vadd.f32 %v1604, %v1732
      %v1734 = vpop.f32.mrb[0].mxu0
      %1735 = vmatprep.mubr.f32.mxu0 0.0
      %1736 = vmatmul.mubr.f32.gmra.mrb[0].mxu0 %v1642
      %v1737 = vpop.f32.mrb[0].mxu0
      %v1738 = vadd.f32 %v1609, %v1737
      %v1739 = vpop.f32.mrb[0].mxu0
      %1740 = vmatprep.mubr.f32.mxu0 0.0
      %1741 = vmatmul.mubr.f32.gmra.mrb[0].mxu0 %v1645
      %v1742 = vpop.f32.mrb[0].mxu0
      %v1743 = vadd.f32 %v1614, %v1742
      %v1744 = vpop.f32.mrb[0].mxu0
      %1745 = vmatprep.mubr.f32.mxu0 0.0
      %1746 = vmatmul.mubr.f32.gmra.mrb[0].mxu0 %v1648
      %v1747 = vpop.f32.mrb[0].mxu0
      %v1748 = vadd.f32 %v1619, %v1747
      %v1749 = vpop.f32.mrb[0].mxu0
      %1750 = vmatprep.mubr.f32.mxu0 0.0
      %1751 = vmatmul.mubr.f32.gmra.mrb[0].mxu0 %v1651
      %v1752 = vpop.f32.mrb[0].mxu0
      %v1753 = vadd.f32 %v1624, %v1752
      %v1754 = vpop.f32.mrb[0].mxu0
      %1755 = vmatprep.mubr.f32.mxu0 0.0
      %1756 = vmatmul.mubr.f32.gmra.mrb[0].mxu0 %v1654
      %v1757 = vpop.f32.mrb[0].mxu0
      %v1758 = vadd.f32 %v1629, %v1757
      %v1759 = vpop.f32.mrb[0].mxu0
      %1760 = vdwg.mxu0
      %v1761 = vld [vmem:[%s841 + $0x1] sm:$0xff]
      %v1762 = vld [vmem:[%s841 + $0x11] sm:$0xff]
      %v1763 = vld [vmem:[%s841 + $0x21] sm:$0xff]
      %v1764 = vld [vmem:[%s841 + $0x31] sm:$0xff]
      %v1765 = vld [vmem:[%s841 + $0x41] sm:$0xff]
      %v1766 = vld [vmem:[%s841 + $0x51] sm:$0xff]
      %v1767 = vld [vmem:[%s841 + $0x61] sm:$0xff]
      %v1768 = vld [vmem:[%s841 + $0x71] sm:$0xff]
      %s1769 = scalar_lea.vmem %s2, 48
      %v1770 = vld [vmem:[%s1769] sm:$0xff]
      %v1772 = vsel %vm819, %v1761, 0
      %v1775 = vsel %vm819, %v1762, 0
      %v1778 = vsel %vm819, %v1763, 0
      %v1781 = vsel %vm819, %v1764, 0
      %v1784 = vsel %vm819, %v1765, 0
      %v1787 = vsel %vm819, %v1766, 0
      %v1790 = vsel %vm819, %v1767, 0
      %v1793 = vsel %vm819, %v1768, 0
      %1795 = vmatprep.subr.mxu0 0.0
      %1796 = vmatpush1.msra.mxu0 %v1770
      %1797 = vmatprep.subr.mxu0 0.0
      %1798 = vmatpush1.msra.mxu0 0.0
      %1799 = vmatprep.subr.mxu0 0.0
      %1800 = vmatpush1.msra.mxu0 0.0
      %1801 = vmatprep.subr.mxu0 0.0
      %1802 = vmatpush1.msra.mxu0 0.0
      %1803 = vmatprep.subr.mxu0 0.0
      %1804 = vmatpush1.msra.mxu0 0.0
      %1805 = vmatprep.subr.mxu0 0.0
      %1806 = vmatpush1.msra.mxu0 0.0
      %1807 = vmatprep.subr.mxu0 0.0
      %1808 = vmatpush1.msra.mxu0 0.0
      %1809 = vmatprep.subr.mxu0 0.0
      %1810 = vmatpush1.msra.mxu0 0.0
      %1811 = vmatprep.subr.mxu0 0.0
      %1812 = vmatpush1.msra.mxu0 0.0
      %1813 = vmatprep.subr.mxu0 0.0
      %1814 = vmatpush1.msra.mxu0 0.0
      %1815 = vmatprep.subr.mxu0 0.0
      %1816 = vmatpush1.msra.mxu0 0.0
      %1817 = vmatprep.subr.mxu0 0.0
      %1818 = vmatpush1.msra.mxu0 0.0
      %1819 = vmatprep.subr.mxu0 0.0
      %1820 = vmatpush1.msra.mxu0 0.0
      %1821 = vmatprep.subr.mxu0 0.0
      %1822 = vmatpush1.msra.mxu0 0.0
      %1823 = vmatprep.subr.mxu0 0.0
      %1824 = vmatpush1.msra.mxu0 0.0
      %1825 = vmatprep.subr.mxu0 0.0
      %1826 = vmatpush1.msra.mxu0 0.0
      %1827 = vmatprep.subr.mxu0 0.0
      %1828 = vmatpush1.msra.mxu0 0.0
      %1829 = vmatprep.subr.mxu0 0.0
      %1830 = vmatpush1.msra.mxu0 0.0
      %1831 = vmatprep.subr.mxu0 0.0
      %1832 = vmatpush1.msra.mxu0 0.0
      %1833 = vmatprep.subr.mxu0 0.0
      %1834 = vmatpush1.msra.mxu0 0.0
      %1835 = vmatprep.subr.mxu0 0.0
      %1836 = vmatpush1.msra.mxu0 0.0
      %1837 = vmatprep.subr.mxu0 0.0
      %1838 = vmatpush1.msra.mxu0 0.0
      %1839 = vmatprep.subr.mxu0 0.0
      %1840 = vmatpush1.msra.mxu0 0.0
      %1841 = vmatprep.subr.mxu0 0.0
      %1842 = vmatpush1.msra.mxu0 0.0
      %1843 = vmatprep.subr.mxu0 0.0
      %1844 = vmatpush1.msra.mxu0 0.0
      %1845 = vmatprep.subr.mxu0 0.0
      %1846 = vmatpush1.msra.mxu0 0.0
      %1847 = vmatprep.subr.mxu0 0.0
      %1848 = vmatpush1.msra.mxu0 0.0
      %1849 = vmatprep.subr.mxu0 0.0
      %1850 = vmatpush1.msra.mxu0 0.0
      %1851 = vmatprep.subr.mxu0 0.0
      %1852 = vmatpush1.msra.mxu0 0.0
      %1853 = vmatprep.subr.mxu0 0.0
      %1854 = vmatpush1.msra.mxu0 0.0
      %1855 = vmatprep.subr.mxu0 0.0
      %1856 = vmatpush1.msra.mxu0 0.0
      %1857 = vmatprep.subr.mxu0 0.0
      %1858 = vmatpush1.msra.mxu0 0.0
      %1859 = vmatprep.mubr.f32.mxu0 0.0
      %1860 = vmatmul.mubr.f32.gmra.mrb[0].mxu0 %v1772
      %v1861 = vpop.f32.mrb[0].mxu0
      %v1862 = vadd.f32 0.0, %v1861
      %v1863 = vpop.f32.mrb[0].mxu0
      %1864 = vmatprep.mubr.f32.mxu0 0.0
      %1865 = vmatmul.mubr.f32.gmra.mrb[0].mxu0 %v1775
      %v1866 = vpop.f32.mrb[0].mxu0
      %v1867 = vadd.f32 0.0, %v1866
      %v1868 = vpop.f32.mrb[0].mxu0
      %1869 = vmatprep.mubr.f32.mxu0 0.0
      %1870 = vmatmul.mubr.f32.gmra.mrb[0].mxu0 %v1778
      %v1871 = vpop.f32.mrb[0].mxu0
      %v1872 = vadd.f32 0.0, %v1871
      %v1873 = vpop.f32.mrb[0].mxu0
      %1874 = vmatprep.mubr.f32.mxu0 0.0
      %1875 = vmatmul.mubr.f32.gmra.mrb[0].mxu0 %v1781
      %v1876 = vpop.f32.mrb[0].mxu0
      %v1877 = vadd.f32 0.0, %v1876
      %v1878 = vpop.f32.mrb[0].mxu0
      %1879 = vmatprep.mubr.f32.mxu0 0.0
      %1880 = vmatmul.mubr.f32.gmra.mrb[0].mxu0 %v1784
      %v1881 = vpop.f32.mrb[0].mxu0
      %v1882 = vadd.f32 0.0, %v1881
      %v1883 = vpop.f32.mrb[0].mxu0
      %1884 = vmatprep.mubr.f32.mxu0 0.0
      %1885 = vmatmul.mubr.f32.gmra.mrb[0].mxu0 %v1787
      %v1886 = vpop.f32.mrb[0].mxu0
      %v1887 = vadd.f32 0.0, %v1886
      %v1888 = vpop.f32.mrb[0].mxu0
      %1889 = vmatprep.mubr.f32.mxu0 0.0
      %1890 = vmatmul.mubr.f32.gmra.mrb[0].mxu0 %v1790
      %v1891 = vpop.f32.mrb[0].mxu0
      %v1892 = vadd.f32 0.0, %v1891
      %v1893 = vpop.f32.mrb[0].mxu0
      %1894 = vmatprep.mubr.f32.mxu0 0.0
      %1895 = vmatmul.mubr.f32.gmra.mrb[0].mxu0 %v1793
      %v1896 = vpop.f32.mrb[0].mxu0
      %v1897 = vadd.f32 0.0, %v1896
      %v1898 = vpop.f32.mrb[0].mxu0
      %1899 = vdwg.mxu0
      %v1900 = vadd.f32 %v1723, %v1862
      %v1901 = vadd.f32 %v1728, %v1867
      %v1902 = vadd.f32 %v1733, %v1872
      %v1903 = vadd.f32 %v1738, %v1877
      %v1904 = vadd.f32 %v1743, %v1882
      %v1905 = vadd.f32 %v1748, %v1887
      %v1906 = vadd.f32 %v1753, %v1892
      %v1907 = vadd.f32 %v1758, %v1897
      %v1908 = vld [vmem:[%s841 + $0x2] sm:$0xff]
      %v1909 = vld [vmem:[%s841 + $0x12] sm:$0xff]
      %v1910 = vld [vmem:[%s841 + $0x22] sm:$0xff]
      %v1911 = vld [vmem:[%s841 + $0x32] sm:$0xff]
      %v1912 = vld [vmem:[%s841 + $0x42] sm:$0xff]
      %v1913 = vld [vmem:[%s841 + $0x52] sm:$0xff]
      %v1914 = vld [vmem:[%s841 + $0x62] sm:$0xff]
      %v1915 = vld [vmem:[%s841 + $0x72] sm:$0xff]
      %s1916 = scalar_lea.vmem %s2, 32
      %v1917 = vld [vmem:[%s1916] sm:$0xff]
      %v1919 = vsel %vm819, %v1908, 0
      %v1922 = vsel %vm819, %v1909, 0
      %v1925 = vsel %vm819, %v1910, 0
      %v1928 = vsel %vm819, %v1911, 0
      %v1931 = vsel %vm819, %v1912, 0
      %v1934 = vsel %vm819, %v1913, 0
      %v1937 = vsel %vm819, %v1914, 0
      %v1940 = vsel %vm819, %v1915, 0
      %1942 = vmatprep.subr.mxu0 0.0
      %1943 = vmatpush1.msra.mxu0 %v1917
      %1944 = vmatprep.subr.mxu0 0.0
      %1945 = vmatpush1.msra.mxu0 0.0
      %1946 = vmatprep.subr.mxu0 0.0
      %1947 = vmatpush1.msra.mxu0 0.0
      %1948 = vmatprep.subr.mxu0 0.0
      %1949 = vmatpush1.msra.mxu0 0.0
      %1950 = vmatprep.subr.mxu0 0.0
      %1951 = vmatpush1.msra.mxu0 0.0
      %1952 = vmatprep.subr.mxu0 0.0
      %1953 = vmatpush1.msra.mxu0 0.0
      %1954 = vmatprep.subr.mxu0 0.0
      %1955 = vmatpush1.msra.mxu0 0.0
      %1956 = vmatprep.subr.mxu0 0.0
      %1957 = vmatpush1.msra.mxu0 0.0
      %1958 = vmatprep.subr.mxu0 0.0
      %1959 = vmatpush1.msra.mxu0 0.0
      %1960 = vmatprep.subr.mxu0 0.0
      %1961 = vmatpush1.msra.mxu0 0.0
      %1962 = vmatprep.subr.mxu0 0.0
      %1963 = vmatpush1.msra.mxu0 0.0
      %1964 = vmatprep.subr.mxu0 0.0
      %1965 = vmatpush1.msra.mxu0 0.0
      %1966 = vmatprep.subr.mxu0 0.0
      %1967 = vmatpush1.msra.mxu0 0.0
      %1968 = vmatprep.subr.mxu0 0.0
      %1969 = vmatpush1.msra.mxu0 0.0
      %1970 = vmatprep.subr.mxu0 0.0
      %1971 = vmatpush1.msra.mxu0 0.0
      %1972 = vmatprep.subr.mxu0 0.0
      %1973 = vmatpush1.msra.mxu0 0.0
      %1974 = vmatprep.subr.mxu0 0.0
      %1975 = vmatpush1.msra.mxu0 0.0
      %1976 = vmatprep.subr.mxu0 0.0
      %1977 = vmatpush1.msra.mxu0 0.0
      %1978 = vmatprep.subr.mxu0 0.0
      %1979 = vmatpush1.msra.mxu0 0.0
      %1980 = vmatprep.subr.mxu0 0.0
      %1981 = vmatpush1.msra.mxu0 0.0
      %1982 = vmatprep.subr.mxu0 0.0
      %1983 = vmatpush1.msra.mxu0 0.0
      %1984 = vmatprep.subr.mxu0 0.0
      %1985 = vmatpush1.msra.mxu0 0.0
      %1986 = vmatprep.subr.mxu0 0.0
      %1987 = vmatpush1.msra.mxu0 0.0
      %1988 = vmatprep.subr.mxu0 0.0
      %1989 = vmatpush1.msra.mxu0 0.0
      %1990 = vmatprep.subr.mxu0 0.0
      %1991 = vmatpush1.msra.mxu0 0.0
      %1992 = vmatprep.subr.mxu0 0.0
      %1993 = vmatpush1.msra.mxu0 0.0
      %1994 = vmatprep.subr.mxu0 0.0
      %1995 = vmatpush1.msra.mxu0 0.0
      %1996 = vmatprep.subr.mxu0 0.0
      %1997 = vmatpush1.msra.mxu0 0.0
      %1998 = vmatprep.subr.mxu0 0.0
      %1999 = vmatpush1.msra.mxu0 0.0
      %2000 = vmatprep.subr.mxu0 0.0
      %2001 = vmatpush1.msra.mxu0 0.0
      %2002 = vmatprep.subr.mxu0 0.0
      %2003 = vmatpush1.msra.mxu0 0.0
      %2004 = vmatprep.subr.mxu0 0.0
      %2005 = vmatpush1.msra.mxu0 0.0
      %2006 = vmatprep.mubr.f32.mxu0 0.0
      %2007 = vmatmul.mubr.f32.gmra.mrb[0].mxu0 %v1919
      %v2008 = vpop.f32.mrb[0].mxu0
      %v2009 = vadd.f32 0.0, %v2008
      %v2010 = vpop.f32.mrb[0].mxu0
      %2011 = vmatprep.mubr.f32.mxu0 0.0
      %2012 = vmatmul.mubr.f32.gmra.mrb[0].mxu0 %v1922
      %v2013 = vpop.f32.mrb[0].mxu0
      %v2014 = vadd.f32 0.0, %v2013
      %v2015 = vpop.f32.mrb[0].mxu0
      %2016 = vmatprep.mubr.f32.mxu0 0.0
      %2017 = vmatmul.mubr.f32.gmra.mrb[0].mxu0 %v1925
      %v2018 = vpop.f32.mrb[0].mxu0
      %v2019 = vadd.f32 0.0, %v2018
      %v2020 = vpop.f32.mrb[0].mxu0
      %2021 = vmatprep.mubr.f32.mxu0 0.0
      %2022 = vmatmul.mubr.f32.gmra.mrb[0].mxu0 %v1928
      %v2023 = vpop.f32.mrb[0].mxu0
      %v2024 = vadd.f32 0.0, %v2023
      %v2025 = vpop.f32.mrb[0].mxu0
      %2026 = vmatprep.mubr.f32.mxu0 0.0
      %2027 = vmatmul.mubr.f32.gmra.mrb[0].mxu0 %v1931
      %v2028 = vpop.f32.mrb[0].mxu0
      %v2029 = vadd.f32 0.0, %v2028
      %v2030 = vpop.f32.mrb[0].mxu0
      %2031 = vmatprep.mubr.f32.mxu0 0.0
      %2032 = vmatmul.mubr.f32.gmra.mrb[0].mxu0 %v1934
      %v2033 = vpop.f32.mrb[0].mxu0
      %v2034 = vadd.f32 0.0, %v2033
      %v2035 = vpop.f32.mrb[0].mxu0
      %2036 = vmatprep.mubr.f32.mxu0 0.0
      %2037 = vmatmul.mubr.f32.gmra.mrb[0].mxu0 %v1937
      %v2038 = vpop.f32.mrb[0].mxu0
      %v2039 = vadd.f32 0.0, %v2038
      %v2040 = vpop.f32.mrb[0].mxu0
      %2041 = vmatprep.mubr.f32.mxu0 0.0
      %2042 = vmatmul.mubr.f32.gmra.mrb[0].mxu0 %v1940
      %v2043 = vpop.f32.mrb[0].mxu0
      %v2044 = vadd.f32 0.0, %v2043
      %v2045 = vpop.f32.mrb[0].mxu0
      %2046 = vdwg.mxu0
      %v2047 = vadd.f32 %v1900, %v2009
      %v2048 = vadd.f32 %v1901, %v2014
      %v2049 = vadd.f32 %v1902, %v2019
      %v2050 = vadd.f32 %v1903, %v2024
      %v2051 = vadd.f32 %v1904, %v2029
      %v2052 = vadd.f32 %v1905, %v2034
      %v2053 = vadd.f32 %v1906, %v2039
      %v2054 = vadd.f32 %v1907, %v2044
      %s2055 = scalar_lea.vmem %s204, 64
      %2056 = vst.msk [vmem:[%s2055] sm:$0xff] %vm1422, %v2047
      %2057 = vst.msk [vmem:[%s2055 + $0x8] sm:$0xff] %vm1422, %v2048
      %2058 = vst.msk [vmem:[%s2055 + $0x10] sm:$0xff] %vm1422, %v2049
      %2059 = vst.msk [vmem:[%s2055 + $0x18] sm:$0xff] %vm1422, %v2050
      %2060 = vst.msk [vmem:[%s2055 + $0x20] sm:$0xff] %vm1422, %v2051
      %2061 = vst.msk [vmem:[%s2055 + $0x28] sm:$0xff] %vm1422, %v2052
      %2062 = vst.msk [vmem:[%s2055 + $0x30] sm:$0xff] %vm1422, %v2053
      %2063 = vst.msk [vmem:[%s2055 + $0x38] sm:$0xff] %vm1422, %v2054
      %v2064 = vsel %vm1422, %v2047, 0.0
      %v2065 = vsel %vm1422, %v2048, 0.0
      %v2066 = vadd.f32 %v2064, %v2065
      %v2067 = vsel %vm1422, %v2049, 0.0
      %v2068 = vadd.f32 %v2066, %v2067
      %v2069 = vsel %vm1422, %v2050, 0.0
      %v2070 = vadd.f32 %v2068, %v2069
      %v2071 = vsel %vm1422, %v2051, 0.0
      %v2072 = vadd.f32 %v2070, %v2071
      %v2073 = vsel %vm1422, %v2052, 0.0
      %v2074 = vadd.f32 %v2072, %v2073
      %v2075 = vsel %vm1422, %v2053, 0.0
      %v2076 = vadd.f32 %v2074, %v2075
      %v2077 = vsel %vm1422, %v2054, 0.0
      %v2078 = vadd.f32 %v2076, %v2077
      %v2079 = vrot.slane %v2078, 4
      %v2080 = vadd.f32 %v2078, %v2079
      %v2081 = vrot.slane %v2080, 2
      %v2082 = vadd.f32 %v2080, %v2081
      %v2083 = vrot.slane %v2082, 1
      %v2084 = vadd.f32 %v2082, %v2083
      %v2085 = vadd.f32 %v1452, %v2084
      %v2086 = vmul.f32 %v2047, %v2047
      %v2087 = vmul.f32 %v2048, %v2048
      %v2088 = vmul.f32 %v2049, %v2049
      %v2089 = vmul.f32 %v2050, %v2050
      %v2090 = vmul.f32 %v2051, %v2051
      %v2091 = vmul.f32 %v2052, %v2052
      %v2092 = vmul.f32 %v2053, %v2053
      %v2093 = vmul.f32 %v2054, %v2054
      %v2094 = vsel %vm1422, %v2086, 0.0
      %v2095 = vsel %vm1422, %v2087, 0.0
      %v2096 = vadd.f32 %v2094, %v2095
      %v2097 = vsel %vm1422, %v2088, 0.0
      %v2098 = vadd.f32 %v2096, %v2097
      %v2099 = vsel %vm1422, %v2089, 0.0
      %v2100 = vadd.f32 %v2098, %v2099
      %v2101 = vsel %vm1422, %v2090, 0.0
      %v2102 = vadd.f32 %v2100, %v2101
      %v2103 = vsel %vm1422, %v2091, 0.0
      %v2104 = vadd.f32 %v2102, %v2103
      %v2105 = vsel %vm1422, %v2092, 0.0
      %v2106 = vadd.f32 %v2104, %v2105
      %v2107 = vsel %vm1422, %v2093, 0.0
      %v2108 = vadd.f32 %v2106, %v2107
      %v2109 = vrot.slane %v2108, 4
      %v2110 = vadd.f32 %v2108, %v2109
      %v2111 = vrot.slane %v2110, 2
      %v2112 = vadd.f32 %v2110, %v2111
      %v2113 = vrot.slane %v2112, 1
      %v2114 = vadd.f32 %v2112, %v2113
      %v2115 = vadd.f32 %v1482, %v2114
      %v2116 = vld [vmem:[%s841] sm:$0xff]
      %v2117 = vld [vmem:[%s841 + $0x10] sm:$0xff]
      %v2118 = vld [vmem:[%s841 + $0x20] sm:$0xff]
      %v2119 = vld [vmem:[%s841 + $0x30] sm:$0xff]
      %v2120 = vld [vmem:[%s841 + $0x40] sm:$0xff]
      %v2121 = vld [vmem:[%s841 + $0x50] sm:$0xff]
      %v2122 = vld [vmem:[%s841 + $0x60] sm:$0xff]
      %v2123 = vld [vmem:[%s841 + $0x70] sm:$0xff]
      %s2124 = scalar_lea.vmem %s2, 88
      %v2125 = vld [vmem:[%s2124] sm:$0xff]
      %v2126 = vld [vmem:[%s841 + $0x1] sm:$0xff]
      %v2127 = vld [vmem:[%s841 + $0x11] sm:$0xff]
      %v2128 = vld [vmem:[%s841 + $0x21] sm:$0xff]
      %v2129 = vld [vmem:[%s841 + $0x31] sm:$0xff]
      %v2130 = vld [vmem:[%s841 + $0x41] sm:$0xff]
      %v2131 = vld [vmem:[%s841 + $0x51] sm:$0xff]
      %v2132 = vld [vmem:[%s841 + $0x61] sm:$0xff]
      %v2133 = vld [vmem:[%s841 + $0x71] sm:$0xff]
      %s2134 = scalar_lea.vmem %s2, 72
      %v2135 = vld [vmem:[%s2134] sm:$0xff]
      %v2137 = vsel %vm819, %v2126, 0
      %v2140 = vsel %vm819, %v2127, 0
      %v2143 = vsel %vm819, %v2128, 0
      %v2146 = vsel %vm819, %v2129, 0
      %v2149 = vsel %vm819, %v2130, 0
      %v2152 = vsel %vm819, %v2131, 0
      %v2155 = vsel %vm819, %v2132, 0
      %v2158 = vsel %vm819, %v2133, 0
      %2160 = vmatprep.subr.mxu0 0.0
      %2161 = vmatpush1.msra.mxu0 %v2135
      %2162 = vmatprep.subr.mxu0 0.0
      %2163 = vmatpush1.msra.mxu0 0.0
      %2164 = vmatprep.subr.mxu0 0.0
      %2165 = vmatpush1.msra.mxu0 0.0
      %2166 = vmatprep.subr.mxu0 0.0
      %2167 = vmatpush1.msra.mxu0 0.0
      %2168 = vmatprep.subr.mxu0 0.0
      %2169 = vmatpush1.msra.mxu0 0.0
      %2170 = vmatprep.subr.mxu0 0.0
      %2171 = vmatpush1.msra.mxu0 0.0
      %2172 = vmatprep.subr.mxu0 0.0
      %2173 = vmatpush1.msra.mxu0 0.0
      %2174 = vmatprep.subr.mxu0 0.0
      %2175 = vmatpush1.msra.mxu0 0.0
      %2176 = vmatprep.subr.mxu0 0.0
      %2177 = vmatpush1.msra.mxu0 0.0
      %2178 = vmatprep.subr.mxu0 0.0
      %2179 = vmatpush1.msra.mxu0 0.0
      %2180 = vmatprep.subr.mxu0 0.0
      %2181 = vmatpush1.msra.mxu0 0.0
      %2182 = vmatprep.subr.mxu0 0.0
      %2183 = vmatpush1.msra.mxu0 0.0
      %2184 = vmatprep.subr.mxu0 0.0
      %2185 = vmatpush1.msra.mxu0 0.0
      %2186 = vmatprep.subr.mxu0 0.0
      %2187 = vmatpush1.msra.mxu0 0.0
      %2188 = vmatprep.subr.mxu0 0.0
      %2189 = vmatpush1.msra.mxu0 0.0
      %2190 = vmatprep.subr.mxu0 0.0
      %2191 = vmatpush1.msra.mxu0 0.0
      %2192 = vmatprep.subr.mxu0 0.0
      %2193 = vmatpush1.msra.mxu0 0.0
      %2194 = vmatprep.subr.mxu0 0.0
      %2195 = vmatpush1.msra.mxu0 0.0
      %2196 = vmatprep.subr.mxu0 0.0
      %2197 = vmatpush1.msra.mxu0 0.0
      %2198 = vmatprep.subr.mxu0 0.0
      %2199 = vmatpush1.msra.mxu0 0.0
      %2200 = vmatprep.subr.mxu0 0.0
      %2201 = vmatpush1.msra.mxu0 0.0
      %2202 = vmatprep.subr.mxu0 0.0
      %2203 = vmatpush1.msra.mxu0 0.0
      %2204 = vmatprep.subr.mxu0 0.0
      %2205 = vmatpush1.msra.mxu0 0.0
      %2206 = vmatprep.subr.mxu0 0.0
      %2207 = vmatpush1.msra.mxu0 0.0
      %2208 = vmatprep.subr.mxu0 0.0
      %2209 = vmatpush1.msra.mxu0 0.0
      %2210 = vmatprep.subr.mxu0 0.0
      %2211 = vmatpush1.msra.mxu0 0.0
      %2212 = vmatprep.subr.mxu0 0.0
      %2213 = vmatpush1.msra.mxu0 0.0
      %2214 = vmatprep.subr.mxu0 0.0
      %2215 = vmatpush1.msra.mxu0 0.0
      %2216 = vmatprep.subr.mxu0 0.0
      %2217 = vmatpush1.msra.mxu0 0.0
      %2218 = vmatprep.subr.mxu0 0.0
      %2219 = vmatpush1.msra.mxu0 0.0
      %2220 = vmatprep.subr.mxu0 0.0
      %2221 = vmatpush1.msra.mxu0 0.0
      %2222 = vmatprep.subr.mxu0 0.0
      %2223 = vmatpush1.msra.mxu0 0.0
      %2224 = vmatprep.mubr.f32.mxu0 0.0
      %2225 = vmatmul.mubr.f32.gmra.mrb[0].mxu0 %v2137
      %v2226 = vpop.f32.mrb[0].mxu0
      %v2227 = vadd.f32 0.0, %v2226
      %v2228 = vpop.f32.mrb[0].mxu0
      %2229 = vmatprep.mubr.f32.mxu0 0.0
      %2230 = vmatmul.mubr.f32.gmra.mrb[0].mxu0 %v2140
      %v2231 = vpop.f32.mrb[0].mxu0
      %v2232 = vadd.f32 0.0, %v2231
      %v2233 = vpop.f32.mrb[0].mxu0
      %2234 = vmatprep.mubr.f32.mxu0 0.0
      %2235 = vmatmul.mubr.f32.gmra.mrb[0].mxu0 %v2143
      %v2236 = vpop.f32.mrb[0].mxu0
      %v2237 = vadd.f32 0.0, %v2236
      %v2238 = vpop.f32.mrb[0].mxu0
      %2239 = vmatprep.mubr.f32.mxu0 0.0
      %2240 = vmatmul.mubr.f32.gmra.mrb[0].mxu0 %v2146
      %v2241 = vpop.f32.mrb[0].mxu0
      %v2242 = vadd.f32 0.0, %v2241
      %v2243 = vpop.f32.mrb[0].mxu0
      %2244 = vmatprep.mubr.f32.mxu0 0.0
      %2245 = vmatmul.mubr.f32.gmra.mrb[0].mxu0 %v2149
      %v2246 = vpop.f32.mrb[0].mxu0
      %v2247 = vadd.f32 0.0, %v2246
      %v2248 = vpop.f32.mrb[0].mxu0
      %2249 = vmatprep.mubr.f32.mxu0 0.0
      %2250 = vmatmul.mubr.f32.gmra.mrb[0].mxu0 %v2152
      %v2251 = vpop.f32.mrb[0].mxu0
      %v2252 = vadd.f32 0.0, %v2251
      %v2253 = vpop.f32.mrb[0].mxu0
      %2254 = vmatprep.mubr.f32.mxu0 0.0
      %2255 = vmatmul.mubr.f32.gmra.mrb[0].mxu0 %v2155
      %v2256 = vpop.f32.mrb[0].mxu0
      %v2257 = vadd.f32 0.0, %v2256
      %v2258 = vpop.f32.mrb[0].mxu0
      %2259 = vmatprep.mubr.f32.mxu0 0.0
      %2260 = vmatmul.mubr.f32.gmra.mrb[0].mxu0 %v2158
      %v2261 = vpop.f32.mrb[0].mxu0
      %v2262 = vadd.f32 0.0, %v2261
      %v2263 = vpop.f32.mrb[0].mxu0
      %2264 = vdwg.mxu0
      %v2266 = vsel %vm819, %v2116, 0
      %v2269 = vsel %vm819, %v2117, 0
      %v2272 = vsel %vm819, %v2118, 0
      %v2275 = vsel %vm819, %v2119, 0
      %v2278 = vsel %vm819, %v2120, 0
      %v2281 = vsel %vm819, %v2121, 0
      %v2284 = vsel %vm819, %v2122, 0
      %v2287 = vsel %vm819, %v2123, 0
      %2289 = vmatprep.subr.mxu0 0.0
      %2290 = vmatpush1.msra.mxu0 %v2125
      %2291 = vmatprep.subr.mxu0 0.0
      %2292 = vmatpush1.msra.mxu0 0.0
      %2293 = vmatprep.subr.mxu0 0.0
      %2294 = vmatpush1.msra.mxu0 0.0
      %2295 = vmatprep.subr.mxu0 0.0
      %2296 = vmatpush1.msra.mxu0 0.0
      %2297 = vmatprep.subr.mxu0 0.0
      %2298 = vmatpush1.msra.mxu0 0.0
      %2299 = vmatprep.subr.mxu0 0.0
      %2300 = vmatpush1.msra.mxu0 0.0
      %2301 = vmatprep.subr.mxu0 0.0
      %2302 = vmatpush1.msra.mxu0 0.0
      %2303 = vmatprep.subr.mxu0 0.0
      %2304 = vmatpush1.msra.mxu0 0.0
      %2305 = vmatprep.subr.mxu0 0.0
      %2306 = vmatpush1.msra.mxu0 0.0
      %2307 = vmatprep.subr.mxu0 0.0
      %2308 = vmatpush1.msra.mxu0 0.0
      %2309 = vmatprep.subr.mxu0 0.0
      %2310 = vmatpush1.msra.mxu0 0.0
      %2311 = vmatprep.subr.mxu0 0.0
      %2312 = vmatpush1.msra.mxu0 0.0
      %2313 = vmatprep.subr.mxu0 0.0
      %2314 = vmatpush1.msra.mxu0 0.0
      %2315 = vmatprep.subr.mxu0 0.0
      %2316 = vmatpush1.msra.mxu0 0.0
      %2317 = vmatprep.subr.mxu0 0.0
      %2318 = vmatpush1.msra.mxu0 0.0
      %2319 = vmatprep.subr.mxu0 0.0
      %2320 = vmatpush1.msra.mxu0 0.0
      %2321 = vmatprep.subr.mxu0 0.0
      %2322 = vmatpush1.msra.mxu0 0.0
      %2323 = vmatprep.subr.mxu0 0.0
      %2324 = vmatpush1.msra.mxu0 0.0
      %2325 = vmatprep.subr.mxu0 0.0
      %2326 = vmatpush1.msra.mxu0 0.0
      %2327 = vmatprep.subr.mxu0 0.0
      %2328 = vmatpush1.msra.mxu0 0.0
      %2329 = vmatprep.subr.mxu0 0.0
      %2330 = vmatpush1.msra.mxu0 0.0
      %2331 = vmatprep.subr.mxu0 0.0
      %2332 = vmatpush1.msra.mxu0 0.0
      %2333 = vmatprep.subr.mxu0 0.0
      %2334 = vmatpush1.msra.mxu0 0.0
      %2335 = vmatprep.subr.mxu0 0.0
      %2336 = vmatpush1.msra.mxu0 0.0
      %2337 = vmatprep.subr.mxu0 0.0
      %2338 = vmatpush1.msra.mxu0 0.0
      %2339 = vmatprep.subr.mxu0 0.0
      %2340 = vmatpush1.msra.mxu0 0.0
      %2341 = vmatprep.subr.mxu0 0.0
      %2342 = vmatpush1.msra.mxu0 0.0
      %2343 = vmatprep.subr.mxu0 0.0
      %2344 = vmatpush1.msra.mxu0 0.0
      %2345 = vmatprep.subr.mxu0 0.0
      %2346 = vmatpush1.msra.mxu0 0.0
      %2347 = vmatprep.subr.mxu0 0.0
      %2348 = vmatpush1.msra.mxu0 0.0
      %2349 = vmatprep.subr.mxu0 0.0
      %2350 = vmatpush1.msra.mxu0 0.0
      %2351 = vmatprep.subr.mxu0 0.0
      %2352 = vmatpush1.msra.mxu0 0.0
      %2353 = vmatprep.mubr.f32.mxu0 0.0
      %2354 = vmatmul.mubr.f32.gmra.mrb[0].mxu0 %v2266
      %v2355 = vpop.f32.mrb[0].mxu0
      %v2356 = vadd.f32 %v2227, %v2355
      %v2357 = vpop.f32.mrb[0].mxu0
      %2358 = vmatprep.mubr.f32.mxu0 0.0
      %2359 = vmatmul.mubr.f32.gmra.mrb[0].mxu0 %v2269
      %v2360 = vpop.f32.mrb[0].mxu0
      %v2361 = vadd.f32 %v2232, %v2360
      %v2362 = vpop.f32.mrb[0].mxu0
      %2363 = vmatprep.mubr.f32.mxu0 0.0
      %2364 = vmatmul.mubr.f32.gmra.mrb[0].mxu0 %v2272
      %v2365 = vpop.f32.mrb[0].mxu0
      %v2366 = vadd.f32 %v2237, %v2365
      %v2367 = vpop.f32.mrb[0].mxu0
      %2368 = vmatprep.mubr.f32.mxu0 0.0
      %2369 = vmatmul.mubr.f32.gmra.mrb[0].mxu0 %v2275
      %v2370 = vpop.f32.mrb[0].mxu0
      %v2371 = vadd.f32 %v2242, %v2370
      %v2372 = vpop.f32.mrb[0].mxu0
      %2373 = vmatprep.mubr.f32.mxu0 0.0
      %2374 = vmatmul.mubr.f32.gmra.mrb[0].mxu0 %v2278
      %v2375 = vpop.f32.mrb[0].mxu0
      %v2376 = vadd.f32 %v2247, %v2375
      %v2377 = vpop.f32.mrb[0].mxu0
      %2378 = vmatprep.mubr.f32.mxu0 0.0
      %2379 = vmatmul.mubr.f32.gmra.mrb[0].mxu0 %v2281
      %v2380 = vpop.f32.mrb[0].mxu0
      %v2381 = vadd.f32 %v2252, %v2380
      %v2382 = vpop.f32.mrb[0].mxu0
      %2383 = vmatprep.mubr.f32.mxu0 0.0
      %2384 = vmatmul.mubr.f32.gmra.mrb[0].mxu0 %v2284
      %v2385 = vpop.f32.mrb[0].mxu0
      %v2386 = vadd.f32 %v2257, %v2385
      %v2387 = vpop.f32.mrb[0].mxu0
      %2388 = vmatprep.mubr.f32.mxu0 0.0
      %2389 = vmatmul.mubr.f32.gmra.mrb[0].mxu0 %v2287
      %v2390 = vpop.f32.mrb[0].mxu0
      %v2391 = vadd.f32 %v2262, %v2390
      %v2392 = vpop.f32.mrb[0].mxu0
      %2393 = vdwg.mxu0
      %s2394 = scalar_lea.vmem [#allocation2], 32
      %v2395 = vld [vmem:[%s2394] sm:$0xff]
      %v2396 = vld [vmem:[%s2394 + $0x10] sm:$0xff]
      %v2397 = vld [vmem:[%s2394 + $0x20] sm:$0xff]
      %v2398 = vld [vmem:[%s2394 + $0x30] sm:$0xff]
      %v2399 = vld [vmem:[%s2394 + $0x40] sm:$0xff]
      %v2400 = vld [vmem:[%s2394 + $0x50] sm:$0xff]
      %v2401 = vld [vmem:[%s2394 + $0x60] sm:$0xff]
      %v2402 = vld [vmem:[%s2394 + $0x70] sm:$0xff]
      %s2403 = scalar_lea.vmem %s2, 24
      %v2404 = vld [vmem:[%s2403] sm:$0xff]
      %v2406 = vsel %vm819, %v2395, 0
      %v2409 = vsel %vm819, %v2396, 0
      %v2412 = vsel %vm819, %v2397, 0
      %v2415 = vsel %vm819, %v2398, 0
      %v2418 = vsel %vm819, %v2399, 0
      %v2421 = vsel %vm819, %v2400, 0
      %v2424 = vsel %vm819, %v2401, 0
      %v2427 = vsel %vm819, %v2402, 0
      %2429 = vmatprep.subr.mxu0 0.0
      %2430 = vmatpush1.msra.mxu0 %v2404
      %2431 = vmatprep.subr.mxu0 0.0
      %2432 = vmatpush1.msra.mxu0 0.0
      %2433 = vmatprep.subr.mxu0 0.0
      %2434 = vmatpush1.msra.mxu0 0.0
      %2435 = vmatprep.subr.mxu0 0.0
      %2436 = vmatpush1.msra.mxu0 0.0
      %2437 = vmatprep.subr.mxu0 0.0
      %2438 = vmatpush1.msra.mxu0 0.0
      %2439 = vmatprep.subr.mxu0 0.0
      %2440 = vmatpush1.msra.mxu0 0.0
      %2441 = vmatprep.subr.mxu0 0.0
      %2442 = vmatpush1.msra.mxu0 0.0
      %2443 = vmatprep.subr.mxu0 0.0
      %2444 = vmatpush1.msra.mxu0 0.0
      %2445 = vmatprep.subr.mxu0 0.0
      %2446 = vmatpush1.msra.mxu0 0.0
      %2447 = vmatprep.subr.mxu0 0.0
      %2448 = vmatpush1.msra.mxu0 0.0
      %2449 = vmatprep.subr.mxu0 0.0
      %2450 = vmatpush1.msra.mxu0 0.0
      %2451 = vmatprep.subr.mxu0 0.0
      %2452 = vmatpush1.msra.mxu0 0.0
      %2453 = vmatprep.subr.mxu0 0.0
      %2454 = vmatpush1.msra.mxu0 0.0
      %2455 = vmatprep.subr.mxu0 0.0
      %2456 = vmatpush1.msra.mxu0 0.0
      %2457 = vmatprep.subr.mxu0 0.0
      %2458 = vmatpush1.msra.mxu0 0.0
      %2459 = vmatprep.subr.mxu0 0.0
      %2460 = vmatpush1.msra.mxu0 0.0
      %2461 = vmatprep.subr.mxu0 0.0
      %2462 = vmatpush1.msra.mxu0 0.0
      %2463 = vmatprep.subr.mxu0 0.0
      %2464 = vmatpush1.msra.mxu0 0.0
      %2465 = vmatprep.subr.mxu0 0.0
      %2466 = vmatpush1.msra.mxu0 0.0
      %2467 = vmatprep.subr.mxu0 0.0
      %2468 = vmatpush1.msra.mxu0 0.0
      %2469 = vmatprep.subr.mxu0 0.0
      %2470 = vmatpush1.msra.mxu0 0.0
      %2471 = vmatprep.subr.mxu0 0.0
      %2472 = vmatpush1.msra.mxu0 0.0
      %2473 = vmatprep.subr.mxu0 0.0
      %2474 = vmatpush1.msra.mxu0 0.0
      %2475 = vmatprep.subr.mxu0 0.0
      %2476 = vmatpush1.msra.mxu0 0.0
      %2477 = vmatprep.subr.mxu0 0.0
      %2478 = vmatpush1.msra.mxu0 0.0
      %2479 = vmatprep.subr.mxu0 0.0
      %2480 = vmatpush1.msra.mxu0 0.0
      %2481 = vmatprep.subr.mxu0 0.0
      %2482 = vmatpush1.msra.mxu0 0.0
      %2483 = vmatprep.subr.mxu0 0.0
      %2484 = vmatpush1.msra.mxu0 0.0
      %2485 = vmatprep.subr.mxu0 0.0
      %2486 = vmatpush1.msra.mxu0 0.0
      %2487 = vmatprep.subr.mxu0 0.0
      %2488 = vmatpush1.msra.mxu0 0.0
      %2489 = vmatprep.subr.mxu0 0.0
      %2490 = vmatpush1.msra.mxu0 0.0
      %2491 = vmatprep.subr.mxu0 0.0
      %2492 = vmatpush1.msra.mxu0 0.0
      %2493 = vmatprep.mubr.f32.mxu0 0.0
      %2494 = vmatmul.mubr.f32.gmra.mrb[0].mxu0 %v2406
      %v2495 = vpop.f32.mrb[0].mxu0
      %v2496 = vadd.f32 0.0, %v2495
      %v2497 = vpop.f32.mrb[0].mxu0
      %2498 = vmatprep.mubr.f32.mxu0 0.0
      %2499 = vmatmul.mubr.f32.gmra.mrb[0].mxu0 %v2409
      %v2500 = vpop.f32.mrb[0].mxu0
      %v2501 = vadd.f32 0.0, %v2500
      %v2502 = vpop.f32.mrb[0].mxu0
      %2503 = vmatprep.mubr.f32.mxu0 0.0
      %2504 = vmatmul.mubr.f32.gmra.mrb[0].mxu0 %v2412
      %v2505 = vpop.f32.mrb[0].mxu0
      %v2506 = vadd.f32 0.0, %v2505
      %v2507 = vpop.f32.mrb[0].mxu0
      %2508 = vmatprep.mubr.f32.mxu0 0.0
      %2509 = vmatmul.mubr.f32.gmra.mrb[0].mxu0 %v2415
      %v2510 = vpop.f32.mrb[0].mxu0
      %v2511 = vadd.f32 0.0, %v2510
      %v2512 = vpop.f32.mrb[0].mxu0
      %2513 = vmatprep.mubr.f32.mxu0 0.0
      %2514 = vmatmul.mubr.f32.gmra.mrb[0].mxu0 %v2418
      %v2515 = vpop.f32.mrb[0].mxu0
      %v2516 = vadd.f32 0.0, %v2515
      %v2517 = vpop.f32.mrb[0].mxu0
      %2518 = vmatprep.mubr.f32.mxu0 0.0
      %2519 = vmatmul.mubr.f32.gmra.mrb[0].mxu0 %v2421
      %v2520 = vpop.f32.mrb[0].mxu0
      %v2521 = vadd.f32 0.0, %v2520
      %v2522 = vpop.f32.mrb[0].mxu0
      %2523 = vmatprep.mubr.f32.mxu0 0.0
      %2524 = vmatmul.mubr.f32.gmra.mrb[0].mxu0 %v2424
      %v2525 = vpop.f32.mrb[0].mxu0
      %v2526 = vadd.f32 0.0, %v2525
      %v2527 = vpop.f32.mrb[0].mxu0
      %2528 = vmatprep.mubr.f32.mxu0 0.0
      %2529 = vmatmul.mubr.f32.gmra.mrb[0].mxu0 %v2427
      %v2530 = vpop.f32.mrb[0].mxu0
      %v2531 = vadd.f32 0.0, %v2530
      %v2532 = vpop.f32.mrb[0].mxu0
      %2533 = vdwg.mxu0
      %v2534 = vadd.f32 %v2356, %v2496
      %v2535 = vadd.f32 %v2361, %v2501
      %v2536 = vadd.f32 %v2366, %v2506
      %v2537 = vadd.f32 %v2371, %v2511
      %v2538 = vadd.f32 %v2376, %v2516
      %v2539 = vadd.f32 %v2381, %v2521
      %v2540 = vadd.f32 %v2386, %v2526
      %v2541 = vadd.f32 %v2391, %v2531
      %v2542 = vld [vmem:[%s2394 + $0x1] sm:$0xff]
      %v2543 = vld [vmem:[%s2394 + $0x11] sm:$0xff]
      %v2544 = vld [vmem:[%s2394 + $0x21] sm:$0xff]
      %v2545 = vld [vmem:[%s2394 + $0x31] sm:$0xff]
      %v2546 = vld [vmem:[%s2394 + $0x41] sm:$0xff]
      %v2547 = vld [vmem:[%s2394 + $0x51] sm:$0xff]
      %v2548 = vld [vmem:[%s2394 + $0x61] sm:$0xff]
      %v2549 = vld [vmem:[%s2394 + $0x71] sm:$0xff]
      %s2550 = scalar_lea.vmem %s2, 8
      %v2551 = vld [vmem:[%s2550] sm:$0xff]
      %v2553 = vsel %vm819, %v2542, 0
      %v2556 = vsel %vm819, %v2543, 0
      %v2559 = vsel %vm819, %v2544, 0
      %v2562 = vsel %vm819, %v2545, 0
      %v2565 = vsel %vm819, %v2546, 0
      %v2568 = vsel %vm819, %v2547, 0
      %v2571 = vsel %vm819, %v2548, 0
      %v2574 = vsel %vm819, %v2549, 0
      %2576 = vmatprep.subr.mxu0 0.0
      %2577 = vmatpush1.msra.mxu0 %v2551
      %2578 = vmatprep.subr.mxu0 0.0
      %2579 = vmatpush1.msra.mxu0 0.0
      %2580 = vmatprep.subr.mxu0 0.0
      %2581 = vmatpush1.msra.mxu0 0.0
      %2582 = vmatprep.subr.mxu0 0.0
      %2583 = vmatpush1.msra.mxu0 0.0
      %2584 = vmatprep.subr.mxu0 0.0
      %2585 = vmatpush1.msra.mxu0 0.0
      %2586 = vmatprep.subr.mxu0 0.0
      %2587 = vmatpush1.msra.mxu0 0.0
      %2588 = vmatprep.subr.mxu0 0.0
      %2589 = vmatpush1.msra.mxu0 0.0
      %2590 = vmatprep.subr.mxu0 0.0
      %2591 = vmatpush1.msra.mxu0 0.0
      %2592 = vmatprep.subr.mxu0 0.0
      %2593 = vmatpush1.msra.mxu0 0.0
      %2594 = vmatprep.subr.mxu0 0.0
      %2595 = vmatpush1.msra.mxu0 0.0
      %2596 = vmatprep.subr.mxu0 0.0
      %2597 = vmatpush1.msra.mxu0 0.0
      %2598 = vmatprep.subr.mxu0 0.0
      %2599 = vmatpush1.msra.mxu0 0.0
      %2600 = vmatprep.subr.mxu0 0.0
      %2601 = vmatpush1.msra.mxu0 0.0
      %2602 = vmatprep.subr.mxu0 0.0
      %2603 = vmatpush1.msra.mxu0 0.0
      %2604 = vmatprep.subr.mxu0 0.0
      %2605 = vmatpush1.msra.mxu0 0.0
      %2606 = vmatprep.subr.mxu0 0.0
      %2607 = vmatpush1.msra.mxu0 0.0
      %2608 = vmatprep.subr.mxu0 0.0
      %2609 = vmatpush1.msra.mxu0 0.0
      %2610 = vmatprep.subr.mxu0 0.0
      %2611 = vmatpush1.msra.mxu0 0.0
      %2612 = vmatprep.subr.mxu0 0.0
      %2613 = vmatpush1.msra.mxu0 0.0
      %2614 = vmatprep.subr.mxu0 0.0
      %2615 = vmatpush1.msra.mxu0 0.0
      %2616 = vmatprep.subr.mxu0 0.0
      %2617 = vmatpush1.msra.mxu0 0.0
      %2618 = vmatprep.subr.mxu0 0.0
      %2619 = vmatpush1.msra.mxu0 0.0
      %2620 = vmatprep.subr.mxu0 0.0
      %2621 = vmatpush1.msra.mxu0 0.0
      %2622 = vmatprep.subr.mxu0 0.0
      %2623 = vmatpush1.msra.mxu0 0.0
      %2624 = vmatprep.subr.mxu0 0.0
      %2625 = vmatpush1.msra.mxu0 0.0
      %2626 = vmatprep.subr.mxu0 0.0
      %2627 = vmatpush1.msra.mxu0 0.0
      %2628 = vmatprep.subr.mxu0 0.0
      %2629 = vmatpush1.msra.mxu0 0.0
      %2630 = vmatprep.subr.mxu0 0.0
      %2631 = vmatpush1.msra.mxu0 0.0
      %2632 = vmatprep.subr.mxu0 0.0
      %2633 = vmatpush1.msra.mxu0 0.0
      %2634 = vmatprep.subr.mxu0 0.0
      %2635 = vmatpush1.msra.mxu0 0.0
      %2636 = vmatprep.subr.mxu0 0.0
      %2637 = vmatpush1.msra.mxu0 0.0
      %2638 = vmatprep.subr.mxu0 0.0
      %2639 = vmatpush1.msra.mxu0 0.0
      %2640 = vmatprep.mubr.f32.mxu0 0.0
      %2641 = vmatmul.mubr.f32.gmra.mrb[0].mxu0 %v2553
      %v2642 = vpop.f32.mrb[0].mxu0
      %v2643 = vadd.f32 0.0, %v2642
      %v2644 = vpop.f32.mrb[0].mxu0
      %2645 = vmatprep.mubr.f32.mxu0 0.0
      %2646 = vmatmul.mubr.f32.gmra.mrb[0].mxu0 %v2556
      %v2647 = vpop.f32.mrb[0].mxu0
      %v2648 = vadd.f32 0.0, %v2647
      %v2649 = vpop.f32.mrb[0].mxu0
      %2650 = vmatprep.mubr.f32.mxu0 0.0
      %2651 = vmatmul.mubr.f32.gmra.mrb[0].mxu0 %v2559
      %v2652 = vpop.f32.mrb[0].mxu0
      %v2653 = vadd.f32 0.0, %v2652
      %v2654 = vpop.f32.mrb[0].mxu0
      %2655 = vmatprep.mubr.f32.mxu0 0.0
      %2656 = vmatmul.mubr.f32.gmra.mrb[0].mxu0 %v2562
      %v2657 = vpop.f32.mrb[0].mxu0
      %v2658 = vadd.f32 0.0, %v2657
      %v2659 = vpop.f32.mrb[0].mxu0
      %2660 = vmatprep.mubr.f32.mxu0 0.0
      %2661 = vmatmul.mubr.f32.gmra.mrb[0].mxu0 %v2565
      %v2662 = vpop.f32.mrb[0].mxu0
      %v2663 = vadd.f32 0.0, %v2662
      %v2664 = vpop.f32.mrb[0].mxu0
      %2665 = vmatprep.mubr.f32.mxu0 0.0
      %2666 = vmatmul.mubr.f32.gmra.mrb[0].mxu0 %v2568
      %v2667 = vpop.f32.mrb[0].mxu0
      %v2668 = vadd.f32 0.0, %v2667
      %v2669 = vpop.f32.mrb[0].mxu0
      %2670 = vmatprep.mubr.f32.mxu0 0.0
      %2671 = vmatmul.mubr.f32.gmra.mrb[0].mxu0 %v2571
      %v2672 = vpop.f32.mrb[0].mxu0
      %v2673 = vadd.f32 0.0, %v2672
      %v2674 = vpop.f32.mrb[0].mxu0
      %2675 = vmatprep.mubr.f32.mxu0 0.0
      %2676 = vmatmul.mubr.f32.gmra.mrb[0].mxu0 %v2574
      %v2677 = vpop.f32.mrb[0].mxu0
      %v2678 = vadd.f32 0.0, %v2677
      %v2679 = vpop.f32.mrb[0].mxu0
      %2680 = vdwg.mxu0
      %v2681 = vadd.f32 %v2534, %v2643
      %v2682 = vadd.f32 %v2535, %v2648
      %v2683 = vadd.f32 %v2536, %v2653
      %v2684 = vadd.f32 %v2537, %v2658
      %v2685 = vadd.f32 %v2538, %v2663
      %v2686 = vadd.f32 %v2539, %v2668
      %v2687 = vadd.f32 %v2540, %v2673
      %v2688 = vadd.f32 %v2541, %v2678
      %s2689 = scalar_lea.vmem %s204, 128
      %2690 = vst.msk [vmem:[%s2689] sm:$0xff] %vm1422, %v2681
      %2691 = vst.msk [vmem:[%s2689 + $0x8] sm:$0xff] %vm1422, %v2682
      %2692 = vst.msk [vmem:[%s2689 + $0x10] sm:$0xff] %vm1422, %v2683
      %2693 = vst.msk [vmem:[%s2689 + $0x18] sm:$0xff] %vm1422, %v2684
      %2694 = vst.msk [vmem:[%s2689 + $0x20] sm:$0xff] %vm1422, %v2685
      %2695 = vst.msk [vmem:[%s2689 + $0x28] sm:$0xff] %vm1422, %v2686
      %2696 = vst.msk [vmem:[%s2689 + $0x30] sm:$0xff] %vm1422, %v2687
      %2697 = vst.msk [vmem:[%s2689 + $0x38] sm:$0xff] %vm1422, %v2688
      %v2698 = vsel %vm1422, %v2681, 0.0
      %v2699 = vsel %vm1422, %v2682, 0.0
      %v2700 = vadd.f32 %v2698, %v2699
      %v2701 = vsel %vm1422, %v2683, 0.0
      %v2702 = vadd.f32 %v2700, %v2701
      %v2703 = vsel %vm1422, %v2684, 0.0
      %v2704 = vadd.f32 %v2702, %v2703
      %v2705 = vsel %vm1422, %v2685, 0.0
      %v2706 = vadd.f32 %v2704, %v2705
      %v2707 = vsel %vm1422, %v2686, 0.0
      %v2708 = vadd.f32 %v2706, %v2707
      %v2709 = vsel %vm1422, %v2687, 0.0
      %v2710 = vadd.f32 %v2708, %v2709
      %v2711 = vsel %vm1422, %v2688, 0.0
      %v2712 = vadd.f32 %v2710, %v2711
      %v2713 = vrot.slane %v2712, 4
      %v2714 = vadd.f32 %v2712, %v2713
      %v2715 = vrot.slane %v2714, 2
      %v2716 = vadd.f32 %v2714, %v2715
      %v2717 = vrot.slane %v2716, 1
      %v2718 = vadd.f32 %v2716, %v2717
      %v2719 = vadd.f32 %v2085, %v2718
      %v2720 = vmul.f32 %v2681, %v2681
      %v2721 = vmul.f32 %v2682, %v2682
      %v2722 = vmul.f32 %v2683, %v2683
      %v2723 = vmul.f32 %v2684, %v2684
      %v2724 = vmul.f32 %v2685, %v2685
      %v2725 = vmul.f32 %v2686, %v2686
      %v2726 = vmul.f32 %v2687, %v2687
      %v2727 = vmul.f32 %v2688, %v2688
      %v2728 = vsel %vm1422, %v2720, 0.0
      %v2729 = vsel %vm1422, %v2721, 0.0
      %v2730 = vadd.f32 %v2728, %v2729
      %v2731 = vsel %vm1422, %v2722, 0.0
      %v2732 = vadd.f32 %v2730, %v2731
      %v2733 = vsel %vm1422, %v2723, 0.0
      %v2734 = vadd.f32 %v2732, %v2733
      %v2735 = vsel %vm1422, %v2724, 0.0
      %v2736 = vadd.f32 %v2734, %v2735
      %v2737 = vsel %vm1422, %v2725, 0.0
      %v2738 = vadd.f32 %v2736, %v2737
      %v2739 = vsel %vm1422, %v2726, 0.0
      %v2740 = vadd.f32 %v2738, %v2739
      %v2741 = vsel %vm1422, %v2727, 0.0
      %v2742 = vadd.f32 %v2740, %v2741
      %v2743 = vrot.slane %v2742, 4
      %v2744 = vadd.f32 %v2742, %v2743
      %v2745 = vrot.slane %v2744, 2
      %v2746 = vadd.f32 %v2744, %v2745
      %v2747 = vrot.slane %v2746, 1
      %v2748 = vadd.f32 %v2746, %v2747
      %v2749 = vadd.f32 %v2115, %v2748
      %v2750 = vld [vmem:[%s841 + $0x1] sm:$0xff]
      %v2751 = vld [vmem:[%s841 + $0x11] sm:$0xff]
      %v2752 = vld [vmem:[%s841 + $0x21] sm:$0xff]
      %v2753 = vld [vmem:[%s841 + $0x31] sm:$0xff]
      %v2754 = vld [vmem:[%s841 + $0x41] sm:$0xff]
      %v2755 = vld [vmem:[%s841 + $0x51] sm:$0xff]
      %v2756 = vld [vmem:[%s841 + $0x61] sm:$0xff]
      %v2757 = vld [vmem:[%s841 + $0x71] sm:$0xff]
      %s2758 = scalar_lea.vmem %s2, 80
      %v2759 = vld [vmem:[%s2758] sm:$0xff]
      %v2760 = vld [vmem:[%s841 + $0x2] sm:$0xff]
      %v2761 = vld [vmem:[%s841 + $0x12] sm:$0xff]
      %v2762 = vld [vmem:[%s841 + $0x22] sm:$0xff]
      %v2763 = vld [vmem:[%s841 + $0x32] sm:$0xff]
      %v2764 = vld [vmem:[%s841 + $0x42] sm:$0xff]
      %v2765 = vld [vmem:[%s841 + $0x52] sm:$0xff]
      %v2766 = vld [vmem:[%s841 + $0x62] sm:$0xff]
      %v2767 = vld [vmem:[%s841 + $0x72] sm:$0xff]
      %s2768 = scalar_lea.vmem %s2, 64
      %v2769 = vld [vmem:[%s2768] sm:$0xff]
      %v2771 = vsel %vm819, %v2760, 0
      %v2774 = vsel %vm819, %v2761, 0
      %v2777 = vsel %vm819, %v2762, 0
      %v2780 = vsel %vm819, %v2763, 0
      %v2783 = vsel %vm819, %v2764, 0
      %v2786 = vsel %vm819, %v2765, 0
      %v2789 = vsel %vm819, %v2766, 0
      %v2792 = vsel %vm819, %v2767, 0
      %2794 = vmatprep.subr.mxu0 0.0
      %2795 = vmatpush1.msra.mxu0 %v2769
      %2796 = vmatprep.subr.mxu0 0.0
      %2797 = vmatpush1.msra.mxu0 0.0
      %2798 = vmatprep.subr.mxu0 0.0
      %2799 = vmatpush1.msra.mxu0 0.0
      %2800 = vmatprep.subr.mxu0 0.0
      %2801 = vmatpush1.msra.mxu0 0.0
      %2802 = vmatprep.subr.mxu0 0.0
      %2803 = vmatpush1.msra.mxu0 0.0
      %2804 = vmatprep.subr.mxu0 0.0
      %2805 = vmatpush1.msra.mxu0 0.0
      %2806 = vmatprep.subr.mxu0 0.0
      %2807 = vmatpush1.msra.mxu0 0.0
      %2808 = vmatprep.subr.mxu0 0.0
      %2809 = vmatpush1.msra.mxu0 0.0
      %2810 = vmatprep.subr.mxu0 0.0
      %2811 = vmatpush1.msra.mxu0 0.0
      %2812 = vmatprep.subr.mxu0 0.0
      %2813 = vmatpush1.msra.mxu0 0.0
      %2814 = vmatprep.subr.mxu0 0.0
      %2815 = vmatpush1.msra.mxu0 0.0
      %2816 = vmatprep.subr.mxu0 0.0
      %2817 = vmatpush1.msra.mxu0 0.0
      %2818 = vmatprep.subr.mxu0 0.0
      %2819 = vmatpush1.msra.mxu0 0.0
      %2820 = vmatprep.subr.mxu0 0.0
      %2821 = vmatpush1.msra.mxu0 0.0
      %2822 = vmatprep.subr.mxu0 0.0
      %2823 = vmatpush1.msra.mxu0 0.0
      %2824 = vmatprep.subr.mxu0 0.0
      %2825 = vmatpush1.msra.mxu0 0.0
      %2826 = vmatprep.subr.mxu0 0.0
      %2827 = vmatpush1.msra.mxu0 0.0
      %2828 = vmatprep.subr.mxu0 0.0
      %2829 = vmatpush1.msra.mxu0 0.0
      %2830 = vmatprep.subr.mxu0 0.0
      %2831 = vmatpush1.msra.mxu0 0.0
      %2832 = vmatprep.subr.mxu0 0.0
      %2833 = vmatpush1.msra.mxu0 0.0
      %2834 = vmatprep.subr.mxu0 0.0
      %2835 = vmatpush1.msra.mxu0 0.0
      %2836 = vmatprep.subr.mxu0 0.0
      %2837 = vmatpush1.msra.mxu0 0.0
      %2838 = vmatprep.subr.mxu0 0.0
      %2839 = vmatpush1.msra.mxu0 0.0
      %2840 = vmatprep.subr.mxu0 0.0
      %2841 = vmatpush1.msra.mxu0 0.0
      %2842 = vmatprep.subr.mxu0 0.0
      %2843 = vmatpush1.msra.mxu0 0.0
      %2844 = vmatprep.subr.mxu0 0.0
      %2845 = vmatpush1.msra.mxu0 0.0
      %2846 = vmatprep.subr.mxu0 0.0
      %2847 = vmatpush1.msra.mxu0 0.0
      %2848 = vmatprep.subr.mxu0 0.0
      %2849 = vmatpush1.msra.mxu0 0.0
      %2850 = vmatprep.subr.mxu0 0.0
      %2851 = vmatpush1.msra.mxu0 0.0
      %2852 = vmatprep.subr.mxu0 0.0
      %2853 = vmatpush1.msra.mxu0 0.0
      %2854 = vmatprep.subr.mxu0 0.0
      %2855 = vmatpush1.msra.mxu0 0.0
      %2856 = vmatprep.subr.mxu0 0.0
      %2857 = vmatpush1.msra.mxu0 0.0
      %2858 = vmatprep.mubr.f32.mxu0 0.0
      %2859 = vmatmul.mubr.f32.gmra.mrb[0].mxu0 %v2771
      %v2860 = vpop.f32.mrb[0].mxu0
      %v2861 = vadd.f32 0.0, %v2860
      %v2862 = vpop.f32.mrb[0].mxu0
      %2863 = vmatprep.mubr.f32.mxu0 0.0
      %2864 = vmatmul.mubr.f32.gmra.mrb[0].mxu0 %v2774
      %v2865 = vpop.f32.mrb[0].mxu0
      %v2866 = vadd.f32 0.0, %v2865
      %v2867 = vpop.f32.mrb[0].mxu0
      %2868 = vmatprep.mubr.f32.mxu0 0.0
      %2869 = vmatmul.mubr.f32.gmra.mrb[0].mxu0 %v2777
      %v2870 = vpop.f32.mrb[0].mxu0
      %v2871 = vadd.f32 0.0, %v2870
      %v2872 = vpop.f32.mrb[0].mxu0
      %2873 = vmatprep.mubr.f32.mxu0 0.0
      %2874 = vmatmul.mubr.f32.gmra.mrb[0].mxu0 %v2780
      %v2875 = vpop.f32.mrb[0].mxu0
      %v2876 = vadd.f32 0.0, %v2875
      %v2877 = vpop.f32.mrb[0].mxu0
      %2878 = vmatprep.mubr.f32.mxu0 0.0
      %2879 = vmatmul.mubr.f32.gmra.mrb[0].mxu0 %v2783
      %v2880 = vpop.f32.mrb[0].mxu0
      %v2881 = vadd.f32 0.0, %v2880
      %v2882 = vpop.f32.mrb[0].mxu0
      %2883 = vmatprep.mubr.f32.mxu0 0.0
      %2884 = vmatmul.mubr.f32.gmra.mrb[0].mxu0 %v2786
      %v2885 = vpop.f32.mrb[0].mxu0
      %v2886 = vadd.f32 0.0, %v2885
      %v2887 = vpop.f32.mrb[0].mxu0
      %2888 = vmatprep.mubr.f32.mxu0 0.0
      %2889 = vmatmul.mubr.f32.gmra.mrb[0].mxu0 %v2789
      %v2890 = vpop.f32.mrb[0].mxu0
      %v2891 = vadd.f32 0.0, %v2890
      %v2892 = vpop.f32.mrb[0].mxu0
      %2893 = vmatprep.mubr.f32.mxu0 0.0
      %2894 = vmatmul.mubr.f32.gmra.mrb[0].mxu0 %v2792
      %v2895 = vpop.f32.mrb[0].mxu0
      %v2896 = vadd.f32 0.0, %v2895
      %v2897 = vpop.f32.mrb[0].mxu0
      %2898 = vdwg.mxu0
      %v2900 = vsel %vm819, %v2750, 0
      %v2903 = vsel %vm819, %v2751, 0
      %v2906 = vsel %vm819, %v2752, 0
      %v2909 = vsel %vm819, %v2753, 0
      %v2912 = vsel %vm819, %v2754, 0
      %v2915 = vsel %vm819, %v2755, 0
      %v2918 = vsel %vm819, %v2756, 0
      %v2921 = vsel %vm819, %v2757, 0
      %2923 = vmatprep.subr.mxu0 0.0
      %2924 = vmatpush1.msra.mxu0 %v2759
      %2925 = vmatprep.subr.mxu0 0.0
      %2926 = vmatpush1.msra.mxu0 0.0
      %2927 = vmatprep.subr.mxu0 0.0
      %2928 = vmatpush1.msra.mxu0 0.0
      %2929 = vmatprep.subr.mxu0 0.0
      %2930 = vmatpush1.msra.mxu0 0.0
      %2931 = vmatprep.subr.mxu0 0.0
      %2932 = vmatpush1.msra.mxu0 0.0
      %2933 = vmatprep.subr.mxu0 0.0
      %2934 = vmatpush1.msra.mxu0 0.0
      %2935 = vmatprep.subr.mxu0 0.0
      %2936 = vmatpush1.msra.mxu0 0.0
      %2937 = vmatprep.subr.mxu0 0.0
      %2938 = vmatpush1.msra.mxu0 0.0
      %2939 = vmatprep.subr.mxu0 0.0
      %2940 = vmatpush1.msra.mxu0 0.0
      %2941 = vmatprep.subr.mxu0 0.0
      %2942 = vmatpush1.msra.mxu0 0.0
      %2943 = vmatprep.subr.mxu0 0.0
      %2944 = vmatpush1.msra.mxu0 0.0
      %2945 = vmatprep.subr.mxu0 0.0
      %2946 = vmatpush1.msra.mxu0 0.0
      %2947 = vmatprep.subr.mxu0 0.0
      %2948 = vmatpush1.msra.mxu0 0.0
      %2949 = vmatprep.subr.mxu0 0.0
      %2950 = vmatpush1.msra.mxu0 0.0
      %2951 = vmatprep.subr.mxu0 0.0
      %2952 = vmatpush1.msra.mxu0 0.0
      %2953 = vmatprep.subr.mxu0 0.0
      %2954 = vmatpush1.msra.mxu0 0.0
      %2955 = vmatprep.subr.mxu0 0.0
      %2956 = vmatpush1.msra.mxu0 0.0
      %2957 = vmatprep.subr.mxu0 0.0
      %2958 = vmatpush1.msra.mxu0 0.0
      %2959 = vmatprep.subr.mxu0 0.0
      %2960 = vmatpush1.msra.mxu0 0.0
      %2961 = vmatprep.subr.mxu0 0.0
      %2962 = vmatpush1.msra.mxu0 0.0
      %2963 = vmatprep.subr.mxu0 0.0
      %2964 = vmatpush1.msra.mxu0 0.0
      %2965 = vmatprep.subr.mxu0 0.0
      %2966 = vmatpush1.msra.mxu0 0.0
      %2967 = vmatprep.subr.mxu0 0.0
      %2968 = vmatpush1.msra.mxu0 0.0
      %2969 = vmatprep.subr.mxu0 0.0
      %2970 = vmatpush1.msra.mxu0 0.0
      %2971 = vmatprep.subr.mxu0 0.0
      %2972 = vmatpush1.msra.mxu0 0.0
      %2973 = vmatprep.subr.mxu0 0.0
      %2974 = vmatpush1.msra.mxu0 0.0
      %2975 = vmatprep.subr.mxu0 0.0
      %2976 = vmatpush1.msra.mxu0 0.0
      %2977 = vmatprep.subr.mxu0 0.0
      %2978 = vmatpush1.msra.mxu0 0.0
      %2979 = vmatprep.subr.mxu0 0.0
      %2980 = vmatpush1.msra.mxu0 0.0
      %2981 = vmatprep.subr.mxu0 0.0
      %2982 = vmatpush1.msra.mxu0 0.0
      %2983 = vmatprep.subr.mxu0 0.0
      %2984 = vmatpush1.msra.mxu0 0.0
      %2985 = vmatprep.subr.mxu0 0.0
      %2986 = vmatpush1.msra.mxu0 0.0
      %2987 = vmatprep.mubr.f32.mxu0 0.0
      %2988 = vmatmul.mubr.f32.gmra.mrb[0].mxu0 %v2900
      %v2989 = vpop.f32.mrb[0].mxu0
      %v2990 = vadd.f32 %v2861, %v2989
      %v2991 = vpop.f32.mrb[0].mxu0
      %2992 = vmatprep.mubr.f32.mxu0 0.0
      %2993 = vmatmul.mubr.f32.gmra.mrb[0].mxu0 %v2903
      %v2994 = vpop.f32.mrb[0].mxu0
      %v2995 = vadd.f32 %v2866, %v2994
      %v2996 = vpop.f32.mrb[0].mxu0
      %2997 = vmatprep.mubr.f32.mxu0 0.0
      %2998 = vmatmul.mubr.f32.gmra.mrb[0].mxu0 %v2906
      %v2999 = vpop.f32.mrb[0].mxu0
      %v3000 = vadd.f32 %v2871, %v2999
      %v3001 = vpop.f32.mrb[0].mxu0
      %3002 = vmatprep.mubr.f32.mxu0 0.0
      %3003 = vmatmul.mubr.f32.gmra.mrb[0].mxu0 %v2909
      %v3004 = vpop.f32.mrb[0].mxu0
      %v3005 = vadd.f32 %v2876, %v3004
      %v3006 = vpop.f32.mrb[0].mxu0
      %3007 = vmatprep.mubr.f32.mxu0 0.0
      %3008 = vmatmul.mubr.f32.gmra.mrb[0].mxu0 %v2912
      %v3009 = vpop.f32.mrb[0].mxu0
      %v3010 = vadd.f32 %v2881, %v3009
      %v3011 = vpop.f32.mrb[0].mxu0
      %3012 = vmatprep.mubr.f32.mxu0 0.0
      %3013 = vmatmul.mubr.f32.gmra.mrb[0].mxu0 %v2915
      %v3014 = vpop.f32.mrb[0].mxu0
      %v3015 = vadd.f32 %v2886, %v3014
      %v3016 = vpop.f32.mrb[0].mxu0
      %3017 = vmatprep.mubr.f32.mxu0 0.0
      %3018 = vmatmul.mubr.f32.gmra.mrb[0].mxu0 %v2918
      %v3019 = vpop.f32.mrb[0].mxu0
      %v3020 = vadd.f32 %v2891, %v3019
      %v3021 = vpop.f32.mrb[0].mxu0
      %3022 = vmatprep.mubr.f32.mxu0 0.0
      %3023 = vmatmul.mubr.f32.gmra.mrb[0].mxu0 %v2921
      %v3024 = vpop.f32.mrb[0].mxu0
      %v3025 = vadd.f32 %v2896, %v3024
      %v3026 = vpop.f32.mrb[0].mxu0
      %3027 = vdwg.mxu0
      %v3028 = vld [vmem:[%s2394 + $0x1] sm:$0xff]
      %v3029 = vld [vmem:[%s2394 + $0x11] sm:$0xff]
      %v3030 = vld [vmem:[%s2394 + $0x21] sm:$0xff]
      %v3031 = vld [vmem:[%s2394 + $0x31] sm:$0xff]
      %v3032 = vld [vmem:[%s2394 + $0x41] sm:$0xff]
      %v3033 = vld [vmem:[%s2394 + $0x51] sm:$0xff]
      %v3034 = vld [vmem:[%s2394 + $0x61] sm:$0xff]
      %v3035 = vld [vmem:[%s2394 + $0x71] sm:$0xff]
      %s3036 = scalar_lea.vmem %s2, 16
      %v3037 = vld [vmem:[%s3036] sm:$0xff]
      %v3039 = vsel %vm819, %v3028, 0
      %v3042 = vsel %vm819, %v3029, 0
      %v3045 = vsel %vm819, %v3030, 0
      %v3048 = vsel %vm819, %v3031, 0
      %v3051 = vsel %vm819, %v3032, 0
      %v3054 = vsel %vm819, %v3033, 0
      %v3057 = vsel %vm819, %v3034, 0
      %v3060 = vsel %vm819, %v3035, 0
      %3062 = vmatprep.subr.mxu0 0.0
      %3063 = vmatpush1.msra.mxu0 %v3037
      %3064 = vmatprep.subr.mxu0 0.0
      %3065 = vmatpush1.msra.mxu0 0.0
      %3066 = vmatprep.subr.mxu0 0.0
      %3067 = vmatpush1.msra.mxu0 0.0
      %3068 = vmatprep.subr.mxu0 0.0
      %3069 = vmatpush1.msra.mxu0 0.0
      %3070 = vmatprep.subr.mxu0 0.0
      %3071 = vmatpush1.msra.mxu0 0.0
      %3072 = vmatprep.subr.mxu0 0.0
      %3073 = vmatpush1.msra.mxu0 0.0
      %3074 = vmatprep.subr.mxu0 0.0
      %3075 = vmatpush1.msra.mxu0 0.0
      %3076 = vmatprep.subr.mxu0 0.0
      %3077 = vmatpush1.msra.mxu0 0.0
      %3078 = vmatprep.subr.mxu0 0.0
      %3079 = vmatpush1.msra.mxu0 0.0
      %3080 = vmatprep.subr.mxu0 0.0
      %3081 = vmatpush1.msra.mxu0 0.0
      %3082 = vmatprep.subr.mxu0 0.0
      %3083 = vmatpush1.msra.mxu0 0.0
      %3084 = vmatprep.subr.mxu0 0.0
      %3085 = vmatpush1.msra.mxu0 0.0
      %3086 = vmatprep.subr.mxu0 0.0
      %3087 = vmatpush1.msra.mxu0 0.0
      %3088 = vmatprep.subr.mxu0 0.0
      %3089 = vmatpush1.msra.mxu0 0.0
      %3090 = vmatprep.subr.mxu0 0.0
      %3091 = vmatpush1.msra.mxu0 0.0
      %3092 = vmatprep.subr.mxu0 0.0
      %3093 = vmatpush1.msra.mxu0 0.0
      %3094 = vmatprep.subr.mxu0 0.0
      %3095 = vmatpush1.msra.mxu0 0.0
      %3096 = vmatprep.subr.mxu0 0.0
      %3097 = vmatpush1.msra.mxu0 0.0
      %3098 = vmatprep.subr.mxu0 0.0
      %3099 = vmatpush1.msra.mxu0 0.0
      %3100 = vmatprep.subr.mxu0 0.0
      %3101 = vmatpush1.msra.mxu0 0.0
      %3102 = vmatprep.subr.mxu0 0.0
      %3103 = vmatpush1.msra.mxu0 0.0
      %3104 = vmatprep.subr.mxu0 0.0
      %3105 = vmatpush1.msra.mxu0 0.0
      %3106 = vmatprep.subr.mxu0 0.0
      %3107 = vmatpush1.msra.mxu0 0.0
      %3108 = vmatprep.subr.mxu0 0.0
      %3109 = vmatpush1.msra.mxu0 0.0
      %3110 = vmatprep.subr.mxu0 0.0
      %3111 = vmatpush1.msra.mxu0 0.0
      %3112 = vmatprep.subr.mxu0 0.0
      %3113 = vmatpush1.msra.mxu0 0.0
      %3114 = vmatprep.subr.mxu0 0.0
      %3115 = vmatpush1.msra.mxu0 0.0
      %3116 = vmatprep.subr.mxu0 0.0
      %3117 = vmatpush1.msra.mxu0 0.0
      %3118 = vmatprep.subr.mxu0 0.0
      %3119 = vmatpush1.msra.mxu0 0.0
      %3120 = vmatprep.subr.mxu0 0.0
      %3121 = vmatpush1.msra.mxu0 0.0
      %3122 = vmatprep.subr.mxu0 0.0
      %3123 = vmatpush1.msra.mxu0 0.0
      %3124 = vmatprep.subr.mxu0 0.0
      %3125 = vmatpush1.msra.mxu0 0.0
      %3126 = vmatprep.mubr.f32.mxu0 0.0
      %3127 = vmatmul.mubr.f32.gmra.mrb[0].mxu0 %v3039
      %v3128 = vpop.f32.mrb[0].mxu0
      %v3129 = vadd.f32 0.0, %v3128
      %v3130 = vpop.f32.mrb[0].mxu0
      %3131 = vmatprep.mubr.f32.mxu0 0.0
      %3132 = vmatmul.mubr.f32.gmra.mrb[0].mxu0 %v3042
      %v3133 = vpop.f32.mrb[0].mxu0
      %v3134 = vadd.f32 0.0, %v3133
      %v3135 = vpop.f32.mrb[0].mxu0
      %3136 = vmatprep.mubr.f32.mxu0 0.0
      %3137 = vmatmul.mubr.f32.gmra.mrb[0].mxu0 %v3045
      %v3138 = vpop.f32.mrb[0].mxu0
      %v3139 = vadd.f32 0.0, %v3138
      %v3140 = vpop.f32.mrb[0].mxu0
      %3141 = vmatprep.mubr.f32.mxu0 0.0
      %3142 = vmatmul.mubr.f32.gmra.mrb[0].mxu0 %v3048
      %v3143 = vpop.f32.mrb[0].mxu0
      %v3144 = vadd.f32 0.0, %v3143
      %v3145 = vpop.f32.mrb[0].mxu0
      %3146 = vmatprep.mubr.f32.mxu0 0.0
      %3147 = vmatmul.mubr.f32.gmra.mrb[0].mxu0 %v3051
      %v3148 = vpop.f32.mrb[0].mxu0
      %v3149 = vadd.f32 0.0, %v3148
      %v3150 = vpop.f32.mrb[0].mxu0
      %3151 = vmatprep.mubr.f32.mxu0 0.0
      %3152 = vmatmul.mubr.f32.gmra.mrb[0].mxu0 %v3054
      %v3153 = vpop.f32.mrb[0].mxu0
      %v3154 = vadd.f32 0.0, %v3153
      %v3155 = vpop.f32.mrb[0].mxu0
      %3156 = vmatprep.mubr.f32.mxu0 0.0
      %3157 = vmatmul.mubr.f32.gmra.mrb[0].mxu0 %v3057
      %v3158 = vpop.f32.mrb[0].mxu0
      %v3159 = vadd.f32 0.0, %v3158
      %v3160 = vpop.f32.mrb[0].mxu0
      %3161 = vmatprep.mubr.f32.mxu0 0.0
      %3162 = vmatmul.mubr.f32.gmra.mrb[0].mxu0 %v3060
      %v3163 = vpop.f32.mrb[0].mxu0
      %v3164 = vadd.f32 0.0, %v3163
      %v3165 = vpop.f32.mrb[0].mxu0
      %3166 = vdwg.mxu0
      %v3167 = vadd.f32 %v2990, %v3129
      %v3168 = vadd.f32 %v2995, %v3134
      %v3169 = vadd.f32 %v3000, %v3139
      %v3170 = vadd.f32 %v3005, %v3144
      %v3171 = vadd.f32 %v3010, %v3149
      %v3172 = vadd.f32 %v3015, %v3154
      %v3173 = vadd.f32 %v3020, %v3159
      %v3174 = vadd.f32 %v3025, %v3164
      %v3175 = vld [vmem:[%s2394 + $0x2] sm:$0xff]
      %v3176 = vld [vmem:[%s2394 + $0x12] sm:$0xff]
      %v3177 = vld [vmem:[%s2394 + $0x22] sm:$0xff]
      %v3178 = vld [vmem:[%s2394 + $0x32] sm:$0xff]
      %v3179 = vld [vmem:[%s2394 + $0x42] sm:$0xff]
      %v3180 = vld [vmem:[%s2394 + $0x52] sm:$0xff]
      %v3181 = vld [vmem:[%s2394 + $0x62] sm:$0xff]
      %v3182 = vld [vmem:[%s2394 + $0x72] sm:$0xff]
      %v3183 = vld [vmem:[%s2] sm:$0xff]
      %v3185 = vsel %vm819, %v3175, 0
      %v3188 = vsel %vm819, %v3176, 0
      %v3191 = vsel %vm819, %v3177, 0
      %v3194 = vsel %vm819, %v3178, 0
      %v3197 = vsel %vm819, %v3179, 0
      %v3200 = vsel %vm819, %v3180, 0
      %v3203 = vsel %vm819, %v3181, 0
      %v3206 = vsel %vm819, %v3182, 0
      %3208 = vmatprep.subr.mxu0 0.0
      %3209 = vmatpush1.msra.mxu0 %v3183
      %3210 = vmatprep.subr.mxu0 0.0
      %3211 = vmatpush1.msra.mxu0 0.0
      %3212 = vmatprep.subr.mxu0 0.0
      %3213 = vmatpush1.msra.mxu0 0.0
      %3214 = vmatprep.subr.mxu0 0.0
      %3215 = vmatpush1.msra.mxu0 0.0
      %3216 = vmatprep.subr.mxu0 0.0
      %3217 = vmatpush1.msra.mxu0 0.0
      %3218 = vmatprep.subr.mxu0 0.0
      %3219 = vmatpush1.msra.mxu0 0.0
      %3220 = vmatprep.subr.mxu0 0.0
      %3221 = vmatpush1.msra.mxu0 0.0
      %3222 = vmatprep.subr.mxu0 0.0
      %3223 = vmatpush1.msra.mxu0 0.0
      %3224 = vmatprep.subr.mxu0 0.0
      %3225 = vmatpush1.msra.mxu0 0.0
      %3226 = vmatprep.subr.mxu0 0.0
      %3227 = vmatpush1.msra.mxu0 0.0
      %3228 = vmatprep.subr.mxu0 0.0
      %3229 = vmatpush1.msra.mxu0 0.0
      %3230 = vmatprep.subr.mxu0 0.0
      %3231 = vmatpush1.msra.mxu0 0.0
      %3232 = vmatprep.subr.mxu0 0.0
      %3233 = vmatpush1.msra.mxu0 0.0
      %3234 = vmatprep.subr.mxu0 0.0
      %3235 = vmatpush1.msra.mxu0 0.0
      %3236 = vmatprep.subr.mxu0 0.0
      %3237 = vmatpush1.msra.mxu0 0.0
      %3238 = vmatprep.subr.mxu0 0.0
      %3239 = vmatpush1.msra.mxu0 0.0
      %3240 = vmatprep.subr.mxu0 0.0
      %3241 = vmatpush1.msra.mxu0 0.0
      %3242 = vmatprep.subr.mxu0 0.0
      %3243 = vmatpush1.msra.mxu0 0.0
      %3244 = vmatprep.subr.mxu0 0.0
      %3245 = vmatpush1.msra.mxu0 0.0
      %3246 = vmatprep.subr.mxu0 0.0
      %3247 = vmatpush1.msra.mxu0 0.0
      %3248 = vmatprep.subr.mxu0 0.0
      %3249 = vmatpush1.msra.mxu0 0.0
      %3250 = vmatprep.subr.mxu0 0.0
      %3251 = vmatpush1.msra.mxu0 0.0
      %3252 = vmatprep.subr.mxu0 0.0
      %3253 = vmatpush1.msra.mxu0 0.0
      %3254 = vmatprep.subr.mxu0 0.0
      %3255 = vmatpush1.msra.mxu0 0.0
      %3256 = vmatprep.subr.mxu0 0.0
      %3257 = vmatpush1.msra.mxu0 0.0
      %3258 = vmatprep.subr.mxu0 0.0
      %3259 = vmatpush1.msra.mxu0 0.0
      %3260 = vmatprep.subr.mxu0 0.0
      %3261 = vmatpush1.msra.mxu0 0.0
      %3262 = vmatprep.subr.mxu0 0.0
      %3263 = vmatpush1.msra.mxu0 0.0
      %3264 = vmatprep.subr.mxu0 0.0
      %3265 = vmatpush1.msra.mxu0 0.0
      %3266 = vmatprep.subr.mxu0 0.0
      %3267 = vmatpush1.msra.mxu0 0.0
      %3268 = vmatprep.subr.mxu0 0.0
      %3269 = vmatpush1.msra.mxu0 0.0
      %3270 = vmatprep.subr.mxu0 0.0
      %3271 = vmatpush1.msra.mxu0 0.0
      %3272 = vmatprep.mubr.f32.mxu0 0.0
      %3273 = vmatmul.mubr.f32.gmra.mrb[0].mxu0 %v3185
      %v3274 = vpop.f32.mrb[0].mxu0
      %v3275 = vadd.f32 0.0, %v3274
      %v3276 = vpop.f32.mrb[0].mxu0
      %3277 = vmatprep.mubr.f32.mxu0 0.0
      %3278 = vmatmul.mubr.f32.gmra.mrb[0].mxu0 %v3188
      %v3279 = vpop.f32.mrb[0].mxu0
      %v3280 = vadd.f32 0.0, %v3279
      %v3281 = vpop.f32.mrb[0].mxu0
      %3282 = vmatprep.mubr.f32.mxu0 0.0
      %3283 = vmatmul.mubr.f32.gmra.mrb[0].mxu0 %v3191
      %v3284 = vpop.f32.mrb[0].mxu0
      %v3285 = vadd.f32 0.0, %v3284
      %v3286 = vpop.f32.mrb[0].mxu0
      %3287 = vmatprep.mubr.f32.mxu0 0.0
      %3288 = vmatmul.mubr.f32.gmra.mrb[0].mxu0 %v3194
      %v3289 = vpop.f32.mrb[0].mxu0
      %v3290 = vadd.f32 0.0, %v3289
      %v3291 = vpop.f32.mrb[0].mxu0
      %3292 = vmatprep.mubr.f32.mxu0 0.0
      %3293 = vmatmul.mubr.f32.gmra.mrb[0].mxu0 %v3197
      %v3294 = vpop.f32.mrb[0].mxu0
      %v3295 = vadd.f32 0.0, %v3294
      %v3296 = vpop.f32.mrb[0].mxu0
      %3297 = vmatprep.mubr.f32.mxu0 0.0
      %3298 = vmatmul.mubr.f32.gmra.mrb[0].mxu0 %v3200
      %v3299 = vpop.f32.mrb[0].mxu0
      %v3300 = vadd.f32 0.0, %v3299
      %v3301 = vpop.f32.mrb[0].mxu0
      %3302 = vmatprep.mubr.f32.mxu0 0.0
      %3303 = vmatmul.mubr.f32.gmra.mrb[0].mxu0 %v3203
      %v3304 = vpop.f32.mrb[0].mxu0
      %v3305 = vadd.f32 0.0, %v3304
      %v3306 = vpop.f32.mrb[0].mxu0
      %3307 = vmatprep.mubr.f32.mxu0 0.0
      %3308 = vmatmul.mubr.f32.gmra.mrb[0].mxu0 %v3206
      %v3309 = vpop.f32.mrb[0].mxu0
      %v3310 = vadd.f32 0.0, %v3309
      %v3311 = vpop.f32.mrb[0].mxu0
      %3312 = vdwg.mxu0
      %v3313 = vadd.f32 %v3167, %v3275
      %v3314 = vadd.f32 %v3168, %v3280
      %v3315 = vadd.f32 %v3169, %v3285
      %v3316 = vadd.f32 %v3170, %v3290
      %v3317 = vadd.f32 %v3171, %v3295
      %v3318 = vadd.f32 %v3172, %v3300
      %v3319 = vadd.f32 %v3173, %v3305
      %v3320 = vadd.f32 %v3174, %v3310
      %s3321 = scalar_lea.vmem %s204, 192
      %3322 = vst.msk [vmem:[%s3321] sm:$0xff] %vm1422, %v3313
      %3323 = vst.msk [vmem:[%s3321 + $0x8] sm:$0xff] %vm1422, %v3314
      %3324 = vst.msk [vmem:[%s3321 + $0x10] sm:$0xff] %vm1422, %v3315
      %3325 = vst.msk [vmem:[%s3321 + $0x18] sm:$0xff] %vm1422, %v3316
      %3326 = vst.msk [vmem:[%s3321 + $0x20] sm:$0xff] %vm1422, %v3317
      %3327 = vst.msk [vmem:[%s3321 + $0x28] sm:$0xff] %vm1422, %v3318
      %3328 = vst.msk [vmem:[%s3321 + $0x30] sm:$0xff] %vm1422, %v3319
      %3329 = vst.msk [vmem:[%s3321 + $0x38] sm:$0xff] %vm1422, %v3320
      %v3330 = vsel %vm1422, %v3313, 0.0
      %v3331 = vsel %vm1422, %v3314, 0.0
      %v3332 = vadd.f32 %v3330, %v3331
      %v3333 = vsel %vm1422, %v3315, 0.0
      %v3334 = vadd.f32 %v3332, %v3333
      %v3335 = vsel %vm1422, %v3316, 0.0
      %v3336 = vadd.f32 %v3334, %v3335
      %v3337 = vsel %vm1422, %v3317, 0.0
      %v3338 = vadd.f32 %v3336, %v3337
      %v3339 = vsel %vm1422, %v3318, 0.0
      %v3340 = vadd.f32 %v3338, %v3339
      %v3341 = vsel %vm1422, %v3319, 0.0
      %v3342 = vadd.f32 %v3340, %v3341
      %v3343 = vsel %vm1422, %v3320, 0.0
      %v3344 = vadd.f32 %v3342, %v3343
      %v3345 = vrot.slane %v3344, 4
      %v3346 = vadd.f32 %v3344, %v3345
      %v3347 = vrot.slane %v3346, 2
      %v3348 = vadd.f32 %v3346, %v3347
      %v3349 = vrot.slane %v3348, 1
      %v3350 = vadd.f32 %v3348, %v3349
      %v3351 = vadd.f32 %v2719, %v3350
      %v3352 = vmul.f32 %v3313, %v3313
      %v3353 = vmul.f32 %v3314, %v3314
      %v3354 = vmul.f32 %v3315, %v3315
      %v3355 = vmul.f32 %v3316, %v3316
      %v3356 = vmul.f32 %v3317, %v3317
      %v3357 = vmul.f32 %v3318, %v3318
      %v3358 = vmul.f32 %v3319, %v3319
      %v3359 = vmul.f32 %v3320, %v3320
      %v3360 = vsel %vm1422, %v3352, 0.0
      %v3361 = vsel %vm1422, %v3353, 0.0
      %v3362 = vadd.f32 %v3360, %v3361
      %v3363 = vsel %vm1422, %v3354, 0.0
      %v3364 = vadd.f32 %v3362, %v3363
      %v3365 = vsel %vm1422, %v3355, 0.0
      %v3366 = vadd.f32 %v3364, %v3365
      %v3367 = vsel %vm1422, %v3356, 0.0
      %v3368 = vadd.f32 %v3366, %v3367
      %v3369 = vsel %vm1422, %v3357, 0.0
      %v3370 = vadd.f32 %v3368, %v3369
      %v3371 = vsel %vm1422, %v3358, 0.0
      %v3372 = vadd.f32 %v3370, %v3371
      %v3373 = vsel %vm1422, %v3359, 0.0
      %v3374 = vadd.f32 %v3372, %v3373
      %v3375 = vrot.slane %v3374, 4
      %v3376 = vadd.f32 %v3374, %v3375
      %v3377 = vrot.slane %v3376, 2
      %v3378 = vadd.f32 %v3376, %v3377
      %v3379 = vrot.slane %v3378, 1
      %v3380 = vadd.f32 %v3378, %v3379
      %v3381 = vadd.f32 %v2749, %v3380
      %vm3382 = vcmask 24576
      %3383 = vst.msk [vmem:[%s208] sm:$0x1] %vm3382, %v3351
      %3384 = vst.msk [vmem:[%s208 + $0x1] sm:$0x1] %vm3382, %v3381
      %p3385 = scmp.lt.s32.totalorder %s16, 1
      %s3386 = scalar_select %p3385, %s16, 1
      %s3387 = smul.addr %s3386, 32
      %s3388 = smul.addr %s3387, 8
      %s3389 = scalar_lea.vmem %s3, %s3388
      %p3390 = scmp.lt.s32.totalorder %s16, 1
      %s3391 = scalar_select %p3390, %s16, 1
      %s3392 = smul.addr %s3391, 2
      %s3393 = scalar_lea.vmem %s4, %s3392
      // Predicated region
      $region33: #{unet_innermost_forward.2} parent=31 // pred_check
        %p3394 = pneg %p102
      $region34: #{unet_innermost_forward.2} parent=31 // pred_check_branch
        %3396 = sbr.rel (%p3394) target = $region36
      $region35: #{unet_innermost_forward.2} parent=31 // pred_region
        _
      $region36: #{unet_innermost_forward.2} parent=31 // pred_fallthru
        _
      // Predicated region
      $region37: #{unet_innermost_forward.2} parent=31 // pred_check
        %p3397 = pneg %p128
      $region38: #{unet_innermost_forward.2} parent=31 // pred_check_branch
        %3399 = sbr.rel (%p3397) target = $region40
      $region39: #{unet_innermost_forward.2} parent=31 // pred_region
        _
      $region40: #{unet_innermost_forward.2} parent=31 // pred_fallthru
        _
    $region32: #{unet_innermost_forward.2} parent=5 // pred_fallthru
      _
    %p3400 = scmp.le.s32.totalorder 2, %s11
    // Predicated region
    $region41: #{unet_innermost_forward.2} parent=5 // pred_check
      %p3401 = pneg %p3400
    $region42: #{unet_innermost_forward.2} parent=5 // pred_check_branch
      %3403 = sbr.rel (%p3401) target = $region44
    $region43: #{unet_innermost_forward.2} parent=5 // pred_region
      %s3404 = ssub.s32 %s11, 2
      // Predicated region
      $region45: #{unet_innermost_forward.2} parent=43 // pred_check
        %p3405 = pneg %p108
      $region46: #{unet_innermost_forward.2} parent=43 // pred_check_branch
        %3407 = sbr.rel (%p3405) target = $region48
      $region47: #{unet_innermost_forward.2} parent=43 // pred_region
        %p3408 = scmp.lt.s32.totalorder %s17, 1
        %s3409 = scalar_select %p3408, %s17, 1
        %s3410 = smul.addr %s3409, 32
        %s3411 = smul.addr %s3410, 8
        %s3412 = scalar_lea.vmem %s3, %s3411
      $region48: #{unet_innermost_forward.2} parent=43 // pred_fallthru
        _
      // Predicated region
      $region49: #{unet_innermost_forward.2} parent=43 // pred_check
        %p3413 = pneg %p134
      $region50: #{unet_innermost_forward.2} parent=43 // pred_check_branch
        %3415 = sbr.rel (%p3413) target = $region52
      $region51: #{unet_innermost_forward.2} parent=43 // pred_region
        %p3416 = scmp.lt.s32.totalorder %s17, 1
        %s3417 = scalar_select %p3416, %s17, 1
        %s3418 = smul.addr %s3417, 2
        %s3419 = scalar_lea.vmem %s4, %s3418
      $region52: #{unet_innermost_forward.2} parent=43 // pred_fallthru
        _
    $region44: #{unet_innermost_forward.2} parent=5 // pred_fallthru
      _
  $region6: #{unet_innermost_forward.2} parent=0 // loop_footer
    %s15 = sadd.s32 1, %s11
  $region7: #{unet_innermost_forward.2} parent=0 // loop_footer_branch
    %10 = sbr.rel target = $region3
  $region8: #{unet_innermost_forward.2} parent=0 // loop_exit
    _

</llo_original>
